<compile_context>
chip_gen: v7x
topology: tpu7x:2x2x1
jax: 0.10.0
libtpu: 0.0.40
codegen_flags: <defaults>
</compile_context>

<pallas_src>
import functools
import math

import jax
import jax.numpy as jnp
from jax import lax
from jax.experimental import pallas as pl
from jax.experimental.pallas import tpu as pltpu


# ------------------------------ helpers ------------------------------------

def _full_spec(shape):
    """BlockSpec covering the whole array, resident across the grid."""
    return pl.BlockSpec(tuple(shape), lambda *_, n=len(shape): (0,) * n)


def _stacked_spec(shape):
    """BlockSpec for arrays stacked along a leading 'entity-type' axis."""
    n_rest = len(shape) - 1
    return pl.BlockSpec((1,) + tuple(shape[1:]),
                        lambda e, n=n_rest: (e,) + (0,) * n)


# -------------- kernel 1: merged drug+target entity embedding ---------------
# feature Linear + deepwalk Linear + graph-transformer branch, grid=(2,)
# (grid step 0 = drugs, 1 = targets), output (2, 3 views, N_pad, H).

def _entity_embed_kernel(feats_ref, walks_ref, sim_ref,
                         wf_ref, bf_ref, ww_ref, bw_ref, gwin_ref, gbin_ref,
                         *rest, n_gt_layers):
    layer_refs = rest[:2 * n_gt_layers]
    o_ref = rest[2 * n_gt_layers]

    feats = feats_ref[0]                      # (N_pad, F_pad)
    walks = walks_ref[0]                      # (N_pad, 128)
    sim = sim_ref[0]                          # (N_pad, N_pad)

    # view 0: entity feature projection (nn.Linear, no activation)
    o_ref[0, 0] = (jnp.dot(feats, wf_ref[0], preferred_element_type=jnp.float32)
                   + bf_ref[0])
    # view 2: deepwalk embedding projection
    o_ref[0, 2] = (jnp.dot(walks, ww_ref[0], preferred_element_type=jnp.float32)
                   + bw_ref[0])

    # view 1: graph-transformer branch.
    # TODO(synk): GraphTransformer_dru / GraphTransformer_dis are not defined
    # in the provided source; approximated as row-normalized-adjacency message
    # passing (ignores gt_head), same approximation as the previous version.
    a_norm = sim / (jnp.sum(jnp.abs(sim), axis=-1, keepdims=True) + 1e-6)
    h = jnp.dot(sim, gwin_ref[0], preferred_element_type=jnp.float32) + gbin_ref[0]
    h = jnp.maximum(h, 0.0)
    for l in range(n_gt_layers):
        w_l = layer_refs[2 * l][0]
        b_l = layer_refs[2 * l + 1][0]
        agg = jnp.dot(a_norm, h, preferred_element_type=jnp.float32)
        h = jnp.maximum(
            jnp.dot(agg, w_l, preferred_element_type=jnp.float32) + b_l, 0.0)
    o_ref[0, 1] = h


def entity_embed_pair(drug_feats, target_feats, drug_sim, target_sim,
                      drug_walks, target_walks,
                      lin1, lin2, lin3, lin4, drug_gat, target_gat):
    nd, f_d = drug_feats.shape
    nt, f_t = target_feats.shape
    H = lin1[0].shape[1]
    G = drug_gat["w_in"].shape[1]             # gt_out_dim (== H in this model)
    n_gt = len(drug_gat["ws"])
    assert len(target_gat["ws"]) == n_gt

    N_pad = max(8, ((max(nd, nt) + 7) // 8) * 8)
    F = max(f_d, f_t)
    W = drug_walks.shape[1]
    f32 = jnp.float32

    # zero-padded, entity-type-stacked inputs / weights (exact for valid rows)
    feats = jnp.zeros((2, N_pad, F), f32)
    feats = feats.at[0, :nd, :f_d].set(drug_feats).at[1, :nt, :f_t].set(target_feats)
    walks = jnp.zeros((2, N_pad, W), f32)
    walks = walks.at[0, :nd].set(drug_walks).at[1, :nt].set(target_walks)
    sims = jnp.zeros((2, N_pad, N_pad), f32)
    sims = sims.at[0, :nd, :nd].set(drug_sim).at[1, :nt, :nt].set(target_sim)

    wf = jnp.zeros((2, F, H), f32).at[0, :f_d].set(lin1[0]).at[1, :f_t].set(lin2[0])
    bf = jnp.stack([lin1[1], lin2[1]]).reshape(2, 1, H)
    ww = jnp.stack([lin3[0], lin4[0]])                       # (2, 128, H)
    bw = jnp.stack([lin3[1], lin4[1]]).reshape(2, 1, H)
    gwin = (jnp.zeros((2, N_pad, G), f32)
            .at[0, :nd].set(drug_gat["w_in"]).at[1, :nt].set(target_gat["w_in"]))
    gbin = jnp.stack([drug_gat["b_in"], target_gat["b_in"]]).reshape(2, 1, G)

    args = [feats, walks, sims, wf, bf, ww, bw, gwin, gbin]
    for i in range(n_gt):
        args.append(jnp.stack([drug_gat["ws"][i], target_gat["ws"][i]]))
        args.append(jnp.stack([drug_gat["bs"][i], target_gat["bs"][i]]).reshape(2, 1, G))

    return pl.pallas_call(
        functools.partial(_entity_embed_kernel, n_gt_layers=n_gt),
        out_shape=jax.ShapeDtypeStruct((2, 3, N_pad, H), jnp.float32),
        grid=(2,),
        in_specs=[_stacked_spec(a.shape) for a in args],
        out_specs=pl.BlockSpec((1, 3, N_pad, H), lambda e: (e, 0, 0, 0)),
        compiler_params=pltpu.CompilerParams(dimension_semantics=("parallel",)),
    )(*args)


# --------- kernel 2: whole transformer encoder (all layers, all views) ------
# post-norm nn.TransformerEncoderLayer semantics; outputs are packed
# (entity, 3*H) slabs, one per 3-view group (drug / target).

def _encoder_stack_kernel(x_ref, wqkv_ref, bqkv_ref, wo_ref, bo_ref,
                          f1w_ref, f1b_ref, f2w_ref, f2b_ref,
                          g1_ref, b1_ref, g2_ref, b2_ref,
                          *out_refs, num_heads, n_layers, n_groups):
    B, S, d = x_ref.shape
    dh = d // num_heads
    scale = 1.0 / math.sqrt(dh)

    x2 = x_ref[...].reshape(B * S, d)                       # (BS, d)
    for l in range(n_layers):
        # ---- fused QKV projection over all views at once ----
        qkv = (jnp.dot(x2, wqkv_ref[l], preferred_element_type=jnp.float32)
               + bqkv_ref[l])                                # (BS, 3d)
        q = (qkv[:, :d] * scale).reshape(B, S, d)
        k = qkv[:, d:2 * d].reshape(B, S, d)
        v = qkv[:, 2 * d:].reshape(B, S, d)

        # ---- per-head attention, batched over the view axis ----
        heads = []
        for hh in range(num_heads):
            lo, hi = hh * dh, (hh + 1) * dh
            qh, kh, vh = q[..., lo:hi], k[..., lo:hi], v[..., lo:hi]   # (B,S,dh)
            s = jnp.einsum('bqe,bke->bqk', qh, kh,
                           preferred_element_type=jnp.float32)         # (B,S,S)
            s = s - jnp.max(s, axis=-1, keepdims=True)
            p = jnp.exp(s)
            p = p * pl.reciprocal(jnp.sum(p, axis=-1, keepdims=True), approx=True)
            heads.append(jnp.einsum('bqk,bke->bqe', p, vh,
                                    preferred_element_type=jnp.float32))
        attn = jnp.concatenate(heads, axis=-1).reshape(B * S, d)
        attn = (jnp.dot(attn, wo_ref[l], preferred_element_type=jnp.float32)
                + bo_ref[l])                                 # single out-proj

        # ---- residual + LayerNorm 1 (dropout = identity in eval) ----
        h1 = x2 + attn
        mu = jnp.mean(h1, axis=-1, keepdims=True)
        var = jnp.mean((h1 - mu) ** 2, axis=-1, keepdims=True)
        h1 = (h1 - mu) * lax.rsqrt(var + 1e-5) * g1_ref[l] + b1_ref[l]

        # ---- feed-forward over all B*S rows at once (bf16 MXU, f32 acc) ----
        ff = jnp.dot(h1.astype(jnp.bfloat16), f1w_ref[l],
                     preferred_element_type=jnp.float32) + f1b_ref[l]
        ff = jnp.maximum(ff, 0.0)
        ff = jnp.dot(ff.astype(jnp.bfloat16), f2w_ref[l],
                     preferred_element_type=jnp.float32) + f2b_ref[l]

        # ---- residual + LayerNorm 2 ----
        h2 = h1 + ff
        mu = jnp.mean(h2, axis=-1, keepdims=True)
        var = jnp.mean((h2 - mu) ** 2, axis=-1, keepdims=True)
        h2 = (h2 - mu) * lax.rsqrt(var + 1e-5) * g2_ref[l] + b2_ref[l]
        x2 = h2

    # ---- pack directly to the downstream (entity, 3*H) layout ----
    x3 = x2.reshape(B, S, d)
    for g in range(n_groups):
        out_refs[g][...] = jnp.concatenate(
            [x3[3 * g], x3[3 * g + 1], x3[3 * g + 2]], axis=-1)


def transformer_encode(x_bvd, layers, num_heads, n_groups):
    """x_bvd: (3*n_groups, S, d). Returns n_groups packed (S, 3*d) arrays."""
    B, S, d = x_bvd.shape
    assert B == 3 * n_groups
    L = len(layers)

    def stack(key):
        return jnp.stack([lp[key] for lp in layers], axis=0)

    ff = layers[0]["ff1_w"].shape[1]
    wqkv = stack("in_proj_w")                                 # (L, d, 3d)
    bqkv = stack("in_proj_b").reshape(L, 1, 3 * d)
    wo = stack("out_proj_w")                                  # (L, d, d)
    bo = stack("out_proj_b").reshape(L, 1, d)
    f1w = stack("ff1_w").astype(jnp.bfloat16)                 # (L, d, ff) bf16
    f1b = stack("ff1_b").reshape(L, 1, ff)
    f2w = stack("ff2_w").astype(jnp.bfloat16)                 # (L, ff, d) bf16
    f2b = stack("ff2_b").reshape(L, 1, d)
    g1 = stack("ln1_g").reshape(L, 1, d)
    b1 = stack("ln1_b").reshape(L, 1, d)
    g2 = stack("ln2_g").reshape(L, 1, d)
    b2 = stack("ln2_b").reshape(L, 1, d)

    args = [x_bvd, wqkv, bqkv, wo, bo, f1w, f1b, f2w, f2b, g1, b1, g2, b2]
    out_shape = tuple(jax.ShapeDtypeStruct((S, 3 * d), jnp.float32)
                      for _ in range(n_groups))

    outs = pl.pallas_call(
        functools.partial(_encoder_stack_kernel, num_heads=num_heads,
                          n_layers=L, n_groups=n_groups),
        out_shape=out_shape,
        grid=(1,),
        in_specs=[_full_spec(a.shape) for a in args],
        out_specs=tuple(_full_spec((S, 3 * d)) for _ in range(n_groups)),
        compiler_params=pltpu.CompilerParams(dimension_semantics=("arbitrary",)),
    )(*args)
    if not isinstance(outs, (tuple, list)):
        outs = (outs,)
    return tuple(outs)


# ------- kernel 3: one-hot-matmul ddi gather + pair interaction + MLP -------

def _pair_kernel(didx_ref, tidx_ref, dr_ref, pr_ref,
                 w1_ref, b1_ref, w2_ref, b2_ref, w3_ref, b3_ref, o_ref):
    tile_p = didx_ref.shape[0]
    Sd = dr_ref.shape[0]
    St = pr_ref.shape[0]

    # vectorized gather: one-hot rows built from the VMEM index column,
    # then a (tile_p, S) x (S, 3H) matmul rides the MXU.
    d_oh = (didx_ref[...] ==
            lax.broadcasted_iota(jnp.int32, (tile_p, Sd), 1)).astype(jnp.float32)
    t_oh = (tidx_ref[...] ==
            lax.broadcasted_iota(jnp.int32, (tile_p, St), 1)).astype(jnp.float32)
    dg = jnp.dot(d_oh, dr_ref[...], preferred_element_type=jnp.float32)
    tg = jnp.dot(t_oh, pr_ref[...], preferred_element_type=jnp.float32)
    x = dg * tg                                              # (tile_p, 3H)

    h = jnp.maximum(
        jnp.dot(x, w1_ref[...], preferred_element_type=jnp.float32) + b1_ref[...], 0.0)
    h = jnp.maximum(
        jnp.dot(h, w2_ref[...], preferred_element_type=jnp.float32) + b2_ref[...], 0.0)
    o_ref[...] = (jnp.dot(h, w3_ref[...], preferred_element_type=jnp.float32)
                  + b3_ref[...])                             # lane-dense 128-wide


def pair_mlp_gather(dr_flat, pr_flat, ddi, mp, tile_p=128):
    P = ddi.shape[0]
    D3 = dr_flat.shape[1]
    H = mp["w1"].shape[1]
    L = mp["w3"].shape[1]

    tile_p = min(tile_p, max(8, ((P + 7) // 8) * 8))
    n_tiles = pl.cdiv(P, tile_p)
    P_pad = n_tiles * tile_p

    didx = jnp.zeros((P_pad, 1), jnp.int32).at[:P, 0].set(ddi[:, 0].astype(jnp.int32))
    tidx = jnp.zeros((P_pad, 1), jnp.int32).at[:P, 0].set(ddi[:, 1].astype(jnp.int32))

    L_pad = 128                                              # lane-dense output slab
    w3p = jnp.zeros((H, L_pad), jnp.float32).at[:, :L].set(mp["w3"])
    b3p = jnp.zeros((1, L_pad), jnp.float32).at[0, :L].set(mp["b3"])

    out = pl.pallas_call(
        _pair_kernel,
        out_shape=jax.ShapeDtypeStruct((P_pad, L_pad), jnp.float32),
        grid=(n_tiles,),
        in_specs=[pl.BlockSpec((tile_p, 1), lambda i: (i, 0)),
                  pl.BlockSpec((tile_p, 1), lambda i: (i, 0)),
                  _full_spec(dr_flat.shape), _full_spec(pr_flat.shape),
                  _full_spec((D3, H)), _full_spec((1, H)),
                  _full_spec((H, H)), _full_spec((1, H)),
                  _full_spec((H, L_pad)), _full_spec((1, L_pad))],
        out_specs=pl.BlockSpec((tile_p, L_pad), lambda i: (i, 0)),
        compiler_params=pltpu.CompilerParams(dimension_semantics=("parallel",)),
    )(didx, tidx, dr_flat, pr_flat,
      mp["w1"], mp["b1"].reshape(1, -1),
      mp["w2"], mp["b2"].reshape(1, -1), w3p, b3p)
    return out[:P, :L]


# ------------------------- parameter initialization ------------------------

def init_linear(key, in_dim, out_dim):
    kw, kb = jax.random.split(key)
    bound = 1.0 / math.sqrt(in_dim)
    w = jax.random.uniform(kw, (in_dim, out_dim), jnp.float32, -bound, bound)
    b = jax.random.uniform(kb, (out_dim,), jnp.float32, -bound, bound)
    return w, b


def init_encoder_layer(key, d, ff):
    ks = jax.random.split(key, 4)
    in_w, in_b = init_linear(ks[0], d, 3 * d)
    out_w, out_b = init_linear(ks[1], d, d)
    ff1_w, ff1_b = init_linear(ks[2], d, ff)
    ff2_w, ff2_b = init_linear(ks[3], ff, d)
    return dict(in_proj_w=in_w, in_proj_b=in_b,
                out_proj_w=out_w, out_proj_b=out_b,
                ff1_w=ff1_w, ff1_b=ff1_b, ff2_w=ff2_w, ff2_b=ff2_b,
                ln1_g=jnp.ones((d,), jnp.float32), ln1_b=jnp.zeros((d,), jnp.float32),
                ln2_g=jnp.ones((d,), jnp.float32), ln2_b=jnp.zeros((d,), jnp.float32))


def init_graph_transformer(key, n_nodes, out_dim, n_layers):
    ks = jax.random.split(key, n_layers + 1)
    w_in, b_in = init_linear(ks[0], n_nodes, out_dim)
    ws, bs = [], []
    for i in range(n_layers):
        w, b = init_linear(ks[i + 1], out_dim, out_dim)
        ws.append(w)
        bs.append(b)
    return dict(w_in=w_in, b_in=b_in, ws=ws, bs=bs)


def init_params(key, cfg):
    ks = jax.random.split(key, 11)
    p = {}
    p["lin1"] = init_linear(ks[0], cfg["drug_in_dim"], cfg["embed_size"])
    p["lin2"] = init_linear(ks[1], cfg["target_in_dim"], cfg["embed_size"])
    p["lin3"] = init_linear(ks[2], 128, cfg["embed_size"])
    p["lin4"] = init_linear(ks[3], 128, cfg["embed_size"])
    p["drug_gat"] = init_graph_transformer(ks[4], cfg["num_drugs"],
                                           cfg["gt_out_dim"], cfg["gt_layer"])
    p["target_gat"] = init_graph_transformer(ks[5], cfg["num_targets"],
                                             cfg["gt_out_dim"], cfg["gt_layer"])
    # nn.TransformerEncoder deep-copies one encoder_layer -> every layer of both
    # encoders starts from identical weights; mirror that (shared dicts).
    enc_layer = init_encoder_layer(ks[6], cfg["num_hiddens"], cfg["dim_feedforward"])
    p["drug_trans"] = [enc_layer for _ in range(cfg["num_layers"])]
    p["target_trans"] = [enc_layer for _ in range(cfg["num_layers"])]
    w1, b1 = init_linear(ks[7], cfg["num_hiddens"] * 3, cfg["num_hiddens"])
    w2, b2 = init_linear(ks[8], cfg["num_hiddens"], cfg["num_hiddens"])
    w3, b3 = init_linear(ks[9], cfg["num_hiddens"], cfg["labels"])
    p["mlp"] = dict(w1=w1, b1=b1, w2=w2, b2=b2, w3=w3, b3=b3)
    p["reg"] = init_linear(ks[10], 4, 2)   # present in __init__ but unused in forward
    return p


# ------------------------------ forward pass -------------------------------

def multi_model5_plus_forward(params, cfg, drug_feats, target_feats,
                              drug_sim_graphs, target_sim_graphs,
                              walks_embedding, ddi):
    nd, nt = cfg["num_drugs"], cfg["num_targets"]
    H = cfg["num_hiddens"]

    # (2 entity types, 3 views, N_pad, H); views: 0 = feature linear,
    # 1 = graph branch, 2 = walks   (matches torch.stack order)
    emb = entity_embed_pair(
        drug_feats, target_feats, drug_sim_graphs, target_sim_graphs,
        walks_embedding[:nd], walks_embedding[nd:nd + nt],
        params["lin1"], params["lin2"], params["lin3"], params["lin4"],
        params["drug_gat"], params["target_gat"])
    N_pad = emb.shape[2]

    # Both encoders share identical initial weights; when entity counts also
    # match, batch them into a single encoder pass (exact: attention over the
    # entity axis is independent across the view axis).
    shared = (nd == nt and nd == N_pad
              and len(params["drug_trans"]) == len(params["target_trans"])
              and all(a is b for a, b in zip(params["drug_trans"],
                                             params["target_trans"])))
    if shared:
        x = emb.reshape(6, N_pad, H)                 # views 0-2 drug, 3-5 target
        dr_flat, pr_flat = transformer_encode(x, params["drug_trans"],
                                              cfg["num_heads"], n_groups=2)
    else:
        (dr_flat,) = transformer_encode(emb[0, :, :nd, :], params["drug_trans"],
                                        cfg["num_heads"], n_groups=1)
        (pr_flat,) = transformer_encode(emb[1, :, :nt, :], params["target_trans"],
                                        cfg["num_heads"], n_groups=1)

    # fused ddi gather (one-hot matmul) + elementwise pair interaction + MLP
    # (dropout = identity in eval)
    return pair_mlp_gather(dr_flat, pr_flat, ddi, params["mlp"])


# ----------------------------------- main -----------------------------------

if __name__ == "__main__":
    cfg = dict(drug_in_dim=64, target_in_dim=48, embed_size=32, num_hiddens=32,
               num_layers=1, num_heads=4, labels=2, gt_layer=1, gt_head=2,
               gt_out_dim=32, num_drugs=8, num_targets=8, dim_feedforward=2048)

    key = jax.random.PRNGKey(0)
    kp, k1, k2, k3, k4, k5, k6, k7 = jax.random.split(key, 8)
    params = init_params(kp, cfg)

    drug_feats = jax.random.normal(k1, (cfg["num_drugs"], cfg["drug_in_dim"]), jnp.float32)
    target_feats = jax.random.normal(k2, (cfg["num_targets"], cfg["target_in_dim"]), jnp.float32)
    drug_sim = jax.random.uniform(k3, (cfg["num_drugs"], cfg["num_drugs"]), jnp.float32)
    target_sim = jax.random.uniform(k4, (cfg["num_targets"], cfg["num_targets"]), jnp.float32)
    walks = jax.random.normal(k5, (cfg["num_drugs"] + cfg["num_targets"], 128), jnp.float32)
    n_pairs = 16
    ddi = jnp.stack([
        jax.random.randint(k6, (n_pairs,), 0, cfg["num_drugs"]),
        jax.random.randint(k7, (n_pairs,), 0, cfg["num_targets"]),
    ], axis=1).astype(jnp.int32)

    fwd = jax.jit(lambda df, tf, ds, ts, w, e:
                  multi_model5_plus_forward(params, cfg, df, tf, ds, ts, w, e))
    out = fwd(drug_feats, target_feats, drug_sim, target_sim, walks, ddi)
    jax.block_until_ready(out)
    assert out.shape == (n_pairs, cfg["labels"])
    assert out.dtype == jnp.float32
    print("KERNEL_OK")
</pallas_src>

<mosaic_0001>
module attributes {stable_mosaic.version = 11 : i64} {
  func.func @_entity_embed_kernel(%arg0: i32, %arg1: memref<1x8x64xf32, #tpu.memory_space<vmem>>, %arg2: memref<1x8x128xf32, #tpu.memory_space<vmem>>, %arg3: memref<1x8x8xf32, #tpu.memory_space<vmem>>, %arg4: memref<1x64x32xf32, #tpu.memory_space<vmem>>, %arg5: memref<1x1x32xf32, #tpu.memory_space<vmem>>, %arg6: memref<1x128x32xf32, #tpu.memory_space<vmem>>, %arg7: memref<1x1x32xf32, #tpu.memory_space<vmem>>, %arg8: memref<1x8x32xf32, #tpu.memory_space<vmem>>, %arg9: memref<1x1x32xf32, #tpu.memory_space<vmem>>, %arg10: memref<1x32x32xf32, #tpu.memory_space<vmem>>, %arg11: memref<1x1x32xf32, #tpu.memory_space<vmem>>, %arg12: memref<1x3x8x32xf32, #tpu.memory_space<vmem>>) attributes {dimension_semantics = [#tpu.dimension_semantics<parallel>], iteration_bounds = array<i64: 2>, scalar_prefetch = 0 : i64, scratch_operands = 0 : i64, tpu.core_type = #tpu.core_type<tc>, window_params = [{transform_indices = @transform_0, window_bounds = array<i64: 1, 8, 64>}, {transform_indices = @transform_1, window_bounds = array<i64: 1, 8, 128>}, {transform_indices = @transform_2, window_bounds = array<i64: 1, 8, 8>}, {transform_indices = @transform_3, window_bounds = array<i64: 1, 64, 32>}, {transform_indices = @transform_4, window_bounds = array<i64: 1, 1, 32>}, {transform_indices = @transform_5, window_bounds = array<i64: 1, 128, 32>}, {transform_indices = @transform_6, window_bounds = array<i64: 1, 1, 32>}, {transform_indices = @transform_7, window_bounds = array<i64: 1, 8, 32>}, {transform_indices = @transform_8, window_bounds = array<i64: 1, 1, 32>}, {transform_indices = @transform_9, window_bounds = array<i64: 1, 32, 32>}, {transform_indices = @transform_10, window_bounds = array<i64: 1, 1, 32>}, {transform_indices = @transform_11, window_bounds = array<i64: 1, 3, 8, 32>}]} {
    %c0 = arith.constant 0 : index
    %c0_0 = arith.constant 0 : index
    %c0_1 = arith.constant 0 : index
    %0 = vector.load %arg1[%c0, %c0_0, %c0_1] : memref<1x8x64xf32, #tpu.memory_space<vmem>>, vector<1x8x64xf32>
    %1 = vector.shape_cast %0 : vector<1x8x64xf32> to vector<8x64xf32>
    %c0_2 = arith.constant 0 : index
    %c0_3 = arith.constant 0 : index
    %c0_4 = arith.constant 0 : index
    %2 = vector.load %arg2[%c0_2, %c0_3, %c0_4] : memref<1x8x128xf32, #tpu.memory_space<vmem>>, vector<1x8x128xf32>
    %3 = vector.shape_cast %2 : vector<1x8x128xf32> to vector<8x128xf32>
    %c0_5 = arith.constant 0 : index
    %c0_6 = arith.constant 0 : index
    %c0_7 = arith.constant 0 : index
    %4 = vector.load %arg3[%c0_5, %c0_6, %c0_7] : memref<1x8x8xf32, #tpu.memory_space<vmem>>, vector<1x8x8xf32>
    %5 = vector.shape_cast %4 : vector<1x8x8xf32> to vector<8x8xf32>
    %c0_8 = arith.constant 0 : index
    %c0_9 = arith.constant 0 : index
    %c0_10 = arith.constant 0 : index
    %6 = vector.load %arg4[%c0_8, %c0_9, %c0_10] : memref<1x64x32xf32, #tpu.memory_space<vmem>>, vector<1x64x32xf32>
    %7 = vector.shape_cast %6 : vector<1x64x32xf32> to vector<64x32xf32>
    %cst = arith.constant dense<0.000000e+00> : vector<8x32xf32>
    %8 = tpu.matmul %1, %7, %cst {dimension_numbers = #tpu.dot_dimension_numbers<[1], [0], [0], [1], [0, 0, 1, 1], [], []>} : vector<8x64xf32>, vector<64x32xf32>, vector<8x32xf32> -> vector<8x32xf32>
    %c0_11 = arith.constant 0 : index
    %c0_12 = arith.constant 0 : index
    %c0_13 = arith.constant 0 : index
    %9 = vector.load %arg5[%c0_11, %c0_12, %c0_13] : memref<1x1x32xf32, #tpu.memory_space<vmem>>, vector<1x1x32xf32>
    %10 = vector.shape_cast %9 : vector<1x1x32xf32> to vector<1x32xf32>
    %11 = vector.broadcast %10 : vector<1x32xf32> to vector<8x32xf32>
    %12 = arith.addf %8, %11 : vector<8x32xf32>
    %c0_14 = arith.constant 0 : index
    %c0_15 = arith.constant 0 : index
    %c0_16 = arith.constant 0 : index
    %c0_17 = arith.constant 0 : index
    %13 = vector.load %arg12[%c0_14, %c0_15, %c0_16, %c0_17] : memref<1x3x8x32xf32, #tpu.memory_space<vmem>>, vector<1x1x8x32xf32>
    %14 = vector.shape_cast %13 : vector<1x1x8x32xf32> to vector<8x32xf32>
    %15 = vector.shape_cast %12 : vector<8x32xf32> to vector<1x1x8x32xf32>
    tpu.vector_store %arg12[%c0_14, %c0_15, %c0_16, %c0_17], %15 {strides = array<i32>} : memref<1x3x8x32xf32, #tpu.memory_space<vmem>>, vector<1x1x8x32xf32>,
    %c0_18 = arith.constant 0 : index
    %c0_19 = arith.constant 0 : index
    %c0_20 = arith.constant 0 : index
    %16 = vector.load %arg6[%c0_18, %c0_19, %c0_20] : memref<1x128x32xf32, #tpu.memory_space<vmem>>, vector<1x128x32xf32>
    %17 = vector.shape_cast %16 : vector<1x128x32xf32> to vector<128x32xf32>
    %cst_21 = arith.constant dense<0.000000e+00> : vector<8x32xf32>
    %18 = tpu.matmul %3, %17, %cst_21 {dimension_numbers = #tpu.dot_dimension_numbers<[1], [0], [0], [1], [0, 0, 1, 1], [], []>} : vector<8x128xf32>, vector<128x32xf32>, vector<8x32xf32> -> vector<8x32xf32>
    %c0_22 = arith.constant 0 : index
    %c0_23 = arith.constant 0 : index
    %c0_24 = arith.constant 0 : index
    %19 = vector.load %arg7[%c0_22, %c0_23, %c0_24] : memref<1x1x32xf32, #tpu.memory_space<vmem>>, vector<1x1x32xf32>
    %20 = vector.shape_cast %19 : vector<1x1x32xf32> to vector<1x32xf32>
    %21 = vector.broadcast %20 : vector<1x32xf32> to vector<8x32xf32>
    %22 = arith.addf %18, %21 : vector<8x32xf32>
    %c0_25 = arith.constant 0 : index
    %c2 = arith.constant 2 : index
    %c0_26 = arith.constant 0 : index
    %c0_27 = arith.constant 0 : index
    %23 = vector.load %arg12[%c0_25, %c2, %c0_26, %c0_27] : memref<1x3x8x32xf32, #tpu.memory_space<vmem>>, vector<1x1x8x32xf32>
    %24 = vector.shape_cast %23 : vector<1x1x8x32xf32> to vector<8x32xf32>
    %25 = vector.shape_cast %22 : vector<8x32xf32> to vector<1x1x8x32xf32>
    tpu.vector_store %arg12[%c0_25, %c2, %c0_26, %c0_27], %25 {strides = array<i32>} : memref<1x3x8x32xf32, #tpu.memory_space<vmem>>, vector<1x1x8x32xf32>,
    %26 = math.absf %5 : vector<8x8xf32>
    %cst_28 = arith.constant dense<0.000000e+00> : vector<8xf32>
    %27 = vector.multi_reduction <add>, %26, %cst_28 [1] : vector<8x8xf32> to vector<8xf32>
    %28 = vector.shape_cast %27 : vector<8xf32> to vector<8x1xf32>
    %cst_29 = arith.constant 9.99999997E-7 : f32
    %29 = vector.broadcast %cst_29 : f32 to vector<8x1xf32>
    %30 = arith.addf %28, %29 : vector<8x1xf32>
    %31 = vector.broadcast %30 : vector<8x1xf32> to vector<8x8xf32>
    %32 = arith.divf %5, %31 : vector<8x8xf32>
    %c0_30 = arith.constant 0 : index
    %c0_31 = arith.constant 0 : index
    %c0_32 = arith.constant 0 : index
    %33 = vector.load %arg8[%c0_30, %c0_31, %c0_32] : memref<1x8x32xf32, #tpu.memory_space<vmem>>, vector<1x8x32xf32>
    %34 = vector.shape_cast %33 : vector<1x8x32xf32> to vector<8x32xf32>
    %cst_33 = arith.constant dense<0.000000e+00> : vector<8x32xf32>
    %35 = tpu.matmul %5, %34, %cst_33 {dimension_numbers = #tpu.dot_dimension_numbers<[1], [0], [0], [1], [0, 0, 1, 1], [], []>} : vector<8x8xf32>, vector<8x32xf32>, vector<8x32xf32> -> vector<8x32xf32>
    %c0_34 = arith.constant 0 : index
    %c0_35 = arith.constant 0 : index
    %c0_36 = arith.constant 0 : index
    %36 = vector.load %arg9[%c0_34, %c0_35, %c0_36] : memref<1x1x32xf32, #tpu.memory_space<vmem>>, vector<1x1x32xf32>
    %37 = vector.shape_cast %36 : vector<1x1x32xf32> to vector<1x32xf32>
    %38 = vector.broadcast %37 : vector<1x32xf32> to vector<8x32xf32>
    %39 = arith.addf %35, %38 : vector<8x32xf32>
    %cst_37 = arith.constant 0.000000e+00 : f32
    %40 = vector.broadcast %cst_37 : f32 to vector<8x32xf32>
    %41 = arith.maximumf %39, %40 : vector<8x32xf32>
    %c0_38 = arith.constant 0 : index
    %c0_39 = arith.constant 0 : index
    %c0_40 = arith.constant 0 : index
    %42 = vector.load %arg10[%c0_38, %c0_39, %c0_40] : memref<1x32x32xf32, #tpu.memory_space<vmem>>, vector<1x32x32xf32>
    %43 = vector.shape_cast %42 : vector<1x32x32xf32> to vector<32x32xf32>
    %c0_41 = arith.constant 0 : index
    %c0_42 = arith.constant 0 : index
    %c0_43 = arith.constant 0 : index
    %44 = vector.load %arg11[%c0_41, %c0_42, %c0_43] : memref<1x1x32xf32, #tpu.memory_space<vmem>>, vector<1x1x32xf32>
    %45 = vector.shape_cast %44 : vector<1x1x32xf32> to vector<1x32xf32>
    %cst_44 = arith.constant dense<0.000000e+00> : vector<8x32xf32>
    %46 = tpu.matmul %32, %41, %cst_44 {dimension_numbers = #tpu.dot_dimension_numbers<[1], [0], [0], [1], [0, 0, 1, 1], [], []>} : vector<8x8xf32>, vector<8x32xf32>, vector<8x32xf32> -> vector<8x32xf32>
    %cst_45 = arith.constant dense<0.000000e+00> : vector<8x32xf32>
    %47 = tpu.matmul %46, %43, %cst_45 {dimension_numbers = #tpu.dot_dimension_numbers<[1], [0], [0], [1], [0, 0, 1, 1], [], []>} : vector<8x32xf32>, vector<32x32xf32>, vector<8x32xf32> -> vector<8x32xf32>
    %48 = vector.broadcast %45 : vector<1x32xf32> to vector<8x32xf32>
    %49 = arith.addf %47, %48 : vector<8x32xf32>
    %cst_46 = arith.constant 0.000000e+00 : f32
    %50 = vector.broadcast %cst_46 : f32 to vector<8x32xf32>
    %51 = arith.maximumf %49, %50 : vector<8x32xf32>
    %c0_47 = arith.constant 0 : index
    %c1 = arith.constant 1 : index
    %c0_48 = arith.constant 0 : index
    %c0_49 = arith.constant 0 : index
    %52 = vector.load %arg12[%c0_47, %c1, %c0_48, %c0_49] : memref<1x3x8x32xf32, #tpu.memory_space<vmem>>, vector<1x1x8x32xf32>
    %53 = vector.shape_cast %52 : vector<1x1x8x32xf32> to vector<8x32xf32>
    %54 = vector.shape_cast %51 : vector<8x32xf32> to vector<1x1x8x32xf32>
    tpu.vector_store %arg12[%c0_47, %c1, %c0_48, %c0_49], %54 {strides = array<i32>} : memref<1x3x8x32xf32, #tpu.memory_space<vmem>>, vector<1x1x8x32xf32>,
    return
  }
  func.func @transform_0(%arg0: i32) -> (i32, i32, i32) {
    %c0_i32 = arith.constant 0 : i32
    %c0_i32_0 = arith.constant 0 : i32
    %c0_i32_1 = arith.constant 0 : i32
    return %arg0, %c0_i32, %c0_i32_0 : i32, i32, i32
  }
  func.func @transform_1(%arg0: i32) -> (i32, i32, i32) {
    %c0_i32 = arith.constant 0 : i32
    %c0_i32_0 = arith.constant 0 : i32
    %c0_i32_1 = arith.constant 0 : i32
    return %arg0, %c0_i32, %c0_i32_0 : i32, i32, i32
  }
  func.func @transform_2(%arg0: i32) -> (i32, i32, i32) {
    %c0_i32 = arith.constant 0 : i32
    %c0_i32_0 = arith.constant 0 : i32
    %c0_i32_1 = arith.constant 0 : i32
    return %arg0, %c0_i32, %c0_i32_0 : i32, i32, i32
  }
  func.func @transform_3(%arg0: i32) -> (i32, i32, i32) {
    %c0_i32 = arith.constant 0 : i32
    %c0_i32_0 = arith.constant 0 : i32
    %c0_i32_1 = arith.constant 0 : i32
    return %arg0, %c0_i32, %c0_i32_0 : i32, i32, i32
  }
  func.func @transform_4(%arg0: i32) -> (i32, i32, i32) {
    %c0_i32 = arith.constant 0 : i32
    %c0_i32_0 = arith.constant 0 : i32
    %c0_i32_1 = arith.constant 0 : i32
    return %arg0, %c0_i32, %c0_i32_0 : i32, i32, i32
  }
  func.func @transform_5(%arg0: i32) -> (i32, i32, i32) {
    %c0_i32 = arith.constant 0 : i32
    %c0_i32_0 = arith.constant 0 : i32
    %c0_i32_1 = arith.constant 0 : i32
    return %arg0, %c0_i32, %c0_i32_0 : i32, i32, i32
  }
  func.func @transform_6(%arg0: i32) -> (i32, i32, i32) {
    %c0_i32 = arith.constant 0 : i32
    %c0_i32_0 = arith.constant 0 : i32
    %c0_i32_1 = arith.constant 0 : i32
    return %arg0, %c0_i32, %c0_i32_0 : i32, i32, i32
  }
  func.func @transform_7(%arg0: i32) -> (i32, i32, i32) {
    %c0_i32 = arith.constant 0 : i32
    %c0_i32_0 = arith.constant 0 : i32
    %c0_i32_1 = arith.constant 0 : i32
    return %arg0, %c0_i32, %c0_i32_0 : i32, i32, i32
  }
  func.func @transform_8(%arg0: i32) -> (i32, i32, i32) {
    %c0_i32 = arith.constant 0 : i32
    %c0_i32_0 = arith.constant 0 : i32
    %c0_i32_1 = arith.constant 0 : i32
    return %arg0, %c0_i32, %c0_i32_0 : i32, i32, i32
  }
  func.func @transform_9(%arg0: i32) -> (i32, i32, i32) {
    %c0_i32 = arith.constant 0 : i32
    %c0_i32_0 = arith.constant 0 : i32
    %c0_i32_1 = arith.constant 0 : i32
    return %arg0, %c0_i32, %c0_i32_0 : i32, i32, i32
  }
  func.func @transform_10(%arg0: i32) -> (i32, i32, i32) {
    %c0_i32 = arith.constant 0 : i32
    %c0_i32_0 = arith.constant 0 : i32
    %c0_i32_1 = arith.constant 0 : i32
    return %arg0, %c0_i32, %c0_i32_0 : i32, i32, i32
  }
  func.func @transform_11(%arg0: i32) -> (i32, i32, i32, i32) {
    %c0_i32 = arith.constant 0 : i32
    %c0_i32_0 = arith.constant 0 : i32
    %c0_i32_1 = arith.constant 0 : i32
    %c0_i32_2 = arith.constant 0 : i32
    return %arg0, %c0_i32, %c0_i32_0, %c0_i32_1 : i32, i32, i32, i32
  }
}

module attributes {stable_mosaic.version = 11 : i64} {
  func.func @_encoder_stack_kernel(%arg0: i32, %arg1: memref<6x8x32xf32, #tpu.memory_space<vmem>>, %arg2: memref<1x32x96xf32, #tpu.memory_space<vmem>>, %arg3: memref<1x1x96xf32, #tpu.memory_space<vmem>>, %arg4: memref<1x32x32xf32, #tpu.memory_space<vmem>>, %arg5: memref<1x1x32xf32, #tpu.memory_space<vmem>>, %arg6: memref<1x32x2048xbf16, #tpu.memory_space<vmem>>, %arg7: memref<1x1x2048xf32, #tpu.memory_space<vmem>>, %arg8: memref<1x2048x32xbf16, #tpu.memory_space<vmem>>, %arg9: memref<1x1x32xf32, #tpu.memory_space<vmem>>, %arg10: memref<1x1x32xf32, #tpu.memory_space<vmem>>, %arg11: memref<1x1x32xf32, #tpu.memory_space<vmem>>, %arg12: memref<1x1x32xf32, #tpu.memory_space<vmem>>, %arg13: memref<1x1x32xf32, #tpu.memory_space<vmem>>, %arg14: memref<8x96xf32, #tpu.memory_space<vmem>>, %arg15: memref<8x96xf32, #tpu.memory_space<vmem>>) attributes {dimension_semantics = [#tpu.dimension_semantics<arbitrary>], iteration_bounds = array<i64: 1>, scalar_prefetch = 0 : i64, scratch_operands = 0 : i64, tpu.core_type = #tpu.core_type<tc>, window_params = [{pipeline_mode = #tpu.pipeline_mode<synchronous>, transform_indices = @transform_0, window_bounds = array<i64: 6, 8, 32>}, {pipeline_mode = #tpu.pipeline_mode<synchronous>, transform_indices = @transform_1, window_bounds = array<i64: 1, 32, 96>}, {pipeline_mode = #tpu.pipeline_mode<synchronous>, transform_indices = @transform_2, window_bounds = array<i64: 1, 1, 96>}, {pipeline_mode = #tpu.pipeline_mode<synchronous>, transform_indices = @transform_3, window_bounds = array<i64: 1, 32, 32>}, {pipeline_mode = #tpu.pipeline_mode<synchronous>, transform_indices = @transform_4, window_bounds = array<i64: 1, 1, 32>}, {pipeline_mode = #tpu.pipeline_mode<synchronous>, transform_indices = @transform_5, window_bounds = array<i64: 1, 32, 2048>}, {pipeline_mode = #tpu.pipeline_mode<synchronous>, transform_indices = @transform_6, window_bounds = array<i64: 1, 1, 2048>}, {pipeline_mode = #tpu.pipeline_mode<synchronous>, transform_indices = @transform_7, window_bounds = array<i64: 1, 2048, 32>}, {pipeline_mode = #tpu.pipeline_mode<synchronous>, transform_indices = @transform_8, window_bounds = array<i64: 1, 1, 32>}, {pipeline_mode = #tpu.pipeline_mode<synchronous>, transform_indices = @transform_9, window_bounds = array<i64: 1, 1, 32>}, {pipeline_mode = #tpu.pipeline_mode<synchronous>, transform_indices = @transform_10, window_bounds = array<i64: 1, 1, 32>}, {pipeline_mode = #tpu.pipeline_mode<synchronous>, transform_indices = @transform_11, window_bounds = array<i64: 1, 1, 32>}, {pipeline_mode = #tpu.pipeline_mode<synchronous>, transform_indices = @transform_12, window_bounds = array<i64: 1, 1, 32>}, {pipeline_mode = #tpu.pipeline_mode<synchronous>, transform_indices = @transform_13, window_bounds = array<i64: 8, 96>}, {pipeline_mode = #tpu.pipeline_mode<synchronous>, transform_indices = @transform_14, window_bounds = array<i64: 8, 96>}]} {
    %c0 = arith.constant 0 : index
    %c0_0 = arith.constant 0 : index
    %c0_1 = arith.constant 0 : index
    %0 = vector.load %arg1[%c0, %c0_0, %c0_1] : memref<6x8x32xf32, #tpu.memory_space<vmem>>, vector<6x8x32xf32>
    %1 = vector.shape_cast %0 : vector<6x8x32xf32> to vector<48x32xf32>
    %c0_2 = arith.constant 0 : index
    %c0_3 = arith.constant 0 : index
    %c0_4 = arith.constant 0 : index
    %2 = vector.load %arg2[%c0_2, %c0_3, %c0_4] : memref<1x32x96xf32, #tpu.memory_space<vmem>>, vector<1x32x96xf32>
    %3 = vector.shape_cast %2 : vector<1x32x96xf32> to vector<32x96xf32>
    %cst = arith.constant dense<0.000000e+00> : vector<48x96xf32>
    %4 = tpu.matmul %1, %3, %cst {dimension_numbers = #tpu.dot_dimension_numbers<[1], [0], [0], [1], [0, 0, 1, 1], [], []>} : vector<48x32xf32>, vector<32x96xf32>, vector<48x96xf32> -> vector<48x96xf32>
    %c0_5 = arith.constant 0 : index
    %c0_6 = arith.constant 0 : index
    %c0_7 = arith.constant 0 : index
    %5 = vector.load %arg3[%c0_5, %c0_6, %c0_7] : memref<1x1x96xf32, #tpu.memory_space<vmem>>, vector<1x1x96xf32>
    %6 = vector.shape_cast %5 : vector<1x1x96xf32> to vector<1x96xf32>
    %7 = vector.broadcast %6 : vector<1x96xf32> to vector<48x96xf32>
    %8 = arith.addf %4, %7 : vector<48x96xf32>
    %9 = vector.extract_strided_slice %8 {offsets = [0, 0], sizes = [48, 32], strides = [1, 1]} : vector<48x96xf32> to vector<48x32xf32>
    %cst_8 = arith.constant 0.353553385 : f32
    %10 = vector.broadcast %cst_8 : f32 to vector<48x32xf32>
    %11 = arith.mulf %9, %10 : vector<48x32xf32>
    %12 = vector.shape_cast %11 : vector<48x32xf32> to vector<6x8x32xf32>
    %13 = vector.extract_strided_slice %8 {offsets = [0, 32], sizes = [48, 32], strides = [1, 1]} : vector<48x96xf32> to vector<48x32xf32>
    %14 = vector.shape_cast %13 : vector<48x32xf32> to vector<6x8x32xf32>
    %15 = vector.extract_strided_slice %8 {offsets = [0, 64], sizes = [48, 32], strides = [1, 1]} : vector<48x96xf32> to vector<48x32xf32>
    %16 = vector.shape_cast %15 : vector<48x32xf32> to vector<6x8x32xf32>
    %17 = vector.extract_strided_slice %12 {offsets = [0, 0, 0], sizes = [6, 8, 8], strides = [1, 1, 1]} : vector<6x8x32xf32> to vector<6x8x8xf32>
    %18 = vector.extract_strided_slice %14 {offsets = [0, 0, 0], sizes = [6, 8, 8], strides = [1, 1, 1]} : vector<6x8x32xf32> to vector<6x8x8xf32>
    %19 = vector.extract_strided_slice %16 {offsets = [0, 0, 0], sizes = [6, 8, 8], strides = [1, 1, 1]} : vector<6x8x32xf32> to vector<6x8x8xf32>
    "tpu.trace_start"() <{level = 10 : i32, message = "bqe,bke->bqk"}> : () -> ()
    %cst_9 = arith.constant dense<0.000000e+00> : vector<6x8x8xf32>
    %20 = tpu.matmul %17, %18, %cst_9 {dimension_numbers = #tpu.dot_dimension_numbers<[2], [2], [1], [1], [0, 0, 0, 1, 1, 1], [0], [0]>} : vector<6x8x8xf32>, vector<6x8x8xf32>, vector<6x8x8xf32> -> vector<6x8x8xf32>
    "tpu.trace_stop"() : () -> ()
    %cst_10 = arith.constant dense<0xFF800000> : vector<6x8xf32>
    %21 = vector.multi_reduction <maximumf>, %20, %cst_10 [2] : vector<6x8x8xf32> to vector<6x8xf32>
    %22 = vector.shape_cast %21 : vector<6x8xf32> to vector<6x8x1xf32>
    %23 = vector.broadcast %22 : vector<6x8x1xf32> to vector<6x8x8xf32>
    %24 = arith.subf %20, %23 : vector<6x8x8xf32>
    %25 = math.exp %24 : vector<6x8x8xf32>
    %cst_11 = arith.constant dense<0.000000e+00> : vector<6x8xf32>
    %26 = vector.multi_reduction <add>, %25, %cst_11 [2] : vector<6x8x8xf32> to vector<6x8xf32>
    %27 = vector.shape_cast %26 : vector<6x8xf32> to vector<6x8x1xf32>
    %28 = tpu.reciprocal %27 {approx = true} : vector<6x8x1xf32> -> vector<6x8x1xf32>
    %29 = vector.broadcast %28 : vector<6x8x1xf32> to vector<6x8x8xf32>
    %30 = arith.mulf %25, %29 : vector<6x8x8xf32>
    "tpu.trace_start"() <{level = 10 : i32, message = "bqk,bke->bqe"}> : () -> ()
    %cst_12 = arith.constant dense<0.000000e+00> : vector<6x8x8xf32>
    %31 = tpu.matmul %30, %19, %cst_12 {dimension_numbers = #tpu.dot_dimension_numbers<[2], [1], [1], [2], [0, 0, 0, 1, 1, 2], [0], [0]>} : vector<6x8x8xf32>, vector<6x8x8xf32>, vector<6x8x8xf32> -> vector<6x8x8xf32>
    "tpu.trace_stop"() : () -> ()
    %32 = vector.extract_strided_slice %12 {offsets = [0, 0, 8], sizes = [6, 8, 8], strides = [1, 1, 1]} : vector<6x8x32xf32> to vector<6x8x8xf32>
    %33 = vector.extract_strided_slice %14 {offsets = [0, 0, 8], sizes = [6, 8, 8], strides = [1, 1, 1]} : vector<6x8x32xf32> to vector<6x8x8xf32>
    %34 = vector.extract_strided_slice %16 {offsets = [0, 0, 8], sizes = [6, 8, 8], strides = [1, 1, 1]} : vector<6x8x32xf32> to vector<6x8x8xf32>
    "tpu.trace_start"() <{level = 10 : i32, message = "bqe,bke->bqk"}> : () -> ()
    %cst_13 = arith.constant dense<0.000000e+00> : vector<6x8x8xf32>
    %35 = tpu.matmul %32, %33, %cst_13 {dimension_numbers = #tpu.dot_dimension_numbers<[2], [2], [1], [1], [0, 0, 0, 1, 1, 1], [0], [0]>} : vector<6x8x8xf32>, vector<6x8x8xf32>, vector<6x8x8xf32> -> vector<6x8x8xf32>
    "tpu.trace_stop"() : () -> ()
    %cst_14 = arith.constant dense<0xFF800000> : vector<6x8xf32>
    %36 = vector.multi_reduction <maximumf>, %35, %cst_14 [2] : vector<6x8x8xf32> to vector<6x8xf32>
    %37 = vector.shape_cast %36 : vector<6x8xf32> to vector<6x8x1xf32>
    %38 = vector.broadcast %37 : vector<6x8x1xf32> to vector<6x8x8xf32>
    %39 = arith.subf %35, %38 : vector<6x8x8xf32>
    %40 = math.exp %39 : vector<6x8x8xf32>
    %cst_15 = arith.constant dense<0.000000e+00> : vector<6x8xf32>
    %41 = vector.multi_reduction <add>, %40, %cst_15 [2] : vector<6x8x8xf32> to vector<6x8xf32>
    %42 = vector.shape_cast %41 : vector<6x8xf32> to vector<6x8x1xf32>
    %43 = tpu.reciprocal %42 {approx = true} : vector<6x8x1xf32> -> vector<6x8x1xf32>
    %44 = vector.broadcast %43 : vector<6x8x1xf32> to vector<6x8x8xf32>
    %45 = arith.mulf %40, %44 : vector<6x8x8xf32>
    "tpu.trace_start"() <{level = 10 : i32, message = "bqk,bke->bqe"}> : () -> ()
    %cst_16 = arith.constant dense<0.000000e+00> : vector<6x8x8xf32>
    %46 = tpu.matmul %45, %34, %cst_16 {dimension_numbers = #tpu.dot_dimension_numbers<[2], [1], [1], [2], [0, 0, 0, 1, 1, 2], [0], [0]>} : vector<6x8x8xf32>, vector<6x8x8xf32>, vector<6x8x8xf32> -> vector<6x8x8xf32>
    "tpu.trace_stop"() : () -> ()
    %47 = vector.extract_strided_slice %12 {offsets = [0, 0, 16], sizes = [6, 8, 8], strides = [1, 1, 1]} : vector<6x8x32xf32> to vector<6x8x8xf32>
    %48 = vector.extract_strided_slice %14 {offsets = [0, 0, 16], sizes = [6, 8, 8], strides = [1, 1, 1]} : vector<6x8x32xf32> to vector<6x8x8xf32>
    %49 = vector.extract_strided_slice %16 {offsets = [0, 0, 16], sizes = [6, 8, 8], strides = [1, 1, 1]} : vector<6x8x32xf32> to vector<6x8x8xf32>
    "tpu.trace_start"() <{level = 10 : i32, message = "bqe,bke->bqk"}> : () -> ()
    %cst_17 = arith.constant dense<0.000000e+00> : vector<6x8x8xf32>
    %50 = tpu.matmul %47, %48, %cst_17 {dimension_numbers = #tpu.dot_dimension_numbers<[2], [2], [1], [1], [0, 0, 0, 1, 1, 1], [0], [0]>} : vector<6x8x8xf32>, vector<6x8x8xf32>, vector<6x8x8xf32> -> vector<6x8x8xf32>
    "tpu.trace_stop"() : () -> ()
    %cst_18 = arith.constant dense<0xFF800000> : vector<6x8xf32>
    %51 = vector.multi_reduction <maximumf>, %50, %cst_18 [2] : vector<6x8x8xf32> to vector<6x8xf32>
    %52 = vector.shape_cast %51 : vector<6x8xf32> to vector<6x8x1xf32>
    %53 = vector.broadcast %52 : vector<6x8x1xf32> to vector<6x8x8xf32>
    %54 = arith.subf %50, %53 : vector<6x8x8xf32>
    %55 = math.exp %54 : vector<6x8x8xf32>
    %cst_19 = arith.constant dense<0.000000e+00> : vector<6x8xf32>
    %56 = vector.multi_reduction <add>, %55, %cst_19 [2] : vector<6x8x8xf32> to vector<6x8xf32>
    %57 = vector.shape_cast %56 : vector<6x8xf32> to vector<6x8x1xf32>
    %58 = tpu.reciprocal %57 {approx = true} : vector<6x8x1xf32> -> vector<6x8x1xf32>
    %59 = vector.broadcast %58 : vector<6x8x1xf32> to vector<6x8x8xf32>
    %60 = arith.mulf %55, %59 : vector<6x8x8xf32>
    "tpu.trace_start"() <{level = 10 : i32, message = "bqk,bke->bqe"}> : () -> ()
    %cst_20 = arith.constant dense<0.000000e+00> : vector<6x8x8xf32>
    %61 = tpu.matmul %60, %49, %cst_20 {dimension_numbers = #tpu.dot_dimension_numbers<[2], [1], [1], [2], [0, 0, 0, 1, 1, 2], [0], [0]>} : vector<6x8x8xf32>, vector<6x8x8xf32>, vector<6x8x8xf32> -> vector<6x8x8xf32>
    "tpu.trace_stop"() : () -> ()
    %62 = vector.extract_strided_slice %12 {offsets = [0, 0, 24], sizes = [6, 8, 8], strides = [1, 1, 1]} : vector<6x8x32xf32> to vector<6x8x8xf32>
    %63 = vector.extract_strided_slice %14 {offsets = [0, 0, 24], sizes = [6, 8, 8], strides = [1, 1, 1]} : vector<6x8x32xf32> to vector<6x8x8xf32>
    %64 = vector.extract_strided_slice %16 {offsets = [0, 0, 24], sizes = [6, 8, 8], strides = [1, 1, 1]} : vector<6x8x32xf32> to vector<6x8x8xf32>
    "tpu.trace_start"() <{level = 10 : i32, message = "bqe,bke->bqk"}> : () -> ()
    %cst_21 = arith.constant dense<0.000000e+00> : vector<6x8x8xf32>
    %65 = tpu.matmul %62, %63, %cst_21 {dimension_numbers = #tpu.dot_dimension_numbers<[2], [2], [1], [1], [0, 0, 0, 1, 1, 1], [0], [0]>} : vector<6x8x8xf32>, vector<6x8x8xf32>, vector<6x8x8xf32> -> vector<6x8x8xf32>
    "tpu.trace_stop"() : () -> ()
    %cst_22 = arith.constant dense<0xFF800000> : vector<6x8xf32>
    %66 = vector.multi_reduction <maximumf>, %65, %cst_22 [2] : vector<6x8x8xf32> to vector<6x8xf32>
    %67 = vector.shape_cast %66 : vector<6x8xf32> to vector<6x8x1xf32>
    %68 = vector.broadcast %67 : vector<6x8x1xf32> to vector<6x8x8xf32>
    %69 = arith.subf %65, %68 : vector<6x8x8xf32>
    %70 = math.exp %69 : vector<6x8x8xf32>
    %cst_23 = arith.constant dense<0.000000e+00> : vector<6x8xf32>
    %71 = vector.multi_reduction <add>, %70, %cst_23 [2] : vector<6x8x8xf32> to vector<6x8xf32>
    %72 = vector.shape_cast %71 : vector<6x8xf32> to vector<6x8x1xf32>
    %73 = tpu.reciprocal %72 {approx = true} : vector<6x8x1xf32> -> vector<6x8x1xf32>
    %74 = vector.broadcast %73 : vector<6x8x1xf32> to vector<6x8x8xf32>
    %75 = arith.mulf %70, %74 : vector<6x8x8xf32>
    "tpu.trace_start"() <{level = 10 : i32, message = "bqk,bke->bqe"}> : () -> ()
    %cst_24 = arith.constant dense<0.000000e+00> : vector<6x8x8xf32>
    %76 = tpu.matmul %75, %64, %cst_24 {dimension_numbers = #tpu.dot_dimension_numbers<[2], [1], [1], [2], [0, 0, 0, 1, 1, 2], [0], [0]>} : vector<6x8x8xf32>, vector<6x8x8xf32>, vector<6x8x8xf32> -> vector<6x8x8xf32>
    "tpu.trace_stop"() : () -> ()
    %77 = tpu.concatenate %31, %46, %61, %76 in 2 : vector<6x8x8xf32>, vector<6x8x8xf32>, vector<6x8x8xf32>, vector<6x8x8xf32> -> vector<6x8x32xf32>
    %78 = vector.shape_cast %77 : vector<6x8x32xf32> to vector<48x32xf32>
    %c0_25 = arith.constant 0 : index
    %c0_26 = arith.constant 0 : index
    %c0_27 = arith.constant 0 : index
    %79 = vector.load %arg4[%c0_25, %c0_26, %c0_27] : memref<1x32x32xf32, #tpu.memory_space<vmem>>, vector<1x32x32xf32>
    %80 = vector.shape_cast %79 : vector<1x32x32xf32> to vector<32x32xf32>
    %cst_28 = arith.constant dense<0.000000e+00> : vector<48x32xf32>
    %81 = tpu.matmul %78, %80, %cst_28 {dimension_numbers = #tpu.dot_dimension_numbers<[1], [0], [0], [1], [0, 0, 1, 1], [], []>} : vector<48x32xf32>, vector<32x32xf32>, vector<48x32xf32> -> vector<48x32xf32>
    %c0_29 = arith.constant 0 : index
    %c0_30 = arith.constant 0 : index
    %c0_31 = arith.constant 0 : index
    %82 = vector.load %arg5[%c0_29, %c0_30, %c0_31] : memref<1x1x32xf32, #tpu.memory_space<vmem>>, vector<1x1x32xf32>
    %83 = vector.shape_cast %82 : vector<1x1x32xf32> to vector<1x32xf32>
    %84 = vector.broadcast %83 : vector<1x32xf32> to vector<48x32xf32>
    %85 = arith.addf %81, %84 : vector<48x32xf32>
    %86 = arith.addf %1, %85 : vector<48x32xf32>
    %cst_32 = arith.constant dense<0.000000e+00> : vector<48xf32>
    %87 = vector.multi_reduction <add>, %86, %cst_32 [1] : vector<48x32xf32> to vector<48xf32>
    %88 = vector.shape_cast %87 : vector<48xf32> to vector<48x1xf32>
    %cst_33 = arith.constant 3.200000e+01 : f32
    %89 = vector.broadcast %cst_33 : f32 to vector<48x1xf32>
    %90 = arith.divf %88, %89 : vector<48x1xf32>
    %91 = vector.broadcast %90 : vector<48x1xf32> to vector<48x32xf32>
    %92 = arith.subf %86, %91 : vector<48x32xf32>
    %93 = arith.mulf %92, %92 : vector<48x32xf32>
    %cst_34 = arith.constant dense<0.000000e+00> : vector<48xf32>
    %94 = vector.multi_reduction <add>, %93, %cst_34 [1] : vector<48x32xf32> to vector<48xf32>
    %95 = vector.shape_cast %94 : vector<48xf32> to vector<48x1xf32>
    %cst_35 = arith.constant 3.200000e+01 : f32
    %96 = vector.broadcast %cst_35 : f32 to vector<48x1xf32>
    %97 = arith.divf %95, %96 : vector<48x1xf32>
    %98 = vector.broadcast %90 : vector<48x1xf32> to vector<48x32xf32>
    %99 = arith.subf %86, %98 : vector<48x32xf32>
    %cst_36 = arith.constant 9.99999974E-6 : f32
    %100 = vector.broadcast %cst_36 : f32 to vector<48x1xf32>
    %101 = arith.addf %97, %100 : vector<48x1xf32>
    %102 = math.rsqrt %101 : vector<48x1xf32>
    %103 = vector.broadcast %102 : vector<48x1xf32> to vector<48x32xf32>
    %104 = arith.mulf %99, %103 : vector<48x32xf32>
    %c0_37 = arith.constant 0 : index
    %c0_38 = arith.constant 0 : index
    %c0_39 = arith.constant 0 : index
    %105 = vector.load %arg10[%c0_37, %c0_38, %c0_39] : memref<1x1x32xf32, #tpu.memory_space<vmem>>, vector<1x1x32xf32>
    %106 = vector.shape_cast %105 : vector<1x1x32xf32> to vector<1x32xf32>
    %107 = vector.broadcast %106 : vector<1x32xf32> to vector<48x32xf32>
    %108 = arith.mulf %104, %107 : vector<48x32xf32>
    %c0_40 = arith.constant 0 : index
    %c0_41 = arith.constant 0 : index
    %c0_42 = arith.constant 0 : index
    %109 = vector.load %arg11[%c0_40, %c0_41, %c0_42] : memref<1x1x32xf32, #tpu.memory_space<vmem>>, vector<1x1x32xf32>
    %110 = vector.shape_cast %109 : vector<1x1x32xf32> to vector<1x32xf32>
    %111 = vector.broadcast %110 : vector<1x32xf32> to vector<48x32xf32>
    %112 = arith.addf %108, %111 : vector<48x32xf32>
    %113 = arith.truncf %112 : vector<48x32xf32> to vector<48x32xbf16>
    %c0_43 = arith.constant 0 : index
    %c0_44 = arith.constant 0 : index
    %c0_45 = arith.constant 0 : index
    %114 = vector.load %arg6[%c0_43, %c0_44, %c0_45] : memref<1x32x2048xbf16, #tpu.memory_space<vmem>>, vector<1x32x2048xbf16>
    %115 = vector.shape_cast %114 : vector<1x32x2048xbf16> to vector<32x2048xbf16>
    %cst_46 = arith.constant dense<0.000000e+00> : vector<48x2048xf32>
    %116 = tpu.matmul %113, %115, %cst_46 {dimension_numbers = #tpu.dot_dimension_numbers<[1], [0], [0], [1], [0, 0, 1, 1], [], []>} : vector<48x32xbf16>, vector<32x2048xbf16>, vector<48x2048xf32> -> vector<48x2048xf32>
    %c0_47 = arith.constant 0 : index
    %c0_48 = arith.constant 0 : index
    %c0_49 = arith.constant 0 : index
    %117 = vector.load %arg7[%c0_47, %c0_48, %c0_49] : memref<1x1x2048xf32, #tpu.memory_space<vmem>>, vector<1x1x2048xf32>
    %118 = vector.shape_cast %117 : vector<1x1x2048xf32> to vector<1x2048xf32>
    %119 = vector.broadcast %118 : vector<1x2048xf32> to vector<48x2048xf32>
    %120 = arith.addf %116, %119 : vector<48x2048xf32>
    %cst_50 = arith.constant 0.000000e+00 : f32
    %121 = vector.broadcast %cst_50 : f32 to vector<48x2048xf32>
    %122 = arith.maximumf %120, %121 : vector<48x2048xf32>
    %123 = arith.truncf %122 : vector<48x2048xf32> to vector<48x2048xbf16>
    %c0_51 = arith.constant 0 : index
    %c0_52 = arith.constant 0 : index
    %c0_53 = arith.constant 0 : index
    %124 = vector.load %arg8[%c0_51, %c0_52, %c0_53] : memref<1x2048x32xbf16, #tpu.memory_space<vmem>>, vector<1x2048x32xbf16>
    %125 = vector.shape_cast %124 : vector<1x2048x32xbf16> to vector<2048x32xbf16>
    %cst_54 = arith.constant dense<0.000000e+00> : vector<48x32xf32>
    %126 = tpu.matmul %123, %125, %cst_54 {dimension_numbers = #tpu.dot_dimension_numbers<[1], [0], [0], [1], [0, 0, 1, 1], [], []>} : vector<48x2048xbf16>, vector<2048x32xbf16>, vector<48x32xf32> -> vector<48x32xf32>
    %c0_55 = arith.constant 0 : index
    %c0_56 = arith.constant 0 : index
    %c0_57 = arith.constant 0 : index
    %127 = vector.load %arg9[%c0_55, %c0_56, %c0_57] : memref<1x1x32xf32, #tpu.memory_space<vmem>>, vector<1x1x32xf32>
    %128 = vector.shape_cast %127 : vector<1x1x32xf32> to vector<1x32xf32>
    %129 = vector.broadcast %128 : vector<1x32xf32> to vector<48x32xf32>
    %130 = arith.addf %126, %129 : vector<48x32xf32>
    %131 = arith.addf %112, %130 : vector<48x32xf32>
    %cst_58 = arith.constant dense<0.000000e+00> : vector<48xf32>
    %132 = vector.multi_reduction <add>, %131, %cst_58 [1] : vector<48x32xf32> to vector<48xf32>
    %133 = vector.shape_cast %132 : vector<48xf32> to vector<48x1xf32>
    %cst_59 = arith.constant 3.200000e+01 : f32
    %134 = vector.broadcast %cst_59 : f32 to vector<48x1xf32>
    %135 = arith.divf %133, %134 : vector<48x1xf32>
    %136 = vector.broadcast %135 : vector<48x1xf32> to vector<48x32xf32>
    %137 = arith.subf %131, %136 : vector<48x32xf32>
    %138 = arith.mulf %137, %137 : vector<48x32xf32>
    %cst_60 = arith.constant dense<0.000000e+00> : vector<48xf32>
    %139 = vector.multi_reduction <add>, %138, %cst_60 [1] : vector<48x32xf32> to vector<48xf32>
    %140 = vector.shape_cast %139 : vector<48xf32> to vector<48x1xf32>
    %cst_61 = arith.constant 3.200000e+01 : f32
    %141 = vector.broadcast %cst_61 : f32 to vector<48x1xf32>
    %142 = arith.divf %140, %141 : vector<48x1xf32>
    %143 = vector.broadcast %135 : vector<48x1xf32> to vector<48x32xf32>
    %144 = arith.subf %131, %143 : vector<48x32xf32>
    %cst_62 = arith.constant 9.99999974E-6 : f32
    %145 = vector.broadcast %cst_62 : f32 to vector<48x1xf32>
    %146 = arith.addf %142, %145 : vector<48x1xf32>
    %147 = math.rsqrt %146 : vector<48x1xf32>
    %148 = vector.broadcast %147 : vector<48x1xf32> to vector<48x32xf32>
    %149 = arith.mulf %144, %148 : vector<48x32xf32>
    %c0_63 = arith.constant 0 : index
    %c0_64 = arith.constant 0 : index
    %c0_65 = arith.constant 0 : index
    %150 = vector.load %arg12[%c0_63, %c0_64, %c0_65] : memref<1x1x32xf32, #tpu.memory_space<vmem>>, vector<1x1x32xf32>
    %151 = vector.shape_cast %150 : vector<1x1x32xf32> to vector<1x32xf32>
    %152 = vector.broadcast %151 : vector<1x32xf32> to vector<48x32xf32>
    %153 = arith.mulf %149, %152 : vector<48x32xf32>
    %c0_66 = arith.constant 0 : index
    %c0_67 = arith.constant 0 : index
    %c0_68 = arith.constant 0 : index
    %154 = vector.load %arg13[%c0_66, %c0_67, %c0_68] : memref<1x1x32xf32, #tpu.memory_space<vmem>>, vector<1x1x32xf32>
    %155 = vector.shape_cast %154 : vector<1x1x32xf32> to vector<1x32xf32>
    %156 = vector.broadcast %155 : vector<1x32xf32> to vector<48x32xf32>
    %157 = arith.addf %153, %156 : vector<48x32xf32>
    %158 = vector.shape_cast %157 : vector<48x32xf32> to vector<6x8x32xf32>
    %159 = vector.extract_strided_slice %158 {offsets = [0, 0, 0], sizes = [1, 8, 32], strides = [1, 1, 1]} : vector<6x8x32xf32> to vector<1x8x32xf32>
    %160 = vector.shape_cast %159 : vector<1x8x32xf32> to vector<8x32xf32>
    %161 = vector.extract_strided_slice %158 {offsets = [1, 0, 0], sizes = [1, 8, 32], strides = [1, 1, 1]} : vector<6x8x32xf32> to vector<1x8x32xf32>
    %162 = vector.shape_cast %161 : vector<1x8x32xf32> to vector<8x32xf32>
    %163 = vector.extract_strided_slice %158 {offsets = [2, 0, 0], sizes = [1, 8, 32], strides = [1, 1, 1]} : vector<6x8x32xf32> to vector<1x8x32xf32>
    %164 = vector.shape_cast %163 : vector<1x8x32xf32> to vector<8x32xf32>
    %165 = tpu.concatenate %160, %162, %164 in 1 : vector<8x32xf32>, vector<8x32xf32>, vector<8x32xf32> -> vector<8x96xf32>
    %c0_69 = arith.constant 0 : index
    %c0_70 = arith.constant 0 : index
    %166 = vector.load %arg14[%c0_69, %c0_70] : memref<8x96xf32, #tpu.memory_space<vmem>>, vector<8x96xf32>
    tpu.vector_store %arg14[%c0_69, %c0_70], %165 {strides = array<i32>} : memref<8x96xf32, #tpu.memory_space<vmem>>, vector<8x96xf32>,
    %167 = vector.extract_strided_slice %158 {offsets = [3, 0, 0], sizes = [1, 8, 32], strides = [1, 1, 1]} : vector<6x8x32xf32> to vector<1x8x32xf32>
    %168 = vector.shape_cast %167 : vector<1x8x32xf32> to vector<8x32xf32>
    %169 = vector.extract_strided_slice %158 {offsets = [4, 0, 0], sizes = [1, 8, 32], strides = [1, 1, 1]} : vector<6x8x32xf32> to vector<1x8x32xf32>
    %170 = vector.shape_cast %169 : vector<1x8x32xf32> to vector<8x32xf32>
    %171 = vector.extract_strided_slice %158 {offsets = [5, 0, 0], sizes = [1, 8, 32], strides = [1, 1, 1]} : vector<6x8x32xf32> to vector<1x8x32xf32>
    %172 = vector.shape_cast %171 : vector<1x8x32xf32> to vector<8x32xf32>
    %173 = tpu.concatenate %168, %170, %172 in 1 : vector<8x32xf32>, vector<8x32xf32>, vector<8x32xf32> -> vector<8x96xf32>
    %c0_71 = arith.constant 0 : index
    %c0_72 = arith.constant 0 : index
    %174 = vector.load %arg15[%c0_71, %c0_72] : memref<8x96xf32, #tpu.memory_space<vmem>>, vector<8x96xf32>
    tpu.vector_store %arg15[%c0_71, %c0_72], %173 {strides = array<i32>} : memref<8x96xf32, #tpu.memory_space<vmem>>, vector<8x96xf32>,
    return
  }
  func.func @transform_0(%arg0: i32) -> (i32, i32, i32) {
    %c0_i32 = arith.constant 0 : i32
    %c0_i32_0 = arith.constant 0 : i32
    %c0_i32_1 = arith.constant 0 : i32
    %c0_i32_2 = arith.constant 0 : i32
    return %c0_i32, %c0_i32_0, %c0_i32_1 : i32, i32, i32
  }
  func.func @transform_1(%arg0: i32) -> (i32, i32, i32) {
    %c0_i32 = arith.constant 0 : i32
    %c0_i32_0 = arith.constant 0 : i32
    %c0_i32_1 = arith.constant 0 : i32
    %c0_i32_2 = arith.constant 0 : i32
    return %c0_i32, %c0_i32_0, %c0_i32_1 : i32, i32, i32
  }
  func.func @transform_2(%arg0: i32) -> (i32, i32, i32) {
    %c0_i32 = arith.constant 0 : i32
    %c0_i32_0 = arith.constant 0 : i32
    %c0_i32_1 = arith.constant 0 : i32
    %c0_i32_2 = arith.constant 0 : i32
    return %c0_i32, %c0_i32_0, %c0_i32_1 : i32, i32, i32
  }
  func.func @transform_3(%arg0: i32) -> (i32, i32, i32) {
    %c0_i32 = arith.constant 0 : i32
    %c0_i32_0 = arith.constant 0 : i32
    %c0_i32_1 = arith.constant 0 : i32
    %c0_i32_2 = arith.constant 0 : i32
    return %c0_i32, %c0_i32_0, %c0_i32_1 : i32, i32, i32
  }
  func.func @transform_4(%arg0: i32) -> (i32, i32, i32) {
    %c0_i32 = arith.constant 0 : i32
    %c0_i32_0 = arith.constant 0 : i32
    %c0_i32_1 = arith.constant 0 : i32
    %c0_i32_2 = arith.constant 0 : i32
    return %c0_i32, %c0_i32_0, %c0_i32_1 : i32, i32, i32
  }
  func.func @transform_5(%arg0: i32) -> (i32, i32, i32) {
    %c0_i32 = arith.constant 0 : i32
    %c0_i32_0 = arith.constant 0 : i32
    %c0_i32_1 = arith.constant 0 : i32
    %c0_i32_2 = arith.constant 0 : i32
    return %c0_i32, %c0_i32_0, %c0_i32_1 : i32, i32, i32
  }
  func.func @transform_6(%arg0: i32) -> (i32, i32, i32) {
    %c0_i32 = arith.constant 0 : i32
    %c0_i32_0 = arith.constant 0 : i32
    %c0_i32_1 = arith.constant 0 : i32
    %c0_i32_2 = arith.constant 0 : i32
    return %c0_i32, %c0_i32_0, %c0_i32_1 : i32, i32, i32
  }
  func.func @transform_7(%arg0: i32) -> (i32, i32, i32) {
    %c0_i32 = arith.constant 0 : i32
    %c0_i32_0 = arith.constant 0 : i32
    %c0_i32_1 = arith.constant 0 : i32
    %c0_i32_2 = arith.constant 0 : i32
    return %c0_i32, %c0_i32_0, %c0_i32_1 : i32, i32, i32
  }
  func.func @transform_8(%arg0: i32) -> (i32, i32, i32) {
    %c0_i32 = arith.constant 0 : i32
    %c0_i32_0 = arith.constant 0 : i32
    %c0_i32_1 = arith.constant 0 : i32
    %c0_i32_2 = arith.constant 0 : i32
    return %c0_i32, %c0_i32_0, %c0_i32_1 : i32, i32, i32
  }
  func.func @transform_9(%arg0: i32) -> (i32, i32, i32) {
    %c0_i32 = arith.constant 0 : i32
    %c0_i32_0 = arith.constant 0 : i32
    %c0_i32_1 = arith.constant 0 : i32
    %c0_i32_2 = arith.constant 0 : i32
    return %c0_i32, %c0_i32_0, %c0_i32_1 : i32, i32, i32
  }
  func.func @transform_10(%arg0: i32) -> (i32, i32, i32) {
    %c0_i32 = arith.constant 0 : i32
    %c0_i32_0 = arith.constant 0 : i32
    %c0_i32_1 = arith.constant 0 : i32
    %c0_i32_2 = arith.constant 0 : i32
    return %c0_i32, %c0_i32_0, %c0_i32_1 : i32, i32, i32
  }
  func.func @transform_11(%arg0: i32) -> (i32, i32, i32) {
    %c0_i32 = arith.constant 0 : i32
    %c0_i32_0 = arith.constant 0 : i32
    %c0_i32_1 = arith.constant 0 : i32
    %c0_i32_2 = arith.constant 0 : i32
    return %c0_i32, %c0_i32_0, %c0_i32_1 : i32, i32, i32
  }
  func.func @transform_12(%arg0: i32) -> (i32, i32, i32) {
    %c0_i32 = arith.constant 0 : i32
    %c0_i32_0 = arith.constant 0 : i32
    %c0_i32_1 = arith.constant 0 : i32
    %c0_i32_2 = arith.constant 0 : i32
    return %c0_i32, %c0_i32_0, %c0_i32_1 : i32, i32, i32
  }
  func.func @transform_13(%arg0: i32) -> (i32, i32) {
    %c0_i32 = arith.constant 0 : i32
    %c0_i32_0 = arith.constant 0 : i32
    %c0_i32_1 = arith.constant 0 : i32
    return %c0_i32, %c0_i32_0 : i32, i32
  }
  func.func @transform_14(%arg0: i32) -> (i32, i32) {
    %c0_i32 = arith.constant 0 : i32
    %c0_i32_0 = arith.constant 0 : i32
    %c0_i32_1 = arith.constant 0 : i32
    return %c0_i32, %c0_i32_0 : i32, i32
  }
}

module attributes {stable_mosaic.version = 11 : i64} {
  func.func @_pair_kernel(%arg0: i32, %arg1: memref<16x1xi32, #tpu.memory_space<vmem>>, %arg2: memref<16x1xi32, #tpu.memory_space<vmem>>, %arg3: memref<8x96xf32, #tpu.memory_space<vmem>>, %arg4: memref<8x96xf32, #tpu.memory_space<vmem>>, %arg5: memref<96x32xf32, #tpu.memory_space<vmem>>, %arg6: memref<1x32xf32, #tpu.memory_space<vmem>>, %arg7: memref<32x32xf32, #tpu.memory_space<vmem>>, %arg8: memref<1x32xf32, #tpu.memory_space<vmem>>, %arg9: memref<32x128xf32, #tpu.memory_space<vmem>>, %arg10: memref<1x128xf32, #tpu.memory_space<vmem>>, %arg11: memref<16x128xf32, #tpu.memory_space<vmem>>) attributes {dimension_semantics = [#tpu.dimension_semantics<parallel>], iteration_bounds = array<i64: 1>, scalar_prefetch = 0 : i64, scratch_operands = 0 : i64, tpu.core_type = #tpu.core_type<tc>, window_params = [{transform_indices = @transform_0, window_bounds = array<i64: 16, 1>}, {transform_indices = @transform_1, window_bounds = array<i64: 16, 1>}, {pipeline_mode = #tpu.pipeline_mode<synchronous>, transform_indices = @transform_2, window_bounds = array<i64: 8, 96>}, {pipeline_mode = #tpu.pipeline_mode<synchronous>, transform_indices = @transform_3, window_bounds = array<i64: 8, 96>}, {pipeline_mode = #tpu.pipeline_mode<synchronous>, transform_indices = @transform_4, window_bounds = array<i64: 96, 32>}, {pipeline_mode = #tpu.pipeline_mode<synchronous>, transform_indices = @transform_5, window_bounds = array<i64: 1, 32>}, {pipeline_mode = #tpu.pipeline_mode<synchronous>, transform_indices = @transform_6, window_bounds = array<i64: 32, 32>}, {pipeline_mode = #tpu.pipeline_mode<synchronous>, transform_indices = @transform_7, window_bounds = array<i64: 1, 32>}, {pipeline_mode = #tpu.pipeline_mode<synchronous>, transform_indices = @transform_8, window_bounds = array<i64: 32, 128>}, {pipeline_mode = #tpu.pipeline_mode<synchronous>, transform_indices = @transform_9, window_bounds = array<i64: 1, 128>}, {transform_indices = @transform_10, window_bounds = array<i64: 16, 128>}]} {
    %c0 = arith.constant 0 : index
    %c0_0 = arith.constant 0 : index
    %0 = vector.load %arg1[%c0, %c0_0] : memref<16x1xi32, #tpu.memory_space<vmem>>, vector<16x1xi32>
    %1 = tpu.iota {dimensions = array<i32: 1>} : vector<16x8xi32>
    %2 = vector.broadcast %0 : vector<16x1xi32> to vector<16x8xi32>
    %3 = arith.cmpi eq, %2, %1 : vector<16x8xi32>
    %4 = arith.extui %3 : vector<16x8xi1> to vector<16x8xi32>
    %5 = arith.sitofp %4 : vector<16x8xi32> to vector<16x8xf32>
    %c0_1 = arith.constant 0 : index
    %c0_2 = arith.constant 0 : index
    %6 = vector.load %arg2[%c0_1, %c0_2] : memref<16x1xi32, #tpu.memory_space<vmem>>, vector<16x1xi32>
    %7 = tpu.iota {dimensions = array<i32: 1>} : vector<16x8xi32>
    %8 = vector.broadcast %6 : vector<16x1xi32> to vector<16x8xi32>
    %9 = arith.cmpi eq, %8, %7 : vector<16x8xi32>
    %10 = arith.extui %9 : vector<16x8xi1> to vector<16x8xi32>
    %11 = arith.sitofp %10 : vector<16x8xi32> to vector<16x8xf32>
    %c0_3 = arith.constant 0 : index
    %c0_4 = arith.constant 0 : index
    %12 = vector.load %arg3[%c0_3, %c0_4] : memref<8x96xf32, #tpu.memory_space<vmem>>, vector<8x96xf32>
    %cst = arith.constant dense<0.000000e+00> : vector<16x96xf32>
    %13 = tpu.matmul %5, %12, %cst {dimension_numbers = #tpu.dot_dimension_numbers<[1], [0], [0], [1], [0, 0, 1, 1], [], []>} : vector<16x8xf32>, vector<8x96xf32>, vector<16x96xf32> -> vector<16x96xf32>
    %c0_5 = arith.constant 0 : index
    %c0_6 = arith.constant 0 : index
    %14 = vector.load %arg4[%c0_5, %c0_6] : memref<8x96xf32, #tpu.memory_space<vmem>>, vector<8x96xf32>
    %cst_7 = arith.constant dense<0.000000e+00> : vector<16x96xf32>
    %15 = tpu.matmul %11, %14, %cst_7 {dimension_numbers = #tpu.dot_dimension_numbers<[1], [0], [0], [1], [0, 0, 1, 1], [], []>} : vector<16x8xf32>, vector<8x96xf32>, vector<16x96xf32> -> vector<16x96xf32>
    %16 = arith.mulf %13, %15 : vector<16x96xf32>
    %c0_8 = arith.constant 0 : index
    %c0_9 = arith.constant 0 : index
    %17 = vector.load %arg5[%c0_8, %c0_9] : memref<96x32xf32, #tpu.memory_space<vmem>>, vector<96x32xf32>
    %cst_10 = arith.constant dense<0.000000e+00> : vector<16x32xf32>
    %18 = tpu.matmul %16, %17, %cst_10 {dimension_numbers = #tpu.dot_dimension_numbers<[1], [0], [0], [1], [0, 0, 1, 1], [], []>} : vector<16x96xf32>, vector<96x32xf32>, vector<16x32xf32> -> vector<16x32xf32>
    %c0_11 = arith.constant 0 : index
    %c0_12 = arith.constant 0 : index
    %19 = vector.load %arg6[%c0_11, %c0_12] : memref<1x32xf32, #tpu.memory_space<vmem>>, vector<1x32xf32>
    %20 = vector.broadcast %19 : vector<1x32xf32> to vector<16x32xf32>
    %21 = arith.addf %18, %20 : vector<16x32xf32>
    %cst_13 = arith.constant 0.000000e+00 : f32
    %22 = vector.broadcast %cst_13 : f32 to vector<16x32xf32>
    %23 = arith.maximumf %21, %22 : vector<16x32xf32>
    %c0_14 = arith.constant 0 : index
    %c0_15 = arith.constant 0 : index
    %24 = vector.load %arg7[%c0_14, %c0_15] : memref<32x32xf32, #tpu.memory_space<vmem>>, vector<32x32xf32>
    %cst_16 = arith.constant dense<0.000000e+00> : vector<16x32xf32>
    %25 = tpu.matmul %23, %24, %cst_16 {dimension_numbers = #tpu.dot_dimension_numbers<[1], [0], [0], [1], [0, 0, 1, 1], [], []>} : vector<16x32xf32>, vector<32x32xf32>, vector<16x32xf32> -> vector<16x32xf32>
    %c0_17 = arith.constant 0 : index
    %c0_18 = arith.constant 0 : index
    %26 = vector.load %arg8[%c0_17, %c0_18] : memref<1x32xf32, #tpu.memory_space<vmem>>, vector<1x32xf32>
    %27 = vector.broadcast %26 : vector<1x32xf32> to vector<16x32xf32>
    %28 = arith.addf %25, %27 : vector<16x32xf32>
    %cst_19 = arith.constant 0.000000e+00 : f32
    %29 = vector.broadcast %cst_19 : f32 to vector<16x32xf32>
    %30 = arith.maximumf %28, %29 : vector<16x32xf32>
    %c0_20 = arith.constant 0 : index
    %c0_21 = arith.constant 0 : index
    %31 = vector.load %arg9[%c0_20, %c0_21] : memref<32x128xf32, #tpu.memory_space<vmem>>, vector<32x128xf32>
    %cst_22 = arith.constant dense<0.000000e+00> : vector<16x128xf32>
    %32 = tpu.matmul %30, %31, %cst_22 {dimension_numbers = #tpu.dot_dimension_numbers<[1], [0], [0], [1], [0, 0, 1, 1], [], []>} : vector<16x32xf32>, vector<32x128xf32>, vector<16x128xf32> -> vector<16x128xf32>
    %c0_23 = arith.constant 0 : index
    %c0_24 = arith.constant 0 : index
    %33 = vector.load %arg10[%c0_23, %c0_24] : memref<1x128xf32, #tpu.memory_space<vmem>>, vector<1x128xf32>
    %34 = vector.broadcast %33 : vector<1x128xf32> to vector<16x128xf32>
    %35 = arith.addf %32, %34 : vector<16x128xf32>
    %c0_25 = arith.constant 0 : index
    %c0_26 = arith.constant 0 : index
    %36 = vector.load %arg11[%c0_25, %c0_26] : memref<16x128xf32, #tpu.memory_space<vmem>>, vector<16x128xf32>
    tpu.vector_store %arg11[%c0_25, %c0_26], %35 {strides = array<i32>} : memref<16x128xf32, #tpu.memory_space<vmem>>, vector<16x128xf32>,
    return
  }
  func.func @transform_0(%arg0: i32) -> (i32, i32) {
    %c0_i32 = arith.constant 0 : i32
    %c0_i32_0 = arith.constant 0 : i32
    return %arg0, %c0_i32 : i32, i32
  }
  func.func @transform_1(%arg0: i32) -> (i32, i32) {
    %c0_i32 = arith.constant 0 : i32
    %c0_i32_0 = arith.constant 0 : i32
    return %arg0, %c0_i32 : i32, i32
  }
  func.func @transform_2(%arg0: i32) -> (i32, i32) {
    %c0_i32 = arith.constant 0 : i32
    %c0_i32_0 = arith.constant 0 : i32
    %c0_i32_1 = arith.constant 0 : i32
    return %c0_i32, %c0_i32_0 : i32, i32
  }
  func.func @transform_3(%arg0: i32) -> (i32, i32) {
    %c0_i32 = arith.constant 0 : i32
    %c0_i32_0 = arith.constant 0 : i32
    %c0_i32_1 = arith.constant 0 : i32
    return %c0_i32, %c0_i32_0 : i32, i32
  }
  func.func @transform_4(%arg0: i32) -> (i32, i32) {
    %c0_i32 = arith.constant 0 : i32
    %c0_i32_0 = arith.constant 0 : i32
    %c0_i32_1 = arith.constant 0 : i32
    return %c0_i32, %c0_i32_0 : i32, i32
  }
  func.func @transform_5(%arg0: i32) -> (i32, i32) {
    %c0_i32 = arith.constant 0 : i32
    %c0_i32_0 = arith.constant 0 : i32
    %c0_i32_1 = arith.constant 0 : i32
    return %c0_i32, %c0_i32_0 : i32, i32
  }
  func.func @transform_6(%arg0: i32) -> (i32, i32) {
    %c0_i32 = arith.constant 0 : i32
    %c0_i32_0 = arith.constant 0 : i32
    %c0_i32_1 = arith.constant 0 : i32
    return %c0_i32, %c0_i32_0 : i32, i32
  }
  func.func @transform_7(%arg0: i32) -> (i32, i32) {
    %c0_i32 = arith.constant 0 : i32
    %c0_i32_0 = arith.constant 0 : i32
    %c0_i32_1 = arith.constant 0 : i32
    return %c0_i32, %c0_i32_0 : i32, i32
  }
  func.func @transform_8(%arg0: i32) -> (i32, i32) {
    %c0_i32 = arith.constant 0 : i32
    %c0_i32_0 = arith.constant 0 : i32
    %c0_i32_1 = arith.constant 0 : i32
    return %c0_i32, %c0_i32_0 : i32, i32
  }
  func.func @transform_9(%arg0: i32) -> (i32, i32) {
    %c0_i32 = arith.constant 0 : i32
    %c0_i32_0 = arith.constant 0 : i32
    %c0_i32_1 = arith.constant 0 : i32
    return %c0_i32, %c0_i32_0 : i32, i32
  }
  func.func @transform_10(%arg0: i32) -> (i32, i32) {
    %c0_i32 = arith.constant 0 : i32
    %c0_i32_0 = arith.constant 0 : i32
    return %arg0, %c0_i32 : i32, i32
  }
}

</mosaic_0001>

<llo_original>
// kernel: _lambda_.3
$region0: #{_lambda_.3}
  #allocation0 [shape = 'u32[]', space=smem, size = 0x4, offset = 0x4, fixed_abs, tag = 'smem constant byte address 0x4 - core index']
  #allocation1 [shape = 'u32[144,128]{1,0:T(1,128)}', space=vmem, size = 0x12000, scoped, tag = 'internal scratch']
  %s0 = inlined_call_operand.vmem [shape: f32[2,8,64], index: 0, kind: input, shape index: {}]
  %s1 = inlined_call_operand.vmem [shape: f32[2,8,128], index: 1, kind: input, shape index: {}]
  %s2 = inlined_call_operand.vmem [shape: f32[2,8,8], index: 2, kind: input, shape index: {}]
  %s3 = inlined_call_operand.hbm [shape: f32[2,64,32], index: 3, kind: input, shape index: {}]
  %s4 = inlined_call_operand.vmem [shape: f32[2,1,32], index: 4, kind: input, shape index: {}]
  %s5 = inlined_call_operand.vmem [shape: f32[2,128,32], index: 5, kind: input, shape index: {}]
  %s6 = inlined_call_operand.vmem [shape: f32[2,1,32], index: 6, kind: input, shape index: {}]
  %s7 = inlined_call_operand.vmem [shape: f32[2,8,32], index: 7, kind: input, shape index: {}]
  %s8 = inlined_call_operand.vmem [shape: f32[2,1,32], index: 8, kind: input, shape index: {}]
  %s9 = inlined_call_operand.hbm [shape: f32[2,32,32], index: 9, kind: input, shape index: {}]
  %s10 = inlined_call_operand.vmem [shape: f32[2,1,32], index: 10, kind: input, shape index: {}]
  %s11 = inlined_call_operand.vmem [shape: f32[2,3,8,32], index: 11, kind: output, shape index: {}]
  %s12 = sld [smem:[#allocation0]]
  $region85: #{_lambda_.3} parent=0
    _
  %s14 = ssub.s32 1, %s12
  %s15 = scalar_select 0, %s14, %s12
  $region1: #{_lambda_.3} parent=0
    #allocation2 [shape = 'u8[65536]{0}', space=vmem, size = 0x10000, scoped, tag = 'input window, operand 3']
    #allocation3 [shape = 's32[2]{0}', space=sflag, size = 0x8, scoped, tag = 'scoped memory for _lambda_.3']
    #allocation4 [shape = 'u8[32768]{0}', space=vmem, size = 0x8000, scoped, tag = 'input window, operand 9']
    #allocation5 [shape = 's32[2]{0}', space=sflag, size = 0x8, scoped, tag = 'scoped memory for _lambda_.3']
    %16 = vsyncpa [#allocation3], 0
    %s17 = scalar_lea.sflag [#allocation3], 1
    %18 = vsyncpa %s17, 0
    %19 = vsyncpa [#allocation5], 0
    %s20 = scalar_lea.sflag [#allocation5], 1
    %21 = vsyncpa %s20, 0
    loop: start=0, step=1, limit=4
    $region2: #{_lambda_.3} parent=1 // loop_pre_header
      _
    $region3: #{_lambda_.3} parent=1 // loop_header
      %s23 = sphi 0, %s27
      %p24 = scmp.ge.s32.totalorder %s23, 4
      %s33 = sphi 0, %s35
      %s36 = sphi 0, %s33
      %s37 = sphi 0, %s36
      %s53 = sphi 0, %s37
      %s59 = sphi 0, %s61
      %s62 = sphi 0, %s59
      %s63 = sphi 0, %s62
      %s79 = sphi 0, %s63
      %s85 = sphi 0, %s87
      %s88 = sphi 0, %s85
      %s89 = sphi 0, %s88
      %s105 = sphi 0, %s89
      %s111 = sphi 0, %s113
      %s114 = sphi 0, %s111
      %s115 = sphi 0, %s114
      %s131 = sphi 0, %s115
      %s137 = sphi 0, %s139
      %s140 = sphi 0, %s137
      %s141 = sphi 0, %s140
      %s157 = sphi 0, %s141
      %s163 = sphi 0, %s165
      %s166 = sphi 0, %s163
      %s167 = sphi 0, %s166
      %s183 = sphi 0, %s167
      %s189 = sphi 0, %s191
      %s192 = sphi 0, %s189
      %s193 = sphi 0, %s192
      %s209 = sphi 0, %s193
      %s215 = sphi 0, %s217
      %s218 = sphi 0, %s215
      %s219 = sphi 0, %s218
      %s235 = sphi 0, %s219
      %s241 = sphi 0, %s243
      %s244 = sphi 0, %s241
      %s245 = sphi 0, %s244
      %s261 = sphi 0, %s245
      %s267 = sphi 0, %s269
      %s270 = sphi 0, %s267
      %s271 = sphi 0, %s270
      %s287 = sphi 0, %s271
      %s293 = sphi 0, %s295
      %s296 = sphi 0, %s293
      %s297 = sphi 0, %s296
      %s313 = sphi 0, %s297
      %s319 = sphi 0, %s321
      %s322 = sphi 0, %s319
      %s323 = sphi 0, %s322
      %s339 = sphi 0, %s323
    $region4: #{_lambda_.3} parent=1 // loop_header_branch
      %26 = sbr.rel (%p24) target = $region8
    $region5: #{_lambda_.3} parent=1 // loop_body
      %s28 = ssub.s32 %s23, 1
      %s29 = ssub.s32 %s23, 2
      %s30 = sadd.s32 %s23, 1
      %s31 = ssub.s32 %s23, %s30
      %p32 = scmp.eq.s32.totalorder %s31, 0
      %s34 = sadd.s32 %s33, 1
      %s35 = scalar_select %p32, %s33, %s34
      %p38 = pneg %p32
      %p39 = scmp.eq.s32.totalorder %s23, 1
      %p40 = por %p38, %p39
      %p41 = scmp.ne.s32.totalorder %s33, %s36
      %p42 = scmp.eq.s32.totalorder %s23, 0
      %p43 = por %p41, %p42
      %p44 = scmp.ne.s32.totalorder %s33, %s36
      %p45 = scmp.eq.s32.totalorder %s28, 1
      %p46 = por %p44, %p45
      %p47 = scmp.ne.s32.totalorder %s36, %s37
      %p48 = scmp.eq.s32.totalorder %s28, 0
      %p49 = por %p47, %p48
      %p50 = scmp.ne.s32.totalorder %s36, %s37
      %p51 = scmp.eq.s32.totalorder %s29, 1
      %p52 = por %p50, %p51
      %p54 = scmp.ne.s32.totalorder %s37, %s53
      %p55 = scmp.eq.s32.totalorder %s29, 0
      %p56 = por %p54, %p55
      %s57 = ssub.s32 %s23, %s30
      %p58 = scmp.eq.s32.totalorder %s57, 0
      %s60 = sadd.s32 %s59, 1
      %s61 = scalar_select %p58, %s59, %s60
      %p64 = pneg %p58
      %p65 = scmp.eq.s32.totalorder %s23, 1
      %p66 = por %p64, %p65
      %p67 = scmp.ne.s32.totalorder %s59, %s62
      %p68 = scmp.eq.s32.totalorder %s23, 0
      %p69 = por %p67, %p68
      %p70 = scmp.ne.s32.totalorder %s59, %s62
      %p71 = scmp.eq.s32.totalorder %s28, 1
      %p72 = por %p70, %p71
      %p73 = scmp.ne.s32.totalorder %s62, %s63
      %p74 = scmp.eq.s32.totalorder %s28, 0
      %p75 = por %p73, %p74
      %p76 = scmp.ne.s32.totalorder %s62, %s63
      %p77 = scmp.eq.s32.totalorder %s29, 1
      %p78 = por %p76, %p77
      %p80 = scmp.ne.s32.totalorder %s63, %s79
      %p81 = scmp.eq.s32.totalorder %s29, 0
      %p82 = por %p80, %p81
      %s83 = ssub.s32 %s23, %s30
      %p84 = scmp.eq.s32.totalorder %s83, 0
      %s86 = sadd.s32 %s85, 1
      %s87 = scalar_select %p84, %s85, %s86
      %p90 = pneg %p84
      %p91 = scmp.eq.s32.totalorder %s23, 1
      %p92 = por %p90, %p91
      %p93 = scmp.ne.s32.totalorder %s85, %s88
      %p94 = scmp.eq.s32.totalorder %s23, 0
      %p95 = por %p93, %p94
      %p96 = scmp.ne.s32.totalorder %s85, %s88
      %p97 = scmp.eq.s32.totalorder %s28, 1
      %p98 = por %p96, %p97
      %p99 = scmp.ne.s32.totalorder %s88, %s89
      %p100 = scmp.eq.s32.totalorder %s28, 0
      %p101 = por %p99, %p100
      %p102 = scmp.ne.s32.totalorder %s88, %s89
      %p103 = scmp.eq.s32.totalorder %s29, 1
      %p104 = por %p102, %p103
      %p106 = scmp.ne.s32.totalorder %s89, %s105
      %p107 = scmp.eq.s32.totalorder %s29, 0
      %p108 = por %p106, %p107
      %s109 = ssub.s32 %s23, %s30
      %p110 = scmp.eq.s32.totalorder %s109, 0
      %s112 = sadd.s32 %s111, 1
      %s113 = scalar_select %p110, %s111, %s112
      %p116 = pneg %p110
      %p117 = scmp.eq.s32.totalorder %s23, 1
      %p118 = por %p116, %p117
      %p119 = scmp.ne.s32.totalorder %s111, %s114
      %p120 = scmp.eq.s32.totalorder %s23, 0
      %p121 = por %p119, %p120
      %p122 = scmp.ne.s32.totalorder %s111, %s114
      %p123 = scmp.eq.s32.totalorder %s28, 1
      %p124 = por %p122, %p123
      %p125 = scmp.ne.s32.totalorder %s114, %s115
      %p126 = scmp.eq.s32.totalorder %s28, 0
      %p127 = por %p125, %p126
      %p128 = scmp.ne.s32.totalorder %s114, %s115
      %p129 = scmp.eq.s32.totalorder %s29, 1
      %p130 = por %p128, %p129
      %p132 = scmp.ne.s32.totalorder %s115, %s131
      %p133 = scmp.eq.s32.totalorder %s29, 0
      %p134 = por %p132, %p133
      %s135 = ssub.s32 %s23, %s30
      %p136 = scmp.eq.s32.totalorder %s135, 0
      %s138 = sadd.s32 %s137, 1
      %s139 = scalar_select %p136, %s137, %s138
      %p142 = pneg %p136
      %p143 = scmp.eq.s32.totalorder %s23, 1
      %p144 = por %p142, %p143
      %p145 = scmp.ne.s32.totalorder %s137, %s140
      %p146 = scmp.eq.s32.totalorder %s23, 0
      %p147 = por %p145, %p146
      %p148 = scmp.ne.s32.totalorder %s137, %s140
      %p149 = scmp.eq.s32.totalorder %s28, 1
      %p150 = por %p148, %p149
      %p151 = scmp.ne.s32.totalorder %s140, %s141
      %p152 = scmp.eq.s32.totalorder %s28, 0
      %p153 = por %p151, %p152
      %p154 = scmp.ne.s32.totalorder %s140, %s141
      %p155 = scmp.eq.s32.totalorder %s29, 1
      %p156 = por %p154, %p155
      %p158 = scmp.ne.s32.totalorder %s141, %s157
      %p159 = scmp.eq.s32.totalorder %s29, 0
      %p160 = por %p158, %p159
      %s161 = ssub.s32 %s23, %s30
      %p162 = scmp.eq.s32.totalorder %s161, 0
      %s164 = sadd.s32 %s163, 1
      %s165 = scalar_select %p162, %s163, %s164
      %p168 = pneg %p162
      %p169 = scmp.eq.s32.totalorder %s23, 1
      %p170 = por %p168, %p169
      %p171 = scmp.ne.s32.totalorder %s163, %s166
      %p172 = scmp.eq.s32.totalorder %s23, 0
      %p173 = por %p171, %p172
      %p174 = scmp.ne.s32.totalorder %s163, %s166
      %p175 = scmp.eq.s32.totalorder %s28, 1
      %p176 = por %p174, %p175
      %p177 = scmp.ne.s32.totalorder %s166, %s167
      %p178 = scmp.eq.s32.totalorder %s28, 0
      %p179 = por %p177, %p178
      %p180 = scmp.ne.s32.totalorder %s166, %s167
      %p181 = scmp.eq.s32.totalorder %s29, 1
      %p182 = por %p180, %p181
      %p184 = scmp.ne.s32.totalorder %s167, %s183
      %p185 = scmp.eq.s32.totalorder %s29, 0
      %p186 = por %p184, %p185
      %s187 = ssub.s32 %s23, %s30
      %p188 = scmp.eq.s32.totalorder %s187, 0
      %s190 = sadd.s32 %s189, 1
      %s191 = scalar_select %p188, %s189, %s190
      %p194 = pneg %p188
      %p195 = scmp.eq.s32.totalorder %s23, 1
      %p196 = por %p194, %p195
      %p197 = scmp.ne.s32.totalorder %s189, %s192
      %p198 = scmp.eq.s32.totalorder %s23, 0
      %p199 = por %p197, %p198
      %p200 = scmp.ne.s32.totalorder %s189, %s192
      %p201 = scmp.eq.s32.totalorder %s28, 1
      %p202 = por %p200, %p201
      %p203 = scmp.ne.s32.totalorder %s192, %s193
      %p204 = scmp.eq.s32.totalorder %s28, 0
      %p205 = por %p203, %p204
      %p206 = scmp.ne.s32.totalorder %s192, %s193
      %p207 = scmp.eq.s32.totalorder %s29, 1
      %p208 = por %p206, %p207
      %p210 = scmp.ne.s32.totalorder %s193, %s209
      %p211 = scmp.eq.s32.totalorder %s29, 0
      %p212 = por %p210, %p211
      %s213 = ssub.s32 %s23, %s30
      %p214 = scmp.eq.s32.totalorder %s213, 0
      %s216 = sadd.s32 %s215, 1
      %s217 = scalar_select %p214, %s215, %s216
      %p220 = pneg %p214
      %p221 = scmp.eq.s32.totalorder %s23, 1
      %p222 = por %p220, %p221
      %p223 = scmp.ne.s32.totalorder %s215, %s218
      %p224 = scmp.eq.s32.totalorder %s23, 0
      %p225 = por %p223, %p224
      %p226 = scmp.ne.s32.totalorder %s215, %s218
      %p227 = scmp.eq.s32.totalorder %s28, 1
      %p228 = por %p226, %p227
      %p229 = scmp.ne.s32.totalorder %s218, %s219
      %p230 = scmp.eq.s32.totalorder %s28, 0
      %p231 = por %p229, %p230
      %p232 = scmp.ne.s32.totalorder %s218, %s219
      %p233 = scmp.eq.s32.totalorder %s29, 1
      %p234 = por %p232, %p233
      %p236 = scmp.ne.s32.totalorder %s219, %s235
      %p237 = scmp.eq.s32.totalorder %s29, 0
      %p238 = por %p236, %p237
      %s239 = ssub.s32 %s23, %s30
      %p240 = scmp.eq.s32.totalorder %s239, 0
      %s242 = sadd.s32 %s241, 1
      %s243 = scalar_select %p240, %s241, %s242
      %p246 = pneg %p240
      %p247 = scmp.eq.s32.totalorder %s23, 1
      %p248 = por %p246, %p247
      %p249 = scmp.ne.s32.totalorder %s241, %s244
      %p250 = scmp.eq.s32.totalorder %s23, 0
      %p251 = por %p249, %p250
      %p252 = scmp.ne.s32.totalorder %s241, %s244
      %p253 = scmp.eq.s32.totalorder %s28, 1
      %p254 = por %p252, %p253
      %p255 = scmp.ne.s32.totalorder %s244, %s245
      %p256 = scmp.eq.s32.totalorder %s28, 0
      %p257 = por %p255, %p256
      %p258 = scmp.ne.s32.totalorder %s244, %s245
      %p259 = scmp.eq.s32.totalorder %s29, 1
      %p260 = por %p258, %p259
      %p262 = scmp.ne.s32.totalorder %s245, %s261
      %p263 = scmp.eq.s32.totalorder %s29, 0
      %p264 = por %p262, %p263
      %s265 = ssub.s32 %s23, %s30
      %p266 = scmp.eq.s32.totalorder %s265, 0
      %s268 = sadd.s32 %s267, 1
      %s269 = scalar_select %p266, %s267, %s268
      %p272 = pneg %p266
      %p273 = scmp.eq.s32.totalorder %s23, 1
      %p274 = por %p272, %p273
      %p275 = scmp.ne.s32.totalorder %s267, %s270
      %p276 = scmp.eq.s32.totalorder %s23, 0
      %p277 = por %p275, %p276
      %p278 = scmp.ne.s32.totalorder %s267, %s270
      %p279 = scmp.eq.s32.totalorder %s28, 1
      %p280 = por %p278, %p279
      %p281 = scmp.ne.s32.totalorder %s270, %s271
      %p282 = scmp.eq.s32.totalorder %s28, 0
      %p283 = por %p281, %p282
      %p284 = scmp.ne.s32.totalorder %s270, %s271
      %p285 = scmp.eq.s32.totalorder %s29, 1
      %p286 = por %p284, %p285
      %p288 = scmp.ne.s32.totalorder %s271, %s287
      %p289 = scmp.eq.s32.totalorder %s29, 0
      %p290 = por %p288, %p289
      %s291 = ssub.s32 %s23, %s30
      %p292 = scmp.eq.s32.totalorder %s291, 0
      %s294 = sadd.s32 %s293, 1
      %s295 = scalar_select %p292, %s293, %s294
      %p298 = pneg %p292
      %p299 = scmp.eq.s32.totalorder %s23, 1
      %p300 = por %p298, %p299
      %p301 = scmp.ne.s32.totalorder %s293, %s296
      %p302 = scmp.eq.s32.totalorder %s23, 0
      %p303 = por %p301, %p302
      %p304 = scmp.ne.s32.totalorder %s293, %s296
      %p305 = scmp.eq.s32.totalorder %s28, 1
      %p306 = por %p304, %p305
      %p307 = scmp.ne.s32.totalorder %s296, %s297
      %p308 = scmp.eq.s32.totalorder %s28, 0
      %p309 = por %p307, %p308
      %p310 = scmp.ne.s32.totalorder %s296, %s297
      %p311 = scmp.eq.s32.totalorder %s29, 1
      %p312 = por %p310, %p311
      %p314 = scmp.ne.s32.totalorder %s297, %s313
      %p315 = scmp.eq.s32.totalorder %s29, 0
      %p316 = por %p314, %p315
      %s317 = ssub.s32 %s23, %s30
      %p318 = scmp.eq.s32.totalorder %s317, 0
      %s320 = sadd.s32 %s319, 1
      %s321 = scalar_select %p318, %s319, %s320
      %p324 = pneg %p318
      %p325 = scmp.eq.s32.totalorder %s23, 1
      %p326 = por %p324, %p325
      %p327 = scmp.ne.s32.totalorder %s319, %s322
      %p328 = scmp.eq.s32.totalorder %s23, 0
      %p329 = por %p327, %p328
      %p330 = scmp.ne.s32.totalorder %s319, %s322
      %p331 = scmp.eq.s32.totalorder %s28, 1
      %p332 = por %p330, %p331
      %p333 = scmp.ne.s32.totalorder %s322, %s323
      %p334 = scmp.eq.s32.totalorder %s28, 0
      %p335 = por %p333, %p334
      %p336 = scmp.ne.s32.totalorder %s322, %s323
      %p337 = scmp.eq.s32.totalorder %s29, 1
      %p338 = por %p336, %p337
      %p340 = scmp.ne.s32.totalorder %s323, %s339
      %p341 = scmp.eq.s32.totalorder %s29, 0
      %p342 = por %p340, %p341
      %p343 = scmp.le.s32.totalorder 1, %s23
      %p344 = scmp.lt.s32.totalorder %s23, 3
      %p345 = pnand %p343, %p344
      %p346 = pneg %p345
      // Predicated region
      $region9: #{_lambda_.3} parent=5 // pred_check
        _
      $region10: #{_lambda_.3} parent=5 // pred_check_branch
        %348 = sbr.rel (%p345) target = $region12
      $region11: #{_lambda_.3} parent=5 // pred_region
        %s349 = ssub.s32 %s23, 1
      $region12: #{_lambda_.3} parent=5 // pred_fallthru
        _
      %p350 = scmp.lt.s32.totalorder %s23, 2
      // Predicated region
      $region13: #{_lambda_.3} parent=5 // pred_check
        %p351 = pneg %p350
      $region14: #{_lambda_.3} parent=5 // pred_check_branch
        %353 = sbr.rel (%p351) target = $region16
      $region15: #{_lambda_.3} parent=5 // pred_region
        // Predicated region
        $region17: #{_lambda_.3} parent=15 // pred_check
          %p354 = pneg %p43
        $region18: #{_lambda_.3} parent=15 // pred_check_branch
          %356 = sbr.rel (%p354) target = $region20
        $region19: #{_lambda_.3} parent=15 // pred_region
          %p357 = scmp.lt.s32.totalorder %s23, 1
          %s358 = scalar_select %p357, %s23, 1
          %s359 = smul.addr %s358, 8
          %s360 = scalar_lea.vmem %s0, %s359
        $region20: #{_lambda_.3} parent=15 // pred_fallthru
          _
        // Predicated region
        $region21: #{_lambda_.3} parent=15 // pred_check
          %p361 = pneg %p69
        $region22: #{_lambda_.3} parent=15 // pred_check_branch
          %363 = sbr.rel (%p361) target = $region24
        $region23: #{_lambda_.3} parent=15 // pred_region
          %p364 = scmp.lt.s32.totalorder %s23, 1
          %s365 = scalar_select %p364, %s23, 1
          %s366 = smul.addr %s365, 8
          %s367 = scalar_lea.vmem %s1, %s366
        $region24: #{_lambda_.3} parent=15 // pred_fallthru
          _
        // Predicated region
        $region25: #{_lambda_.3} parent=15 // pred_check
          %p368 = pneg %p95
        $region26: #{_lambda_.3} parent=15 // pred_check_branch
          %370 = sbr.rel (%p368) target = $region28
        $region27: #{_lambda_.3} parent=15 // pred_region
          %p371 = scmp.lt.s32.totalorder %s23, 1
          %s372 = scalar_select %p371, %s23, 1
          %s373 = smul.addr %s372, 8
          %s374 = scalar_lea.vmem %s2, %s373
        $region28: #{_lambda_.3} parent=15 // pred_fallthru
          _
        // Predicated region
        $region29: #{_lambda_.3} parent=15 // pred_check
          %p375 = pneg %p121
        $region30: #{_lambda_.3} parent=15 // pred_check_branch
          %377 = sbr.rel (%p375) target = $region32
        $region31: #{_lambda_.3} parent=15 // pred_region
          %s378 = sand.u32 %s111, 1
          %s379 = scalar_lea.sflag [#allocation3], %s378
          %s380 = sand.u32 %s111, 1
          %s381 = smul.addr %s380, 64
          %s382 = scalar_lea.vmem [#allocation2], %s381
          %s384 = ssub.s32 1024, 1024
          %385 = vsyncadd %s379, %s384
          %s386 = smul.addr %s23, 8
          %s387 = smul.addr %s386, 128
          %s388 = scalar_lea.hbm %s3, %s387
          %s389 = sshll.u32 %s382, 4
          %s390 = int_to_ptr.vmem [resolvable:$true] %s389
          %395 = dma.hbm_to_vmem [thread:$0]  %s388, 1024, %s390, %s379, 128, 128, 8
        $region32: #{_lambda_.3} parent=15 // pred_fallthru
          _
        // Predicated region
        $region33: #{_lambda_.3} parent=15 // pred_check
          %p396 = pneg %p147
        $region34: #{_lambda_.3} parent=15 // pred_check_branch
          %398 = sbr.rel (%p396) target = $region36
        $region35: #{_lambda_.3} parent=15 // pred_region
          %p399 = scmp.lt.s32.totalorder %s23, 1
          %s400 = scalar_select %p399, %s23, 1
          %s401 = scalar_lea.vmem %s4, %s400
        $region36: #{_lambda_.3} parent=15 // pred_fallthru
          _
        // Predicated region
        $region37: #{_lambda_.3} parent=15 // pred_check
          %p402 = pneg %p173
        $region38: #{_lambda_.3} parent=15 // pred_check_branch
          %404 = sbr.rel (%p402) target = $region40
        $region39: #{_lambda_.3} parent=15 // pred_region
          %p405 = scmp.lt.s32.totalorder %s23, 1
          %s406 = scalar_select %p405, %s23, 1
          %s407 = smul.addr %s406, 16
          %s408 = smul.addr %s407, 8
          %s409 = scalar_lea.vmem %s5, %s408
        $region40: #{_lambda_.3} parent=15 // pred_fallthru
          _
        // Predicated region
        $region41: #{_lambda_.3} parent=15 // pred_check
          %p410 = pneg %p199
        $region42: #{_lambda_.3} parent=15 // pred_check_branch
          %412 = sbr.rel (%p410) target = $region44
        $region43: #{_lambda_.3} parent=15 // pred_region
          %p413 = scmp.lt.s32.totalorder %s23, 1
          %s414 = scalar_select %p413, %s23, 1
          %s415 = scalar_lea.vmem %s6, %s414
        $region44: #{_lambda_.3} parent=15 // pred_fallthru
          _
        // Predicated region
        $region45: #{_lambda_.3} parent=15 // pred_check
          %p416 = pneg %p225
        $region46: #{_lambda_.3} parent=15 // pred_check_branch
          %418 = sbr.rel (%p416) target = $region48
        $region47: #{_lambda_.3} parent=15 // pred_region
          %p419 = scmp.lt.s32.totalorder %s23, 1
          %s420 = scalar_select %p419, %s23, 1
          %s421 = smul.addr %s420, 8
          %s422 = scalar_lea.vmem %s7, %s421
        $region48: #{_lambda_.3} parent=15 // pred_fallthru
          _
        // Predicated region
        $region49: #{_lambda_.3} parent=15 // pred_check
          %p423 = pneg %p251
        $region50: #{_lambda_.3} parent=15 // pred_check_branch
          %425 = sbr.rel (%p423) target = $region52
        $region51: #{_lambda_.3} parent=15 // pred_region
          %p426 = scmp.lt.s32.totalorder %s23, 1
          %s427 = scalar_select %p426, %s23, 1
          %s428 = scalar_lea.vmem %s8, %s427
        $region52: #{_lambda_.3} parent=15 // pred_fallthru
          _
        // Predicated region
        $region53: #{_lambda_.3} parent=15 // pred_check
          %p429 = pneg %p277
        $region54: #{_lambda_.3} parent=15 // pred_check_branch
          %431 = sbr.rel (%p429) target = $region56
        $region55: #{_lambda_.3} parent=15 // pred_region
          %s432 = sand.u32 %s267, 1
          %s433 = scalar_lea.sflag [#allocation5], %s432
          %s434 = sand.u32 %s267, 1
          %s435 = smul.addr %s434, 32
          %s436 = scalar_lea.vmem [#allocation4], %s435
          %s438 = ssub.s32 512, 512
          %439 = vsyncadd %s433, %s438
          %s440 = smul.addr %s23, 4
          %s441 = smul.addr %s440, 128
          %s442 = scalar_lea.hbm %s9, %s441
          %s443 = sshll.u32 %s436, 4
          %s444 = int_to_ptr.vmem [resolvable:$true] %s443
          %449 = dma.hbm_to_vmem [thread:$0]  %s442, 512, %s444, %s433, 128, 128, 8
        $region56: #{_lambda_.3} parent=15 // pred_fallthru
          _
        // Predicated region
        $region57: #{_lambda_.3} parent=15 // pred_check
          %p450 = pneg %p303
        $region58: #{_lambda_.3} parent=15 // pred_check_branch
          %452 = sbr.rel (%p450) target = $region60
        $region59: #{_lambda_.3} parent=15 // pred_region
          %p453 = scmp.lt.s32.totalorder %s23, 1
          %s454 = scalar_select %p453, %s23, 1
          %s455 = scalar_lea.vmem %s10, %s454
        $region60: #{_lambda_.3} parent=15 // pred_fallthru
          _
      $region16: #{_lambda_.3} parent=5 // pred_fallthru
        _
      %p456 = scmp.le.s32.totalorder 1, %s23
      %p457 = scmp.lt.s32.totalorder %s23, 3
      %p458 = pnand %p456, %p457
      %p459 = pneg %p458
      // Predicated region
      $region61: #{_lambda_.3} parent=5 // pred_check
        _
      $region62: #{_lambda_.3} parent=5 // pred_check_branch
        %461 = sbr.rel (%p458) target = $region64
      $region63: #{_lambda_.3} parent=5 // pred_region
        %s462 = ssub.s32 %s23, 1
        %s463 = sand.u32 %s114, 1
        %s464 = scalar_lea.sflag [#allocation3], %s463
        %s465 = sand.u32 %s114, 1
        %s466 = smul.addr %s465, 64
        %s467 = scalar_lea.vmem [#allocation2], %s466
        // Predicated region
        $region65: #{_lambda_.3} parent=63 // pred_check
          %p468 = pneg %p127
        $region66: #{_lambda_.3} parent=63 // pred_check_branch
          %470 = sbr.rel (%p468) target = $region68
        $region67: #{_lambda_.3} parent=63 // pred_region
          %471 = dma.done %s464, 1024
        $region68: #{_lambda_.3} parent=63 // pred_fallthru
          _
        %s472 = sand.u32 %s270, 1
        %s473 = scalar_lea.sflag [#allocation5], %s472
        %s474 = sand.u32 %s270, 1
        %s475 = smul.addr %s474, 32
        %s476 = scalar_lea.vmem [#allocation4], %s475
        // Predicated region
        $region69: #{_lambda_.3} parent=63 // pred_check
          %p477 = pneg %p283
        $region70: #{_lambda_.3} parent=63 // pred_check_branch
          %479 = sbr.rel (%p477) target = $region72
        $region71: #{_lambda_.3} parent=63 // pred_region
          %480 = dma.done %s473, 512
        $region72: #{_lambda_.3} parent=63 // pred_fallthru
          _
        %p481 = scmp.lt.s32.totalorder %s28, 1
        %s482 = scalar_select %p481, %s28, 1
        %s483 = smul.addr %s482, 8
        %s484 = scalar_lea.vmem %s0, %s483
        %p485 = pneg %p49
        %p486 = pneg %p46
        %p487 = scmp.lt.s32.totalorder %s28, 1
        %s488 = scalar_select %p487, %s28, 1
        %s489 = smul.addr %s488, 8
        %s490 = scalar_lea.vmem %s1, %s489
        %p491 = pneg %p75
        %p492 = pneg %p72
        %p493 = scmp.lt.s32.totalorder %s28, 1
        %s494 = scalar_select %p493, %s28, 1
        %s495 = smul.addr %s494, 8
        %s496 = scalar_lea.vmem %s2, %s495
        %p497 = pneg %p101
        %p498 = pneg %p98
        %s499 = sand.u32 %s114, 1
        %s500 = scalar_lea.sflag [#allocation3], %s499
        %s501 = sand.u32 %s114, 1
        %s502 = smul.addr %s501, 64
        %s503 = scalar_lea.vmem [#allocation2], %s502
        %p504 = pneg %p127
        %p505 = pneg %p124
        %p506 = scmp.lt.s32.totalorder %s28, 1
        %s507 = scalar_select %p506, %s28, 1
        %s508 = scalar_lea.vmem %s4, %s507
        %p509 = pneg %p153
        %p510 = pneg %p150
        %p511 = scmp.lt.s32.totalorder %s28, 1
        %s512 = scalar_select %p511, %s28, 1
        %s513 = smul.addr %s512, 16
        %s514 = smul.addr %s513, 8
        %s515 = scalar_lea.vmem %s5, %s514
        %p516 = pneg %p179
        %p517 = pneg %p176
        %p518 = scmp.lt.s32.totalorder %s28, 1
        %s519 = scalar_select %p518, %s28, 1
        %s520 = scalar_lea.vmem %s6, %s519
        %p521 = pneg %p205
        %p522 = pneg %p202
        %p523 = scmp.lt.s32.totalorder %s28, 1
        %s524 = scalar_select %p523, %s28, 1
        %s525 = smul.addr %s524, 8
        %s526 = scalar_lea.vmem %s7, %s525
        %p527 = pneg %p231
        %p528 = pneg %p228
        %p529 = scmp.lt.s32.totalorder %s28, 1
        %s530 = scalar_select %p529, %s28, 1
        %s531 = scalar_lea.vmem %s8, %s530
        %p532 = pneg %p257
        %p533 = pneg %p254
        %s534 = sand.u32 %s270, 1
        %s535 = scalar_lea.sflag [#allocation5], %s534
        %s536 = sand.u32 %s270, 1
        %s537 = smul.addr %s536, 32
        %s538 = scalar_lea.vmem [#allocation4], %s537
        %p539 = pneg %p283
        %p540 = pneg %p280
        %p541 = scmp.lt.s32.totalorder %s28, 1
        %s542 = scalar_select %p541, %s28, 1
        %s543 = scalar_lea.vmem %s10, %s542
        %p544 = pneg %p309
        %p545 = pneg %p306
        %p546 = pneg %p335
        %p547 = pneg %p332
        %p548 = scmp.lt.s32.totalorder %s28, 1
        %s549 = scalar_select %p548, %s28, 1
        %s550 = smul.addr %s549, 3
        %s551 = smul.addr %s550, 8
        %s552 = scalar_lea.vmem %s11, %s551
        %p553 = scmp.lt.s32.totalorder %s28, 1
        %s554 = scalar_select %p553, %s28, 1
        %s555 = smul.addr %s554, 8
        %s556 = scalar_lea.vmem %s0, %s555
        %p557 = scmp.lt.s32.totalorder %s28, 1
        %s558 = scalar_select %p557, %s28, 1
        %s559 = smul.addr %s558, 8
        %s560 = scalar_lea.vmem %s1, %s559
        %p561 = scmp.lt.s32.totalorder %s28, 1
        %s562 = scalar_select %p561, %s28, 1
        %s563 = smul.addr %s562, 8
        %s564 = scalar_lea.vmem %s2, %s563
        %p565 = scmp.lt.s32.totalorder %s28, 1
        %s566 = scalar_select %p565, %s28, 1
        %s567 = scalar_lea.vmem %s4, %s566
        %p568 = scmp.lt.s32.totalorder %s28, 1
        %s569 = scalar_select %p568, %s28, 1
        %s570 = smul.addr %s569, 16
        %s571 = smul.addr %s570, 8
        %s572 = scalar_lea.vmem %s5, %s571
        %p573 = scmp.lt.s32.totalorder %s28, 1
        %s574 = scalar_select %p573, %s28, 1
        %s575 = scalar_lea.vmem %s6, %s574
        %p576 = scmp.lt.s32.totalorder %s28, 1
        %s577 = scalar_select %p576, %s28, 1
        %s578 = smul.addr %s577, 8
        %s579 = scalar_lea.vmem %s7, %s578
        %p580 = scmp.lt.s32.totalorder %s28, 1
        %s581 = scalar_select %p580, %s28, 1
        %s582 = scalar_lea.vmem %s8, %s581
        %p583 = scmp.lt.s32.totalorder %s28, 1
        %s584 = scalar_select %p583, %s28, 1
        %s585 = scalar_lea.vmem %s10, %s584
        %p586 = scmp.lt.s32.totalorder %s28, 1
        %s587 = scalar_select %p586, %s28, 1
        %s588 = smul.addr %s587, 3
        %s589 = smul.addr %s588, 8
        %s590 = scalar_lea.vmem %s11, %s589
        %v591 = vld [vmem:[%s556] sm:$0xff]
        %v592 = vld [vmem:[%s560] sm:$0xff]
        %v593 = vld [vmem:[%s564] sm:$0xff]
        %v594 = vld [vmem:[%s467] sm:$0xff]
        %v595 = vld [vmem:[%s467 + $0x8] sm:$0xff]
        %v596 = vld [vmem:[%s467 + $0x10] sm:$0xff]
        %v597 = vld [vmem:[%s467 + $0x18] sm:$0xff]
        %v598 = vld [vmem:[%s467 + $0x20] sm:$0xff]
        %v599 = vld [vmem:[%s467 + $0x28] sm:$0xff]
        %v600 = vld [vmem:[%s467 + $0x30] sm:$0xff]
        %v601 = vld [vmem:[%s467 + $0x38] sm:$0xff]
        %v602 = vld [vmem:[%s567] sm:$0x1]
        %v604 = vlaneseq
        %v605 = vshrl.u32 %v604, 7
        %v606 = vsub.s32 0, %v605
        %v607 = vrot.slane %v602, %v606
        %vm609 = vcmask 523264
        %v611 = vsel %vm609, %v591, 0
        %613 = vmatprep.subr.mxu0 0.0
        %614 = vmatpush1.msra.mxu0 %v594
        %615 = vmatprep.subr.mxu0 0.0
        %616 = vmatpush1.msra.mxu0 %v595
        %617 = vmatprep.subr.mxu0 0.0
        %618 = vmatpush1.msra.mxu0 %v596
        %619 = vmatprep.subr.mxu0 0.0
        %620 = vmatpush1.msra.mxu0 %v597
        %621 = vmatprep.subr.mxu0 0.0
        %622 = vmatpush1.msra.mxu0 %v598
        %623 = vmatprep.subr.mxu0 0.0
        %624 = vmatpush1.msra.mxu0 %v599
        %625 = vmatprep.subr.mxu0 0.0
        %626 = vmatpush1.msra.mxu0 %v600
        %627 = vmatprep.subr.mxu0 0.0
        %628 = vmatpush1.msra.mxu0 %v601
        %629 = vmatprep.subr.mxu0 0.0
        %630 = vmatpush1.msra.mxu0 0.0
        %631 = vmatprep.subr.mxu0 0.0
        %632 = vmatpush1.msra.mxu0 0.0
        %633 = vmatprep.subr.mxu0 0.0
        %634 = vmatpush1.msra.mxu0 0.0
        %635 = vmatprep.subr.mxu0 0.0
        %636 = vmatpush1.msra.mxu0 0.0
        %637 = vmatprep.subr.mxu0 0.0
        %638 = vmatpush1.msra.mxu0 0.0
        %639 = vmatprep.subr.mxu0 0.0
        %640 = vmatpush1.msra.mxu0 0.0
        %641 = vmatprep.subr.mxu0 0.0
        %642 = vmatpush1.msra.mxu0 0.0
        %643 = vmatprep.subr.mxu0 0.0
        %644 = vmatpush1.msra.mxu0 0.0
        %645 = vmatprep.subr.mxu0 0.0
        %646 = vmatpush1.msra.mxu0 0.0
        %647 = vmatprep.subr.mxu0 0.0
        %648 = vmatpush1.msra.mxu0 0.0
        %649 = vmatprep.subr.mxu0 0.0
        %650 = vmatpush1.msra.mxu0 0.0
        %651 = vmatprep.subr.mxu0 0.0
        %652 = vmatpush1.msra.mxu0 0.0
        %653 = vmatprep.subr.mxu0 0.0
        %654 = vmatpush1.msra.mxu0 0.0
        %655 = vmatprep.subr.mxu0 0.0
        %656 = vmatpush1.msra.mxu0 0.0
        %657 = vmatprep.subr.mxu0 0.0
        %658 = vmatpush1.msra.mxu0 0.0
        %659 = vmatprep.subr.mxu0 0.0
        %660 = vmatpush1.msra.mxu0 0.0
        %661 = vmatprep.subr.mxu0 0.0
        %662 = vmatpush1.msra.mxu0 0.0
        %663 = vmatprep.subr.mxu0 0.0
        %664 = vmatpush1.msra.mxu0 0.0
        %665 = vmatprep.subr.mxu0 0.0
        %666 = vmatpush1.msra.mxu0 0.0
        %667 = vmatprep.subr.mxu0 0.0
        %668 = vmatpush1.msra.mxu0 0.0
        %669 = vmatprep.subr.mxu0 0.0
        %670 = vmatpush1.msra.mxu0 0.0
        %671 = vmatprep.subr.mxu0 0.0
        %672 = vmatpush1.msra.mxu0 0.0
        %673 = vmatprep.subr.mxu0 0.0
        %674 = vmatpush1.msra.mxu0 0.0
        %675 = vmatprep.subr.mxu0 0.0
        %676 = vmatpush1.msra.mxu0 0.0
        %677 = vmatprep.mubr.f32.mxu0 0.0
        %678 = vmatmul.mubr.f32.gmra.mrb[0].mxu0 %v611
        %v679 = vpop.f32.mrb[0].mxu0
        %v680 = vadd.f32 %v607, %v679
        %v681 = vpop.f32.mrb[0].mxu0
        %682 = vdwg.mxu0
        %vm683 = vcmask 261120
        %684 = vst.msk [vmem:[%s590] sm:$0xff] %vm683, %v680
        %v685 = vld [vmem:[%s572] sm:$0xff]
        %v686 = vld [vmem:[%s572 + $0x8] sm:$0xff]
        %v687 = vld [vmem:[%s572 + $0x10] sm:$0xff]
        %v688 = vld [vmem:[%s572 + $0x18] sm:$0xff]
        %v689 = vld [vmem:[%s572 + $0x20] sm:$0xff]
        %v690 = vld [vmem:[%s572 + $0x28] sm:$0xff]
        %v691 = vld [vmem:[%s572 + $0x30] sm:$0xff]
        %v692 = vld [vmem:[%s572 + $0x38] sm:$0xff]
        %v693 = vld [vmem:[%s572 + $0x40] sm:$0xff]
        %v694 = vld [vmem:[%s572 + $0x48] sm:$0xff]
        %v695 = vld [vmem:[%s572 + $0x50] sm:$0xff]
        %v696 = vld [vmem:[%s572 + $0x58] sm:$0xff]
        %v697 = vld [vmem:[%s572 + $0x60] sm:$0xff]
        %v698 = vld [vmem:[%s572 + $0x68] sm:$0xff]
        %v699 = vld [vmem:[%s572 + $0x70] sm:$0xff]
        %v700 = vld [vmem:[%s572 + $0x78] sm:$0xff]
        %v701 = vld [vmem:[%s575] sm:$0x1]
        %v703 = vlaneseq
        %v704 = vshrl.u32 %v703, 7
        %v705 = vsub.s32 0, %v704
        %v706 = vrot.slane %v701, %v705
        %708 = vmatprep.subr.mxu0 0.0
        %709 = vmatpush1.msra.mxu0 %v685
        %710 = vmatprep.subr.mxu0 0.0
        %711 = vmatpush1.msra.mxu0 %v686
        %712 = vmatprep.subr.mxu0 0.0
        %713 = vmatpush1.msra.mxu0 %v687
        %714 = vmatprep.subr.mxu0 0.0
        %715 = vmatpush1.msra.mxu0 %v688
        %716 = vmatprep.subr.mxu0 0.0
        %717 = vmatpush1.msra.mxu0 %v689
        %718 = vmatprep.subr.mxu0 0.0
        %719 = vmatpush1.msra.mxu0 %v690
        %720 = vmatprep.subr.mxu0 0.0
        %721 = vmatpush1.msra.mxu0 %v691
        %722 = vmatprep.subr.mxu0 0.0
        %723 = vmatpush1.msra.mxu0 %v692
        %724 = vmatprep.subr.mxu0 0.0
        %725 = vmatpush1.msra.mxu0 %v693
        %726 = vmatprep.subr.mxu0 0.0
        %727 = vmatpush1.msra.mxu0 %v694
        %728 = vmatprep.subr.mxu0 0.0
        %729 = vmatpush1.msra.mxu0 %v695
        %730 = vmatprep.subr.mxu0 0.0
        %731 = vmatpush1.msra.mxu0 %v696
        %732 = vmatprep.subr.mxu0 0.0
        %733 = vmatpush1.msra.mxu0 %v697
        %734 = vmatprep.subr.mxu0 0.0
        %735 = vmatpush1.msra.mxu0 %v698
        %736 = vmatprep.subr.mxu0 0.0
        %737 = vmatpush1.msra.mxu0 %v699
        %738 = vmatprep.subr.mxu0 0.0
        %739 = vmatpush1.msra.mxu0 %v700
        %740 = vmatprep.subr.mxu0 0.0
        %741 = vmatpush1.msra.mxu0 0.0
        %742 = vmatprep.subr.mxu0 0.0
        %743 = vmatpush1.msra.mxu0 0.0
        %744 = vmatprep.subr.mxu0 0.0
        %745 = vmatpush1.msra.mxu0 0.0
        %746 = vmatprep.subr.mxu0 0.0
        %747 = vmatpush1.msra.mxu0 0.0
        %748 = vmatprep.subr.mxu0 0.0
        %749 = vmatpush1.msra.mxu0 0.0
        %750 = vmatprep.subr.mxu0 0.0
        %751 = vmatpush1.msra.mxu0 0.0
        %752 = vmatprep.subr.mxu0 0.0
        %753 = vmatpush1.msra.mxu0 0.0
        %754 = vmatprep.subr.mxu0 0.0
        %755 = vmatpush1.msra.mxu0 0.0
        %756 = vmatprep.subr.mxu0 0.0
        %757 = vmatpush1.msra.mxu0 0.0
        %758 = vmatprep.subr.mxu0 0.0
        %759 = vmatpush1.msra.mxu0 0.0
        %760 = vmatprep.subr.mxu0 0.0
        %761 = vmatpush1.msra.mxu0 0.0
        %762 = vmatprep.subr.mxu0 0.0
        %763 = vmatpush1.msra.mxu0 0.0
        %764 = vmatprep.subr.mxu0 0.0
        %765 = vmatpush1.msra.mxu0 0.0
        %766 = vmatprep.subr.mxu0 0.0
        %767 = vmatpush1.msra.mxu0 0.0
        %768 = vmatprep.subr.mxu0 0.0
        %769 = vmatpush1.msra.mxu0 0.0
        %770 = vmatprep.subr.mxu0 0.0
        %771 = vmatpush1.msra.mxu0 0.0
        %772 = vmatprep.mubr.f32.mxu0 0.0
        %773 = vmatmul.mubr.f32.gmra.mrb[0].mxu0 %v592
        %v774 = vpop.f32.mrb[0].mxu0
        %v775 = vadd.f32 %v706, %v774
        %v776 = vpop.f32.mrb[0].mxu0
        %777 = vdwg.mxu0
        %s778 = scalar_lea.vmem %s590, 16
        %779 = vst.msk [vmem:[%s778] sm:$0xff] %vm683, %v775
        %v780 = vand.u32 2147483647, %v593
        %vm781 = vcmask 64512
        %v782 = vsel %vm781, %v780, 0.0
        %783 = vadd.xlane.f32.xlu0 %v782
        %v784 = vpop.xlane.xlu0 %783
        %v785 = vadd.f32 %v784, 1e-06
        %v786 = vrcp.pop %v785
        %v787 = vmul.f32 %v593, %v786
        %v788 = vld [vmem:[%s579] sm:$0xff]
        %v789 = vld [vmem:[%s582] sm:$0x1]
        %v791 = vlaneseq
        %v792 = vshrl.u32 %v791, 7
        %v793 = vsub.s32 0, %v792
        %v794 = vrot.slane %v789, %v793
        %v797 = vsel %vm781, %v593, 0
        %799 = vmatprep.subr.mxu0 0.0
        %800 = vmatpush1.msra.mxu0 %v788
        %801 = vmatprep.subr.mxu0 0.0
        %802 = vmatpush1.msra.mxu0 0.0
        %803 = vmatprep.subr.mxu0 0.0
        %804 = vmatpush1.msra.mxu0 0.0
        %805 = vmatprep.subr.mxu0 0.0
        %806 = vmatpush1.msra.mxu0 0.0
        %807 = vmatprep.subr.mxu0 0.0
        %808 = vmatpush1.msra.mxu0 0.0
        %809 = vmatprep.subr.mxu0 0.0
        %810 = vmatpush1.msra.mxu0 0.0
        %811 = vmatprep.subr.mxu0 0.0
        %812 = vmatpush1.msra.mxu0 0.0
        %813 = vmatprep.subr.mxu0 0.0
        %814 = vmatpush1.msra.mxu0 0.0
        %815 = vmatprep.subr.mxu0 0.0
        %816 = vmatpush1.msra.mxu0 0.0
        %817 = vmatprep.subr.mxu0 0.0
        %818 = vmatpush1.msra.mxu0 0.0
        %819 = vmatprep.subr.mxu0 0.0
        %820 = vmatpush1.msra.mxu0 0.0
        %821 = vmatprep.subr.mxu0 0.0
        %822 = vmatpush1.msra.mxu0 0.0
        %823 = vmatprep.subr.mxu0 0.0
        %824 = vmatpush1.msra.mxu0 0.0
        %825 = vmatprep.subr.mxu0 0.0
        %826 = vmatpush1.msra.mxu0 0.0
        %827 = vmatprep.subr.mxu0 0.0
        %828 = vmatpush1.msra.mxu0 0.0
        %829 = vmatprep.subr.mxu0 0.0
        %830 = vmatpush1.msra.mxu0 0.0
        %831 = vmatprep.subr.mxu0 0.0
        %832 = vmatpush1.msra.mxu0 0.0
        %833 = vmatprep.subr.mxu0 0.0
        %834 = vmatpush1.msra.mxu0 0.0
        %835 = vmatprep.subr.mxu0 0.0
        %836 = vmatpush1.msra.mxu0 0.0
        %837 = vmatprep.subr.mxu0 0.0
        %838 = vmatpush1.msra.mxu0 0.0
        %839 = vmatprep.subr.mxu0 0.0
        %840 = vmatpush1.msra.mxu0 0.0
        %841 = vmatprep.subr.mxu0 0.0
        %842 = vmatpush1.msra.mxu0 0.0
        %843 = vmatprep.subr.mxu0 0.0
        %844 = vmatpush1.msra.mxu0 0.0
        %845 = vmatprep.subr.mxu0 0.0
        %846 = vmatpush1.msra.mxu0 0.0
        %847 = vmatprep.subr.mxu0 0.0
        %848 = vmatpush1.msra.mxu0 0.0
        %849 = vmatprep.subr.mxu0 0.0
        %850 = vmatpush1.msra.mxu0 0.0
        %851 = vmatprep.subr.mxu0 0.0
        %852 = vmatpush1.msra.mxu0 0.0
        %853 = vmatprep.subr.mxu0 0.0
        %854 = vmatpush1.msra.mxu0 0.0
        %855 = vmatprep.subr.mxu0 0.0
        %856 = vmatpush1.msra.mxu0 0.0
        %857 = vmatprep.subr.mxu0 0.0
        %858 = vmatpush1.msra.mxu0 0.0
        %859 = vmatprep.subr.mxu0 0.0
        %860 = vmatpush1.msra.mxu0 0.0
        %861 = vmatprep.subr.mxu0 0.0
        %862 = vmatpush1.msra.mxu0 0.0
        %863 = vmatprep.mubr.f32.mxu0 0.0
        %864 = vmatmul.mubr.f32.gmra.mrb[0].mxu0 %v797
        %v865 = vpop.f32.mrb[0].mxu0
        %v866 = vadd.f32 %v794, %v865
        %v867 = vpop.f32.mrb[0].mxu0
        %868 = vdwg.mxu0
        %v869 = vmax.f32 %v866, 0.0
        %v870 = vld [vmem:[%s476] sm:$0xff]
        %v871 = vld [vmem:[%s476 + $0x8] sm:$0xff]
        %v872 = vld [vmem:[%s476 + $0x10] sm:$0xff]
        %v873 = vld [vmem:[%s476 + $0x18] sm:$0xff]
        %v874 = vld [vmem:[%s585] sm:$0x1]
        %v876 = vsel %vm781, %v787, 0
        %878 = vmatprep.subr.mxu0 0.0
        %879 = vmatpush1.msra.mxu0 %v869
        %880 = vmatprep.subr.mxu0 0.0
        %881 = vmatpush1.msra.mxu0 0.0
        %882 = vmatprep.subr.mxu0 0.0
        %883 = vmatpush1.msra.mxu0 0.0
        %884 = vmatprep.subr.mxu0 0.0
        %885 = vmatpush1.msra.mxu0 0.0
        %886 = vmatprep.subr.mxu0 0.0
        %887 = vmatpush1.msra.mxu0 0.0
        %888 = vmatprep.subr.mxu0 0.0
        %889 = vmatpush1.msra.mxu0 0.0
        %890 = vmatprep.subr.mxu0 0.0
        %891 = vmatpush1.msra.mxu0 0.0
        %892 = vmatprep.subr.mxu0 0.0
        %893 = vmatpush1.msra.mxu0 0.0
        %894 = vmatprep.subr.mxu0 0.0
        %895 = vmatpush1.msra.mxu0 0.0
        %896 = vmatprep.subr.mxu0 0.0
        %897 = vmatpush1.msra.mxu0 0.0
        %898 = vmatprep.subr.mxu0 0.0
        %899 = vmatpush1.msra.mxu0 0.0
        %900 = vmatprep.subr.mxu0 0.0
        %901 = vmatpush1.msra.mxu0 0.0
        %902 = vmatprep.subr.mxu0 0.0
        %903 = vmatpush1.msra.mxu0 0.0
        %904 = vmatprep.subr.mxu0 0.0
        %905 = vmatpush1.msra.mxu0 0.0
        %906 = vmatprep.subr.mxu0 0.0
        %907 = vmatpush1.msra.mxu0 0.0
        %908 = vmatprep.subr.mxu0 0.0
        %909 = vmatpush1.msra.mxu0 0.0
        %910 = vmatprep.subr.mxu0 0.0
        %911 = vmatpush1.msra.mxu0 0.0
        %912 = vmatprep.subr.mxu0 0.0
        %913 = vmatpush1.msra.mxu0 0.0
        %914 = vmatprep.subr.mxu0 0.0
        %915 = vmatpush1.msra.mxu0 0.0
        %916 = vmatprep.subr.mxu0 0.0
        %917 = vmatpush1.msra.mxu0 0.0
        %918 = vmatprep.subr.mxu0 0.0
        %919 = vmatpush1.msra.mxu0 0.0
        %920 = vmatprep.subr.mxu0 0.0
        %921 = vmatpush1.msra.mxu0 0.0
        %922 = vmatprep.subr.mxu0 0.0
        %923 = vmatpush1.msra.mxu0 0.0
        %924 = vmatprep.subr.mxu0 0.0
        %925 = vmatpush1.msra.mxu0 0.0
        %926 = vmatprep.subr.mxu0 0.0
        %927 = vmatpush1.msra.mxu0 0.0
        %928 = vmatprep.subr.mxu0 0.0
        %929 = vmatpush1.msra.mxu0 0.0
        %930 = vmatprep.subr.mxu0 0.0
        %931 = vmatpush1.msra.mxu0 0.0
        %932 = vmatprep.subr.mxu0 0.0
        %933 = vmatpush1.msra.mxu0 0.0
        %934 = vmatprep.subr.mxu0 0.0
        %935 = vmatpush1.msra.mxu0 0.0
        %936 = vmatprep.subr.mxu0 0.0
        %937 = vmatpush1.msra.mxu0 0.0
        %938 = vmatprep.subr.mxu0 0.0
        %939 = vmatpush1.msra.mxu0 0.0
        %940 = vmatprep.subr.mxu0 0.0
        %941 = vmatpush1.msra.mxu0 0.0
        %942 = vmatprep.mubr.f32.mxu0 0.0
        %943 = vmatmul.mubr.f32.gmra.mrb[0].mxu0 %v876
        %v944 = vpop.f32.mrb[0].mxu0
        %v945 = vadd.f32 0.0, %v944
        %v946 = vpop.f32.mrb[0].mxu0
        %947 = vdwg.mxu0
        %v949 = vlaneseq
        %v950 = vshrl.u32 %v949, 7
        %v951 = vsub.s32 0, %v950
        %v952 = vrot.slane %v874, %v951
        %v955 = vsel %vm683, %v945, 0
        %957 = vmatprep.subr.mxu0 0.0
        %958 = vmatpush1.msra.mxu0 %v870
        %959 = vmatprep.subr.mxu0 0.0
        %960 = vmatpush1.msra.mxu0 %v871
        %961 = vmatprep.subr.mxu0 0.0
        %962 = vmatpush1.msra.mxu0 %v872
        %963 = vmatprep.subr.mxu0 0.0
        %964 = vmatpush1.msra.mxu0 %v873
        %965 = vmatprep.subr.mxu0 0.0
        %966 = vmatpush1.msra.mxu0 0.0
        %967 = vmatprep.subr.mxu0 0.0
        %968 = vmatpush1.msra.mxu0 0.0
        %969 = vmatprep.subr.mxu0 0.0
        %970 = vmatpush1.msra.mxu0 0.0
        %971 = vmatprep.subr.mxu0 0.0
        %972 = vmatpush1.msra.mxu0 0.0
        %973 = vmatprep.subr.mxu0 0.0
        %974 = vmatpush1.msra.mxu0 0.0
        %975 = vmatprep.subr.mxu0 0.0
        %976 = vmatpush1.msra.mxu0 0.0
        %977 = vmatprep.subr.mxu0 0.0
        %978 = vmatpush1.msra.mxu0 0.0
        %979 = vmatprep.subr.mxu0 0.0
        %980 = vmatpush1.msra.mxu0 0.0
        %981 = vmatprep.subr.mxu0 0.0
        %982 = vmatpush1.msra.mxu0 0.0
        %983 = vmatprep.subr.mxu0 0.0
        %984 = vmatpush1.msra.mxu0 0.0
        %985 = vmatprep.subr.mxu0 0.0
        %986 = vmatpush1.msra.mxu0 0.0
        %987 = vmatprep.subr.mxu0 0.0
        %988 = vmatpush1.msra.mxu0 0.0
        %989 = vmatprep.subr.mxu0 0.0
        %990 = vmatpush1.msra.mxu0 0.0
        %991 = vmatprep.subr.mxu0 0.0
        %992 = vmatpush1.msra.mxu0 0.0
        %993 = vmatprep.subr.mxu0 0.0
        %994 = vmatpush1.msra.mxu0 0.0
        %995 = vmatprep.subr.mxu0 0.0
        %996 = vmatpush1.msra.mxu0 0.0
        %997 = vmatprep.subr.mxu0 0.0
        %998 = vmatpush1.msra.mxu0 0.0
        %999 = vmatprep.subr.mxu0 0.0
        %1000 = vmatpush1.msra.mxu0 0.0
        %1001 = vmatprep.subr.mxu0 0.0
        %1002 = vmatpush1.msra.mxu0 0.0
        %1003 = vmatprep.subr.mxu0 0.0
        %1004 = vmatpush1.msra.mxu0 0.0
        %1005 = vmatprep.subr.mxu0 0.0
        %1006 = vmatpush1.msra.mxu0 0.0
        %1007 = vmatprep.subr.mxu0 0.0
        %1008 = vmatpush1.msra.mxu0 0.0
        %1009 = vmatprep.subr.mxu0 0.0
        %1010 = vmatpush1.msra.mxu0 0.0
        %1011 = vmatprep.subr.mxu0 0.0
        %1012 = vmatpush1.msra.mxu0 0.0
        %1013 = vmatprep.subr.mxu0 0.0
        %1014 = vmatpush1.msra.mxu0 0.0
        %1015 = vmatprep.subr.mxu0 0.0
        %1016 = vmatpush1.msra.mxu0 0.0
        %1017 = vmatprep.subr.mxu0 0.0
        %1018 = vmatpush1.msra.mxu0 0.0
        %1019 = vmatprep.subr.mxu0 0.0
        %1020 = vmatpush1.msra.mxu0 0.0
        %1021 = vmatprep.mubr.f32.mxu0 0.0
        %1022 = vmatmul.mubr.f32.gmra.mrb[0].mxu0 %v955
        %v1023 = vpop.f32.mrb[0].mxu0
        %v1024 = vadd.f32 %v952, %v1023
        %v1025 = vpop.f32.mrb[0].mxu0
        %1026 = vdwg.mxu0
        %v1027 = vmax.f32 %v1024, 0.0
        %s1028 = scalar_lea.vmem %s590, 8
        %1029 = vst.msk [vmem:[%s1028] sm:$0xff] %vm683, %v1027
        %p1030 = scmp.lt.s32.totalorder %s28, 1
        %s1031 = scalar_select %p1030, %s28, 1
        %s1032 = smul.addr %s1031, 3
        %s1033 = smul.addr %s1032, 8
        %s1034 = scalar_lea.vmem %s11, %s1033
        // Predicated region
        $region73: #{_lambda_.3} parent=63 // pred_check
          %p1035 = pneg %p332
        $region74: #{_lambda_.3} parent=63 // pred_check_branch
          %1037 = sbr.rel (%p1035) target = $region76
        $region75: #{_lambda_.3} parent=63 // pred_region
          _
        $region76: #{_lambda_.3} parent=63 // pred_fallthru
          _
      $region64: #{_lambda_.3} parent=5 // pred_fallthru
        _
      %p1038 = scmp.le.s32.totalorder 2, %s23
      // Predicated region
      $region77: #{_lambda_.3} parent=5 // pred_check
        %p1039 = pneg %p1038
      $region78: #{_lambda_.3} parent=5 // pred_check_branch
        %1041 = sbr.rel (%p1039) target = $region80
      $region79: #{_lambda_.3} parent=5 // pred_region
        %s1042 = ssub.s32 %s23, 2
        // Predicated region
        $region81: #{_lambda_.3} parent=79 // pred_check
          %p1043 = pneg %p338
        $region82: #{_lambda_.3} parent=79 // pred_check_branch
          %1045 = sbr.rel (%p1043) target = $region84
        $region83: #{_lambda_.3} parent=79 // pred_region
          %p1046 = scmp.lt.s32.totalorder %s29, 1
          %s1047 = scalar_select %p1046, %s29, 1
          %s1048 = smul.addr %s1047, 3
          %s1049 = smul.addr %s1048, 8
          %s1050 = scalar_lea.vmem %s11, %s1049
        $region84: #{_lambda_.3} parent=79 // pred_fallthru
          _
      $region80: #{_lambda_.3} parent=5 // pred_fallthru
        _
    $region6: #{_lambda_.3} parent=1 // loop_footer
      %s27 = sadd.s32 1, %s23
    $region7: #{_lambda_.3} parent=1 // loop_footer_branch
      %22 = sbr.rel target = $region3
    $region8: #{_lambda_.3} parent=1 // loop_exit
      _
    %1051 = vsyncpa [#allocation3], 1
    %s1052 = scalar_lea.sflag [#allocation3], 1
    %1053 = vsyncpa %s1052, 1
    %1054 = vsyncpa [#allocation5], 1
    %s1055 = scalar_lea.sflag [#allocation5], 1
    %1056 = vsyncpa %s1055, 1

// kernel: _lambda_.5
$region0: #{_lambda_.5}
  #allocation0 [shape = 'u32[]', space=smem, size = 0x4, offset = 0x4, fixed_abs, tag = 'smem constant byte address 0x4 - core index']
  #allocation1 [shape = 'u32[144,128]{1,0:T(1,128)}', space=vmem, size = 0x12000, scoped, tag = 'internal scratch']
  %s0 = inlined_call_operand.vmem [shape: s32[16,1], index: 0, kind: input, shape index: {}]
  %s1 = inlined_call_operand.vmem [shape: s32[16,1], index: 1, kind: input, shape index: {}]
  %s2 = inlined_call_operand.vmem [shape: f32[8,96], index: 2, kind: input, shape index: {}]
  %s3 = inlined_call_operand.vmem [shape: f32[8,96], index: 3, kind: input, shape index: {}]
  %s4 = inlined_call_operand.vmem [shape: f32[96,32], index: 4, kind: input, shape index: {}]
  %s5 = inlined_call_operand.vmem [shape: f32[1,32], index: 5, kind: input, shape index: {}]
  %s6 = inlined_call_operand.vmem [shape: f32[32,32], index: 6, kind: input, shape index: {}]
  %s7 = inlined_call_operand.vmem [shape: f32[1,32], index: 7, kind: input, shape index: {}]
  %s8 = inlined_call_operand.vmem [shape: f32[32,128], index: 8, kind: input, shape index: {}]
  %s9 = inlined_call_operand.vmem [shape: f32[1,128], index: 9, kind: input, shape index: {}]
  %s10 = inlined_call_operand.vmem [shape: f32[16,128], index: 10, kind: output, shape index: {}]
  %s11 = sld [smem:[#allocation0]]
  $region50: #{_lambda_.5} parent=0
    _
  %s13 = ssub.s32 1, %s11
  %s14 = scalar_select 0, %s13, %s11
  // Predicated region
  $region2: #{_lambda_.5} parent=0 // pred_check
    _
  $region3: #{_lambda_.5} parent=0 // pred_check_branch
    %16 = sbr.rel (0) target = $region5
  $region4: #{_lambda_.5} parent=0 // pred_region
    _
  $region5: #{_lambda_.5} parent=0 // pred_fallthru
    _
  // Predicated region
  $region6: #{_lambda_.5} parent=0 // pred_check
    _
  $region7: #{_lambda_.5} parent=0 // pred_check_branch
    %18 = sbr.rel (0) target = $region9
  $region8: #{_lambda_.5} parent=0 // pred_region
    _
  $region9: #{_lambda_.5} parent=0 // pred_fallthru
    _
  // Predicated region
  $region10: #{_lambda_.5} parent=0 // pred_check
    _
  $region11: #{_lambda_.5} parent=0 // pred_check_branch
    %20 = sbr.rel (0) target = $region13
  $region12: #{_lambda_.5} parent=0 // pred_region
    _
  $region13: #{_lambda_.5} parent=0 // pred_fallthru
    _
  // Predicated region
  $region14: #{_lambda_.5} parent=0 // pred_check
    _
  $region15: #{_lambda_.5} parent=0 // pred_check_branch
    %22 = sbr.rel (0) target = $region17
  $region16: #{_lambda_.5} parent=0 // pred_region
    _
  $region17: #{_lambda_.5} parent=0 // pred_fallthru
    _
  // Predicated region
  $region18: #{_lambda_.5} parent=0 // pred_check
    _
  $region19: #{_lambda_.5} parent=0 // pred_check_branch
    %24 = sbr.rel (0) target = $region21
  $region20: #{_lambda_.5} parent=0 // pred_region
    _
  $region21: #{_lambda_.5} parent=0 // pred_fallthru
    _
  // Predicated region
  $region22: #{_lambda_.5} parent=0 // pred_check
    _
  $region23: #{_lambda_.5} parent=0 // pred_check_branch
    %26 = sbr.rel (0) target = $region25
  $region24: #{_lambda_.5} parent=0 // pred_region
    _
  $region25: #{_lambda_.5} parent=0 // pred_fallthru
    _
  // Predicated region
  $region26: #{_lambda_.5} parent=0 // pred_check
    _
  $region27: #{_lambda_.5} parent=0 // pred_check_branch
    %28 = sbr.rel (0) target = $region29
  $region28: #{_lambda_.5} parent=0 // pred_region
    _
  $region29: #{_lambda_.5} parent=0 // pred_fallthru
    _
  // Predicated region
  $region30: #{_lambda_.5} parent=0 // pred_check
    _
  $region31: #{_lambda_.5} parent=0 // pred_check_branch
    %30 = sbr.rel (0) target = $region33
  $region32: #{_lambda_.5} parent=0 // pred_region
    _
  $region33: #{_lambda_.5} parent=0 // pred_fallthru
    _
  // Predicated region
  $region34: #{_lambda_.5} parent=0 // pred_check
    _
  $region35: #{_lambda_.5} parent=0 // pred_check_branch
    %32 = sbr.rel (0) target = $region37
  $region36: #{_lambda_.5} parent=0 // pred_region
    _
  $region37: #{_lambda_.5} parent=0 // pred_fallthru
    _
  // Predicated region
  $region38: #{_lambda_.5} parent=0 // pred_check
    _
  $region39: #{_lambda_.5} parent=0 // pred_check_branch
    %34 = sbr.rel (0) target = $region41
  $region40: #{_lambda_.5} parent=0 // pred_region
    _
  $region41: #{_lambda_.5} parent=0 // pred_fallthru
    _
  %v35 = vld [vmem:[%s0] sm:$0xff]
  %v36 = vld [vmem:[%s0 + $0x8] sm:$0xff]
  %v37 = vlaneseq
  %v38 = vand.u32 %v37, 127
  %39 = vset.pattern.permute.xlu0 0
  %40 = vperm.xlu0 %39, %v35
  %v41 = vpop.permute.xlu0 %40
  %42 = vset.pattern.permute.xlu0 0
  %43 = vperm.xlu0 %42, %v36
  %v44 = vpop.permute.xlu0 %43
  %vm45 = vcmp.eq.s32.totalorder %v41, %v38
  %vm46 = vcmp.eq.s32.totalorder %v44, %v38
  %v47 = vsel %vm45, 1, 0
  %v48 = vsel %vm46, 1, 0
  %v49 = vcvt.s32.f32 %v47
  %v50 = vcvt.s32.f32 %v48
  %v51 = vld [vmem:[%s1] sm:$0xff]
  %v52 = vld [vmem:[%s1 + $0x8] sm:$0xff]
  %53 = vset.pattern.permute.xlu0 0
  %54 = vperm.xlu0 %53, %v51
  %v55 = vpop.permute.xlu0 %54
  %56 = vset.pattern.permute.xlu0 0
  %57 = vperm.xlu0 %56, %v52
  %v58 = vpop.permute.xlu0 %57
  %vm59 = vcmp.eq.s32.totalorder %v55, %v38
  %vm60 = vcmp.eq.s32.totalorder %v58, %v38
  %v61 = vsel %vm59, 1, 0
  %v62 = vsel %vm60, 1, 0
  %v63 = vcvt.s32.f32 %v61
  %v64 = vcvt.s32.f32 %v62
  %v65 = vld [vmem:[%s2] sm:$0xff]
  %vm66 = vcmask 64512
  %v68 = vsel %vm66, %v49, 0
  %v71 = vsel %vm66, %v50, 0
  %73 = vmatprep.subr.mxu0 0.0
  %74 = vmatpush1.msra.mxu0 %v65
  %75 = vmatprep.subr.mxu0 0.0
  %76 = vmatpush1.msra.mxu0 0.0
  %77 = vmatprep.subr.mxu0 0.0
  %78 = vmatpush1.msra.mxu0 0.0
  %79 = vmatprep.subr.mxu0 0.0
  %80 = vmatpush1.msra.mxu0 0.0
  %81 = vmatprep.subr.mxu0 0.0
  %82 = vmatpush1.msra.mxu0 0.0
  %83 = vmatprep.subr.mxu0 0.0
  %84 = vmatpush1.msra.mxu0 0.0
  %85 = vmatprep.subr.mxu0 0.0
  %86 = vmatpush1.msra.mxu0 0.0
  %87 = vmatprep.subr.mxu0 0.0
  %88 = vmatpush1.msra.mxu0 0.0
  %89 = vmatprep.subr.mxu0 0.0
  %90 = vmatpush1.msra.mxu0 0.0
  %91 = vmatprep.subr.mxu0 0.0
  %92 = vmatpush1.msra.mxu0 0.0
  %93 = vmatprep.subr.mxu0 0.0
  %94 = vmatpush1.msra.mxu0 0.0
  %95 = vmatprep.subr.mxu0 0.0
  %96 = vmatpush1.msra.mxu0 0.0
  %97 = vmatprep.subr.mxu0 0.0
  %98 = vmatpush1.msra.mxu0 0.0
  %99 = vmatprep.subr.mxu0 0.0
  %100 = vmatpush1.msra.mxu0 0.0
  %101 = vmatprep.subr.mxu0 0.0
  %102 = vmatpush1.msra.mxu0 0.0
  %103 = vmatprep.subr.mxu0 0.0
  %104 = vmatpush1.msra.mxu0 0.0
  %105 = vmatprep.subr.mxu0 0.0
  %106 = vmatpush1.msra.mxu0 0.0
  %107 = vmatprep.subr.mxu0 0.0
  %108 = vmatpush1.msra.mxu0 0.0
  %109 = vmatprep.subr.mxu0 0.0
  %110 = vmatpush1.msra.mxu0 0.0
  %111 = vmatprep.subr.mxu0 0.0
  %112 = vmatpush1.msra.mxu0 0.0
  %113 = vmatprep.subr.mxu0 0.0
  %114 = vmatpush1.msra.mxu0 0.0
  %115 = vmatprep.subr.mxu0 0.0
  %116 = vmatpush1.msra.mxu0 0.0
  %117 = vmatprep.subr.mxu0 0.0
  %118 = vmatpush1.msra.mxu0 0.0
  %119 = vmatprep.subr.mxu0 0.0
  %120 = vmatpush1.msra.mxu0 0.0
  %121 = vmatprep.subr.mxu0 0.0
  %122 = vmatpush1.msra.mxu0 0.0
  %123 = vmatprep.subr.mxu0 0.0
  %124 = vmatpush1.msra.mxu0 0.0
  %125 = vmatprep.subr.mxu0 0.0
  %126 = vmatpush1.msra.mxu0 0.0
  %127 = vmatprep.subr.mxu0 0.0
  %128 = vmatpush1.msra.mxu0 0.0
  %129 = vmatprep.subr.mxu0 0.0
  %130 = vmatpush1.msra.mxu0 0.0
  %131 = vmatprep.subr.mxu0 0.0
  %132 = vmatpush1.msra.mxu0 0.0
  %133 = vmatprep.subr.mxu0 0.0
  %134 = vmatpush1.msra.mxu0 0.0
  %135 = vmatprep.subr.mxu0 0.0
  %136 = vmatpush1.msra.mxu0 0.0
  %137 = vmatprep.mubr.f32.mxu0 0.0
  %138 = vmatmul.mubr.f32.gmra.mrb[0].mxu0 %v68
  %v139 = vpop.f32.mrb[0].mxu0
  %v140 = vadd.f32 0.0, %v139
  %v141 = vpop.f32.mrb[0].mxu0
  %142 = vmatprep.mubr.f32.mxu0 0.0
  %143 = vmatmul.mubr.f32.gmra.mrb[0].mxu0 %v71
  %v144 = vpop.f32.mrb[0].mxu0
  %v145 = vadd.f32 0.0, %v144
  %v146 = vpop.f32.mrb[0].mxu0
  %147 = vdwg.mxu0
  %v148 = vld [vmem:[%s3] sm:$0xff]
  %v150 = vsel %vm66, %v63, 0
  %v153 = vsel %vm66, %v64, 0
  %155 = vmatprep.subr.mxu0 0.0
  %156 = vmatpush1.msra.mxu0 %v148
  %157 = vmatprep.subr.mxu0 0.0
  %158 = vmatpush1.msra.mxu0 0.0
  %159 = vmatprep.subr.mxu0 0.0
  %160 = vmatpush1.msra.mxu0 0.0
  %161 = vmatprep.subr.mxu0 0.0
  %162 = vmatpush1.msra.mxu0 0.0
  %163 = vmatprep.subr.mxu0 0.0
  %164 = vmatpush1.msra.mxu0 0.0
  %165 = vmatprep.subr.mxu0 0.0
  %166 = vmatpush1.msra.mxu0 0.0
  %167 = vmatprep.subr.mxu0 0.0
  %168 = vmatpush1.msra.mxu0 0.0
  %169 = vmatprep.subr.mxu0 0.0
  %170 = vmatpush1.msra.mxu0 0.0
  %171 = vmatprep.subr.mxu0 0.0
  %172 = vmatpush1.msra.mxu0 0.0
  %173 = vmatprep.subr.mxu0 0.0
  %174 = vmatpush1.msra.mxu0 0.0
  %175 = vmatprep.subr.mxu0 0.0
  %176 = vmatpush1.msra.mxu0 0.0
  %177 = vmatprep.subr.mxu0 0.0
  %178 = vmatpush1.msra.mxu0 0.0
  %179 = vmatprep.subr.mxu0 0.0
  %180 = vmatpush1.msra.mxu0 0.0
  %181 = vmatprep.subr.mxu0 0.0
  %182 = vmatpush1.msra.mxu0 0.0
  %183 = vmatprep.subr.mxu0 0.0
  %184 = vmatpush1.msra.mxu0 0.0
  %185 = vmatprep.subr.mxu0 0.0
  %186 = vmatpush1.msra.mxu0 0.0
  %187 = vmatprep.subr.mxu0 0.0
  %188 = vmatpush1.msra.mxu0 0.0
  %189 = vmatprep.subr.mxu0 0.0
  %190 = vmatpush1.msra.mxu0 0.0
  %191 = vmatprep.subr.mxu0 0.0
  %192 = vmatpush1.msra.mxu0 0.0
  %193 = vmatprep.subr.mxu0 0.0
  %194 = vmatpush1.msra.mxu0 0.0
  %195 = vmatprep.subr.mxu0 0.0
  %196 = vmatpush1.msra.mxu0 0.0
  %197 = vmatprep.subr.mxu0 0.0
  %198 = vmatpush1.msra.mxu0 0.0
  %199 = vmatprep.subr.mxu0 0.0
  %200 = vmatpush1.msra.mxu0 0.0
  %201 = vmatprep.subr.mxu0 0.0
  %202 = vmatpush1.msra.mxu0 0.0
  %203 = vmatprep.subr.mxu0 0.0
  %204 = vmatpush1.msra.mxu0 0.0
  %205 = vmatprep.subr.mxu0 0.0
  %206 = vmatpush1.msra.mxu0 0.0
  %207 = vmatprep.subr.mxu0 0.0
  %208 = vmatpush1.msra.mxu0 0.0
  %209 = vmatprep.subr.mxu0 0.0
  %210 = vmatpush1.msra.mxu0 0.0
  %211 = vmatprep.subr.mxu0 0.0
  %212 = vmatpush1.msra.mxu0 0.0
  %213 = vmatprep.subr.mxu0 0.0
  %214 = vmatpush1.msra.mxu0 0.0
  %215 = vmatprep.subr.mxu0 0.0
  %216 = vmatpush1.msra.mxu0 0.0
  %217 = vmatprep.subr.mxu0 0.0
  %218 = vmatpush1.msra.mxu0 0.0
  %219 = vmatprep.mubr.f32.mxu0 0.0
  %220 = vmatmul.mubr.f32.gmra.mrb[0].mxu0 %v150
  %v221 = vpop.f32.mrb[0].mxu0
  %v222 = vadd.f32 0.0, %v221
  %v223 = vpop.f32.mrb[0].mxu0
  %224 = vmatprep.mubr.f32.mxu0 0.0
  %225 = vmatmul.mubr.f32.gmra.mrb[0].mxu0 %v153
  %v226 = vpop.f32.mrb[0].mxu0
  %v227 = vadd.f32 0.0, %v226
  %v228 = vpop.f32.mrb[0].mxu0
  %229 = vdwg.mxu0
  %v230 = vmul.f32 %v140, %v222
  %v231 = vmul.f32 %v145, %v227
  %v232 = vld [vmem:[%s4] sm:$0xff]
  %v233 = vld [vmem:[%s4 + $0x8] sm:$0xff]
  %v234 = vld [vmem:[%s4 + $0x10] sm:$0xff]
  %v235 = vld [vmem:[%s4 + $0x18] sm:$0xff]
  %v236 = vld [vmem:[%s4 + $0x20] sm:$0xff]
  %v237 = vld [vmem:[%s4 + $0x28] sm:$0xff]
  %v238 = vld [vmem:[%s4 + $0x30] sm:$0xff]
  %v239 = vld [vmem:[%s4 + $0x38] sm:$0xff]
  %v240 = vld [vmem:[%s4 + $0x40] sm:$0xff]
  %v241 = vld [vmem:[%s4 + $0x48] sm:$0xff]
  %v242 = vld [vmem:[%s4 + $0x50] sm:$0xff]
  %v243 = vld [vmem:[%s4 + $0x58] sm:$0xff]
  %v244 = vld [vmem:[%s5] sm:$0x1]
  %v246 = vlaneseq
  %v247 = vshrl.u32 %v246, 7
  %v248 = vsub.s32 0, %v247
  %v249 = vrot.slane %v244, %v248
  %vm251 = vcmask 785408
  %v253 = vsel %vm251, %v230, 0
  %v256 = vsel %vm251, %v231, 0
  %258 = vmatprep.subr.mxu0 0.0
  %259 = vmatpush1.msra.mxu0 %v232
  %260 = vmatprep.subr.mxu0 0.0
  %261 = vmatpush1.msra.mxu0 %v233
  %262 = vmatprep.subr.mxu0 0.0
  %263 = vmatpush1.msra.mxu0 %v234
  %264 = vmatprep.subr.mxu0 0.0
  %265 = vmatpush1.msra.mxu0 %v235
  %266 = vmatprep.subr.mxu0 0.0
  %267 = vmatpush1.msra.mxu0 %v236
  %268 = vmatprep.subr.mxu0 0.0
  %269 = vmatpush1.msra.mxu0 %v237
  %270 = vmatprep.subr.mxu0 0.0
  %271 = vmatpush1.msra.mxu0 %v238
  %272 = vmatprep.subr.mxu0 0.0
  %273 = vmatpush1.msra.mxu0 %v239
  %274 = vmatprep.subr.mxu0 0.0
  %275 = vmatpush1.msra.mxu0 %v240
  %276 = vmatprep.subr.mxu0 0.0
  %277 = vmatpush1.msra.mxu0 %v241
  %278 = vmatprep.subr.mxu0 0.0
  %279 = vmatpush1.msra.mxu0 %v242
  %280 = vmatprep.subr.mxu0 0.0
  %281 = vmatpush1.msra.mxu0 %v243
  %282 = vmatprep.subr.mxu0 0.0
  %283 = vmatpush1.msra.mxu0 0.0
  %284 = vmatprep.subr.mxu0 0.0
  %285 = vmatpush1.msra.mxu0 0.0
  %286 = vmatprep.subr.mxu0 0.0
  %287 = vmatpush1.msra.mxu0 0.0
  %288 = vmatprep.subr.mxu0 0.0
  %289 = vmatpush1.msra.mxu0 0.0
  %290 = vmatprep.subr.mxu0 0.0
  %291 = vmatpush1.msra.mxu0 0.0
  %292 = vmatprep.subr.mxu0 0.0
  %293 = vmatpush1.msra.mxu0 0.0
  %294 = vmatprep.subr.mxu0 0.0
  %295 = vmatpush1.msra.mxu0 0.0
  %296 = vmatprep.subr.mxu0 0.0
  %297 = vmatpush1.msra.mxu0 0.0
  %298 = vmatprep.subr.mxu0 0.0
  %299 = vmatpush1.msra.mxu0 0.0
  %300 = vmatprep.subr.mxu0 0.0
  %301 = vmatpush1.msra.mxu0 0.0
  %302 = vmatprep.subr.mxu0 0.0
  %303 = vmatpush1.msra.mxu0 0.0
  %304 = vmatprep.subr.mxu0 0.0
  %305 = vmatpush1.msra.mxu0 0.0
  %306 = vmatprep.subr.mxu0 0.0
  %307 = vmatpush1.msra.mxu0 0.0
  %308 = vmatprep.subr.mxu0 0.0
  %309 = vmatpush1.msra.mxu0 0.0
  %310 = vmatprep.subr.mxu0 0.0
  %311 = vmatpush1.msra.mxu0 0.0
  %312 = vmatprep.subr.mxu0 0.0
  %313 = vmatpush1.msra.mxu0 0.0
  %314 = vmatprep.subr.mxu0 0.0
  %315 = vmatpush1.msra.mxu0 0.0
  %316 = vmatprep.subr.mxu0 0.0
  %317 = vmatpush1.msra.mxu0 0.0
  %318 = vmatprep.subr.mxu0 0.0
  %319 = vmatpush1.msra.mxu0 0.0
  %320 = vmatprep.subr.mxu0 0.0
  %321 = vmatpush1.msra.mxu0 0.0
  %322 = vmatprep.mubr.f32.mxu0 0.0
  %323 = vmatmul.mubr.f32.gmra.mrb[0].mxu0 %v253
  %v324 = vpop.f32.mrb[0].mxu0
  %v325 = vadd.f32 %v249, %v324
  %v326 = vpop.f32.mrb[0].mxu0
  %327 = vmatprep.mubr.f32.mxu0 0.0
  %328 = vmatmul.mubr.f32.gmra.mrb[0].mxu0 %v256
  %v329 = vpop.f32.mrb[0].mxu0
  %v330 = vadd.f32 %v249, %v329
  %v331 = vpop.f32.mrb[0].mxu0
  %332 = vdwg.mxu0
  %v333 = vmax.f32 %v325, 0.0
  %v334 = vmax.f32 %v330, 0.0
  %v335 = vld [vmem:[%s6] sm:$0xff]
  %v336 = vld [vmem:[%s6 + $0x8] sm:$0xff]
  %v337 = vld [vmem:[%s6 + $0x10] sm:$0xff]
  %v338 = vld [vmem:[%s6 + $0x18] sm:$0xff]
  %v339 = vld [vmem:[%s7] sm:$0x1]
  %v341 = vlaneseq
  %v342 = vshrl.u32 %v341, 7
  %v343 = vsub.s32 0, %v342
  %v344 = vrot.slane %v339, %v343
  %vm346 = vcmask 261120
  %v348 = vsel %vm346, %v333, 0
  %v351 = vsel %vm346, %v334, 0
  %353 = vmatprep.subr.mxu0 0.0
  %354 = vmatpush1.msra.mxu0 %v335
  %355 = vmatprep.subr.mxu0 0.0
  %356 = vmatpush1.msra.mxu0 %v336
  %357 = vmatprep.subr.mxu0 0.0
  %358 = vmatpush1.msra.mxu0 %v337
  %359 = vmatprep.subr.mxu0 0.0
  %360 = vmatpush1.msra.mxu0 %v338
  %361 = vmatprep.subr.mxu0 0.0
  %362 = vmatpush1.msra.mxu0 0.0
  %363 = vmatprep.subr.mxu0 0.0
  %364 = vmatpush1.msra.mxu0 0.0
  %365 = vmatprep.subr.mxu0 0.0
  %366 = vmatpush1.msra.mxu0 0.0
  %367 = vmatprep.subr.mxu0 0.0
  %368 = vmatpush1.msra.mxu0 0.0
  %369 = vmatprep.subr.mxu0 0.0
  %370 = vmatpush1.msra.mxu0 0.0
  %371 = vmatprep.subr.mxu0 0.0
  %372 = vmatpush1.msra.mxu0 0.0
  %373 = vmatprep.subr.mxu0 0.0
  %374 = vmatpush1.msra.mxu0 0.0
  %375 = vmatprep.subr.mxu0 0.0
  %376 = vmatpush1.msra.mxu0 0.0
  %377 = vmatprep.subr.mxu0 0.0
  %378 = vmatpush1.msra.mxu0 0.0
  %379 = vmatprep.subr.mxu0 0.0
  %380 = vmatpush1.msra.mxu0 0.0
  %381 = vmatprep.subr.mxu0 0.0
  %382 = vmatpush1.msra.mxu0 0.0
  %383 = vmatprep.subr.mxu0 0.0
  %384 = vmatpush1.msra.mxu0 0.0
  %385 = vmatprep.subr.mxu0 0.0
  %386 = vmatpush1.msra.mxu0 0.0
  %387 = vmatprep.subr.mxu0 0.0
  %388 = vmatpush1.msra.mxu0 0.0
  %389 = vmatprep.subr.mxu0 0.0
  %390 = vmatpush1.msra.mxu0 0.0
  %391 = vmatprep.subr.mxu0 0.0
  %392 = vmatpush1.msra.mxu0 0.0
  %393 = vmatprep.subr.mxu0 0.0
  %394 = vmatpush1.msra.mxu0 0.0
  %395 = vmatprep.subr.mxu0 0.0
  %396 = vmatpush1.msra.mxu0 0.0
  %397 = vmatprep.subr.mxu0 0.0
  %398 = vmatpush1.msra.mxu0 0.0
  %399 = vmatprep.subr.mxu0 0.0
  %400 = vmatpush1.msra.mxu0 0.0
  %401 = vmatprep.subr.mxu0 0.0
  %402 = vmatpush1.msra.mxu0 0.0
  %403 = vmatprep.subr.mxu0 0.0
  %404 = vmatpush1.msra.mxu0 0.0
  %405 = vmatprep.subr.mxu0 0.0
  %406 = vmatpush1.msra.mxu0 0.0
  %407 = vmatprep.subr.mxu0 0.0
  %408 = vmatpush1.msra.mxu0 0.0
  %409 = vmatprep.subr.mxu0 0.0
  %410 = vmatpush1.msra.mxu0 0.0
  %411 = vmatprep.subr.mxu0 0.0
  %412 = vmatpush1.msra.mxu0 0.0
  %413 = vmatprep.subr.mxu0 0.0
  %414 = vmatpush1.msra.mxu0 0.0
  %415 = vmatprep.subr.mxu0 0.0
  %416 = vmatpush1.msra.mxu0 0.0
  %417 = vmatprep.mubr.f32.mxu0 0.0
  %418 = vmatmul.mubr.f32.gmra.mrb[0].mxu0 %v348
  %v419 = vpop.f32.mrb[0].mxu0
  %v420 = vadd.f32 %v344, %v419
  %v421 = vpop.f32.mrb[0].mxu0
  %422 = vmatprep.mubr.f32.mxu0 0.0
  %423 = vmatmul.mubr.f32.gmra.mrb[0].mxu0 %v351
  %v424 = vpop.f32.mrb[0].mxu0
  %v425 = vadd.f32 %v344, %v424
  %v426 = vpop.f32.mrb[0].mxu0
  %427 = vdwg.mxu0
  %v428 = vmax.f32 %v420, 0.0
  %v429 = vmax.f32 %v425, 0.0
  %v430 = vld [vmem:[%s8] sm:$0xff]
  %v431 = vld [vmem:[%s8 + $0x8] sm:$0xff]
  %v432 = vld [vmem:[%s8 + $0x10] sm:$0xff]
  %v433 = vld [vmem:[%s8 + $0x18] sm:$0xff]
  %v434 = vld [vmem:[%s9] sm:$0x1]
  %v436 = vlaneseq
  %v437 = vshrl.u32 %v436, 7
  %v438 = vsub.s32 0, %v437
  %v439 = vrot.slane %v434, %v438
  %v442 = vsel %vm346, %v428, 0
  %v445 = vsel %vm346, %v429, 0
  %447 = vmatprep.subr.mxu0 0.0
  %448 = vmatpush1.msra.mxu0 %v430
  %449 = vmatprep.subr.mxu0 0.0
  %450 = vmatpush1.msra.mxu0 %v431
  %451 = vmatprep.subr.mxu0 0.0
  %452 = vmatpush1.msra.mxu0 %v432
  %453 = vmatprep.subr.mxu0 0.0
  %454 = vmatpush1.msra.mxu0 %v433
  %455 = vmatprep.subr.mxu0 0.0
  %456 = vmatpush1.msra.mxu0 0.0
  %457 = vmatprep.subr.mxu0 0.0
  %458 = vmatpush1.msra.mxu0 0.0
  %459 = vmatprep.subr.mxu0 0.0
  %460 = vmatpush1.msra.mxu0 0.0
  %461 = vmatprep.subr.mxu0 0.0
  %462 = vmatpush1.msra.mxu0 0.0
  %463 = vmatprep.subr.mxu0 0.0
  %464 = vmatpush1.msra.mxu0 0.0
  %465 = vmatprep.subr.mxu0 0.0
  %466 = vmatpush1.msra.mxu0 0.0
  %467 = vmatprep.subr.mxu0 0.0
  %468 = vmatpush1.msra.mxu0 0.0
  %469 = vmatprep.subr.mxu0 0.0
  %470 = vmatpush1.msra.mxu0 0.0
  %471 = vmatprep.subr.mxu0 0.0
  %472 = vmatpush1.msra.mxu0 0.0
  %473 = vmatprep.subr.mxu0 0.0
  %474 = vmatpush1.msra.mxu0 0.0
  %475 = vmatprep.subr.mxu0 0.0
  %476 = vmatpush1.msra.mxu0 0.0
  %477 = vmatprep.subr.mxu0 0.0
  %478 = vmatpush1.msra.mxu0 0.0
  %479 = vmatprep.subr.mxu0 0.0
  %480 = vmatpush1.msra.mxu0 0.0
  %481 = vmatprep.subr.mxu0 0.0
  %482 = vmatpush1.msra.mxu0 0.0
  %483 = vmatprep.subr.mxu0 0.0
  %484 = vmatpush1.msra.mxu0 0.0
  %485 = vmatprep.subr.mxu0 0.0
  %486 = vmatpush1.msra.mxu0 0.0
  %487 = vmatprep.subr.mxu0 0.0
  %488 = vmatpush1.msra.mxu0 0.0
  %489 = vmatprep.subr.mxu0 0.0
  %490 = vmatpush1.msra.mxu0 0.0
  %491 = vmatprep.subr.mxu0 0.0
  %492 = vmatpush1.msra.mxu0 0.0
  %493 = vmatprep.subr.mxu0 0.0
  %494 = vmatpush1.msra.mxu0 0.0
  %495 = vmatprep.subr.mxu0 0.0
  %496 = vmatpush1.msra.mxu0 0.0
  %497 = vmatprep.subr.mxu0 0.0
  %498 = vmatpush1.msra.mxu0 0.0
  %499 = vmatprep.subr.mxu0 0.0
  %500 = vmatpush1.msra.mxu0 0.0
  %501 = vmatprep.subr.mxu0 0.0
  %502 = vmatpush1.msra.mxu0 0.0
  %503 = vmatprep.subr.mxu0 0.0
  %504 = vmatpush1.msra.mxu0 0.0
  %505 = vmatprep.subr.mxu0 0.0
  %506 = vmatpush1.msra.mxu0 0.0
  %507 = vmatprep.subr.mxu0 0.0
  %508 = vmatpush1.msra.mxu0 0.0
  %509 = vmatprep.subr.mxu0 0.0
  %510 = vmatpush1.msra.mxu0 0.0
  %511 = vmatprep.mubr.f32.mxu0 0.0
  %512 = vmatmul.mubr.f32.gmra.mrb[0].mxu0 %v442
  %v513 = vpop.f32.mrb[0].mxu0
  %v514 = vadd.f32 %v439, %v513
  %v515 = vpop.f32.mrb[0].mxu0
  %516 = vmatprep.mubr.f32.mxu0 0.0
  %517 = vmatmul.mubr.f32.gmra.mrb[0].mxu0 %v445
  %v518 = vpop.f32.mrb[0].mxu0
  %v519 = vadd.f32 %v439, %v518
  %v520 = vpop.f32.mrb[0].mxu0
  %521 = vdwg.mxu0
  %522 = vst [vmem:[%s10] sm:$0xff] %v514
  %523 = vst [vmem:[%s10 + $0x8] sm:$0xff] %v519
  // Predicated region
  $region42: #{_lambda_.5} parent=0 // pred_check
    _
  $region43: #{_lambda_.5} parent=0 // pred_check_branch
    %525 = sbr.rel (0) target = $region45
  $region44: #{_lambda_.5} parent=0 // pred_region
    _
  $region45: #{_lambda_.5} parent=0 // pred_fallthru
    _
  // Predicated region
  $region46: #{_lambda_.5} parent=0 // pred_check
    _
  $region47: #{_lambda_.5} parent=0 // pred_check_branch
    %527 = sbr.rel (0) target = $region49
  $region48: #{_lambda_.5} parent=0 // pred_region
    _
  $region49: #{_lambda_.5} parent=0 // pred_fallthru
    _

// kernel: _lambda_.4
$region0: #{_lambda_.4}
  #allocation0 [shape = 'u32[]', space=smem, size = 0x4, offset = 0x4, fixed_abs, tag = 'smem constant byte address 0x4 - core index']
  #allocation1 [shape = 'u32[144,128]{1,0:T(1,128)}', space=vmem, size = 0x12000, scoped, tag = 'internal scratch']
  %s0 = inlined_call_operand.vmem [shape: f32[6,8,32], index: 0, kind: input, shape index: {}]
  %s1 = inlined_call_operand.hbm [shape: f32[1,32,96], index: 1, kind: input, shape index: {}]
  %s2 = inlined_call_operand.vmem [shape: f32[1,1,96], index: 2, kind: input, shape index: {}]
  %s3 = inlined_call_operand.vmem [shape: f32[1,32,32], index: 3, kind: input, shape index: {}]
  %s4 = inlined_call_operand.vmem [shape: f32[1,1,32], index: 4, kind: input, shape index: {}]
  %s5 = inlined_call_operand.vmem [shape: bf16[1,32,2048], index: 5, kind: input, shape index: {}]
  %s6 = inlined_call_operand.hbm [shape: f32[1,1,2048], index: 6, kind: input, shape index: {}]
  %s7 = inlined_call_operand.vmem [shape: bf16[1,2048,32], index: 7, kind: input, shape index: {}]
  %s8 = inlined_call_operand.vmem [shape: f32[1,1,32], index: 8, kind: input, shape index: {}]
  %s9 = inlined_call_operand.vmem [shape: f32[1,1,32], index: 9, kind: input, shape index: {}, may-alias: {9,11}]
  %s10 = inlined_call_operand.vmem [shape: f32[1,1,32], index: 10, kind: input, shape index: {}, may-alias: {10,12}]
  %s11 = inlined_call_operand.vmem [shape: f32[1,1,32], index: 11, kind: input, shape index: {}, may-alias: {9,11}]
  %s12 = inlined_call_operand.vmem [shape: f32[1,1,32], index: 12, kind: input, shape index: {}, may-alias: {10,12}]
  %s13 = inlined_call_operand.vmem [shape: f32[8,96], index: 13, kind: output, shape index: {0}]
  %s14 = inlined_call_operand.vmem [shape: f32[8,96], index: 14, kind: output, shape index: {1}]
  %15 = xla_tuple %s13, %s14
  %s16 = sld [smem:[#allocation0]]
  $region78: #{_lambda_.4} parent=0
    _
  %s18 = ssub.s32 1, %s16
  %s19 = scalar_select 0, %s18, %s16
  $region1: #{_lambda_.4} parent=0
    #allocation2 [shape = 'u8[16384]{0}', space=vmem, size = 0x4000, scoped, tag = 'input window, operand 1, single buffered']
    #allocation3 [shape = 's32[1]{0}', space=sflag, size = 0x4, scoped, tag = 'scoped memory for _lambda_.4']
    #allocation4 [shape = 'u8[8192]{0}', space=vmem, size = 0x2000, scoped, tag = 'input window, operand 6, single buffered']
    #allocation5 [shape = 's32[1]{0}', space=sflag, size = 0x4, scoped, tag = 'scoped memory for _lambda_.4']
    %20 = vsyncpa [#allocation3], 0
    %21 = vsyncpa [#allocation5], 0
    // Predicated region
    $region2: #{_lambda_.4} parent=1 // pred_check
      _
    $region3: #{_lambda_.4} parent=1 // pred_check_branch
      %23 = sbr.rel (0) target = $region5
    $region4: #{_lambda_.4} parent=1 // pred_region
      _
    $region5: #{_lambda_.4} parent=1 // pred_fallthru
      _
    // Predicated region
    $region6: #{_lambda_.4} parent=1 // pred_check
      _
    $region7: #{_lambda_.4} parent=1 // pred_check_branch
      %25 = sbr.rel (0) target = $region9
    $region8: #{_lambda_.4} parent=1 // pred_region
      %s27 = ssub.s32 512, 512
      %28 = vsyncadd [#allocation3], %s27
      %s29 = sshll.u32 [#allocation2], 4
      %s30 = int_to_ptr.vmem [resolvable:$true] %s29
      %35 = dma.hbm_to_vmem [thread:$0]  %s1, 512, %s30, [#allocation3], 128, 128, 8
    $region9: #{_lambda_.4} parent=1 // pred_fallthru
      _
    // Predicated region
    $region10: #{_lambda_.4} parent=1 // pred_check
      _
    $region11: #{_lambda_.4} parent=1 // pred_check_branch
      %37 = sbr.rel (0) target = $region13
    $region12: #{_lambda_.4} parent=1 // pred_region
      _
    $region13: #{_lambda_.4} parent=1 // pred_fallthru
      _
    // Predicated region
    $region14: #{_lambda_.4} parent=1 // pred_check
      _
    $region15: #{_lambda_.4} parent=1 // pred_check_branch
      %39 = sbr.rel (0) target = $region17
    $region16: #{_lambda_.4} parent=1 // pred_region
      _
    $region17: #{_lambda_.4} parent=1 // pred_fallthru
      _
    // Predicated region
    $region18: #{_lambda_.4} parent=1 // pred_check
      _
    $region19: #{_lambda_.4} parent=1 // pred_check_branch
      %41 = sbr.rel (0) target = $region21
    $region20: #{_lambda_.4} parent=1 // pred_region
      _
    $region21: #{_lambda_.4} parent=1 // pred_fallthru
      _
    // Predicated region
    $region22: #{_lambda_.4} parent=1 // pred_check
      _
    $region23: #{_lambda_.4} parent=1 // pred_check_branch
      %43 = sbr.rel (0) target = $region25
    $region24: #{_lambda_.4} parent=1 // pred_region
      _
    $region25: #{_lambda_.4} parent=1 // pred_fallthru
      _
    // Predicated region
    $region26: #{_lambda_.4} parent=1 // pred_check
      _
    $region27: #{_lambda_.4} parent=1 // pred_check_branch
      %45 = sbr.rel (0) target = $region29
    $region28: #{_lambda_.4} parent=1 // pred_region
      %s47 = ssub.s32 256, 256
      %48 = vsyncadd [#allocation5], %s47
      %s50 = sshll.u32 [#allocation4], 4
      %s51 = int_to_ptr.vmem [resolvable:$true] %s50
      %53 = dma.hbm_to_vmem [thread:$0]  %s6, 256, %s51, [#allocation5]
    $region29: #{_lambda_.4} parent=1 // pred_fallthru
      _
    // Predicated region
    $region30: #{_lambda_.4} parent=1 // pred_check
      _
    $region31: #{_lambda_.4} parent=1 // pred_check_branch
      %55 = sbr.rel (0) target = $region33
    $region32: #{_lambda_.4} parent=1 // pred_region
      _
    $region33: #{_lambda_.4} parent=1 // pred_fallthru
      _
    // Predicated region
    $region34: #{_lambda_.4} parent=1 // pred_check
      _
    $region35: #{_lambda_.4} parent=1 // pred_check_branch
      %57 = sbr.rel (0) target = $region37
    $region36: #{_lambda_.4} parent=1 // pred_region
      _
    $region37: #{_lambda_.4} parent=1 // pred_fallthru
      _
    // Predicated region
    $region38: #{_lambda_.4} parent=1 // pred_check
      _
    $region39: #{_lambda_.4} parent=1 // pred_check_branch
      %59 = sbr.rel (0) target = $region41
    $region40: #{_lambda_.4} parent=1 // pred_region
      _
    $region41: #{_lambda_.4} parent=1 // pred_fallthru
      _
    // Predicated region
    $region42: #{_lambda_.4} parent=1 // pred_check
      _
    $region43: #{_lambda_.4} parent=1 // pred_check_branch
      %61 = sbr.rel (0) target = $region45
    $region44: #{_lambda_.4} parent=1 // pred_region
      _
    $region45: #{_lambda_.4} parent=1 // pred_fallthru
      _
    // Predicated region
    $region46: #{_lambda_.4} parent=1 // pred_check
      _
    $region47: #{_lambda_.4} parent=1 // pred_check_branch
      %63 = sbr.rel (0) target = $region49
    $region48: #{_lambda_.4} parent=1 // pred_region
      _
    $region49: #{_lambda_.4} parent=1 // pred_fallthru
      _
    // Predicated region
    $region50: #{_lambda_.4} parent=1 // pred_check
      _
    $region51: #{_lambda_.4} parent=1 // pred_check_branch
      %65 = sbr.rel (0) target = $region53
    $region52: #{_lambda_.4} parent=1 // pred_region
      _
    $region53: #{_lambda_.4} parent=1 // pred_fallthru
      _
    // Predicated region
    $region54: #{_lambda_.4} parent=1 // pred_check
      _
    $region55: #{_lambda_.4} parent=1 // pred_check_branch
      %67 = sbr.rel (0) target = $region57
    $region56: #{_lambda_.4} parent=1 // pred_region
      %68 = dma.done [#allocation3], 512
    $region57: #{_lambda_.4} parent=1 // pred_fallthru
      _
    // Predicated region
    $region58: #{_lambda_.4} parent=1 // pred_check
      _
    $region59: #{_lambda_.4} parent=1 // pred_check_branch
      %70 = sbr.rel (0) target = $region61
    $region60: #{_lambda_.4} parent=1 // pred_region
      %71 = dma.done [#allocation5], 256
    $region61: #{_lambda_.4} parent=1 // pred_fallthru
      _
    %v73 = vld [vmem:[%s0] sm:$0xff]
    %v74 = vld [vmem:[%s0 + $0x8] sm:$0xff]
    %v75 = vld [vmem:[%s0 + $0x10] sm:$0xff]
    %v76 = vld [vmem:[%s0 + $0x18] sm:$0xff]
    %v77 = vld [vmem:[%s0 + $0x20] sm:$0xff]
    %v78 = vld [vmem:[%s0 + $0x28] sm:$0xff]
    %v79 = vld [vmem:[#allocation2] sm:$0xff]
    %v80 = vld [vmem:[#allocation2 + $0x8] sm:$0xff]
    %v81 = vld [vmem:[#allocation2 + $0x10] sm:$0xff]
    %v82 = vld [vmem:[#allocation2 + $0x18] sm:$0xff]
    %v83 = vld [vmem:[%s2] sm:$0x1]
    %v85 = vlaneseq
    %v86 = vshrl.u32 %v85, 7
    %v87 = vsub.s32 0, %v86
    %v88 = vrot.slane %v83, %v87
    %vm90 = vcmask 261120
    %v92 = vsel %vm90, %v73, 0
    %v95 = vsel %vm90, %v74, 0
    %v98 = vsel %vm90, %v75, 0
    %v101 = vsel %vm90, %v76, 0
    %v104 = vsel %vm90, %v77, 0
    %v107 = vsel %vm90, %v78, 0
    %109 = vmatprep.subr.mxu0 0.0
    %110 = vmatpush1.msra.mxu0 %v79
    %111 = vmatprep.subr.mxu0 0.0
    %112 = vmatpush1.msra.mxu0 %v80
    %113 = vmatprep.subr.mxu0 0.0
    %114 = vmatpush1.msra.mxu0 %v81
    %115 = vmatprep.subr.mxu0 0.0
    %116 = vmatpush1.msra.mxu0 %v82
    %117 = vmatprep.subr.mxu0 0.0
    %118 = vmatpush1.msra.mxu0 0.0
    %119 = vmatprep.subr.mxu0 0.0
    %120 = vmatpush1.msra.mxu0 0.0
    %121 = vmatprep.subr.mxu0 0.0
    %122 = vmatpush1.msra.mxu0 0.0
    %123 = vmatprep.subr.mxu0 0.0
    %124 = vmatpush1.msra.mxu0 0.0
    %125 = vmatprep.subr.mxu0 0.0
    %126 = vmatpush1.msra.mxu0 0.0
    %127 = vmatprep.subr.mxu0 0.0
    %128 = vmatpush1.msra.mxu0 0.0
    %129 = vmatprep.subr.mxu0 0.0
    %130 = vmatpush1.msra.mxu0 0.0
    %131 = vmatprep.subr.mxu0 0.0
    %132 = vmatpush1.msra.mxu0 0.0
    %133 = vmatprep.subr.mxu0 0.0
    %134 = vmatpush1.msra.mxu0 0.0
    %135 = vmatprep.subr.mxu0 0.0
    %136 = vmatpush1.msra.mxu0 0.0
    %137 = vmatprep.subr.mxu0 0.0
    %138 = vmatpush1.msra.mxu0 0.0
    %139 = vmatprep.subr.mxu0 0.0
    %140 = vmatpush1.msra.mxu0 0.0
    %141 = vmatprep.subr.mxu0 0.0
    %142 = vmatpush1.msra.mxu0 0.0
    %143 = vmatprep.subr.mxu0 0.0
    %144 = vmatpush1.msra.mxu0 0.0
    %145 = vmatprep.subr.mxu0 0.0
    %146 = vmatpush1.msra.mxu0 0.0
    %147 = vmatprep.subr.mxu0 0.0
    %148 = vmatpush1.msra.mxu0 0.0
    %149 = vmatprep.subr.mxu0 0.0
    %150 = vmatpush1.msra.mxu0 0.0
    %151 = vmatprep.subr.mxu0 0.0
    %152 = vmatpush1.msra.mxu0 0.0
    %153 = vmatprep.subr.mxu0 0.0
    %154 = vmatpush1.msra.mxu0 0.0
    %155 = vmatprep.subr.mxu0 0.0
    %156 = vmatpush1.msra.mxu0 0.0
    %157 = vmatprep.subr.mxu0 0.0
    %158 = vmatpush1.msra.mxu0 0.0
    %159 = vmatprep.subr.mxu0 0.0
    %160 = vmatpush1.msra.mxu0 0.0
    %161 = vmatprep.subr.mxu0 0.0
    %162 = vmatpush1.msra.mxu0 0.0
    %163 = vmatprep.subr.mxu0 0.0
    %164 = vmatpush1.msra.mxu0 0.0
    %165 = vmatprep.subr.mxu0 0.0
    %166 = vmatpush1.msra.mxu0 0.0
    %167 = vmatprep.subr.mxu0 0.0
    %168 = vmatpush1.msra.mxu0 0.0
    %169 = vmatprep.subr.mxu0 0.0
    %170 = vmatpush1.msra.mxu0 0.0
    %171 = vmatprep.subr.mxu0 0.0
    %172 = vmatpush1.msra.mxu0 0.0
    %173 = vmatprep.mubr.f32.mxu0 0.0
    %174 = vmatmul.mubr.f32.gmra.mrb[0].mxu0 %v92
    %v175 = vpop.f32.mrb[0].mxu0
    %v176 = vadd.f32 %v88, %v175
    %v177 = vpop.f32.mrb[0].mxu0
    %178 = vmatprep.mubr.f32.mxu0 0.0
    %179 = vmatmul.mubr.f32.gmra.mrb[0].mxu0 %v95
    %v180 = vpop.f32.mrb[0].mxu0
    %v181 = vadd.f32 %v88, %v180
    %v182 = vpop.f32.mrb[0].mxu0
    %183 = vmatprep.mubr.f32.mxu0 0.0
    %184 = vmatmul.mubr.f32.gmra.mrb[0].mxu0 %v98
    %v185 = vpop.f32.mrb[0].mxu0
    %v186 = vadd.f32 %v88, %v185
    %v187 = vpop.f32.mrb[0].mxu0
    %188 = vmatprep.mubr.f32.mxu0 0.0
    %189 = vmatmul.mubr.f32.gmra.mrb[0].mxu0 %v101
    %v190 = vpop.f32.mrb[0].mxu0
    %v191 = vadd.f32 %v88, %v190
    %v192 = vpop.f32.mrb[0].mxu0
    %193 = vmatprep.mubr.f32.mxu0 0.0
    %194 = vmatmul.mubr.f32.gmra.mrb[0].mxu0 %v104
    %v195 = vpop.f32.mrb[0].mxu0
    %v196 = vadd.f32 %v88, %v195
    %v197 = vpop.f32.mrb[0].mxu0
    %198 = vmatprep.mubr.f32.mxu0 0.0
    %199 = vmatmul.mubr.f32.gmra.mrb[0].mxu0 %v107
    %v200 = vpop.f32.mrb[0].mxu0
    %v201 = vadd.f32 %v88, %v200
    %v202 = vpop.f32.mrb[0].mxu0
    %203 = vdwg.mxu0
    %v204 = vmul.f32 %v176, 0.35355338
    %v205 = vmul.f32 %v181, 0.35355338
    %v206 = vmul.f32 %v186, 0.35355338
    %v207 = vmul.f32 %v191, 0.35355338
    %v208 = vmul.f32 %v196, 0.35355338
    %v209 = vmul.f32 %v201, 0.35355338
    %211 = vrot.lane.b32.xlu0 %v176, 96
    %v212 = vpop.permute.xlu0 %211
    %vm213 = vcmask 64512
    %v215 = vsel %vm213, %v204, 0
    %v217 = vsel %vm213, %v212, 0
    %219 = vmatprep.subr.mxu0 0.0
    %220 = vmatpush1.xpose.msra.mxu0 %v217
    %221 = vmatprep.subr.mxu0 0.0
    %222 = vmatpush1.xpose.msra.mxu0 0.0
    %223 = vmatprep.subr.mxu0 0.0
    %224 = vmatpush1.xpose.msra.mxu0 0.0
    %225 = vmatprep.subr.mxu0 0.0
    %226 = vmatpush1.xpose.msra.mxu0 0.0
    %227 = vmatprep.subr.mxu0 0.0
    %228 = vmatpush1.xpose.msra.mxu0 0.0
    %229 = vmatprep.subr.mxu0 0.0
    %230 = vmatpush1.xpose.msra.mxu0 0.0
    %231 = vmatprep.subr.mxu0 0.0
    %232 = vmatpush1.xpose.msra.mxu0 0.0
    %233 = vmatprep.subr.mxu0 0.0
    %234 = vmatpush1.xpose.msra.mxu0 0.0
    %235 = vmatprep.subr.mxu0 0.0
    %236 = vmatpush1.xpose.msra.mxu0 0.0
    %237 = vmatprep.subr.mxu0 0.0
    %238 = vmatpush1.xpose.msra.mxu0 0.0
    %239 = vmatprep.subr.mxu0 0.0
    %240 = vmatpush1.xpose.msra.mxu0 0.0
    %241 = vmatprep.subr.mxu0 0.0
    %242 = vmatpush1.xpose.msra.mxu0 0.0
    %243 = vmatprep.subr.mxu0 0.0
    %244 = vmatpush1.xpose.msra.mxu0 0.0
    %245 = vmatprep.subr.mxu0 0.0
    %246 = vmatpush1.xpose.msra.mxu0 0.0
    %247 = vmatprep.subr.mxu0 0.0
    %248 = vmatpush1.xpose.msra.mxu0 0.0
    %249 = vmatprep.subr.mxu0 0.0
    %250 = vmatpush1.xpose.msra.mxu0 0.0
    %251 = vmatprep.subr.mxu0 0.0
    %252 = vmatpush1.xpose.msra.mxu0 0.0
    %253 = vmatprep.subr.mxu0 0.0
    %254 = vmatpush1.xpose.msra.mxu0 0.0
    %255 = vmatprep.subr.mxu0 0.0
    %256 = vmatpush1.xpose.msra.mxu0 0.0
    %257 = vmatprep.subr.mxu0 0.0
    %258 = vmatpush1.xpose.msra.mxu0 0.0
    %259 = vmatprep.subr.mxu0 0.0
    %260 = vmatpush1.xpose.msra.mxu0 0.0
    %261 = vmatprep.subr.mxu0 0.0
    %262 = vmatpush1.xpose.msra.mxu0 0.0
    %263 = vmatprep.subr.mxu0 0.0
    %264 = vmatpush1.xpose.msra.mxu0 0.0
    %265 = vmatprep.subr.mxu0 0.0
    %266 = vmatpush1.xpose.msra.mxu0 0.0
    %267 = vmatprep.subr.mxu0 0.0
    %268 = vmatpush1.xpose.msra.mxu0 0.0
    %269 = vmatprep.subr.mxu0 0.0
    %270 = vmatpush1.xpose.msra.mxu0 0.0
    %271 = vmatprep.subr.mxu0 0.0
    %272 = vmatpush1.xpose.msra.mxu0 0.0
    %273 = vmatprep.subr.mxu0 0.0
    %274 = vmatpush1.xpose.msra.mxu0 0.0
    %275 = vmatprep.subr.mxu0 0.0
    %276 = vmatpush1.xpose.msra.mxu0 0.0
    %277 = vmatprep.subr.mxu0 0.0
    %278 = vmatpush1.xpose.msra.mxu0 0.0
    %279 = vmatprep.subr.mxu0 0.0
    %280 = vmatpush1.xpose.msra.mxu0 0.0
    %281 = vmatprep.subr.mxu0 0.0
    %282 = vmatpush1.xpose.msra.mxu0 0.0
    %283 = vmatprep.mubr.f32.mxu0 0.0
    %284 = vmatmul.mubr.f32.gmra.mrb[0].mxu0 %v215
    %v285 = vpop.f32.mrb[0].mxu0
    %v286 = vadd.f32 0.0, %v285
    %v287 = vpop.f32.mrb[0].mxu0
    %288 = vdwg.mxu0
    %290 = vrot.lane.b32.xlu0 %v181, 96
    %v291 = vpop.permute.xlu0 %290
    %v293 = vsel %vm213, %v205, 0
    %v295 = vsel %vm213, %v291, 0
    %297 = vmatprep.subr.mxu0 0.0
    %298 = vmatpush1.xpose.msra.mxu0 %v295
    %299 = vmatprep.subr.mxu0 0.0
    %300 = vmatpush1.xpose.msra.mxu0 0.0
    %301 = vmatprep.subr.mxu0 0.0
    %302 = vmatpush1.xpose.msra.mxu0 0.0
    %303 = vmatprep.subr.mxu0 0.0
    %304 = vmatpush1.xpose.msra.mxu0 0.0
    %305 = vmatprep.subr.mxu0 0.0
    %306 = vmatpush1.xpose.msra.mxu0 0.0
    %307 = vmatprep.subr.mxu0 0.0
    %308 = vmatpush1.xpose.msra.mxu0 0.0
    %309 = vmatprep.subr.mxu0 0.0
    %310 = vmatpush1.xpose.msra.mxu0 0.0
    %311 = vmatprep.subr.mxu0 0.0
    %312 = vmatpush1.xpose.msra.mxu0 0.0
    %313 = vmatprep.subr.mxu0 0.0
    %314 = vmatpush1.xpose.msra.mxu0 0.0
    %315 = vmatprep.subr.mxu0 0.0
    %316 = vmatpush1.xpose.msra.mxu0 0.0
    %317 = vmatprep.subr.mxu0 0.0
    %318 = vmatpush1.xpose.msra.mxu0 0.0
    %319 = vmatprep.subr.mxu0 0.0
    %320 = vmatpush1.xpose.msra.mxu0 0.0
    %321 = vmatprep.subr.mxu0 0.0
    %322 = vmatpush1.xpose.msra.mxu0 0.0
    %323 = vmatprep.subr.mxu0 0.0
    %324 = vmatpush1.xpose.msra.mxu0 0.0
    %325 = vmatprep.subr.mxu0 0.0
    %326 = vmatpush1.xpose.msra.mxu0 0.0
    %327 = vmatprep.subr.mxu0 0.0
    %328 = vmatpush1.xpose.msra.mxu0 0.0
    %329 = vmatprep.subr.mxu0 0.0
    %330 = vmatpush1.xpose.msra.mxu0 0.0
    %331 = vmatprep.subr.mxu0 0.0
    %332 = vmatpush1.xpose.msra.mxu0 0.0
    %333 = vmatprep.subr.mxu0 0.0
    %334 = vmatpush1.xpose.msra.mxu0 0.0
    %335 = vmatprep.subr.mxu0 0.0
    %336 = vmatpush1.xpose.msra.mxu0 0.0
    %337 = vmatprep.subr.mxu0 0.0
    %338 = vmatpush1.xpose.msra.mxu0 0.0
    %339 = vmatprep.subr.mxu0 0.0
    %340 = vmatpush1.xpose.msra.mxu0 0.0
    %341 = vmatprep.subr.mxu0 0.0
    %342 = vmatpush1.xpose.msra.mxu0 0.0
    %343 = vmatprep.subr.mxu0 0.0
    %344 = vmatpush1.xpose.msra.mxu0 0.0
    %345 = vmatprep.subr.mxu0 0.0
    %346 = vmatpush1.xpose.msra.mxu0 0.0
    %347 = vmatprep.subr.mxu0 0.0
    %348 = vmatpush1.xpose.msra.mxu0 0.0
    %349 = vmatprep.subr.mxu0 0.0
    %350 = vmatpush1.xpose.msra.mxu0 0.0
    %351 = vmatprep.subr.mxu0 0.0
    %352 = vmatpush1.xpose.msra.mxu0 0.0
    %353 = vmatprep.subr.mxu0 0.0
    %354 = vmatpush1.xpose.msra.mxu0 0.0
    %355 = vmatprep.subr.mxu0 0.0
    %356 = vmatpush1.xpose.msra.mxu0 0.0
    %357 = vmatprep.subr.mxu0 0.0
    %358 = vmatpush1.xpose.msra.mxu0 0.0
    %359 = vmatprep.subr.mxu0 0.0
    %360 = vmatpush1.xpose.msra.mxu0 0.0
    %361 = vmatprep.mubr.f32.mxu0 0.0
    %362 = vmatmul.mubr.f32.gmra.mrb[0].mxu0 %v293
    %v363 = vpop.f32.mrb[0].mxu0
    %v364 = vadd.f32 0.0, %v363
    %v365 = vpop.f32.mrb[0].mxu0
    %366 = vdwg.mxu0
    %368 = vrot.lane.b32.xlu0 %v186, 96
    %v369 = vpop.permute.xlu0 %368
    %v371 = vsel %vm213, %v206, 0
    %v373 = vsel %vm213, %v369, 0
    %375 = vmatprep.subr.mxu0 0.0
    %376 = vmatpush1.xpose.msra.mxu0 %v373
    %377 = vmatprep.subr.mxu0 0.0
    %378 = vmatpush1.xpose.msra.mxu0 0.0
    %379 = vmatprep.subr.mxu0 0.0
    %380 = vmatpush1.xpose.msra.mxu0 0.0
    %381 = vmatprep.subr.mxu0 0.0
    %382 = vmatpush1.xpose.msra.mxu0 0.0
    %383 = vmatprep.subr.mxu0 0.0
    %384 = vmatpush1.xpose.msra.mxu0 0.0
    %385 = vmatprep.subr.mxu0 0.0
    %386 = vmatpush1.xpose.msra.mxu0 0.0
    %387 = vmatprep.subr.mxu0 0.0
    %388 = vmatpush1.xpose.msra.mxu0 0.0
    %389 = vmatprep.subr.mxu0 0.0
    %390 = vmatpush1.xpose.msra.mxu0 0.0
    %391 = vmatprep.subr.mxu0 0.0
    %392 = vmatpush1.xpose.msra.mxu0 0.0
    %393 = vmatprep.subr.mxu0 0.0
    %394 = vmatpush1.xpose.msra.mxu0 0.0
    %395 = vmatprep.subr.mxu0 0.0
    %396 = vmatpush1.xpose.msra.mxu0 0.0
    %397 = vmatprep.subr.mxu0 0.0
    %398 = vmatpush1.xpose.msra.mxu0 0.0
    %399 = vmatprep.subr.mxu0 0.0
    %400 = vmatpush1.xpose.msra.mxu0 0.0
    %401 = vmatprep.subr.mxu0 0.0
    %402 = vmatpush1.xpose.msra.mxu0 0.0
    %403 = vmatprep.subr.mxu0 0.0
    %404 = vmatpush1.xpose.msra.mxu0 0.0
    %405 = vmatprep.subr.mxu0 0.0
    %406 = vmatpush1.xpose.msra.mxu0 0.0
    %407 = vmatprep.subr.mxu0 0.0
    %408 = vmatpush1.xpose.msra.mxu0 0.0
    %409 = vmatprep.subr.mxu0 0.0
    %410 = vmatpush1.xpose.msra.mxu0 0.0
    %411 = vmatprep.subr.mxu0 0.0
    %412 = vmatpush1.xpose.msra.mxu0 0.0
    %413 = vmatprep.subr.mxu0 0.0
    %414 = vmatpush1.xpose.msra.mxu0 0.0
    %415 = vmatprep.subr.mxu0 0.0
    %416 = vmatpush1.xpose.msra.mxu0 0.0
    %417 = vmatprep.subr.mxu0 0.0
    %418 = vmatpush1.xpose.msra.mxu0 0.0
    %419 = vmatprep.subr.mxu0 0.0
    %420 = vmatpush1.xpose.msra.mxu0 0.0
    %421 = vmatprep.subr.mxu0 0.0
    %422 = vmatpush1.xpose.msra.mxu0 0.0
    %423 = vmatprep.subr.mxu0 0.0
    %424 = vmatpush1.xpose.msra.mxu0 0.0
    %425 = vmatprep.subr.mxu0 0.0
    %426 = vmatpush1.xpose.msra.mxu0 0.0
    %427 = vmatprep.subr.mxu0 0.0
    %428 = vmatpush1.xpose.msra.mxu0 0.0
    %429 = vmatprep.subr.mxu0 0.0
    %430 = vmatpush1.xpose.msra.mxu0 0.0
    %431 = vmatprep.subr.mxu0 0.0
    %432 = vmatpush1.xpose.msra.mxu0 0.0
    %433 = vmatprep.subr.mxu0 0.0
    %434 = vmatpush1.xpose.msra.mxu0 0.0
    %435 = vmatprep.subr.mxu0 0.0
    %436 = vmatpush1.xpose.msra.mxu0 0.0
    %437 = vmatprep.subr.mxu0 0.0
    %438 = vmatpush1.xpose.msra.mxu0 0.0
    %439 = vmatprep.mubr.f32.mxu0 0.0
    %440 = vmatmul.mubr.f32.gmra.mrb[0].mxu0 %v371
    %v441 = vpop.f32.mrb[0].mxu0
    %v442 = vadd.f32 0.0, %v441
    %v443 = vpop.f32.mrb[0].mxu0
    %444 = vdwg.mxu0
    %446 = vrot.lane.b32.xlu0 %v191, 96
    %v447 = vpop.permute.xlu0 %446
    %v449 = vsel %vm213, %v207, 0
    %v451 = vsel %vm213, %v447, 0
    %453 = vmatprep.subr.mxu0 0.0
    %454 = vmatpush1.xpose.msra.mxu0 %v451
    %455 = vmatprep.subr.mxu0 0.0
    %456 = vmatpush1.xpose.msra.mxu0 0.0
    %457 = vmatprep.subr.mxu0 0.0
    %458 = vmatpush1.xpose.msra.mxu0 0.0
    %459 = vmatprep.subr.mxu0 0.0
    %460 = vmatpush1.xpose.msra.mxu0 0.0
    %461 = vmatprep.subr.mxu0 0.0
    %462 = vmatpush1.xpose.msra.mxu0 0.0
    %463 = vmatprep.subr.mxu0 0.0
    %464 = vmatpush1.xpose.msra.mxu0 0.0
    %465 = vmatprep.subr.mxu0 0.0
    %466 = vmatpush1.xpose.msra.mxu0 0.0
    %467 = vmatprep.subr.mxu0 0.0
    %468 = vmatpush1.xpose.msra.mxu0 0.0
    %469 = vmatprep.subr.mxu0 0.0
    %470 = vmatpush1.xpose.msra.mxu0 0.0
    %471 = vmatprep.subr.mxu0 0.0
    %472 = vmatpush1.xpose.msra.mxu0 0.0
    %473 = vmatprep.subr.mxu0 0.0
    %474 = vmatpush1.xpose.msra.mxu0 0.0
    %475 = vmatprep.subr.mxu0 0.0
    %476 = vmatpush1.xpose.msra.mxu0 0.0
    %477 = vmatprep.subr.mxu0 0.0
    %478 = vmatpush1.xpose.msra.mxu0 0.0
    %479 = vmatprep.subr.mxu0 0.0
    %480 = vmatpush1.xpose.msra.mxu0 0.0
    %481 = vmatprep.subr.mxu0 0.0
    %482 = vmatpush1.xpose.msra.mxu0 0.0
    %483 = vmatprep.subr.mxu0 0.0
    %484 = vmatpush1.xpose.msra.mxu0 0.0
    %485 = vmatprep.subr.mxu0 0.0
    %486 = vmatpush1.xpose.msra.mxu0 0.0
    %487 = vmatprep.subr.mxu0 0.0
    %488 = vmatpush1.xpose.msra.mxu0 0.0
    %489 = vmatprep.subr.mxu0 0.0
    %490 = vmatpush1.xpose.msra.mxu0 0.0
    %491 = vmatprep.subr.mxu0 0.0
    %492 = vmatpush1.xpose.msra.mxu0 0.0
    %493 = vmatprep.subr.mxu0 0.0
    %494 = vmatpush1.xpose.msra.mxu0 0.0
    %495 = vmatprep.subr.mxu0 0.0
    %496 = vmatpush1.xpose.msra.mxu0 0.0
    %497 = vmatprep.subr.mxu0 0.0
    %498 = vmatpush1.xpose.msra.mxu0 0.0
    %499 = vmatprep.subr.mxu0 0.0
    %500 = vmatpush1.xpose.msra.mxu0 0.0
    %501 = vmatprep.subr.mxu0 0.0
    %502 = vmatpush1.xpose.msra.mxu0 0.0
    %503 = vmatprep.subr.mxu0 0.0
    %504 = vmatpush1.xpose.msra.mxu0 0.0
    %505 = vmatprep.subr.mxu0 0.0
    %506 = vmatpush1.xpose.msra.mxu0 0.0
    %507 = vmatprep.subr.mxu0 0.0
    %508 = vmatpush1.xpose.msra.mxu0 0.0
    %509 = vmatprep.subr.mxu0 0.0
    %510 = vmatpush1.xpose.msra.mxu0 0.0
    %511 = vmatprep.subr.mxu0 0.0
    %512 = vmatpush1.xpose.msra.mxu0 0.0
    %513 = vmatprep.subr.mxu0 0.0
    %514 = vmatpush1.xpose.msra.mxu0 0.0
    %515 = vmatprep.subr.mxu0 0.0
    %516 = vmatpush1.xpose.msra.mxu0 0.0
    %517 = vmatprep.mubr.f32.mxu0 0.0
    %518 = vmatmul.mubr.f32.gmra.mrb[0].mxu0 %v449
    %v519 = vpop.f32.mrb[0].mxu0
    %v520 = vadd.f32 0.0, %v519
    %v521 = vpop.f32.mrb[0].mxu0
    %522 = vdwg.mxu0
    %524 = vrot.lane.b32.xlu0 %v196, 96
    %v525 = vpop.permute.xlu0 %524
    %v527 = vsel %vm213, %v208, 0
    %v529 = vsel %vm213, %v525, 0
    %531 = vmatprep.subr.mxu0 0.0
    %532 = vmatpush1.xpose.msra.mxu0 %v529
    %533 = vmatprep.subr.mxu0 0.0
    %534 = vmatpush1.xpose.msra.mxu0 0.0
    %535 = vmatprep.subr.mxu0 0.0
    %536 = vmatpush1.xpose.msra.mxu0 0.0
    %537 = vmatprep.subr.mxu0 0.0
    %538 = vmatpush1.xpose.msra.mxu0 0.0
    %539 = vmatprep.subr.mxu0 0.0
    %540 = vmatpush1.xpose.msra.mxu0 0.0
    %541 = vmatprep.subr.mxu0 0.0
    %542 = vmatpush1.xpose.msra.mxu0 0.0
    %543 = vmatprep.subr.mxu0 0.0
    %544 = vmatpush1.xpose.msra.mxu0 0.0
    %545 = vmatprep.subr.mxu0 0.0
    %546 = vmatpush1.xpose.msra.mxu0 0.0
    %547 = vmatprep.subr.mxu0 0.0
    %548 = vmatpush1.xpose.msra.mxu0 0.0
    %549 = vmatprep.subr.mxu0 0.0
    %550 = vmatpush1.xpose.msra.mxu0 0.0
    %551 = vmatprep.subr.mxu0 0.0
    %552 = vmatpush1.xpose.msra.mxu0 0.0
    %553 = vmatprep.subr.mxu0 0.0
    %554 = vmatpush1.xpose.msra.mxu0 0.0
    %555 = vmatprep.subr.mxu0 0.0
    %556 = vmatpush1.xpose.msra.mxu0 0.0
    %557 = vmatprep.subr.mxu0 0.0
    %558 = vmatpush1.xpose.msra.mxu0 0.0
    %559 = vmatprep.subr.mxu0 0.0
    %560 = vmatpush1.xpose.msra.mxu0 0.0
    %561 = vmatprep.subr.mxu0 0.0
    %562 = vmatpush1.xpose.msra.mxu0 0.0
    %563 = vmatprep.subr.mxu0 0.0
    %564 = vmatpush1.xpose.msra.mxu0 0.0
    %565 = vmatprep.subr.mxu0 0.0
    %566 = vmatpush1.xpose.msra.mxu0 0.0
    %567 = vmatprep.subr.mxu0 0.0
    %568 = vmatpush1.xpose.msra.mxu0 0.0
    %569 = vmatprep.subr.mxu0 0.0
    %570 = vmatpush1.xpose.msra.mxu0 0.0
    %571 = vmatprep.subr.mxu0 0.0
    %572 = vmatpush1.xpose.msra.mxu0 0.0
    %573 = vmatprep.subr.mxu0 0.0
    %574 = vmatpush1.xpose.msra.mxu0 0.0
    %575 = vmatprep.subr.mxu0 0.0
    %576 = vmatpush1.xpose.msra.mxu0 0.0
    %577 = vmatprep.subr.mxu0 0.0
    %578 = vmatpush1.xpose.msra.mxu0 0.0
    %579 = vmatprep.subr.mxu0 0.0
    %580 = vmatpush1.xpose.msra.mxu0 0.0
    %581 = vmatprep.subr.mxu0 0.0
    %582 = vmatpush1.xpose.msra.mxu0 0.0
    %583 = vmatprep.subr.mxu0 0.0
    %584 = vmatpush1.xpose.msra.mxu0 0.0
    %585 = vmatprep.subr.mxu0 0.0
    %586 = vmatpush1.xpose.msra.mxu0 0.0
    %587 = vmatprep.subr.mxu0 0.0
    %588 = vmatpush1.xpose.msra.mxu0 0.0
    %589 = vmatprep.subr.mxu0 0.0
    %590 = vmatpush1.xpose.msra.mxu0 0.0
    %591 = vmatprep.subr.mxu0 0.0
    %592 = vmatpush1.xpose.msra.mxu0 0.0
    %593 = vmatprep.subr.mxu0 0.0
    %594 = vmatpush1.xpose.msra.mxu0 0.0
    %595 = vmatprep.mubr.f32.mxu0 0.0
    %596 = vmatmul.mubr.f32.gmra.mrb[0].mxu0 %v527
    %v597 = vpop.f32.mrb[0].mxu0
    %v598 = vadd.f32 0.0, %v597
    %v599 = vpop.f32.mrb[0].mxu0
    %600 = vdwg.mxu0
    %602 = vrot.lane.b32.xlu0 %v201, 96
    %v603 = vpop.permute.xlu0 %602
    %v605 = vsel %vm213, %v209, 0
    %v607 = vsel %vm213, %v603, 0
    %609 = vmatprep.subr.mxu0 0.0
    %610 = vmatpush1.xpose.msra.mxu0 %v607
    %611 = vmatprep.subr.mxu0 0.0
    %612 = vmatpush1.xpose.msra.mxu0 0.0
    %613 = vmatprep.subr.mxu0 0.0
    %614 = vmatpush1.xpose.msra.mxu0 0.0
    %615 = vmatprep.subr.mxu0 0.0
    %616 = vmatpush1.xpose.msra.mxu0 0.0
    %617 = vmatprep.subr.mxu0 0.0
    %618 = vmatpush1.xpose.msra.mxu0 0.0
    %619 = vmatprep.subr.mxu0 0.0
    %620 = vmatpush1.xpose.msra.mxu0 0.0
    %621 = vmatprep.subr.mxu0 0.0
    %622 = vmatpush1.xpose.msra.mxu0 0.0
    %623 = vmatprep.subr.mxu0 0.0
    %624 = vmatpush1.xpose.msra.mxu0 0.0
    %625 = vmatprep.subr.mxu0 0.0
    %626 = vmatpush1.xpose.msra.mxu0 0.0
    %627 = vmatprep.subr.mxu0 0.0
    %628 = vmatpush1.xpose.msra.mxu0 0.0
    %629 = vmatprep.subr.mxu0 0.0
    %630 = vmatpush1.xpose.msra.mxu0 0.0
    %631 = vmatprep.subr.mxu0 0.0
    %632 = vmatpush1.xpose.msra.mxu0 0.0
    %633 = vmatprep.subr.mxu0 0.0
    %634 = vmatpush1.xpose.msra.mxu0 0.0
    %635 = vmatprep.subr.mxu0 0.0
    %636 = vmatpush1.xpose.msra.mxu0 0.0
    %637 = vmatprep.subr.mxu0 0.0
    %638 = vmatpush1.xpose.msra.mxu0 0.0
    %639 = vmatprep.subr.mxu0 0.0
    %640 = vmatpush1.xpose.msra.mxu0 0.0
    %641 = vmatprep.subr.mxu0 0.0
    %642 = vmatpush1.xpose.msra.mxu0 0.0
    %643 = vmatprep.subr.mxu0 0.0
    %644 = vmatpush1.xpose.msra.mxu0 0.0
    %645 = vmatprep.subr.mxu0 0.0
    %646 = vmatpush1.xpose.msra.mxu0 0.0
    %647 = vmatprep.subr.mxu0 0.0
    %648 = vmatpush1.xpose.msra.mxu0 0.0
    %649 = vmatprep.subr.mxu0 0.0
    %650 = vmatpush1.xpose.msra.mxu0 0.0
    %651 = vmatprep.subr.mxu0 0.0
    %652 = vmatpush1.xpose.msra.mxu0 0.0
    %653 = vmatprep.subr.mxu0 0.0
    %654 = vmatpush1.xpose.msra.mxu0 0.0
    %655 = vmatprep.subr.mxu0 0.0
    %656 = vmatpush1.xpose.msra.mxu0 0.0
    %657 = vmatprep.subr.mxu0 0.0
    %658 = vmatpush1.xpose.msra.mxu0 0.0
    %659 = vmatprep.subr.mxu0 0.0
    %660 = vmatpush1.xpose.msra.mxu0 0.0
    %661 = vmatprep.subr.mxu0 0.0
    %662 = vmatpush1.xpose.msra.mxu0 0.0
    %663 = vmatprep.subr.mxu0 0.0
    %664 = vmatpush1.xpose.msra.mxu0 0.0
    %665 = vmatprep.subr.mxu0 0.0
    %666 = vmatpush1.xpose.msra.mxu0 0.0
    %667 = vmatprep.subr.mxu0 0.0
    %668 = vmatpush1.xpose.msra.mxu0 0.0
    %669 = vmatprep.subr.mxu0 0.0
    %670 = vmatpush1.xpose.msra.mxu0 0.0
    %671 = vmatprep.subr.mxu0 0.0
    %672 = vmatpush1.xpose.msra.mxu0 0.0
    %673 = vmatprep.mubr.f32.mxu0 0.0
    %674 = vmatmul.mubr.f32.gmra.mrb[0].mxu0 %v605
    %v675 = vpop.f32.mrb[0].mxu0
    %v676 = vadd.f32 0.0, %v675
    %v677 = vpop.f32.mrb[0].mxu0
    %678 = vdwg.mxu0
    %v679 = vsel %vm213, %v286, -inf
    %680 = vmax.xlane.f32.xlu0 %v679
    %v681 = vpop.xlane.xlu0 %680
    %v682 = vsel %vm213, %v364, -inf
    %683 = vmax.xlane.f32.xlu0 %v682
    %v684 = vpop.xlane.xlu0 %683
    %v685 = vsel %vm213, %v442, -inf
    %686 = vmax.xlane.f32.xlu0 %v685
    %v687 = vpop.xlane.xlu0 %686
    %v688 = vsel %vm213, %v520, -inf
    %689 = vmax.xlane.f32.xlu0 %v688
    %v690 = vpop.xlane.xlu0 %689
    %v691 = vsel %vm213, %v598, -inf
    %692 = vmax.xlane.f32.xlu0 %v691
    %v693 = vpop.xlane.xlu0 %692
    %v694 = vsel %vm213, %v676, -inf
    %695 = vmax.xlane.f32.xlu0 %v694
    %v696 = vpop.xlane.xlu0 %695
    %v697 = vsub.f32 %v286, %v681
    %v698 = vsub.f32 %v364, %v684
    %v699 = vsub.f32 %v442, %v687
    %v700 = vsub.f32 %v520, %v690
    %v701 = vsub.f32 %v598, %v693
    %v702 = vsub.f32 %v676, %v696
    %v703 = vmul.f32 %v697, 1.442695
    %v704 = vpow.pop %v703
    %v705 = vmul.f32 %v698, 1.442695
    %v706 = vpow.pop %v705
    %v707 = vmul.f32 %v699, 1.442695
    %v708 = vpow.pop %v707
    %v709 = vmul.f32 %v700, 1.442695
    %v710 = vpow.pop %v709
    %v711 = vmul.f32 %v701, 1.442695
    %v712 = vpow.pop %v711
    %v713 = vmul.f32 %v702, 1.442695
    %v714 = vpow.pop %v713
    %v715 = vsel %vm213, %v704, 0.0
    %716 = vadd.xlane.f32.xlu0 %v715
    %v717 = vpop.xlane.xlu0 %716
    %v718 = vsel %vm213, %v706, 0.0
    %719 = vadd.xlane.f32.xlu0 %v718
    %v720 = vpop.xlane.xlu0 %719
    %v721 = vsel %vm213, %v708, 0.0
    %722 = vadd.xlane.f32.xlu0 %v721
    %v723 = vpop.xlane.xlu0 %722
    %v724 = vsel %vm213, %v710, 0.0
    %725 = vadd.xlane.f32.xlu0 %v724
    %v726 = vpop.xlane.xlu0 %725
    %v727 = vsel %vm213, %v712, 0.0
    %728 = vadd.xlane.f32.xlu0 %v727
    %v729 = vpop.xlane.xlu0 %728
    %v730 = vsel %vm213, %v714, 0.0
    %731 = vadd.xlane.f32.xlu0 %v730
    %v732 = vpop.xlane.xlu0 %731
    %v733 = vrcp.pop %v717
    %v734 = vrcp.pop %v720
    %v735 = vrcp.pop %v723
    %v736 = vrcp.pop %v726
    %v737 = vrcp.pop %v729
    %v738 = vrcp.pop %v732
    %v739 = vmul.f32 %v704, %v733
    %v740 = vmul.f32 %v706, %v734
    %v741 = vmul.f32 %v708, %v735
    %v742 = vmul.f32 %v710, %v736
    %v743 = vmul.f32 %v712, %v737
    %v744 = vmul.f32 %v714, %v738
    %745 = vrot.lane.b32.xlu0 %v176, 64
    %v746 = vpop.permute.xlu0 %745
    %v749 = vsel %vm213, %v739, 0
    %751 = vmatprep.subr.mxu0 0.0
    %752 = vmatpush1.msra.mxu0 %v746
    %753 = vmatprep.subr.mxu0 0.0
    %754 = vmatpush1.msra.mxu0 0.0
    %755 = vmatprep.subr.mxu0 0.0
    %756 = vmatpush1.msra.mxu0 0.0
    %757 = vmatprep.subr.mxu0 0.0
    %758 = vmatpush1.msra.mxu0 0.0
    %759 = vmatprep.subr.mxu0 0.0
    %760 = vmatpush1.msra.mxu0 0.0
    %761 = vmatprep.subr.mxu0 0.0
    %762 = vmatpush1.msra.mxu0 0.0
    %763 = vmatprep.subr.mxu0 0.0
    %764 = vmatpush1.msra.mxu0 0.0
    %765 = vmatprep.subr.mxu0 0.0
    %766 = vmatpush1.msra.mxu0 0.0
    %767 = vmatprep.subr.mxu0 0.0
    %768 = vmatpush1.msra.mxu0 0.0
    %769 = vmatprep.subr.mxu0 0.0
    %770 = vmatpush1.msra.mxu0 0.0
    %771 = vmatprep.subr.mxu0 0.0
    %772 = vmatpush1.msra.mxu0 0.0
    %773 = vmatprep.subr.mxu0 0.0
    %774 = vmatpush1.msra.mxu0 0.0
    %775 = vmatprep.subr.mxu0 0.0
    %776 = vmatpush1.msra.mxu0 0.0
    %777 = vmatprep.subr.mxu0 0.0
    %778 = vmatpush1.msra.mxu0 0.0
    %779 = vmatprep.subr.mxu0 0.0
    %780 = vmatpush1.msra.mxu0 0.0
    %781 = vmatprep.subr.mxu0 0.0
    %782 = vmatpush1.msra.mxu0 0.0
    %783 = vmatprep.subr.mxu0 0.0
    %784 = vmatpush1.msra.mxu0 0.0
    %785 = vmatprep.subr.mxu0 0.0
    %786 = vmatpush1.msra.mxu0 0.0
    %787 = vmatprep.subr.mxu0 0.0
    %788 = vmatpush1.msra.mxu0 0.0
    %789 = vmatprep.subr.mxu0 0.0
    %790 = vmatpush1.msra.mxu0 0.0
    %791 = vmatprep.subr.mxu0 0.0
    %792 = vmatpush1.msra.mxu0 0.0
    %793 = vmatprep.subr.mxu0 0.0
    %794 = vmatpush1.msra.mxu0 0.0
    %795 = vmatprep.subr.mxu0 0.0
    %796 = vmatpush1.msra.mxu0 0.0
    %797 = vmatprep.subr.mxu0 0.0
    %798 = vmatpush1.msra.mxu0 0.0
    %799 = vmatprep.subr.mxu0 0.0
    %800 = vmatpush1.msra.mxu0 0.0
    %801 = vmatprep.subr.mxu0 0.0
    %802 = vmatpush1.msra.mxu0 0.0
    %803 = vmatprep.subr.mxu0 0.0
    %804 = vmatpush1.msra.mxu0 0.0
    %805 = vmatprep.subr.mxu0 0.0
    %806 = vmatpush1.msra.mxu0 0.0
    %807 = vmatprep.subr.mxu0 0.0
    %808 = vmatpush1.msra.mxu0 0.0
    %809 = vmatprep.subr.mxu0 0.0
    %810 = vmatpush1.msra.mxu0 0.0
    %811 = vmatprep.subr.mxu0 0.0
    %812 = vmatpush1.msra.mxu0 0.0
    %813 = vmatprep.subr.mxu0 0.0
    %814 = vmatpush1.msra.mxu0 0.0
    %815 = vmatprep.mubr.f32.mxu0 0.0
    %816 = vmatmul.mubr.f32.gmra.mrb[0].mxu0 %v749
    %v817 = vpop.f32.mrb[0].mxu0
    %v818 = vadd.f32 0.0, %v817
    %v819 = vpop.f32.mrb[0].mxu0
    %820 = vdwg.mxu0
    %821 = vrot.lane.b32.xlu0 %v181, 64
    %v822 = vpop.permute.xlu0 %821
    %v825 = vsel %vm213, %v740, 0
    %827 = vmatprep.subr.mxu0 0.0
    %828 = vmatpush1.msra.mxu0 %v822
    %829 = vmatprep.subr.mxu0 0.0
    %830 = vmatpush1.msra.mxu0 0.0
    %831 = vmatprep.subr.mxu0 0.0
    %832 = vmatpush1.msra.mxu0 0.0
    %833 = vmatprep.subr.mxu0 0.0
    %834 = vmatpush1.msra.mxu0 0.0
    %835 = vmatprep.subr.mxu0 0.0
    %836 = vmatpush1.msra.mxu0 0.0
    %837 = vmatprep.subr.mxu0 0.0
    %838 = vmatpush1.msra.mxu0 0.0
    %839 = vmatprep.subr.mxu0 0.0
    %840 = vmatpush1.msra.mxu0 0.0
    %841 = vmatprep.subr.mxu0 0.0
    %842 = vmatpush1.msra.mxu0 0.0
    %843 = vmatprep.subr.mxu0 0.0
    %844 = vmatpush1.msra.mxu0 0.0
    %845 = vmatprep.subr.mxu0 0.0
    %846 = vmatpush1.msra.mxu0 0.0
    %847 = vmatprep.subr.mxu0 0.0
    %848 = vmatpush1.msra.mxu0 0.0
    %849 = vmatprep.subr.mxu0 0.0
    %850 = vmatpush1.msra.mxu0 0.0
    %851 = vmatprep.subr.mxu0 0.0
    %852 = vmatpush1.msra.mxu0 0.0
    %853 = vmatprep.subr.mxu0 0.0
    %854 = vmatpush1.msra.mxu0 0.0
    %855 = vmatprep.subr.mxu0 0.0
    %856 = vmatpush1.msra.mxu0 0.0
    %857 = vmatprep.subr.mxu0 0.0
    %858 = vmatpush1.msra.mxu0 0.0
    %859 = vmatprep.subr.mxu0 0.0
    %860 = vmatpush1.msra.mxu0 0.0
    %861 = vmatprep.subr.mxu0 0.0
    %862 = vmatpush1.msra.mxu0 0.0
    %863 = vmatprep.subr.mxu0 0.0
    %864 = vmatpush1.msra.mxu0 0.0
    %865 = vmatprep.subr.mxu0 0.0
    %866 = vmatpush1.msra.mxu0 0.0
    %867 = vmatprep.subr.mxu0 0.0
    %868 = vmatpush1.msra.mxu0 0.0
    %869 = vmatprep.subr.mxu0 0.0
    %870 = vmatpush1.msra.mxu0 0.0
    %871 = vmatprep.subr.mxu0 0.0
    %872 = vmatpush1.msra.mxu0 0.0
    %873 = vmatprep.subr.mxu0 0.0
    %874 = vmatpush1.msra.mxu0 0.0
    %875 = vmatprep.subr.mxu0 0.0
    %876 = vmatpush1.msra.mxu0 0.0
    %877 = vmatprep.subr.mxu0 0.0
    %878 = vmatpush1.msra.mxu0 0.0
    %879 = vmatprep.subr.mxu0 0.0
    %880 = vmatpush1.msra.mxu0 0.0
    %881 = vmatprep.subr.mxu0 0.0
    %882 = vmatpush1.msra.mxu0 0.0
    %883 = vmatprep.subr.mxu0 0.0
    %884 = vmatpush1.msra.mxu0 0.0
    %885 = vmatprep.subr.mxu0 0.0
    %886 = vmatpush1.msra.mxu0 0.0
    %887 = vmatprep.subr.mxu0 0.0
    %888 = vmatpush1.msra.mxu0 0.0
    %889 = vmatprep.subr.mxu0 0.0
    %890 = vmatpush1.msra.mxu0 0.0
    %891 = vmatprep.mubr.f32.mxu0 0.0
    %892 = vmatmul.mubr.f32.gmra.mrb[0].mxu0 %v825
    %v893 = vpop.f32.mrb[0].mxu0
    %v894 = vadd.f32 0.0, %v893
    %v895 = vpop.f32.mrb[0].mxu0
    %896 = vdwg.mxu0
    %897 = vrot.lane.b32.xlu0 %v186, 64
    %v898 = vpop.permute.xlu0 %897
    %v901 = vsel %vm213, %v741, 0
    %903 = vmatprep.subr.mxu0 0.0
    %904 = vmatpush1.msra.mxu0 %v898
    %905 = vmatprep.subr.mxu0 0.0
    %906 = vmatpush1.msra.mxu0 0.0
    %907 = vmatprep.subr.mxu0 0.0
    %908 = vmatpush1.msra.mxu0 0.0
    %909 = vmatprep.subr.mxu0 0.0
    %910 = vmatpush1.msra.mxu0 0.0
    %911 = vmatprep.subr.mxu0 0.0
    %912 = vmatpush1.msra.mxu0 0.0
    %913 = vmatprep.subr.mxu0 0.0
    %914 = vmatpush1.msra.mxu0 0.0
    %915 = vmatprep.subr.mxu0 0.0
    %916 = vmatpush1.msra.mxu0 0.0
    %917 = vmatprep.subr.mxu0 0.0
    %918 = vmatpush1.msra.mxu0 0.0
    %919 = vmatprep.subr.mxu0 0.0
    %920 = vmatpush1.msra.mxu0 0.0
    %921 = vmatprep.subr.mxu0 0.0
    %922 = vmatpush1.msra.mxu0 0.0
    %923 = vmatprep.subr.mxu0 0.0
    %924 = vmatpush1.msra.mxu0 0.0
    %925 = vmatprep.subr.mxu0 0.0
    %926 = vmatpush1.msra.mxu0 0.0
    %927 = vmatprep.subr.mxu0 0.0
    %928 = vmatpush1.msra.mxu0 0.0
    %929 = vmatprep.subr.mxu0 0.0
    %930 = vmatpush1.msra.mxu0 0.0
    %931 = vmatprep.subr.mxu0 0.0
    %932 = vmatpush1.msra.mxu0 0.0
    %933 = vmatprep.subr.mxu0 0.0
    %934 = vmatpush1.msra.mxu0 0.0
    %935 = vmatprep.subr.mxu0 0.0
    %936 = vmatpush1.msra.mxu0 0.0
    %937 = vmatprep.subr.mxu0 0.0
    %938 = vmatpush1.msra.mxu0 0.0
    %939 = vmatprep.subr.mxu0 0.0
    %940 = vmatpush1.msra.mxu0 0.0
    %941 = vmatprep.subr.mxu0 0.0
    %942 = vmatpush1.msra.mxu0 0.0
    %943 = vmatprep.subr.mxu0 0.0
    %944 = vmatpush1.msra.mxu0 0.0
    %945 = vmatprep.subr.mxu0 0.0
    %946 = vmatpush1.msra.mxu0 0.0
    %947 = vmatprep.subr.mxu0 0.0
    %948 = vmatpush1.msra.mxu0 0.0
    %949 = vmatprep.subr.mxu0 0.0
    %950 = vmatpush1.msra.mxu0 0.0
    %951 = vmatprep.subr.mxu0 0.0
    %952 = vmatpush1.msra.mxu0 0.0
    %953 = vmatprep.subr.mxu0 0.0
    %954 = vmatpush1.msra.mxu0 0.0
    %955 = vmatprep.subr.mxu0 0.0
    %956 = vmatpush1.msra.mxu0 0.0
    %957 = vmatprep.subr.mxu0 0.0
    %958 = vmatpush1.msra.mxu0 0.0
    %959 = vmatprep.subr.mxu0 0.0
    %960 = vmatpush1.msra.mxu0 0.0
    %961 = vmatprep.subr.mxu0 0.0
    %962 = vmatpush1.msra.mxu0 0.0
    %963 = vmatprep.subr.mxu0 0.0
    %964 = vmatpush1.msra.mxu0 0.0
    %965 = vmatprep.subr.mxu0 0.0
    %966 = vmatpush1.msra.mxu0 0.0
    %967 = vmatprep.mubr.f32.mxu0 0.0
    %968 = vmatmul.mubr.f32.gmra.mrb[0].mxu0 %v901
    %v969 = vpop.f32.mrb[0].mxu0
    %v970 = vadd.f32 0.0, %v969
    %v971 = vpop.f32.mrb[0].mxu0
    %972 = vdwg.mxu0
    %973 = vrot.lane.b32.xlu0 %v191, 64
    %v974 = vpop.permute.xlu0 %973
    %v977 = vsel %vm213, %v742, 0
    %979 = vmatprep.subr.mxu0 0.0
    %980 = vmatpush1.msra.mxu0 %v974
    %981 = vmatprep.subr.mxu0 0.0
    %982 = vmatpush1.msra.mxu0 0.0
    %983 = vmatprep.subr.mxu0 0.0
    %984 = vmatpush1.msra.mxu0 0.0
    %985 = vmatprep.subr.mxu0 0.0
    %986 = vmatpush1.msra.mxu0 0.0
    %987 = vmatprep.subr.mxu0 0.0
    %988 = vmatpush1.msra.mxu0 0.0
    %989 = vmatprep.subr.mxu0 0.0
    %990 = vmatpush1.msra.mxu0 0.0
    %991 = vmatprep.subr.mxu0 0.0
    %992 = vmatpush1.msra.mxu0 0.0
    %993 = vmatprep.subr.mxu0 0.0
    %994 = vmatpush1.msra.mxu0 0.0
    %995 = vmatprep.subr.mxu0 0.0
    %996 = vmatpush1.msra.mxu0 0.0
    %997 = vmatprep.subr.mxu0 0.0
    %998 = vmatpush1.msra.mxu0 0.0
    %999 = vmatprep.subr.mxu0 0.0
    %1000 = vmatpush1.msra.mxu0 0.0
    %1001 = vmatprep.subr.mxu0 0.0
    %1002 = vmatpush1.msra.mxu0 0.0
    %1003 = vmatprep.subr.mxu0 0.0
    %1004 = vmatpush1.msra.mxu0 0.0
    %1005 = vmatprep.subr.mxu0 0.0
    %1006 = vmatpush1.msra.mxu0 0.0
    %1007 = vmatprep.subr.mxu0 0.0
    %1008 = vmatpush1.msra.mxu0 0.0
    %1009 = vmatprep.subr.mxu0 0.0
    %1010 = vmatpush1.msra.mxu0 0.0
    %1011 = vmatprep.subr.mxu0 0.0
    %1012 = vmatpush1.msra.mxu0 0.0
    %1013 = vmatprep.subr.mxu0 0.0
    %1014 = vmatpush1.msra.mxu0 0.0
    %1015 = vmatprep.subr.mxu0 0.0
    %1016 = vmatpush1.msra.mxu0 0.0
    %1017 = vmatprep.subr.mxu0 0.0
    %1018 = vmatpush1.msra.mxu0 0.0
    %1019 = vmatprep.subr.mxu0 0.0
    %1020 = vmatpush1.msra.mxu0 0.0
    %1021 = vmatprep.subr.mxu0 0.0
    %1022 = vmatpush1.msra.mxu0 0.0
    %1023 = vmatprep.subr.mxu0 0.0
    %1024 = vmatpush1.msra.mxu0 0.0
    %1025 = vmatprep.subr.mxu0 0.0
    %1026 = vmatpush1.msra.mxu0 0.0
    %1027 = vmatprep.subr.mxu0 0.0
    %1028 = vmatpush1.msra.mxu0 0.0
    %1029 = vmatprep.subr.mxu0 0.0
    %1030 = vmatpush1.msra.mxu0 0.0
    %1031 = vmatprep.subr.mxu0 0.0
    %1032 = vmatpush1.msra.mxu0 0.0
    %1033 = vmatprep.subr.mxu0 0.0
    %1034 = vmatpush1.msra.mxu0 0.0
    %1035 = vmatprep.subr.mxu0 0.0
    %1036 = vmatpush1.msra.mxu0 0.0
    %1037 = vmatprep.subr.mxu0 0.0
    %1038 = vmatpush1.msra.mxu0 0.0
    %1039 = vmatprep.subr.mxu0 0.0
    %1040 = vmatpush1.msra.mxu0 0.0
    %1041 = vmatprep.subr.mxu0 0.0
    %1042 = vmatpush1.msra.mxu0 0.0
    %1043 = vmatprep.mubr.f32.mxu0 0.0
    %1044 = vmatmul.mubr.f32.gmra.mrb[0].mxu0 %v977
    %v1045 = vpop.f32.mrb[0].mxu0
    %v1046 = vadd.f32 0.0, %v1045
    %v1047 = vpop.f32.mrb[0].mxu0
    %1048 = vdwg.mxu0
    %1049 = vrot.lane.b32.xlu0 %v196, 64
    %v1050 = vpop.permute.xlu0 %1049
    %v1053 = vsel %vm213, %v743, 0
    %1055 = vmatprep.subr.mxu0 0.0
    %1056 = vmatpush1.msra.mxu0 %v1050
    %1057 = vmatprep.subr.mxu0 0.0
    %1058 = vmatpush1.msra.mxu0 0.0
    %1059 = vmatprep.subr.mxu0 0.0
    %1060 = vmatpush1.msra.mxu0 0.0
    %1061 = vmatprep.subr.mxu0 0.0
    %1062 = vmatpush1.msra.mxu0 0.0
    %1063 = vmatprep.subr.mxu0 0.0
    %1064 = vmatpush1.msra.mxu0 0.0
    %1065 = vmatprep.subr.mxu0 0.0
    %1066 = vmatpush1.msra.mxu0 0.0
    %1067 = vmatprep.subr.mxu0 0.0
    %1068 = vmatpush1.msra.mxu0 0.0
    %1069 = vmatprep.subr.mxu0 0.0
    %1070 = vmatpush1.msra.mxu0 0.0
    %1071 = vmatprep.subr.mxu0 0.0
    %1072 = vmatpush1.msra.mxu0 0.0
    %1073 = vmatprep.subr.mxu0 0.0
    %1074 = vmatpush1.msra.mxu0 0.0
    %1075 = vmatprep.subr.mxu0 0.0
    %1076 = vmatpush1.msra.mxu0 0.0
    %1077 = vmatprep.subr.mxu0 0.0
    %1078 = vmatpush1.msra.mxu0 0.0
    %1079 = vmatprep.subr.mxu0 0.0
    %1080 = vmatpush1.msra.mxu0 0.0
    %1081 = vmatprep.subr.mxu0 0.0
    %1082 = vmatpush1.msra.mxu0 0.0
    %1083 = vmatprep.subr.mxu0 0.0
    %1084 = vmatpush1.msra.mxu0 0.0
    %1085 = vmatprep.subr.mxu0 0.0
    %1086 = vmatpush1.msra.mxu0 0.0
    %1087 = vmatprep.subr.mxu0 0.0
    %1088 = vmatpush1.msra.mxu0 0.0
    %1089 = vmatprep.subr.mxu0 0.0
    %1090 = vmatpush1.msra.mxu0 0.0
    %1091 = vmatprep.subr.mxu0 0.0
    %1092 = vmatpush1.msra.mxu0 0.0
    %1093 = vmatprep.subr.mxu0 0.0
    %1094 = vmatpush1.msra.mxu0 0.0
    %1095 = vmatprep.subr.mxu0 0.0
    %1096 = vmatpush1.msra.mxu0 0.0
    %1097 = vmatprep.subr.mxu0 0.0
    %1098 = vmatpush1.msra.mxu0 0.0
    %1099 = vmatprep.subr.mxu0 0.0
    %1100 = vmatpush1.msra.mxu0 0.0
    %1101 = vmatprep.subr.mxu0 0.0
    %1102 = vmatpush1.msra.mxu0 0.0
    %1103 = vmatprep.subr.mxu0 0.0
    %1104 = vmatpush1.msra.mxu0 0.0
    %1105 = vmatprep.subr.mxu0 0.0
    %1106 = vmatpush1.msra.mxu0 0.0
    %1107 = vmatprep.subr.mxu0 0.0
    %1108 = vmatpush1.msra.mxu0 0.0
    %1109 = vmatprep.subr.mxu0 0.0
    %1110 = vmatpush1.msra.mxu0 0.0
    %1111 = vmatprep.subr.mxu0 0.0
    %1112 = vmatpush1.msra.mxu0 0.0
    %1113 = vmatprep.subr.mxu0 0.0
    %1114 = vmatpush1.msra.mxu0 0.0
    %1115 = vmatprep.subr.mxu0 0.0
    %1116 = vmatpush1.msra.mxu0 0.0
    %1117 = vmatprep.subr.mxu0 0.0
    %1118 = vmatpush1.msra.mxu0 0.0
    %1119 = vmatprep.mubr.f32.mxu0 0.0
    %1120 = vmatmul.mubr.f32.gmra.mrb[0].mxu0 %v1053
    %v1121 = vpop.f32.mrb[0].mxu0
    %v1122 = vadd.f32 0.0, %v1121
    %v1123 = vpop.f32.mrb[0].mxu0
    %1124 = vdwg.mxu0
    %1125 = vrot.lane.b32.xlu0 %v201, 64
    %v1126 = vpop.permute.xlu0 %1125
    %v1129 = vsel %vm213, %v744, 0
    %1131 = vmatprep.subr.mxu0 0.0
    %1132 = vmatpush1.msra.mxu0 %v1126
    %1133 = vmatprep.subr.mxu0 0.0
    %1134 = vmatpush1.msra.mxu0 0.0
    %1135 = vmatprep.subr.mxu0 0.0
    %1136 = vmatpush1.msra.mxu0 0.0
    %1137 = vmatprep.subr.mxu0 0.0
    %1138 = vmatpush1.msra.mxu0 0.0
    %1139 = vmatprep.subr.mxu0 0.0
    %1140 = vmatpush1.msra.mxu0 0.0
    %1141 = vmatprep.subr.mxu0 0.0
    %1142 = vmatpush1.msra.mxu0 0.0
    %1143 = vmatprep.subr.mxu0 0.0
    %1144 = vmatpush1.msra.mxu0 0.0
    %1145 = vmatprep.subr.mxu0 0.0
    %1146 = vmatpush1.msra.mxu0 0.0
    %1147 = vmatprep.subr.mxu0 0.0
    %1148 = vmatpush1.msra.mxu0 0.0
    %1149 = vmatprep.subr.mxu0 0.0
    %1150 = vmatpush1.msra.mxu0 0.0
    %1151 = vmatprep.subr.mxu0 0.0
    %1152 = vmatpush1.msra.mxu0 0.0
    %1153 = vmatprep.subr.mxu0 0.0
    %1154 = vmatpush1.msra.mxu0 0.0
    %1155 = vmatprep.subr.mxu0 0.0
    %1156 = vmatpush1.msra.mxu0 0.0
    %1157 = vmatprep.subr.mxu0 0.0
    %1158 = vmatpush1.msra.mxu0 0.0
    %1159 = vmatprep.subr.mxu0 0.0
    %1160 = vmatpush1.msra.mxu0 0.0
    %1161 = vmatprep.subr.mxu0 0.0
    %1162 = vmatpush1.msra.mxu0 0.0
    %1163 = vmatprep.subr.mxu0 0.0
    %1164 = vmatpush1.msra.mxu0 0.0
    %1165 = vmatprep.subr.mxu0 0.0
    %1166 = vmatpush1.msra.mxu0 0.0
    %1167 = vmatprep.subr.mxu0 0.0
    %1168 = vmatpush1.msra.mxu0 0.0
    %1169 = vmatprep.subr.mxu0 0.0
    %1170 = vmatpush1.msra.mxu0 0.0
    %1171 = vmatprep.subr.mxu0 0.0
    %1172 = vmatpush1.msra.mxu0 0.0
    %1173 = vmatprep.subr.mxu0 0.0
    %1174 = vmatpush1.msra.mxu0 0.0
    %1175 = vmatprep.subr.mxu0 0.0
    %1176 = vmatpush1.msra.mxu0 0.0
    %1177 = vmatprep.subr.mxu0 0.0
    %1178 = vmatpush1.msra.mxu0 0.0
    %1179 = vmatprep.subr.mxu0 0.0
    %1180 = vmatpush1.msra.mxu0 0.0
    %1181 = vmatprep.subr.mxu0 0.0
    %1182 = vmatpush1.msra.mxu0 0.0
    %1183 = vmatprep.subr.mxu0 0.0
    %1184 = vmatpush1.msra.mxu0 0.0
    %1185 = vmatprep.subr.mxu0 0.0
    %1186 = vmatpush1.msra.mxu0 0.0
    %1187 = vmatprep.subr.mxu0 0.0
    %1188 = vmatpush1.msra.mxu0 0.0
    %1189 = vmatprep.subr.mxu0 0.0
    %1190 = vmatpush1.msra.mxu0 0.0
    %1191 = vmatprep.subr.mxu0 0.0
    %1192 = vmatpush1.msra.mxu0 0.0
    %1193 = vmatprep.subr.mxu0 0.0
    %1194 = vmatpush1.msra.mxu0 0.0
    %1195 = vmatprep.mubr.f32.mxu0 0.0
    %1196 = vmatmul.mubr.f32.gmra.mrb[0].mxu0 %v1129
    %v1197 = vpop.f32.mrb[0].mxu0
    %v1198 = vadd.f32 0.0, %v1197
    %v1199 = vpop.f32.mrb[0].mxu0
    %1200 = vdwg.mxu0
    %1201 = vrot.lane.b32.xlu0 %v204, 120
    %v1202 = vpop.permute.xlu0 %1201
    %1203 = vrot.lane.b32.xlu0 %v176, 88
    %v1204 = vpop.permute.xlu0 %1203
    %v1205 = vsel %vm213, %v1202, 0
    %v1207 = vsel %vm213, %v1204, 0
    %1209 = vmatprep.subr.mxu0 0.0
    %1210 = vmatpush1.xpose.msra.mxu0 %v1207
    %1211 = vmatprep.subr.mxu0 0.0
    %1212 = vmatpush1.xpose.msra.mxu0 0.0
    %1213 = vmatprep.subr.mxu0 0.0
    %1214 = vmatpush1.xpose.msra.mxu0 0.0
    %1215 = vmatprep.subr.mxu0 0.0
    %1216 = vmatpush1.xpose.msra.mxu0 0.0
    %1217 = vmatprep.subr.mxu0 0.0
    %1218 = vmatpush1.xpose.msra.mxu0 0.0
    %1219 = vmatprep.subr.mxu0 0.0
    %1220 = vmatpush1.xpose.msra.mxu0 0.0
    %1221 = vmatprep.subr.mxu0 0.0
    %1222 = vmatpush1.xpose.msra.mxu0 0.0
    %1223 = vmatprep.subr.mxu0 0.0
    %1224 = vmatpush1.xpose.msra.mxu0 0.0
    %1225 = vmatprep.subr.mxu0 0.0
    %1226 = vmatpush1.xpose.msra.mxu0 0.0
    %1227 = vmatprep.subr.mxu0 0.0
    %1228 = vmatpush1.xpose.msra.mxu0 0.0
    %1229 = vmatprep.subr.mxu0 0.0
    %1230 = vmatpush1.xpose.msra.mxu0 0.0
    %1231 = vmatprep.subr.mxu0 0.0
    %1232 = vmatpush1.xpose.msra.mxu0 0.0
    %1233 = vmatprep.subr.mxu0 0.0
    %1234 = vmatpush1.xpose.msra.mxu0 0.0
    %1235 = vmatprep.subr.mxu0 0.0
    %1236 = vmatpush1.xpose.msra.mxu0 0.0
    %1237 = vmatprep.subr.mxu0 0.0
    %1238 = vmatpush1.xpose.msra.mxu0 0.0
    %1239 = vmatprep.subr.mxu0 0.0
    %1240 = vmatpush1.xpose.msra.mxu0 0.0
    %1241 = vmatprep.subr.mxu0 0.0
    %1242 = vmatpush1.xpose.msra.mxu0 0.0
    %1243 = vmatprep.subr.mxu0 0.0
    %1244 = vmatpush1.xpose.msra.mxu0 0.0
    %1245 = vmatprep.subr.mxu0 0.0
    %1246 = vmatpush1.xpose.msra.mxu0 0.0
    %1247 = vmatprep.subr.mxu0 0.0
    %1248 = vmatpush1.xpose.msra.mxu0 0.0
    %1249 = vmatprep.subr.mxu0 0.0
    %1250 = vmatpush1.xpose.msra.mxu0 0.0
    %1251 = vmatprep.subr.mxu0 0.0
    %1252 = vmatpush1.xpose.msra.mxu0 0.0
    %1253 = vmatprep.subr.mxu0 0.0
    %1254 = vmatpush1.xpose.msra.mxu0 0.0
    %1255 = vmatprep.subr.mxu0 0.0
    %1256 = vmatpush1.xpose.msra.mxu0 0.0
    %1257 = vmatprep.subr.mxu0 0.0
    %1258 = vmatpush1.xpose.msra.mxu0 0.0
    %1259 = vmatprep.subr.mxu0 0.0
    %1260 = vmatpush1.xpose.msra.mxu0 0.0
    %1261 = vmatprep.subr.mxu0 0.0
    %1262 = vmatpush1.xpose.msra.mxu0 0.0
    %1263 = vmatprep.subr.mxu0 0.0
    %1264 = vmatpush1.xpose.msra.mxu0 0.0
    %1265 = vmatprep.subr.mxu0 0.0
    %1266 = vmatpush1.xpose.msra.mxu0 0.0
    %1267 = vmatprep.subr.mxu0 0.0
    %1268 = vmatpush1.xpose.msra.mxu0 0.0
    %1269 = vmatprep.subr.mxu0 0.0
    %1270 = vmatpush1.xpose.msra.mxu0 0.0
    %1271 = vmatprep.subr.mxu0 0.0
    %1272 = vmatpush1.xpose.msra.mxu0 0.0
    %1273 = vmatprep.mubr.f32.mxu0 0.0
    %1274 = vmatmul.mubr.f32.gmra.mrb[0].mxu0 %v1205
    %v1275 = vpop.f32.mrb[0].mxu0
    %v1276 = vadd.f32 0.0, %v1275
    %v1277 = vpop.f32.mrb[0].mxu0
    %1278 = vdwg.mxu0
    %1279 = vrot.lane.b32.xlu0 %v205, 120
    %v1280 = vpop.permute.xlu0 %1279
    %1281 = vrot.lane.b32.xlu0 %v181, 88
    %v1282 = vpop.permute.xlu0 %1281
    %v1283 = vsel %vm213, %v1280, 0
    %v1285 = vsel %vm213, %v1282, 0
    %1287 = vmatprep.subr.mxu0 0.0
    %1288 = vmatpush1.xpose.msra.mxu0 %v1285
    %1289 = vmatprep.subr.mxu0 0.0
    %1290 = vmatpush1.xpose.msra.mxu0 0.0
    %1291 = vmatprep.subr.mxu0 0.0
    %1292 = vmatpush1.xpose.msra.mxu0 0.0
    %1293 = vmatprep.subr.mxu0 0.0
    %1294 = vmatpush1.xpose.msra.mxu0 0.0
    %1295 = vmatprep.subr.mxu0 0.0
    %1296 = vmatpush1.xpose.msra.mxu0 0.0
    %1297 = vmatprep.subr.mxu0 0.0
    %1298 = vmatpush1.xpose.msra.mxu0 0.0
    %1299 = vmatprep.subr.mxu0 0.0
    %1300 = vmatpush1.xpose.msra.mxu0 0.0
    %1301 = vmatprep.subr.mxu0 0.0
    %1302 = vmatpush1.xpose.msra.mxu0 0.0
    %1303 = vmatprep.subr.mxu0 0.0
    %1304 = vmatpush1.xpose.msra.mxu0 0.0
    %1305 = vmatprep.subr.mxu0 0.0
    %1306 = vmatpush1.xpose.msra.mxu0 0.0
    %1307 = vmatprep.subr.mxu0 0.0
    %1308 = vmatpush1.xpose.msra.mxu0 0.0
    %1309 = vmatprep.subr.mxu0 0.0
    %1310 = vmatpush1.xpose.msra.mxu0 0.0
    %1311 = vmatprep.subr.mxu0 0.0
    %1312 = vmatpush1.xpose.msra.mxu0 0.0
    %1313 = vmatprep.subr.mxu0 0.0
    %1314 = vmatpush1.xpose.msra.mxu0 0.0
    %1315 = vmatprep.subr.mxu0 0.0
    %1316 = vmatpush1.xpose.msra.mxu0 0.0
    %1317 = vmatprep.subr.mxu0 0.0
    %1318 = vmatpush1.xpose.msra.mxu0 0.0
    %1319 = vmatprep.subr.mxu0 0.0
    %1320 = vmatpush1.xpose.msra.mxu0 0.0
    %1321 = vmatprep.subr.mxu0 0.0
    %1322 = vmatpush1.xpose.msra.mxu0 0.0
    %1323 = vmatprep.subr.mxu0 0.0
    %1324 = vmatpush1.xpose.msra.mxu0 0.0
    %1325 = vmatprep.subr.mxu0 0.0
    %1326 = vmatpush1.xpose.msra.mxu0 0.0
    %1327 = vmatprep.subr.mxu0 0.0
    %1328 = vmatpush1.xpose.msra.mxu0 0.0
    %1329 = vmatprep.subr.mxu0 0.0
    %1330 = vmatpush1.xpose.msra.mxu0 0.0
    %1331 = vmatprep.subr.mxu0 0.0
    %1332 = vmatpush1.xpose.msra.mxu0 0.0
    %1333 = vmatprep.subr.mxu0 0.0
    %1334 = vmatpush1.xpose.msra.mxu0 0.0
    %1335 = vmatprep.subr.mxu0 0.0
    %1336 = vmatpush1.xpose.msra.mxu0 0.0
    %1337 = vmatprep.subr.mxu0 0.0
    %1338 = vmatpush1.xpose.msra.mxu0 0.0
    %1339 = vmatprep.subr.mxu0 0.0
    %1340 = vmatpush1.xpose.msra.mxu0 0.0
    %1341 = vmatprep.subr.mxu0 0.0
    %1342 = vmatpush1.xpose.msra.mxu0 0.0
    %1343 = vmatprep.subr.mxu0 0.0
    %1344 = vmatpush1.xpose.msra.mxu0 0.0
    %1345 = vmatprep.subr.mxu0 0.0
    %1346 = vmatpush1.xpose.msra.mxu0 0.0
    %1347 = vmatprep.subr.mxu0 0.0
    %1348 = vmatpush1.xpose.msra.mxu0 0.0
    %1349 = vmatprep.subr.mxu0 0.0
    %1350 = vmatpush1.xpose.msra.mxu0 0.0
    %1351 = vmatprep.mubr.f32.mxu0 0.0
    %1352 = vmatmul.mubr.f32.gmra.mrb[0].mxu0 %v1283
    %v1353 = vpop.f32.mrb[0].mxu0
    %v1354 = vadd.f32 0.0, %v1353
    %v1355 = vpop.f32.mrb[0].mxu0
    %1356 = vdwg.mxu0
    %1357 = vrot.lane.b32.xlu0 %v206, 120
    %v1358 = vpop.permute.xlu0 %1357
    %1359 = vrot.lane.b32.xlu0 %v186, 88
    %v1360 = vpop.permute.xlu0 %1359
    %v1361 = vsel %vm213, %v1358, 0
    %v1363 = vsel %vm213, %v1360, 0
    %1365 = vmatprep.subr.mxu0 0.0
    %1366 = vmatpush1.xpose.msra.mxu0 %v1363
    %1367 = vmatprep.subr.mxu0 0.0
    %1368 = vmatpush1.xpose.msra.mxu0 0.0
    %1369 = vmatprep.subr.mxu0 0.0
    %1370 = vmatpush1.xpose.msra.mxu0 0.0
    %1371 = vmatprep.subr.mxu0 0.0
    %1372 = vmatpush1.xpose.msra.mxu0 0.0
    %1373 = vmatprep.subr.mxu0 0.0
    %1374 = vmatpush1.xpose.msra.mxu0 0.0
    %1375 = vmatprep.subr.mxu0 0.0
    %1376 = vmatpush1.xpose.msra.mxu0 0.0
    %1377 = vmatprep.subr.mxu0 0.0
    %1378 = vmatpush1.xpose.msra.mxu0 0.0
    %1379 = vmatprep.subr.mxu0 0.0
    %1380 = vmatpush1.xpose.msra.mxu0 0.0
    %1381 = vmatprep.subr.mxu0 0.0
    %1382 = vmatpush1.xpose.msra.mxu0 0.0
    %1383 = vmatprep.subr.mxu0 0.0
    %1384 = vmatpush1.xpose.msra.mxu0 0.0
    %1385 = vmatprep.subr.mxu0 0.0
    %1386 = vmatpush1.xpose.msra.mxu0 0.0
    %1387 = vmatprep.subr.mxu0 0.0
    %1388 = vmatpush1.xpose.msra.mxu0 0.0
    %1389 = vmatprep.subr.mxu0 0.0
    %1390 = vmatpush1.xpose.msra.mxu0 0.0
    %1391 = vmatprep.subr.mxu0 0.0
    %1392 = vmatpush1.xpose.msra.mxu0 0.0
    %1393 = vmatprep.subr.mxu0 0.0
    %1394 = vmatpush1.xpose.msra.mxu0 0.0
    %1395 = vmatprep.subr.mxu0 0.0
    %1396 = vmatpush1.xpose.msra.mxu0 0.0
    %1397 = vmatprep.subr.mxu0 0.0
    %1398 = vmatpush1.xpose.msra.mxu0 0.0
    %1399 = vmatprep.subr.mxu0 0.0
    %1400 = vmatpush1.xpose.msra.mxu0 0.0
    %1401 = vmatprep.subr.mxu0 0.0
    %1402 = vmatpush1.xpose.msra.mxu0 0.0
    %1403 = vmatprep.subr.mxu0 0.0
    %1404 = vmatpush1.xpose.msra.mxu0 0.0
    %1405 = vmatprep.subr.mxu0 0.0
    %1406 = vmatpush1.xpose.msra.mxu0 0.0
    %1407 = vmatprep.subr.mxu0 0.0
    %1408 = vmatpush1.xpose.msra.mxu0 0.0
    %1409 = vmatprep.subr.mxu0 0.0
    %1410 = vmatpush1.xpose.msra.mxu0 0.0
    %1411 = vmatprep.subr.mxu0 0.0
    %1412 = vmatpush1.xpose.msra.mxu0 0.0
    %1413 = vmatprep.subr.mxu0 0.0
    %1414 = vmatpush1.xpose.msra.mxu0 0.0
    %1415 = vmatprep.subr.mxu0 0.0
    %1416 = vmatpush1.xpose.msra.mxu0 0.0
    %1417 = vmatprep.subr.mxu0 0.0
    %1418 = vmatpush1.xpose.msra.mxu0 0.0
    %1419 = vmatprep.subr.mxu0 0.0
    %1420 = vmatpush1.xpose.msra.mxu0 0.0
    %1421 = vmatprep.subr.mxu0 0.0
    %1422 = vmatpush1.xpose.msra.mxu0 0.0
    %1423 = vmatprep.subr.mxu0 0.0
    %1424 = vmatpush1.xpose.msra.mxu0 0.0
    %1425 = vmatprep.subr.mxu0 0.0
    %1426 = vmatpush1.xpose.msra.mxu0 0.0
    %1427 = vmatprep.subr.mxu0 0.0
    %1428 = vmatpush1.xpose.msra.mxu0 0.0
    %1429 = vmatprep.mubr.f32.mxu0 0.0
    %1430 = vmatmul.mubr.f32.gmra.mrb[0].mxu0 %v1361
    %v1431 = vpop.f32.mrb[0].mxu0
    %v1432 = vadd.f32 0.0, %v1431
    %v1433 = vpop.f32.mrb[0].mxu0
    %1434 = vdwg.mxu0
    %1435 = vrot.lane.b32.xlu0 %v207, 120
    %v1436 = vpop.permute.xlu0 %1435
    %1437 = vrot.lane.b32.xlu0 %v191, 88
    %v1438 = vpop.permute.xlu0 %1437
    %v1439 = vsel %vm213, %v1436, 0
    %v1441 = vsel %vm213, %v1438, 0
    %1443 = vmatprep.subr.mxu0 0.0
    %1444 = vmatpush1.xpose.msra.mxu0 %v1441
    %1445 = vmatprep.subr.mxu0 0.0
    %1446 = vmatpush1.xpose.msra.mxu0 0.0
    %1447 = vmatprep.subr.mxu0 0.0
    %1448 = vmatpush1.xpose.msra.mxu0 0.0
    %1449 = vmatprep.subr.mxu0 0.0
    %1450 = vmatpush1.xpose.msra.mxu0 0.0
    %1451 = vmatprep.subr.mxu0 0.0
    %1452 = vmatpush1.xpose.msra.mxu0 0.0
    %1453 = vmatprep.subr.mxu0 0.0
    %1454 = vmatpush1.xpose.msra.mxu0 0.0
    %1455 = vmatprep.subr.mxu0 0.0
    %1456 = vmatpush1.xpose.msra.mxu0 0.0
    %1457 = vmatprep.subr.mxu0 0.0
    %1458 = vmatpush1.xpose.msra.mxu0 0.0
    %1459 = vmatprep.subr.mxu0 0.0
    %1460 = vmatpush1.xpose.msra.mxu0 0.0
    %1461 = vmatprep.subr.mxu0 0.0
    %1462 = vmatpush1.xpose.msra.mxu0 0.0
    %1463 = vmatprep.subr.mxu0 0.0
    %1464 = vmatpush1.xpose.msra.mxu0 0.0
    %1465 = vmatprep.subr.mxu0 0.0
    %1466 = vmatpush1.xpose.msra.mxu0 0.0
    %1467 = vmatprep.subr.mxu0 0.0
    %1468 = vmatpush1.xpose.msra.mxu0 0.0
    %1469 = vmatprep.subr.mxu0 0.0
    %1470 = vmatpush1.xpose.msra.mxu0 0.0
    %1471 = vmatprep.subr.mxu0 0.0
    %1472 = vmatpush1.xpose.msra.mxu0 0.0
    %1473 = vmatprep.subr.mxu0 0.0
    %1474 = vmatpush1.xpose.msra.mxu0 0.0
    %1475 = vmatprep.subr.mxu0 0.0
    %1476 = vmatpush1.xpose.msra.mxu0 0.0
    %1477 = vmatprep.subr.mxu0 0.0
    %1478 = vmatpush1.xpose.msra.mxu0 0.0
    %1479 = vmatprep.subr.mxu0 0.0
    %1480 = vmatpush1.xpose.msra.mxu0 0.0
    %1481 = vmatprep.subr.mxu0 0.0
    %1482 = vmatpush1.xpose.msra.mxu0 0.0
    %1483 = vmatprep.subr.mxu0 0.0
    %1484 = vmatpush1.xpose.msra.mxu0 0.0
    %1485 = vmatprep.subr.mxu0 0.0
    %1486 = vmatpush1.xpose.msra.mxu0 0.0
    %1487 = vmatprep.subr.mxu0 0.0
    %1488 = vmatpush1.xpose.msra.mxu0 0.0
    %1489 = vmatprep.subr.mxu0 0.0
    %1490 = vmatpush1.xpose.msra.mxu0 0.0
    %1491 = vmatprep.subr.mxu0 0.0
    %1492 = vmatpush1.xpose.msra.mxu0 0.0
    %1493 = vmatprep.subr.mxu0 0.0
    %1494 = vmatpush1.xpose.msra.mxu0 0.0
    %1495 = vmatprep.subr.mxu0 0.0
    %1496 = vmatpush1.xpose.msra.mxu0 0.0
    %1497 = vmatprep.subr.mxu0 0.0
    %1498 = vmatpush1.xpose.msra.mxu0 0.0
    %1499 = vmatprep.subr.mxu0 0.0
    %1500 = vmatpush1.xpose.msra.mxu0 0.0
    %1501 = vmatprep.subr.mxu0 0.0
    %1502 = vmatpush1.xpose.msra.mxu0 0.0
    %1503 = vmatprep.subr.mxu0 0.0
    %1504 = vmatpush1.xpose.msra.mxu0 0.0
    %1505 = vmatprep.subr.mxu0 0.0
    %1506 = vmatpush1.xpose.msra.mxu0 0.0
    %1507 = vmatprep.mubr.f32.mxu0 0.0
    %1508 = vmatmul.mubr.f32.gmra.mrb[0].mxu0 %v1439
    %v1509 = vpop.f32.mrb[0].mxu0
    %v1510 = vadd.f32 0.0, %v1509
    %v1511 = vpop.f32.mrb[0].mxu0
    %1512 = vdwg.mxu0
    %1513 = vrot.lane.b32.xlu0 %v208, 120
    %v1514 = vpop.permute.xlu0 %1513
    %1515 = vrot.lane.b32.xlu0 %v196, 88
    %v1516 = vpop.permute.xlu0 %1515
    %v1517 = vsel %vm213, %v1514, 0
    %v1519 = vsel %vm213, %v1516, 0
    %1521 = vmatprep.subr.mxu0 0.0
    %1522 = vmatpush1.xpose.msra.mxu0 %v1519
    %1523 = vmatprep.subr.mxu0 0.0
    %1524 = vmatpush1.xpose.msra.mxu0 0.0
    %1525 = vmatprep.subr.mxu0 0.0
    %1526 = vmatpush1.xpose.msra.mxu0 0.0
    %1527 = vmatprep.subr.mxu0 0.0
    %1528 = vmatpush1.xpose.msra.mxu0 0.0
    %1529 = vmatprep.subr.mxu0 0.0
    %1530 = vmatpush1.xpose.msra.mxu0 0.0
    %1531 = vmatprep.subr.mxu0 0.0
    %1532 = vmatpush1.xpose.msra.mxu0 0.0
    %1533 = vmatprep.subr.mxu0 0.0
    %1534 = vmatpush1.xpose.msra.mxu0 0.0
    %1535 = vmatprep.subr.mxu0 0.0
    %1536 = vmatpush1.xpose.msra.mxu0 0.0
    %1537 = vmatprep.subr.mxu0 0.0
    %1538 = vmatpush1.xpose.msra.mxu0 0.0
    %1539 = vmatprep.subr.mxu0 0.0
    %1540 = vmatpush1.xpose.msra.mxu0 0.0
    %1541 = vmatprep.subr.mxu0 0.0
    %1542 = vmatpush1.xpose.msra.mxu0 0.0
    %1543 = vmatprep.subr.mxu0 0.0
    %1544 = vmatpush1.xpose.msra.mxu0 0.0
    %1545 = vmatprep.subr.mxu0 0.0
    %1546 = vmatpush1.xpose.msra.mxu0 0.0
    %1547 = vmatprep.subr.mxu0 0.0
    %1548 = vmatpush1.xpose.msra.mxu0 0.0
    %1549 = vmatprep.subr.mxu0 0.0
    %1550 = vmatpush1.xpose.msra.mxu0 0.0
    %1551 = vmatprep.subr.mxu0 0.0
    %1552 = vmatpush1.xpose.msra.mxu0 0.0
    %1553 = vmatprep.subr.mxu0 0.0
    %1554 = vmatpush1.xpose.msra.mxu0 0.0
    %1555 = vmatprep.subr.mxu0 0.0
    %1556 = vmatpush1.xpose.msra.mxu0 0.0
    %1557 = vmatprep.subr.mxu0 0.0
    %1558 = vmatpush1.xpose.msra.mxu0 0.0
    %1559 = vmatprep.subr.mxu0 0.0
    %1560 = vmatpush1.xpose.msra.mxu0 0.0
    %1561 = vmatprep.subr.mxu0 0.0
    %1562 = vmatpush1.xpose.msra.mxu0 0.0
    %1563 = vmatprep.subr.mxu0 0.0
    %1564 = vmatpush1.xpose.msra.mxu0 0.0
    %1565 = vmatprep.subr.mxu0 0.0
    %1566 = vmatpush1.xpose.msra.mxu0 0.0
    %1567 = vmatprep.subr.mxu0 0.0
    %1568 = vmatpush1.xpose.msra.mxu0 0.0
    %1569 = vmatprep.subr.mxu0 0.0
    %1570 = vmatpush1.xpose.msra.mxu0 0.0
    %1571 = vmatprep.subr.mxu0 0.0
    %1572 = vmatpush1.xpose.msra.mxu0 0.0
    %1573 = vmatprep.subr.mxu0 0.0
    %1574 = vmatpush1.xpose.msra.mxu0 0.0
    %1575 = vmatprep.subr.mxu0 0.0
    %1576 = vmatpush1.xpose.msra.mxu0 0.0
    %1577 = vmatprep.subr.mxu0 0.0
    %1578 = vmatpush1.xpose.msra.mxu0 0.0
    %1579 = vmatprep.subr.mxu0 0.0
    %1580 = vmatpush1.xpose.msra.mxu0 0.0
    %1581 = vmatprep.subr.mxu0 0.0
    %1582 = vmatpush1.xpose.msra.mxu0 0.0
    %1583 = vmatprep.subr.mxu0 0.0
    %1584 = vmatpush1.xpose.msra.mxu0 0.0
    %1585 = vmatprep.mubr.f32.mxu0 0.0
    %1586 = vmatmul.mubr.f32.gmra.mrb[0].mxu0 %v1517
    %v1587 = vpop.f32.mrb[0].mxu0
    %v1588 = vadd.f32 0.0, %v1587
    %v1589 = vpop.f32.mrb[0].mxu0
    %1590 = vdwg.mxu0
    %1591 = vrot.lane.b32.xlu0 %v209, 120
    %v1592 = vpop.permute.xlu0 %1591
    %1593 = vrot.lane.b32.xlu0 %v201, 88
    %v1594 = vpop.permute.xlu0 %1593
    %v1595 = vsel %vm213, %v1592, 0
    %v1597 = vsel %vm213, %v1594, 0
    %1599 = vmatprep.subr.mxu0 0.0
    %1600 = vmatpush1.xpose.msra.mxu0 %v1597
    %1601 = vmatprep.subr.mxu0 0.0
    %1602 = vmatpush1.xpose.msra.mxu0 0.0
    %1603 = vmatprep.subr.mxu0 0.0
    %1604 = vmatpush1.xpose.msra.mxu0 0.0
    %1605 = vmatprep.subr.mxu0 0.0
    %1606 = vmatpush1.xpose.msra.mxu0 0.0
    %1607 = vmatprep.subr.mxu0 0.0
    %1608 = vmatpush1.xpose.msra.mxu0 0.0
    %1609 = vmatprep.subr.mxu0 0.0
    %1610 = vmatpush1.xpose.msra.mxu0 0.0
    %1611 = vmatprep.subr.mxu0 0.0
    %1612 = vmatpush1.xpose.msra.mxu0 0.0
    %1613 = vmatprep.subr.mxu0 0.0
    %1614 = vmatpush1.xpose.msra.mxu0 0.0
    %1615 = vmatprep.subr.mxu0 0.0
    %1616 = vmatpush1.xpose.msra.mxu0 0.0
    %1617 = vmatprep.subr.mxu0 0.0
    %1618 = vmatpush1.xpose.msra.mxu0 0.0
    %1619 = vmatprep.subr.mxu0 0.0
    %1620 = vmatpush1.xpose.msra.mxu0 0.0
    %1621 = vmatprep.subr.mxu0 0.0
    %1622 = vmatpush1.xpose.msra.mxu0 0.0
    %1623 = vmatprep.subr.mxu0 0.0
    %1624 = vmatpush1.xpose.msra.mxu0 0.0
    %1625 = vmatprep.subr.mxu0 0.0
    %1626 = vmatpush1.xpose.msra.mxu0 0.0
    %1627 = vmatprep.subr.mxu0 0.0
    %1628 = vmatpush1.xpose.msra.mxu0 0.0
    %1629 = vmatprep.subr.mxu0 0.0
    %1630 = vmatpush1.xpose.msra.mxu0 0.0
    %1631 = vmatprep.subr.mxu0 0.0
    %1632 = vmatpush1.xpose.msra.mxu0 0.0
    %1633 = vmatprep.subr.mxu0 0.0
    %1634 = vmatpush1.xpose.msra.mxu0 0.0
    %1635 = vmatprep.subr.mxu0 0.0
    %1636 = vmatpush1.xpose.msra.mxu0 0.0
    %1637 = vmatprep.subr.mxu0 0.0
    %1638 = vmatpush1.xpose.msra.mxu0 0.0
    %1639 = vmatprep.subr.mxu0 0.0
    %1640 = vmatpush1.xpose.msra.mxu0 0.0
    %1641 = vmatprep.subr.mxu0 0.0
    %1642 = vmatpush1.xpose.msra.mxu0 0.0
    %1643 = vmatprep.subr.mxu0 0.0
    %1644 = vmatpush1.xpose.msra.mxu0 0.0
    %1645 = vmatprep.subr.mxu0 0.0
    %1646 = vmatpush1.xpose.msra.mxu0 0.0
    %1647 = vmatprep.subr.mxu0 0.0
    %1648 = vmatpush1.xpose.msra.mxu0 0.0
    %1649 = vmatprep.subr.mxu0 0.0
    %1650 = vmatpush1.xpose.msra.mxu0 0.0
    %1651 = vmatprep.subr.mxu0 0.0
    %1652 = vmatpush1.xpose.msra.mxu0 0.0
    %1653 = vmatprep.subr.mxu0 0.0
    %1654 = vmatpush1.xpose.msra.mxu0 0.0
    %1655 = vmatprep.subr.mxu0 0.0
    %1656 = vmatpush1.xpose.msra.mxu0 0.0
    %1657 = vmatprep.subr.mxu0 0.0
    %1658 = vmatpush1.xpose.msra.mxu0 0.0
    %1659 = vmatprep.subr.mxu0 0.0
    %1660 = vmatpush1.xpose.msra.mxu0 0.0
    %1661 = vmatprep.subr.mxu0 0.0
    %1662 = vmatpush1.xpose.msra.mxu0 0.0
    %1663 = vmatprep.mubr.f32.mxu0 0.0
    %1664 = vmatmul.mubr.f32.gmra.mrb[0].mxu0 %v1595
    %v1665 = vpop.f32.mrb[0].mxu0
    %v1666 = vadd.f32 0.0, %v1665
    %v1667 = vpop.f32.mrb[0].mxu0
    %1668 = vdwg.mxu0
    %v1669 = vsel %vm213, %v1276, -inf
    %1670 = vmax.xlane.f32.xlu0 %v1669
    %v1671 = vpop.xlane.xlu0 %1670
    %v1672 = vsel %vm213, %v1354, -inf
    %1673 = vmax.xlane.f32.xlu0 %v1672
    %v1674 = vpop.xlane.xlu0 %1673
    %v1675 = vsel %vm213, %v1432, -inf
    %1676 = vmax.xlane.f32.xlu0 %v1675
    %v1677 = vpop.xlane.xlu0 %1676
    %v1678 = vsel %vm213, %v1510, -inf
    %1679 = vmax.xlane.f32.xlu0 %v1678
    %v1680 = vpop.xlane.xlu0 %1679
    %v1681 = vsel %vm213, %v1588, -inf
    %1682 = vmax.xlane.f32.xlu0 %v1681
    %v1683 = vpop.xlane.xlu0 %1682
    %v1684 = vsel %vm213, %v1666, -inf
    %1685 = vmax.xlane.f32.xlu0 %v1684
    %v1686 = vpop.xlane.xlu0 %1685
    %v1687 = vsub.f32 %v1276, %v1671
    %v1688 = vsub.f32 %v1354, %v1674
    %v1689 = vsub.f32 %v1432, %v1677
    %v1690 = vsub.f32 %v1510, %v1680
    %v1691 = vsub.f32 %v1588, %v1683
    %v1692 = vsub.f32 %v1666, %v1686
    %v1693 = vmul.f32 %v1687, 1.442695
    %v1694 = vpow.pop %v1693
    %v1695 = vmul.f32 %v1688, 1.442695
    %v1696 = vpow.pop %v1695
    %v1697 = vmul.f32 %v1689, 1.442695
    %v1698 = vpow.pop %v1697
    %v1699 = vmul.f32 %v1690, 1.442695
    %v1700 = vpow.pop %v1699
    %v1701 = vmul.f32 %v1691, 1.442695
    %v1702 = vpow.pop %v1701
    %v1703 = vmul.f32 %v1692, 1.442695
    %v1704 = vpow.pop %v1703
    %v1705 = vsel %vm213, %v1694, 0.0
    %1706 = vadd.xlane.f32.xlu0 %v1705
    %v1707 = vpop.xlane.xlu0 %1706
    %v1708 = vsel %vm213, %v1696, 0.0
    %1709 = vadd.xlane.f32.xlu0 %v1708
    %v1710 = vpop.xlane.xlu0 %1709
    %v1711 = vsel %vm213, %v1698, 0.0
    %1712 = vadd.xlane.f32.xlu0 %v1711
    %v1713 = vpop.xlane.xlu0 %1712
    %v1714 = vsel %vm213, %v1700, 0.0
    %1715 = vadd.xlane.f32.xlu0 %v1714
    %v1716 = vpop.xlane.xlu0 %1715
    %v1717 = vsel %vm213, %v1702, 0.0
    %1718 = vadd.xlane.f32.xlu0 %v1717
    %v1719 = vpop.xlane.xlu0 %1718
    %v1720 = vsel %vm213, %v1704, 0.0
    %1721 = vadd.xlane.f32.xlu0 %v1720
    %v1722 = vpop.xlane.xlu0 %1721
    %v1723 = vrcp.pop %v1707
    %v1724 = vrcp.pop %v1710
    %v1725 = vrcp.pop %v1713
    %v1726 = vrcp.pop %v1716
    %v1727 = vrcp.pop %v1719
    %v1728 = vrcp.pop %v1722
    %v1729 = vmul.f32 %v1694, %v1723
    %v1730 = vmul.f32 %v1696, %v1724
    %v1731 = vmul.f32 %v1698, %v1725
    %v1732 = vmul.f32 %v1700, %v1726
    %v1733 = vmul.f32 %v1702, %v1727
    %v1734 = vmul.f32 %v1704, %v1728
    %1735 = vrot.lane.b32.xlu0 %v176, 56
    %v1736 = vpop.permute.xlu0 %1735
    %v1739 = vsel %vm213, %v1729, 0
    %1741 = vmatprep.subr.mxu0 0.0
    %1742 = vmatpush1.msra.mxu0 %v1736
    %1743 = vmatprep.subr.mxu0 0.0
    %1744 = vmatpush1.msra.mxu0 0.0
    %1745 = vmatprep.subr.mxu0 0.0
    %1746 = vmatpush1.msra.mxu0 0.0
    %1747 = vmatprep.subr.mxu0 0.0
    %1748 = vmatpush1.msra.mxu0 0.0
    %1749 = vmatprep.subr.mxu0 0.0
    %1750 = vmatpush1.msra.mxu0 0.0
    %1751 = vmatprep.subr.mxu0 0.0
    %1752 = vmatpush1.msra.mxu0 0.0
    %1753 = vmatprep.subr.mxu0 0.0
    %1754 = vmatpush1.msra.mxu0 0.0
    %1755 = vmatprep.subr.mxu0 0.0
    %1756 = vmatpush1.msra.mxu0 0.0
    %1757 = vmatprep.subr.mxu0 0.0
    %1758 = vmatpush1.msra.mxu0 0.0
    %1759 = vmatprep.subr.mxu0 0.0
    %1760 = vmatpush1.msra.mxu0 0.0
    %1761 = vmatprep.subr.mxu0 0.0
    %1762 = vmatpush1.msra.mxu0 0.0
    %1763 = vmatprep.subr.mxu0 0.0
    %1764 = vmatpush1.msra.mxu0 0.0
    %1765 = vmatprep.subr.mxu0 0.0
    %1766 = vmatpush1.msra.mxu0 0.0
    %1767 = vmatprep.subr.mxu0 0.0
    %1768 = vmatpush1.msra.mxu0 0.0
    %1769 = vmatprep.subr.mxu0 0.0
    %1770 = vmatpush1.msra.mxu0 0.0
    %1771 = vmatprep.subr.mxu0 0.0
    %1772 = vmatpush1.msra.mxu0 0.0
    %1773 = vmatprep.subr.mxu0 0.0
    %1774 = vmatpush1.msra.mxu0 0.0
    %1775 = vmatprep.subr.mxu0 0.0
    %1776 = vmatpush1.msra.mxu0 0.0
    %1777 = vmatprep.subr.mxu0 0.0
    %1778 = vmatpush1.msra.mxu0 0.0
    %1779 = vmatprep.subr.mxu0 0.0
    %1780 = vmatpush1.msra.mxu0 0.0
    %1781 = vmatprep.subr.mxu0 0.0
    %1782 = vmatpush1.msra.mxu0 0.0
    %1783 = vmatprep.subr.mxu0 0.0
    %1784 = vmatpush1.msra.mxu0 0.0
    %1785 = vmatprep.subr.mxu0 0.0
    %1786 = vmatpush1.msra.mxu0 0.0
    %1787 = vmatprep.subr.mxu0 0.0
    %1788 = vmatpush1.msra.mxu0 0.0
    %1789 = vmatprep.subr.mxu0 0.0
    %1790 = vmatpush1.msra.mxu0 0.0
    %1791 = vmatprep.subr.mxu0 0.0
    %1792 = vmatpush1.msra.mxu0 0.0
    %1793 = vmatprep.subr.mxu0 0.0
    %1794 = vmatpush1.msra.mxu0 0.0
    %1795 = vmatprep.subr.mxu0 0.0
    %1796 = vmatpush1.msra.mxu0 0.0
    %1797 = vmatprep.subr.mxu0 0.0
    %1798 = vmatpush1.msra.mxu0 0.0
    %1799 = vmatprep.subr.mxu0 0.0
    %1800 = vmatpush1.msra.mxu0 0.0
    %1801 = vmatprep.subr.mxu0 0.0
    %1802 = vmatpush1.msra.mxu0 0.0
    %1803 = vmatprep.subr.mxu0 0.0
    %1804 = vmatpush1.msra.mxu0 0.0
    %1805 = vmatprep.mubr.f32.mxu0 0.0
    %1806 = vmatmul.mubr.f32.gmra.mrb[0].mxu0 %v1739
    %v1807 = vpop.f32.mrb[0].mxu0
    %v1808 = vadd.f32 0.0, %v1807
    %v1809 = vpop.f32.mrb[0].mxu0
    %1810 = vdwg.mxu0
    %1811 = vrot.lane.b32.xlu0 %v181, 56
    %v1812 = vpop.permute.xlu0 %1811
    %v1815 = vsel %vm213, %v1730, 0
    %1817 = vmatprep.subr.mxu0 0.0
    %1818 = vmatpush1.msra.mxu0 %v1812
    %1819 = vmatprep.subr.mxu0 0.0
    %1820 = vmatpush1.msra.mxu0 0.0
    %1821 = vmatprep.subr.mxu0 0.0
    %1822 = vmatpush1.msra.mxu0 0.0
    %1823 = vmatprep.subr.mxu0 0.0
    %1824 = vmatpush1.msra.mxu0 0.0
    %1825 = vmatprep.subr.mxu0 0.0
    %1826 = vmatpush1.msra.mxu0 0.0
    %1827 = vmatprep.subr.mxu0 0.0
    %1828 = vmatpush1.msra.mxu0 0.0
    %1829 = vmatprep.subr.mxu0 0.0
    %1830 = vmatpush1.msra.mxu0 0.0
    %1831 = vmatprep.subr.mxu0 0.0
    %1832 = vmatpush1.msra.mxu0 0.0
    %1833 = vmatprep.subr.mxu0 0.0
    %1834 = vmatpush1.msra.mxu0 0.0
    %1835 = vmatprep.subr.mxu0 0.0
    %1836 = vmatpush1.msra.mxu0 0.0
    %1837 = vmatprep.subr.mxu0 0.0
    %1838 = vmatpush1.msra.mxu0 0.0
    %1839 = vmatprep.subr.mxu0 0.0
    %1840 = vmatpush1.msra.mxu0 0.0
    %1841 = vmatprep.subr.mxu0 0.0
    %1842 = vmatpush1.msra.mxu0 0.0
    %1843 = vmatprep.subr.mxu0 0.0
    %1844 = vmatpush1.msra.mxu0 0.0
    %1845 = vmatprep.subr.mxu0 0.0
    %1846 = vmatpush1.msra.mxu0 0.0
    %1847 = vmatprep.subr.mxu0 0.0
    %1848 = vmatpush1.msra.mxu0 0.0
    %1849 = vmatprep.subr.mxu0 0.0
    %1850 = vmatpush1.msra.mxu0 0.0
    %1851 = vmatprep.subr.mxu0 0.0
    %1852 = vmatpush1.msra.mxu0 0.0
    %1853 = vmatprep.subr.mxu0 0.0
    %1854 = vmatpush1.msra.mxu0 0.0
    %1855 = vmatprep.subr.mxu0 0.0
    %1856 = vmatpush1.msra.mxu0 0.0
    %1857 = vmatprep.subr.mxu0 0.0
    %1858 = vmatpush1.msra.mxu0 0.0
    %1859 = vmatprep.subr.mxu0 0.0
    %1860 = vmatpush1.msra.mxu0 0.0
    %1861 = vmatprep.subr.mxu0 0.0
    %1862 = vmatpush1.msra.mxu0 0.0
    %1863 = vmatprep.subr.mxu0 0.0
    %1864 = vmatpush1.msra.mxu0 0.0
    %1865 = vmatprep.subr.mxu0 0.0
    %1866 = vmatpush1.msra.mxu0 0.0
    %1867 = vmatprep.subr.mxu0 0.0
    %1868 = vmatpush1.msra.mxu0 0.0
    %1869 = vmatprep.subr.mxu0 0.0
    %1870 = vmatpush1.msra.mxu0 0.0
    %1871 = vmatprep.subr.mxu0 0.0
    %1872 = vmatpush1.msra.mxu0 0.0
    %1873 = vmatprep.subr.mxu0 0.0
    %1874 = vmatpush1.msra.mxu0 0.0
    %1875 = vmatprep.subr.mxu0 0.0
    %1876 = vmatpush1.msra.mxu0 0.0
    %1877 = vmatprep.subr.mxu0 0.0
    %1878 = vmatpush1.msra.mxu0 0.0
    %1879 = vmatprep.subr.mxu0 0.0
    %1880 = vmatpush1.msra.mxu0 0.0
    %1881 = vmatprep.mubr.f32.mxu0 0.0
    %1882 = vmatmul.mubr.f32.gmra.mrb[0].mxu0 %v1815
    %v1883 = vpop.f32.mrb[0].mxu0
    %v1884 = vadd.f32 0.0, %v1883
    %v1885 = vpop.f32.mrb[0].mxu0
    %1886 = vdwg.mxu0
    %1887 = vrot.lane.b32.xlu0 %v186, 56
    %v1888 = vpop.permute.xlu0 %1887
    %v1891 = vsel %vm213, %v1731, 0
    %1893 = vmatprep.subr.mxu0 0.0
    %1894 = vmatpush1.msra.mxu0 %v1888
    %1895 = vmatprep.subr.mxu0 0.0
    %1896 = vmatpush1.msra.mxu0 0.0
    %1897 = vmatprep.subr.mxu0 0.0
    %1898 = vmatpush1.msra.mxu0 0.0
    %1899 = vmatprep.subr.mxu0 0.0
    %1900 = vmatpush1.msra.mxu0 0.0
    %1901 = vmatprep.subr.mxu0 0.0
    %1902 = vmatpush1.msra.mxu0 0.0
    %1903 = vmatprep.subr.mxu0 0.0
    %1904 = vmatpush1.msra.mxu0 0.0
    %1905 = vmatprep.subr.mxu0 0.0
    %1906 = vmatpush1.msra.mxu0 0.0
    %1907 = vmatprep.subr.mxu0 0.0
    %1908 = vmatpush1.msra.mxu0 0.0
    %1909 = vmatprep.subr.mxu0 0.0
    %1910 = vmatpush1.msra.mxu0 0.0
    %1911 = vmatprep.subr.mxu0 0.0
    %1912 = vmatpush1.msra.mxu0 0.0
    %1913 = vmatprep.subr.mxu0 0.0
    %1914 = vmatpush1.msra.mxu0 0.0
    %1915 = vmatprep.subr.mxu0 0.0
    %1916 = vmatpush1.msra.mxu0 0.0
    %1917 = vmatprep.subr.mxu0 0.0
    %1918 = vmatpush1.msra.mxu0 0.0
    %1919 = vmatprep.subr.mxu0 0.0
    %1920 = vmatpush1.msra.mxu0 0.0
    %1921 = vmatprep.subr.mxu0 0.0
    %1922 = vmatpush1.msra.mxu0 0.0
    %1923 = vmatprep.subr.mxu0 0.0
    %1924 = vmatpush1.msra.mxu0 0.0
    %1925 = vmatprep.subr.mxu0 0.0
    %1926 = vmatpush1.msra.mxu0 0.0
    %1927 = vmatprep.subr.mxu0 0.0
    %1928 = vmatpush1.msra.mxu0 0.0
    %1929 = vmatprep.subr.mxu0 0.0
    %1930 = vmatpush1.msra.mxu0 0.0
    %1931 = vmatprep.subr.mxu0 0.0
    %1932 = vmatpush1.msra.mxu0 0.0
    %1933 = vmatprep.subr.mxu0 0.0
    %1934 = vmatpush1.msra.mxu0 0.0
    %1935 = vmatprep.subr.mxu0 0.0
    %1936 = vmatpush1.msra.mxu0 0.0
    %1937 = vmatprep.subr.mxu0 0.0
    %1938 = vmatpush1.msra.mxu0 0.0
    %1939 = vmatprep.subr.mxu0 0.0
    %1940 = vmatpush1.msra.mxu0 0.0
    %1941 = vmatprep.subr.mxu0 0.0
    %1942 = vmatpush1.msra.mxu0 0.0
    %1943 = vmatprep.subr.mxu0 0.0
    %1944 = vmatpush1.msra.mxu0 0.0
    %1945 = vmatprep.subr.mxu0 0.0
    %1946 = vmatpush1.msra.mxu0 0.0
    %1947 = vmatprep.subr.mxu0 0.0
    %1948 = vmatpush1.msra.mxu0 0.0
    %1949 = vmatprep.subr.mxu0 0.0
    %1950 = vmatpush1.msra.mxu0 0.0
    %1951 = vmatprep.subr.mxu0 0.0
    %1952 = vmatpush1.msra.mxu0 0.0
    %1953 = vmatprep.subr.mxu0 0.0
    %1954 = vmatpush1.msra.mxu0 0.0
    %1955 = vmatprep.subr.mxu0 0.0
    %1956 = vmatpush1.msra.mxu0 0.0
    %1957 = vmatprep.mubr.f32.mxu0 0.0
    %1958 = vmatmul.mubr.f32.gmra.mrb[0].mxu0 %v1891
    %v1959 = vpop.f32.mrb[0].mxu0
    %v1960 = vadd.f32 0.0, %v1959
    %v1961 = vpop.f32.mrb[0].mxu0
    %1962 = vdwg.mxu0
    %1963 = vrot.lane.b32.xlu0 %v191, 56
    %v1964 = vpop.permute.xlu0 %1963
    %v1967 = vsel %vm213, %v1732, 0
    %1969 = vmatprep.subr.mxu0 0.0
    %1970 = vmatpush1.msra.mxu0 %v1964
    %1971 = vmatprep.subr.mxu0 0.0
    %1972 = vmatpush1.msra.mxu0 0.0
    %1973 = vmatprep.subr.mxu0 0.0
    %1974 = vmatpush1.msra.mxu0 0.0
    %1975 = vmatprep.subr.mxu0 0.0
    %1976 = vmatpush1.msra.mxu0 0.0
    %1977 = vmatprep.subr.mxu0 0.0
    %1978 = vmatpush1.msra.mxu0 0.0
    %1979 = vmatprep.subr.mxu0 0.0
    %1980 = vmatpush1.msra.mxu0 0.0
    %1981 = vmatprep.subr.mxu0 0.0
    %1982 = vmatpush1.msra.mxu0 0.0
    %1983 = vmatprep.subr.mxu0 0.0
    %1984 = vmatpush1.msra.mxu0 0.0
    %1985 = vmatprep.subr.mxu0 0.0
    %1986 = vmatpush1.msra.mxu0 0.0
    %1987 = vmatprep.subr.mxu0 0.0
    %1988 = vmatpush1.msra.mxu0 0.0
    %1989 = vmatprep.subr.mxu0 0.0
    %1990 = vmatpush1.msra.mxu0 0.0
    %1991 = vmatprep.subr.mxu0 0.0
    %1992 = vmatpush1.msra.mxu0 0.0
    %1993 = vmatprep.subr.mxu0 0.0
    %1994 = vmatpush1.msra.mxu0 0.0
    %1995 = vmatprep.subr.mxu0 0.0
    %1996 = vmatpush1.msra.mxu0 0.0
    %1997 = vmatprep.subr.mxu0 0.0
    %1998 = vmatpush1.msra.mxu0 0.0
    %1999 = vmatprep.subr.mxu0 0.0
    %2000 = vmatpush1.msra.mxu0 0.0
    %2001 = vmatprep.subr.mxu0 0.0
    %2002 = vmatpush1.msra.mxu0 0.0
    %2003 = vmatprep.subr.mxu0 0.0
    %2004 = vmatpush1.msra.mxu0 0.0
    %2005 = vmatprep.subr.mxu0 0.0
    %2006 = vmatpush1.msra.mxu0 0.0
    %2007 = vmatprep.subr.mxu0 0.0
    %2008 = vmatpush1.msra.mxu0 0.0
    %2009 = vmatprep.subr.mxu0 0.0
    %2010 = vmatpush1.msra.mxu0 0.0
    %2011 = vmatprep.subr.mxu0 0.0
    %2012 = vmatpush1.msra.mxu0 0.0
    %2013 = vmatprep.subr.mxu0 0.0
    %2014 = vmatpush1.msra.mxu0 0.0
    %2015 = vmatprep.subr.mxu0 0.0
    %2016 = vmatpush1.msra.mxu0 0.0
    %2017 = vmatprep.subr.mxu0 0.0
    %2018 = vmatpush1.msra.mxu0 0.0
    %2019 = vmatprep.subr.mxu0 0.0
    %2020 = vmatpush1.msra.mxu0 0.0
    %2021 = vmatprep.subr.mxu0 0.0
    %2022 = vmatpush1.msra.mxu0 0.0
    %2023 = vmatprep.subr.mxu0 0.0
    %2024 = vmatpush1.msra.mxu0 0.0
    %2025 = vmatprep.subr.mxu0 0.0
    %2026 = vmatpush1.msra.mxu0 0.0
    %2027 = vmatprep.subr.mxu0 0.0
    %2028 = vmatpush1.msra.mxu0 0.0
    %2029 = vmatprep.subr.mxu0 0.0
    %2030 = vmatpush1.msra.mxu0 0.0
    %2031 = vmatprep.subr.mxu0 0.0
    %2032 = vmatpush1.msra.mxu0 0.0
    %2033 = vmatprep.mubr.f32.mxu0 0.0
    %2034 = vmatmul.mubr.f32.gmra.mrb[0].mxu0 %v1967
    %v2035 = vpop.f32.mrb[0].mxu0
    %v2036 = vadd.f32 0.0, %v2035
    %v2037 = vpop.f32.mrb[0].mxu0
    %2038 = vdwg.mxu0
    %2039 = vrot.lane.b32.xlu0 %v196, 56
    %v2040 = vpop.permute.xlu0 %2039
    %v2043 = vsel %vm213, %v1733, 0
    %2045 = vmatprep.subr.mxu0 0.0
    %2046 = vmatpush1.msra.mxu0 %v2040
    %2047 = vmatprep.subr.mxu0 0.0
    %2048 = vmatpush1.msra.mxu0 0.0
    %2049 = vmatprep.subr.mxu0 0.0
    %2050 = vmatpush1.msra.mxu0 0.0
    %2051 = vmatprep.subr.mxu0 0.0
    %2052 = vmatpush1.msra.mxu0 0.0
    %2053 = vmatprep.subr.mxu0 0.0
    %2054 = vmatpush1.msra.mxu0 0.0
    %2055 = vmatprep.subr.mxu0 0.0
    %2056 = vmatpush1.msra.mxu0 0.0
    %2057 = vmatprep.subr.mxu0 0.0
    %2058 = vmatpush1.msra.mxu0 0.0
    %2059 = vmatprep.subr.mxu0 0.0
    %2060 = vmatpush1.msra.mxu0 0.0
    %2061 = vmatprep.subr.mxu0 0.0
    %2062 = vmatpush1.msra.mxu0 0.0
    %2063 = vmatprep.subr.mxu0 0.0
    %2064 = vmatpush1.msra.mxu0 0.0
    %2065 = vmatprep.subr.mxu0 0.0
    %2066 = vmatpush1.msra.mxu0 0.0
    %2067 = vmatprep.subr.mxu0 0.0
    %2068 = vmatpush1.msra.mxu0 0.0
    %2069 = vmatprep.subr.mxu0 0.0
    %2070 = vmatpush1.msra.mxu0 0.0
    %2071 = vmatprep.subr.mxu0 0.0
    %2072 = vmatpush1.msra.mxu0 0.0
    %2073 = vmatprep.subr.mxu0 0.0
    %2074 = vmatpush1.msra.mxu0 0.0
    %2075 = vmatprep.subr.mxu0 0.0
    %2076 = vmatpush1.msra.mxu0 0.0
    %2077 = vmatprep.subr.mxu0 0.0
    %2078 = vmatpush1.msra.mxu0 0.0
    %2079 = vmatprep.subr.mxu0 0.0
    %2080 = vmatpush1.msra.mxu0 0.0
    %2081 = vmatprep.subr.mxu0 0.0
    %2082 = vmatpush1.msra.mxu0 0.0
    %2083 = vmatprep.subr.mxu0 0.0
    %2084 = vmatpush1.msra.mxu0 0.0
    %2085 = vmatprep.subr.mxu0 0.0
    %2086 = vmatpush1.msra.mxu0 0.0
    %2087 = vmatprep.subr.mxu0 0.0
    %2088 = vmatpush1.msra.mxu0 0.0
    %2089 = vmatprep.subr.mxu0 0.0
    %2090 = vmatpush1.msra.mxu0 0.0
    %2091 = vmatprep.subr.mxu0 0.0
    %2092 = vmatpush1.msra.mxu0 0.0
    %2093 = vmatprep.subr.mxu0 0.0
    %2094 = vmatpush1.msra.mxu0 0.0
    %2095 = vmatprep.subr.mxu0 0.0
    %2096 = vmatpush1.msra.mxu0 0.0
    %2097 = vmatprep.subr.mxu0 0.0
    %2098 = vmatpush1.msra.mxu0 0.0
    %2099 = vmatprep.subr.mxu0 0.0
    %2100 = vmatpush1.msra.mxu0 0.0
    %2101 = vmatprep.subr.mxu0 0.0
    %2102 = vmatpush1.msra.mxu0 0.0
    %2103 = vmatprep.subr.mxu0 0.0
    %2104 = vmatpush1.msra.mxu0 0.0
    %2105 = vmatprep.subr.mxu0 0.0
    %2106 = vmatpush1.msra.mxu0 0.0
    %2107 = vmatprep.subr.mxu0 0.0
    %2108 = vmatpush1.msra.mxu0 0.0
    %2109 = vmatprep.mubr.f32.mxu0 0.0
    %2110 = vmatmul.mubr.f32.gmra.mrb[0].mxu0 %v2043
    %v2111 = vpop.f32.mrb[0].mxu0
    %v2112 = vadd.f32 0.0, %v2111
    %v2113 = vpop.f32.mrb[0].mxu0
    %2114 = vdwg.mxu0
    %2115 = vrot.lane.b32.xlu0 %v201, 56
    %v2116 = vpop.permute.xlu0 %2115
    %v2119 = vsel %vm213, %v1734, 0
    %2121 = vmatprep.subr.mxu0 0.0
    %2122 = vmatpush1.msra.mxu0 %v2116
    %2123 = vmatprep.subr.mxu0 0.0
    %2124 = vmatpush1.msra.mxu0 0.0
    %2125 = vmatprep.subr.mxu0 0.0
    %2126 = vmatpush1.msra.mxu0 0.0
    %2127 = vmatprep.subr.mxu0 0.0
    %2128 = vmatpush1.msra.mxu0 0.0
    %2129 = vmatprep.subr.mxu0 0.0
    %2130 = vmatpush1.msra.mxu0 0.0
    %2131 = vmatprep.subr.mxu0 0.0
    %2132 = vmatpush1.msra.mxu0 0.0
    %2133 = vmatprep.subr.mxu0 0.0
    %2134 = vmatpush1.msra.mxu0 0.0
    %2135 = vmatprep.subr.mxu0 0.0
    %2136 = vmatpush1.msra.mxu0 0.0
    %2137 = vmatprep.subr.mxu0 0.0
    %2138 = vmatpush1.msra.mxu0 0.0
    %2139 = vmatprep.subr.mxu0 0.0
    %2140 = vmatpush1.msra.mxu0 0.0
    %2141 = vmatprep.subr.mxu0 0.0
    %2142 = vmatpush1.msra.mxu0 0.0
    %2143 = vmatprep.subr.mxu0 0.0
    %2144 = vmatpush1.msra.mxu0 0.0
    %2145 = vmatprep.subr.mxu0 0.0
    %2146 = vmatpush1.msra.mxu0 0.0
    %2147 = vmatprep.subr.mxu0 0.0
    %2148 = vmatpush1.msra.mxu0 0.0
    %2149 = vmatprep.subr.mxu0 0.0
    %2150 = vmatpush1.msra.mxu0 0.0
    %2151 = vmatprep.subr.mxu0 0.0
    %2152 = vmatpush1.msra.mxu0 0.0
    %2153 = vmatprep.subr.mxu0 0.0
    %2154 = vmatpush1.msra.mxu0 0.0
    %2155 = vmatprep.subr.mxu0 0.0
    %2156 = vmatpush1.msra.mxu0 0.0
    %2157 = vmatprep.subr.mxu0 0.0
    %2158 = vmatpush1.msra.mxu0 0.0
    %2159 = vmatprep.subr.mxu0 0.0
    %2160 = vmatpush1.msra.mxu0 0.0
    %2161 = vmatprep.subr.mxu0 0.0
    %2162 = vmatpush1.msra.mxu0 0.0
    %2163 = vmatprep.subr.mxu0 0.0
    %2164 = vmatpush1.msra.mxu0 0.0
    %2165 = vmatprep.subr.mxu0 0.0
    %2166 = vmatpush1.msra.mxu0 0.0
    %2167 = vmatprep.subr.mxu0 0.0
    %2168 = vmatpush1.msra.mxu0 0.0
    %2169 = vmatprep.subr.mxu0 0.0
    %2170 = vmatpush1.msra.mxu0 0.0
    %2171 = vmatprep.subr.mxu0 0.0
    %2172 = vmatpush1.msra.mxu0 0.0
    %2173 = vmatprep.subr.mxu0 0.0
    %2174 = vmatpush1.msra.mxu0 0.0
    %2175 = vmatprep.subr.mxu0 0.0
    %2176 = vmatpush1.msra.mxu0 0.0
    %2177 = vmatprep.subr.mxu0 0.0
    %2178 = vmatpush1.msra.mxu0 0.0
    %2179 = vmatprep.subr.mxu0 0.0
    %2180 = vmatpush1.msra.mxu0 0.0
    %2181 = vmatprep.subr.mxu0 0.0
    %2182 = vmatpush1.msra.mxu0 0.0
    %2183 = vmatprep.subr.mxu0 0.0
    %2184 = vmatpush1.msra.mxu0 0.0
    %2185 = vmatprep.mubr.f32.mxu0 0.0
    %2186 = vmatmul.mubr.f32.gmra.mrb[0].mxu0 %v2119
    %v2187 = vpop.f32.mrb[0].mxu0
    %v2188 = vadd.f32 0.0, %v2187
    %v2189 = vpop.f32.mrb[0].mxu0
    %2190 = vdwg.mxu0
    %2191 = vrot.lane.b32.xlu0 %v204, 112
    %v2192 = vpop.permute.xlu0 %2191
    %2193 = vrot.lane.b32.xlu0 %v176, 80
    %v2194 = vpop.permute.xlu0 %2193
    %v2195 = vsel %vm213, %v2192, 0
    %v2197 = vsel %vm213, %v2194, 0
    %2199 = vmatprep.subr.mxu0 0.0
    %2200 = vmatpush1.xpose.msra.mxu0 %v2197
    %2201 = vmatprep.subr.mxu0 0.0
    %2202 = vmatpush1.xpose.msra.mxu0 0.0
    %2203 = vmatprep.subr.mxu0 0.0
    %2204 = vmatpush1.xpose.msra.mxu0 0.0
    %2205 = vmatprep.subr.mxu0 0.0
    %2206 = vmatpush1.xpose.msra.mxu0 0.0
    %2207 = vmatprep.subr.mxu0 0.0
    %2208 = vmatpush1.xpose.msra.mxu0 0.0
    %2209 = vmatprep.subr.mxu0 0.0
    %2210 = vmatpush1.xpose.msra.mxu0 0.0
    %2211 = vmatprep.subr.mxu0 0.0
    %2212 = vmatpush1.xpose.msra.mxu0 0.0
    %2213 = vmatprep.subr.mxu0 0.0
    %2214 = vmatpush1.xpose.msra.mxu0 0.0
    %2215 = vmatprep.subr.mxu0 0.0
    %2216 = vmatpush1.xpose.msra.mxu0 0.0
    %2217 = vmatprep.subr.mxu0 0.0
    %2218 = vmatpush1.xpose.msra.mxu0 0.0
    %2219 = vmatprep.subr.mxu0 0.0
    %2220 = vmatpush1.xpose.msra.mxu0 0.0
    %2221 = vmatprep.subr.mxu0 0.0
    %2222 = vmatpush1.xpose.msra.mxu0 0.0
    %2223 = vmatprep.subr.mxu0 0.0
    %2224 = vmatpush1.xpose.msra.mxu0 0.0
    %2225 = vmatprep.subr.mxu0 0.0
    %2226 = vmatpush1.xpose.msra.mxu0 0.0
    %2227 = vmatprep.subr.mxu0 0.0
    %2228 = vmatpush1.xpose.msra.mxu0 0.0
    %2229 = vmatprep.subr.mxu0 0.0
    %2230 = vmatpush1.xpose.msra.mxu0 0.0
    %2231 = vmatprep.subr.mxu0 0.0
    %2232 = vmatpush1.xpose.msra.mxu0 0.0
    %2233 = vmatprep.subr.mxu0 0.0
    %2234 = vmatpush1.xpose.msra.mxu0 0.0
    %2235 = vmatprep.subr.mxu0 0.0
    %2236 = vmatpush1.xpose.msra.mxu0 0.0
    %2237 = vmatprep.subr.mxu0 0.0
    %2238 = vmatpush1.xpose.msra.mxu0 0.0
    %2239 = vmatprep.subr.mxu0 0.0
    %2240 = vmatpush1.xpose.msra.mxu0 0.0
    %2241 = vmatprep.subr.mxu0 0.0
    %2242 = vmatpush1.xpose.msra.mxu0 0.0
    %2243 = vmatprep.subr.mxu0 0.0
    %2244 = vmatpush1.xpose.msra.mxu0 0.0
    %2245 = vmatprep.subr.mxu0 0.0
    %2246 = vmatpush1.xpose.msra.mxu0 0.0
    %2247 = vmatprep.subr.mxu0 0.0
    %2248 = vmatpush1.xpose.msra.mxu0 0.0
    %2249 = vmatprep.subr.mxu0 0.0
    %2250 = vmatpush1.xpose.msra.mxu0 0.0
    %2251 = vmatprep.subr.mxu0 0.0
    %2252 = vmatpush1.xpose.msra.mxu0 0.0
    %2253 = vmatprep.subr.mxu0 0.0
    %2254 = vmatpush1.xpose.msra.mxu0 0.0
    %2255 = vmatprep.subr.mxu0 0.0
    %2256 = vmatpush1.xpose.msra.mxu0 0.0
    %2257 = vmatprep.subr.mxu0 0.0
    %2258 = vmatpush1.xpose.msra.mxu0 0.0
    %2259 = vmatprep.subr.mxu0 0.0
    %2260 = vmatpush1.xpose.msra.mxu0 0.0
    %2261 = vmatprep.subr.mxu0 0.0
    %2262 = vmatpush1.xpose.msra.mxu0 0.0
    %2263 = vmatprep.mubr.f32.mxu0 0.0
    %2264 = vmatmul.mubr.f32.gmra.mrb[0].mxu0 %v2195
    %v2265 = vpop.f32.mrb[0].mxu0
    %v2266 = vadd.f32 0.0, %v2265
    %v2267 = vpop.f32.mrb[0].mxu0
    %2268 = vdwg.mxu0
    %2269 = vrot.lane.b32.xlu0 %v205, 112
    %v2270 = vpop.permute.xlu0 %2269
    %2271 = vrot.lane.b32.xlu0 %v181, 80
    %v2272 = vpop.permute.xlu0 %2271
    %v2273 = vsel %vm213, %v2270, 0
    %v2275 = vsel %vm213, %v2272, 0
    %2277 = vmatprep.subr.mxu0 0.0
    %2278 = vmatpush1.xpose.msra.mxu0 %v2275
    %2279 = vmatprep.subr.mxu0 0.0
    %2280 = vmatpush1.xpose.msra.mxu0 0.0
    %2281 = vmatprep.subr.mxu0 0.0
    %2282 = vmatpush1.xpose.msra.mxu0 0.0
    %2283 = vmatprep.subr.mxu0 0.0
    %2284 = vmatpush1.xpose.msra.mxu0 0.0
    %2285 = vmatprep.subr.mxu0 0.0
    %2286 = vmatpush1.xpose.msra.mxu0 0.0
    %2287 = vmatprep.subr.mxu0 0.0
    %2288 = vmatpush1.xpose.msra.mxu0 0.0
    %2289 = vmatprep.subr.mxu0 0.0
    %2290 = vmatpush1.xpose.msra.mxu0 0.0
    %2291 = vmatprep.subr.mxu0 0.0
    %2292 = vmatpush1.xpose.msra.mxu0 0.0
    %2293 = vmatprep.subr.mxu0 0.0
    %2294 = vmatpush1.xpose.msra.mxu0 0.0
    %2295 = vmatprep.subr.mxu0 0.0
    %2296 = vmatpush1.xpose.msra.mxu0 0.0
    %2297 = vmatprep.subr.mxu0 0.0
    %2298 = vmatpush1.xpose.msra.mxu0 0.0
    %2299 = vmatprep.subr.mxu0 0.0
    %2300 = vmatpush1.xpose.msra.mxu0 0.0
    %2301 = vmatprep.subr.mxu0 0.0
    %2302 = vmatpush1.xpose.msra.mxu0 0.0
    %2303 = vmatprep.subr.mxu0 0.0
    %2304 = vmatpush1.xpose.msra.mxu0 0.0
    %2305 = vmatprep.subr.mxu0 0.0
    %2306 = vmatpush1.xpose.msra.mxu0 0.0
    %2307 = vmatprep.subr.mxu0 0.0
    %2308 = vmatpush1.xpose.msra.mxu0 0.0
    %2309 = vmatprep.subr.mxu0 0.0
    %2310 = vmatpush1.xpose.msra.mxu0 0.0
    %2311 = vmatprep.subr.mxu0 0.0
    %2312 = vmatpush1.xpose.msra.mxu0 0.0
    %2313 = vmatprep.subr.mxu0 0.0
    %2314 = vmatpush1.xpose.msra.mxu0 0.0
    %2315 = vmatprep.subr.mxu0 0.0
    %2316 = vmatpush1.xpose.msra.mxu0 0.0
    %2317 = vmatprep.subr.mxu0 0.0
    %2318 = vmatpush1.xpose.msra.mxu0 0.0
    %2319 = vmatprep.subr.mxu0 0.0
    %2320 = vmatpush1.xpose.msra.mxu0 0.0
    %2321 = vmatprep.subr.mxu0 0.0
    %2322 = vmatpush1.xpose.msra.mxu0 0.0
    %2323 = vmatprep.subr.mxu0 0.0
    %2324 = vmatpush1.xpose.msra.mxu0 0.0
    %2325 = vmatprep.subr.mxu0 0.0
    %2326 = vmatpush1.xpose.msra.mxu0 0.0
    %2327 = vmatprep.subr.mxu0 0.0
    %2328 = vmatpush1.xpose.msra.mxu0 0.0
    %2329 = vmatprep.subr.mxu0 0.0
    %2330 = vmatpush1.xpose.msra.mxu0 0.0
    %2331 = vmatprep.subr.mxu0 0.0
    %2332 = vmatpush1.xpose.msra.mxu0 0.0
    %2333 = vmatprep.subr.mxu0 0.0
    %2334 = vmatpush1.xpose.msra.mxu0 0.0
    %2335 = vmatprep.subr.mxu0 0.0
    %2336 = vmatpush1.xpose.msra.mxu0 0.0
    %2337 = vmatprep.subr.mxu0 0.0
    %2338 = vmatpush1.xpose.msra.mxu0 0.0
    %2339 = vmatprep.subr.mxu0 0.0
    %2340 = vmatpush1.xpose.msra.mxu0 0.0
    %2341 = vmatprep.mubr.f32.mxu0 0.0
    %2342 = vmatmul.mubr.f32.gmra.mrb[0].mxu0 %v2273
    %v2343 = vpop.f32.mrb[0].mxu0
    %v2344 = vadd.f32 0.0, %v2343
    %v2345 = vpop.f32.mrb[0].mxu0
    %2346 = vdwg.mxu0
    %2347 = vrot.lane.b32.xlu0 %v206, 112
    %v2348 = vpop.permute.xlu0 %2347
    %2349 = vrot.lane.b32.xlu0 %v186, 80
    %v2350 = vpop.permute.xlu0 %2349
    %v2351 = vsel %vm213, %v2348, 0
    %v2353 = vsel %vm213, %v2350, 0
    %2355 = vmatprep.subr.mxu0 0.0
    %2356 = vmatpush1.xpose.msra.mxu0 %v2353
    %2357 = vmatprep.subr.mxu0 0.0
    %2358 = vmatpush1.xpose.msra.mxu0 0.0
    %2359 = vmatprep.subr.mxu0 0.0
    %2360 = vmatpush1.xpose.msra.mxu0 0.0
    %2361 = vmatprep.subr.mxu0 0.0
    %2362 = vmatpush1.xpose.msra.mxu0 0.0
    %2363 = vmatprep.subr.mxu0 0.0
    %2364 = vmatpush1.xpose.msra.mxu0 0.0
    %2365 = vmatprep.subr.mxu0 0.0
    %2366 = vmatpush1.xpose.msra.mxu0 0.0
    %2367 = vmatprep.subr.mxu0 0.0
    %2368 = vmatpush1.xpose.msra.mxu0 0.0
    %2369 = vmatprep.subr.mxu0 0.0
    %2370 = vmatpush1.xpose.msra.mxu0 0.0
    %2371 = vmatprep.subr.mxu0 0.0
    %2372 = vmatpush1.xpose.msra.mxu0 0.0
    %2373 = vmatprep.subr.mxu0 0.0
    %2374 = vmatpush1.xpose.msra.mxu0 0.0
    %2375 = vmatprep.subr.mxu0 0.0
    %2376 = vmatpush1.xpose.msra.mxu0 0.0
    %2377 = vmatprep.subr.mxu0 0.0
    %2378 = vmatpush1.xpose.msra.mxu0 0.0
    %2379 = vmatprep.subr.mxu0 0.0
    %2380 = vmatpush1.xpose.msra.mxu0 0.0
    %2381 = vmatprep.subr.mxu0 0.0
    %2382 = vmatpush1.xpose.msra.mxu0 0.0
    %2383 = vmatprep.subr.mxu0 0.0
    %2384 = vmatpush1.xpose.msra.mxu0 0.0
    %2385 = vmatprep.subr.mxu0 0.0
    %2386 = vmatpush1.xpose.msra.mxu0 0.0
    %2387 = vmatprep.subr.mxu0 0.0
    %2388 = vmatpush1.xpose.msra.mxu0 0.0
    %2389 = vmatprep.subr.mxu0 0.0
    %2390 = vmatpush1.xpose.msra.mxu0 0.0
    %2391 = vmatprep.subr.mxu0 0.0
    %2392 = vmatpush1.xpose.msra.mxu0 0.0
    %2393 = vmatprep.subr.mxu0 0.0
    %2394 = vmatpush1.xpose.msra.mxu0 0.0
    %2395 = vmatprep.subr.mxu0 0.0
    %2396 = vmatpush1.xpose.msra.mxu0 0.0
    %2397 = vmatprep.subr.mxu0 0.0
    %2398 = vmatpush1.xpose.msra.mxu0 0.0
    %2399 = vmatprep.subr.mxu0 0.0
    %2400 = vmatpush1.xpose.msra.mxu0 0.0
    %2401 = vmatprep.subr.mxu0 0.0
    %2402 = vmatpush1.xpose.msra.mxu0 0.0
    %2403 = vmatprep.subr.mxu0 0.0
    %2404 = vmatpush1.xpose.msra.mxu0 0.0
    %2405 = vmatprep.subr.mxu0 0.0
    %2406 = vmatpush1.xpose.msra.mxu0 0.0
    %2407 = vmatprep.subr.mxu0 0.0
    %2408 = vmatpush1.xpose.msra.mxu0 0.0
    %2409 = vmatprep.subr.mxu0 0.0
    %2410 = vmatpush1.xpose.msra.mxu0 0.0
    %2411 = vmatprep.subr.mxu0 0.0
    %2412 = vmatpush1.xpose.msra.mxu0 0.0
    %2413 = vmatprep.subr.mxu0 0.0
    %2414 = vmatpush1.xpose.msra.mxu0 0.0
    %2415 = vmatprep.subr.mxu0 0.0
    %2416 = vmatpush1.xpose.msra.mxu0 0.0
    %2417 = vmatprep.subr.mxu0 0.0
    %2418 = vmatpush1.xpose.msra.mxu0 0.0
    %2419 = vmatprep.mubr.f32.mxu0 0.0
    %2420 = vmatmul.mubr.f32.gmra.mrb[0].mxu0 %v2351
    %v2421 = vpop.f32.mrb[0].mxu0
    %v2422 = vadd.f32 0.0, %v2421
    %v2423 = vpop.f32.mrb[0].mxu0
    %2424 = vdwg.mxu0
    %2425 = vrot.lane.b32.xlu0 %v207, 112
    %v2426 = vpop.permute.xlu0 %2425
    %2427 = vrot.lane.b32.xlu0 %v191, 80
    %v2428 = vpop.permute.xlu0 %2427
    %v2429 = vsel %vm213, %v2426, 0
    %v2431 = vsel %vm213, %v2428, 0
    %2433 = vmatprep.subr.mxu0 0.0
    %2434 = vmatpush1.xpose.msra.mxu0 %v2431
    %2435 = vmatprep.subr.mxu0 0.0
    %2436 = vmatpush1.xpose.msra.mxu0 0.0
    %2437 = vmatprep.subr.mxu0 0.0
    %2438 = vmatpush1.xpose.msra.mxu0 0.0
    %2439 = vmatprep.subr.mxu0 0.0
    %2440 = vmatpush1.xpose.msra.mxu0 0.0
    %2441 = vmatprep.subr.mxu0 0.0
    %2442 = vmatpush1.xpose.msra.mxu0 0.0
    %2443 = vmatprep.subr.mxu0 0.0
    %2444 = vmatpush1.xpose.msra.mxu0 0.0
    %2445 = vmatprep.subr.mxu0 0.0
    %2446 = vmatpush1.xpose.msra.mxu0 0.0
    %2447 = vmatprep.subr.mxu0 0.0
    %2448 = vmatpush1.xpose.msra.mxu0 0.0
    %2449 = vmatprep.subr.mxu0 0.0
    %2450 = vmatpush1.xpose.msra.mxu0 0.0
    %2451 = vmatprep.subr.mxu0 0.0
    %2452 = vmatpush1.xpose.msra.mxu0 0.0
    %2453 = vmatprep.subr.mxu0 0.0
    %2454 = vmatpush1.xpose.msra.mxu0 0.0
    %2455 = vmatprep.subr.mxu0 0.0
    %2456 = vmatpush1.xpose.msra.mxu0 0.0
    %2457 = vmatprep.subr.mxu0 0.0
    %2458 = vmatpush1.xpose.msra.mxu0 0.0
    %2459 = vmatprep.subr.mxu0 0.0
    %2460 = vmatpush1.xpose.msra.mxu0 0.0
    %2461 = vmatprep.subr.mxu0 0.0
    %2462 = vmatpush1.xpose.msra.mxu0 0.0
    %2463 = vmatprep.subr.mxu0 0.0
    %2464 = vmatpush1.xpose.msra.mxu0 0.0
    %2465 = vmatprep.subr.mxu0 0.0
    %2466 = vmatpush1.xpose.msra.mxu0 0.0
    %2467 = vmatprep.subr.mxu0 0.0
    %2468 = vmatpush1.xpose.msra.mxu0 0.0
    %2469 = vmatprep.subr.mxu0 0.0
    %2470 = vmatpush1.xpose.msra.mxu0 0.0
    %2471 = vmatprep.subr.mxu0 0.0
    %2472 = vmatpush1.xpose.msra.mxu0 0.0
    %2473 = vmatprep.subr.mxu0 0.0
    %2474 = vmatpush1.xpose.msra.mxu0 0.0
    %2475 = vmatprep.subr.mxu0 0.0
    %2476 = vmatpush1.xpose.msra.mxu0 0.0
    %2477 = vmatprep.subr.mxu0 0.0
    %2478 = vmatpush1.xpose.msra.mxu0 0.0
    %2479 = vmatprep.subr.mxu0 0.0
    %2480 = vmatpush1.xpose.msra.mxu0 0.0
    %2481 = vmatprep.subr.mxu0 0.0
    %2482 = vmatpush1.xpose.msra.mxu0 0.0
    %2483 = vmatprep.subr.mxu0 0.0
    %2484 = vmatpush1.xpose.msra.mxu0 0.0
    %2485 = vmatprep.subr.mxu0 0.0
    %2486 = vmatpush1.xpose.msra.mxu0 0.0
    %2487 = vmatprep.subr.mxu0 0.0
    %2488 = vmatpush1.xpose.msra.mxu0 0.0
    %2489 = vmatprep.subr.mxu0 0.0
    %2490 = vmatpush1.xpose.msra.mxu0 0.0
    %2491 = vmatprep.subr.mxu0 0.0
    %2492 = vmatpush1.xpose.msra.mxu0 0.0
    %2493 = vmatprep.subr.mxu0 0.0
    %2494 = vmatpush1.xpose.msra.mxu0 0.0
    %2495 = vmatprep.subr.mxu0 0.0
    %2496 = vmatpush1.xpose.msra.mxu0 0.0
    %2497 = vmatprep.mubr.f32.mxu0 0.0
    %2498 = vmatmul.mubr.f32.gmra.mrb[0].mxu0 %v2429
    %v2499 = vpop.f32.mrb[0].mxu0
    %v2500 = vadd.f32 0.0, %v2499
    %v2501 = vpop.f32.mrb[0].mxu0
    %2502 = vdwg.mxu0
    %2503 = vrot.lane.b32.xlu0 %v208, 112
    %v2504 = vpop.permute.xlu0 %2503
    %2505 = vrot.lane.b32.xlu0 %v196, 80
    %v2506 = vpop.permute.xlu0 %2505
    %v2507 = vsel %vm213, %v2504, 0
    %v2509 = vsel %vm213, %v2506, 0
    %2511 = vmatprep.subr.mxu0 0.0
    %2512 = vmatpush1.xpose.msra.mxu0 %v2509
    %2513 = vmatprep.subr.mxu0 0.0
    %2514 = vmatpush1.xpose.msra.mxu0 0.0
    %2515 = vmatprep.subr.mxu0 0.0
    %2516 = vmatpush1.xpose.msra.mxu0 0.0
    %2517 = vmatprep.subr.mxu0 0.0
    %2518 = vmatpush1.xpose.msra.mxu0 0.0
    %2519 = vmatprep.subr.mxu0 0.0
    %2520 = vmatpush1.xpose.msra.mxu0 0.0
    %2521 = vmatprep.subr.mxu0 0.0
    %2522 = vmatpush1.xpose.msra.mxu0 0.0
    %2523 = vmatprep.subr.mxu0 0.0
    %2524 = vmatpush1.xpose.msra.mxu0 0.0
    %2525 = vmatprep.subr.mxu0 0.0
    %2526 = vmatpush1.xpose.msra.mxu0 0.0
    %2527 = vmatprep.subr.mxu0 0.0
    %2528 = vmatpush1.xpose.msra.mxu0 0.0
    %2529 = vmatprep.subr.mxu0 0.0
    %2530 = vmatpush1.xpose.msra.mxu0 0.0
    %2531 = vmatprep.subr.mxu0 0.0
    %2532 = vmatpush1.xpose.msra.mxu0 0.0
    %2533 = vmatprep.subr.mxu0 0.0
    %2534 = vmatpush1.xpose.msra.mxu0 0.0
    %2535 = vmatprep.subr.mxu0 0.0
    %2536 = vmatpush1.xpose.msra.mxu0 0.0
    %2537 = vmatprep.subr.mxu0 0.0
    %2538 = vmatpush1.xpose.msra.mxu0 0.0
    %2539 = vmatprep.subr.mxu0 0.0
    %2540 = vmatpush1.xpose.msra.mxu0 0.0
    %2541 = vmatprep.subr.mxu0 0.0
    %2542 = vmatpush1.xpose.msra.mxu0 0.0
    %2543 = vmatprep.subr.mxu0 0.0
    %2544 = vmatpush1.xpose.msra.mxu0 0.0
    %2545 = vmatprep.subr.mxu0 0.0
    %2546 = vmatpush1.xpose.msra.mxu0 0.0
    %2547 = vmatprep.subr.mxu0 0.0
    %2548 = vmatpush1.xpose.msra.mxu0 0.0
    %2549 = vmatprep.subr.mxu0 0.0
    %2550 = vmatpush1.xpose.msra.mxu0 0.0
    %2551 = vmatprep.subr.mxu0 0.0
    %2552 = vmatpush1.xpose.msra.mxu0 0.0
    %2553 = vmatprep.subr.mxu0 0.0
    %2554 = vmatpush1.xpose.msra.mxu0 0.0
    %2555 = vmatprep.subr.mxu0 0.0
    %2556 = vmatpush1.xpose.msra.mxu0 0.0
    %2557 = vmatprep.subr.mxu0 0.0
    %2558 = vmatpush1.xpose.msra.mxu0 0.0
    %2559 = vmatprep.subr.mxu0 0.0
    %2560 = vmatpush1.xpose.msra.mxu0 0.0
    %2561 = vmatprep.subr.mxu0 0.0
    %2562 = vmatpush1.xpose.msra.mxu0 0.0
    %2563 = vmatprep.subr.mxu0 0.0
    %2564 = vmatpush1.xpose.msra.mxu0 0.0
    %2565 = vmatprep.subr.mxu0 0.0
    %2566 = vmatpush1.xpose.msra.mxu0 0.0
    %2567 = vmatprep.subr.mxu0 0.0
    %2568 = vmatpush1.xpose.msra.mxu0 0.0
    %2569 = vmatprep.subr.mxu0 0.0
    %2570 = vmatpush1.xpose.msra.mxu0 0.0
    %2571 = vmatprep.subr.mxu0 0.0
    %2572 = vmatpush1.xpose.msra.mxu0 0.0
    %2573 = vmatprep.subr.mxu0 0.0
    %2574 = vmatpush1.xpose.msra.mxu0 0.0
    %2575 = vmatprep.mubr.f32.mxu0 0.0
    %2576 = vmatmul.mubr.f32.gmra.mrb[0].mxu0 %v2507
    %v2577 = vpop.f32.mrb[0].mxu0
    %v2578 = vadd.f32 0.0, %v2577
    %v2579 = vpop.f32.mrb[0].mxu0
    %2580 = vdwg.mxu0
    %2581 = vrot.lane.b32.xlu0 %v209, 112
    %v2582 = vpop.permute.xlu0 %2581
    %2583 = vrot.lane.b32.xlu0 %v201, 80
    %v2584 = vpop.permute.xlu0 %2583
    %v2585 = vsel %vm213, %v2582, 0
    %v2587 = vsel %vm213, %v2584, 0
    %2589 = vmatprep.subr.mxu0 0.0
    %2590 = vmatpush1.xpose.msra.mxu0 %v2587
    %2591 = vmatprep.subr.mxu0 0.0
    %2592 = vmatpush1.xpose.msra.mxu0 0.0
    %2593 = vmatprep.subr.mxu0 0.0
    %2594 = vmatpush1.xpose.msra.mxu0 0.0
    %2595 = vmatprep.subr.mxu0 0.0
    %2596 = vmatpush1.xpose.msra.mxu0 0.0
    %2597 = vmatprep.subr.mxu0 0.0
    %2598 = vmatpush1.xpose.msra.mxu0 0.0
    %2599 = vmatprep.subr.mxu0 0.0
    %2600 = vmatpush1.xpose.msra.mxu0 0.0
    %2601 = vmatprep.subr.mxu0 0.0
    %2602 = vmatpush1.xpose.msra.mxu0 0.0
    %2603 = vmatprep.subr.mxu0 0.0
    %2604 = vmatpush1.xpose.msra.mxu0 0.0
    %2605 = vmatprep.subr.mxu0 0.0
    %2606 = vmatpush1.xpose.msra.mxu0 0.0
    %2607 = vmatprep.subr.mxu0 0.0
    %2608 = vmatpush1.xpose.msra.mxu0 0.0
    %2609 = vmatprep.subr.mxu0 0.0
    %2610 = vmatpush1.xpose.msra.mxu0 0.0
    %2611 = vmatprep.subr.mxu0 0.0
    %2612 = vmatpush1.xpose.msra.mxu0 0.0
    %2613 = vmatprep.subr.mxu0 0.0
    %2614 = vmatpush1.xpose.msra.mxu0 0.0
    %2615 = vmatprep.subr.mxu0 0.0
    %2616 = vmatpush1.xpose.msra.mxu0 0.0
    %2617 = vmatprep.subr.mxu0 0.0
    %2618 = vmatpush1.xpose.msra.mxu0 0.0
    %2619 = vmatprep.subr.mxu0 0.0
    %2620 = vmatpush1.xpose.msra.mxu0 0.0
    %2621 = vmatprep.subr.mxu0 0.0
    %2622 = vmatpush1.xpose.msra.mxu0 0.0
    %2623 = vmatprep.subr.mxu0 0.0
    %2624 = vmatpush1.xpose.msra.mxu0 0.0
    %2625 = vmatprep.subr.mxu0 0.0
    %2626 = vmatpush1.xpose.msra.mxu0 0.0
    %2627 = vmatprep.subr.mxu0 0.0
    %2628 = vmatpush1.xpose.msra.mxu0 0.0
    %2629 = vmatprep.subr.mxu0 0.0
    %2630 = vmatpush1.xpose.msra.mxu0 0.0
    %2631 = vmatprep.subr.mxu0 0.0
    %2632 = vmatpush1.xpose.msra.mxu0 0.0
    %2633 = vmatprep.subr.mxu0 0.0
    %2634 = vmatpush1.xpose.msra.mxu0 0.0
    %2635 = vmatprep.subr.mxu0 0.0
    %2636 = vmatpush1.xpose.msra.mxu0 0.0
    %2637 = vmatprep.subr.mxu0 0.0
    %2638 = vmatpush1.xpose.msra.mxu0 0.0
    %2639 = vmatprep.subr.mxu0 0.0
    %2640 = vmatpush1.xpose.msra.mxu0 0.0
    %2641 = vmatprep.subr.mxu0 0.0
    %2642 = vmatpush1.xpose.msra.mxu0 0.0
    %2643 = vmatprep.subr.mxu0 0.0
    %2644 = vmatpush1.xpose.msra.mxu0 0.0
    %2645 = vmatprep.subr.mxu0 0.0
    %2646 = vmatpush1.xpose.msra.mxu0 0.0
    %2647 = vmatprep.subr.mxu0 0.0
    %2648 = vmatpush1.xpose.msra.mxu0 0.0
    %2649 = vmatprep.subr.mxu0 0.0
    %2650 = vmatpush1.xpose.msra.mxu0 0.0
    %2651 = vmatprep.subr.mxu0 0.0
    %2652 = vmatpush1.xpose.msra.mxu0 0.0
    %2653 = vmatprep.mubr.f32.mxu0 0.0
    %2654 = vmatmul.mubr.f32.gmra.mrb[0].mxu0 %v2585
    %v2655 = vpop.f32.mrb[0].mxu0
    %v2656 = vadd.f32 0.0, %v2655
    %v2657 = vpop.f32.mrb[0].mxu0
    %2658 = vdwg.mxu0
    %v2659 = vsel %vm213, %v2266, -inf
    %2660 = vmax.xlane.f32.xlu0 %v2659
    %v2661 = vpop.xlane.xlu0 %2660
    %v2662 = vsel %vm213, %v2344, -inf
    %2663 = vmax.xlane.f32.xlu0 %v2662
    %v2664 = vpop.xlane.xlu0 %2663
    %v2665 = vsel %vm213, %v2422, -inf
    %2666 = vmax.xlane.f32.xlu0 %v2665
    %v2667 = vpop.xlane.xlu0 %2666
    %v2668 = vsel %vm213, %v2500, -inf
    %2669 = vmax.xlane.f32.xlu0 %v2668
    %v2670 = vpop.xlane.xlu0 %2669
    %v2671 = vsel %vm213, %v2578, -inf
    %2672 = vmax.xlane.f32.xlu0 %v2671
    %v2673 = vpop.xlane.xlu0 %2672
    %v2674 = vsel %vm213, %v2656, -inf
    %2675 = vmax.xlane.f32.xlu0 %v2674
    %v2676 = vpop.xlane.xlu0 %2675
    %v2677 = vsub.f32 %v2266, %v2661
    %v2678 = vsub.f32 %v2344, %v2664
    %v2679 = vsub.f32 %v2422, %v2667
    %v2680 = vsub.f32 %v2500, %v2670
    %v2681 = vsub.f32 %v2578, %v2673
    %v2682 = vsub.f32 %v2656, %v2676
    %v2683 = vmul.f32 %v2677, 1.442695
    %v2684 = vpow.pop %v2683
    %v2685 = vmul.f32 %v2678, 1.442695
    %v2686 = vpow.pop %v2685
    %v2687 = vmul.f32 %v2679, 1.442695
    %v2688 = vpow.pop %v2687
    %v2689 = vmul.f32 %v2680, 1.442695
    %v2690 = vpow.pop %v2689
    %v2691 = vmul.f32 %v2681, 1.442695
    %v2692 = vpow.pop %v2691
    %v2693 = vmul.f32 %v2682, 1.442695
    %v2694 = vpow.pop %v2693
    %v2695 = vsel %vm213, %v2684, 0.0
    %2696 = vadd.xlane.f32.xlu0 %v2695
    %v2697 = vpop.xlane.xlu0 %2696
    %v2698 = vsel %vm213, %v2686, 0.0
    %2699 = vadd.xlane.f32.xlu0 %v2698
    %v2700 = vpop.xlane.xlu0 %2699
    %v2701 = vsel %vm213, %v2688, 0.0
    %2702 = vadd.xlane.f32.xlu0 %v2701
    %v2703 = vpop.xlane.xlu0 %2702
    %v2704 = vsel %vm213, %v2690, 0.0
    %2705 = vadd.xlane.f32.xlu0 %v2704
    %v2706 = vpop.xlane.xlu0 %2705
    %v2707 = vsel %vm213, %v2692, 0.0
    %2708 = vadd.xlane.f32.xlu0 %v2707
    %v2709 = vpop.xlane.xlu0 %2708
    %v2710 = vsel %vm213, %v2694, 0.0
    %2711 = vadd.xlane.f32.xlu0 %v2710
    %v2712 = vpop.xlane.xlu0 %2711
    %v2713 = vrcp.pop %v2697
    %v2714 = vrcp.pop %v2700
    %v2715 = vrcp.pop %v2703
    %v2716 = vrcp.pop %v2706
    %v2717 = vrcp.pop %v2709
    %v2718 = vrcp.pop %v2712
    %v2719 = vmul.f32 %v2684, %v2713
    %v2720 = vmul.f32 %v2686, %v2714
    %v2721 = vmul.f32 %v2688, %v2715
    %v2722 = vmul.f32 %v2690, %v2716
    %v2723 = vmul.f32 %v2692, %v2717
    %v2724 = vmul.f32 %v2694, %v2718
    %2725 = vrot.lane.b32.xlu0 %v176, 48
    %v2726 = vpop.permute.xlu0 %2725
    %v2729 = vsel %vm213, %v2719, 0
    %2731 = vmatprep.subr.mxu0 0.0
    %2732 = vmatpush1.msra.mxu0 %v2726
    %2733 = vmatprep.subr.mxu0 0.0
    %2734 = vmatpush1.msra.mxu0 0.0
    %2735 = vmatprep.subr.mxu0 0.0
    %2736 = vmatpush1.msra.mxu0 0.0
    %2737 = vmatprep.subr.mxu0 0.0
    %2738 = vmatpush1.msra.mxu0 0.0
    %2739 = vmatprep.subr.mxu0 0.0
    %2740 = vmatpush1.msra.mxu0 0.0
    %2741 = vmatprep.subr.mxu0 0.0
    %2742 = vmatpush1.msra.mxu0 0.0
    %2743 = vmatprep.subr.mxu0 0.0
    %2744 = vmatpush1.msra.mxu0 0.0
    %2745 = vmatprep.subr.mxu0 0.0
    %2746 = vmatpush1.msra.mxu0 0.0
    %2747 = vmatprep.subr.mxu0 0.0
    %2748 = vmatpush1.msra.mxu0 0.0
    %2749 = vmatprep.subr.mxu0 0.0
    %2750 = vmatpush1.msra.mxu0 0.0
    %2751 = vmatprep.subr.mxu0 0.0
    %2752 = vmatpush1.msra.mxu0 0.0
    %2753 = vmatprep.subr.mxu0 0.0
    %2754 = vmatpush1.msra.mxu0 0.0
    %2755 = vmatprep.subr.mxu0 0.0
    %2756 = vmatpush1.msra.mxu0 0.0
    %2757 = vmatprep.subr.mxu0 0.0
    %2758 = vmatpush1.msra.mxu0 0.0
    %2759 = vmatprep.subr.mxu0 0.0
    %2760 = vmatpush1.msra.mxu0 0.0
    %2761 = vmatprep.subr.mxu0 0.0
    %2762 = vmatpush1.msra.mxu0 0.0
    %2763 = vmatprep.subr.mxu0 0.0
    %2764 = vmatpush1.msra.mxu0 0.0
    %2765 = vmatprep.subr.mxu0 0.0
    %2766 = vmatpush1.msra.mxu0 0.0
    %2767 = vmatprep.subr.mxu0 0.0
    %2768 = vmatpush1.msra.mxu0 0.0
    %2769 = vmatprep.subr.mxu0 0.0
    %2770 = vmatpush1.msra.mxu0 0.0
    %2771 = vmatprep.subr.mxu0 0.0
    %2772 = vmatpush1.msra.mxu0 0.0
    %2773 = vmatprep.subr.mxu0 0.0
    %2774 = vmatpush1.msra.mxu0 0.0
    %2775 = vmatprep.subr.mxu0 0.0
    %2776 = vmatpush1.msra.mxu0 0.0
    %2777 = vmatprep.subr.mxu0 0.0
    %2778 = vmatpush1.msra.mxu0 0.0
    %2779 = vmatprep.subr.mxu0 0.0
    %2780 = vmatpush1.msra.mxu0 0.0
    %2781 = vmatprep.subr.mxu0 0.0
    %2782 = vmatpush1.msra.mxu0 0.0
    %2783 = vmatprep.subr.mxu0 0.0
    %2784 = vmatpush1.msra.mxu0 0.0
    %2785 = vmatprep.subr.mxu0 0.0
    %2786 = vmatpush1.msra.mxu0 0.0
    %2787 = vmatprep.subr.mxu0 0.0
    %2788 = vmatpush1.msra.mxu0 0.0
    %2789 = vmatprep.subr.mxu0 0.0
    %2790 = vmatpush1.msra.mxu0 0.0
    %2791 = vmatprep.subr.mxu0 0.0
    %2792 = vmatpush1.msra.mxu0 0.0
    %2793 = vmatprep.subr.mxu0 0.0
    %2794 = vmatpush1.msra.mxu0 0.0
    %2795 = vmatprep.mubr.f32.mxu0 0.0
    %2796 = vmatmul.mubr.f32.gmra.mrb[0].mxu0 %v2729
    %v2797 = vpop.f32.mrb[0].mxu0
    %v2798 = vadd.f32 0.0, %v2797
    %v2799 = vpop.f32.mrb[0].mxu0
    %2800 = vdwg.mxu0
    %2801 = vrot.lane.b32.xlu0 %v181, 48
    %v2802 = vpop.permute.xlu0 %2801
    %v2805 = vsel %vm213, %v2720, 0
    %2807 = vmatprep.subr.mxu0 0.0
    %2808 = vmatpush1.msra.mxu0 %v2802
    %2809 = vmatprep.subr.mxu0 0.0
    %2810 = vmatpush1.msra.mxu0 0.0
    %2811 = vmatprep.subr.mxu0 0.0
    %2812 = vmatpush1.msra.mxu0 0.0
    %2813 = vmatprep.subr.mxu0 0.0
    %2814 = vmatpush1.msra.mxu0 0.0
    %2815 = vmatprep.subr.mxu0 0.0
    %2816 = vmatpush1.msra.mxu0 0.0
    %2817 = vmatprep.subr.mxu0 0.0
    %2818 = vmatpush1.msra.mxu0 0.0
    %2819 = vmatprep.subr.mxu0 0.0
    %2820 = vmatpush1.msra.mxu0 0.0
    %2821 = vmatprep.subr.mxu0 0.0
    %2822 = vmatpush1.msra.mxu0 0.0
    %2823 = vmatprep.subr.mxu0 0.0
    %2824 = vmatpush1.msra.mxu0 0.0
    %2825 = vmatprep.subr.mxu0 0.0
    %2826 = vmatpush1.msra.mxu0 0.0
    %2827 = vmatprep.subr.mxu0 0.0
    %2828 = vmatpush1.msra.mxu0 0.0
    %2829 = vmatprep.subr.mxu0 0.0
    %2830 = vmatpush1.msra.mxu0 0.0
    %2831 = vmatprep.subr.mxu0 0.0
    %2832 = vmatpush1.msra.mxu0 0.0
    %2833 = vmatprep.subr.mxu0 0.0
    %2834 = vmatpush1.msra.mxu0 0.0
    %2835 = vmatprep.subr.mxu0 0.0
    %2836 = vmatpush1.msra.mxu0 0.0
    %2837 = vmatprep.subr.mxu0 0.0
    %2838 = vmatpush1.msra.mxu0 0.0
    %2839 = vmatprep.subr.mxu0 0.0
    %2840 = vmatpush1.msra.mxu0 0.0
    %2841 = vmatprep.subr.mxu0 0.0
    %2842 = vmatpush1.msra.mxu0 0.0
    %2843 = vmatprep.subr.mxu0 0.0
    %2844 = vmatpush1.msra.mxu0 0.0
    %2845 = vmatprep.subr.mxu0 0.0
    %2846 = vmatpush1.msra.mxu0 0.0
    %2847 = vmatprep.subr.mxu0 0.0
    %2848 = vmatpush1.msra.mxu0 0.0
    %2849 = vmatprep.subr.mxu0 0.0
    %2850 = vmatpush1.msra.mxu0 0.0
    %2851 = vmatprep.subr.mxu0 0.0
    %2852 = vmatpush1.msra.mxu0 0.0
    %2853 = vmatprep.subr.mxu0 0.0
    %2854 = vmatpush1.msra.mxu0 0.0
    %2855 = vmatprep.subr.mxu0 0.0
    %2856 = vmatpush1.msra.mxu0 0.0
    %2857 = vmatprep.subr.mxu0 0.0
    %2858 = vmatpush1.msra.mxu0 0.0
    %2859 = vmatprep.subr.mxu0 0.0
    %2860 = vmatpush1.msra.mxu0 0.0
    %2861 = vmatprep.subr.mxu0 0.0
    %2862 = vmatpush1.msra.mxu0 0.0
    %2863 = vmatprep.subr.mxu0 0.0
    %2864 = vmatpush1.msra.mxu0 0.0
    %2865 = vmatprep.subr.mxu0 0.0
    %2866 = vmatpush1.msra.mxu0 0.0
    %2867 = vmatprep.subr.mxu0 0.0
    %2868 = vmatpush1.msra.mxu0 0.0
    %2869 = vmatprep.subr.mxu0 0.0
    %2870 = vmatpush1.msra.mxu0 0.0
    %2871 = vmatprep.mubr.f32.mxu0 0.0
    %2872 = vmatmul.mubr.f32.gmra.mrb[0].mxu0 %v2805
    %v2873 = vpop.f32.mrb[0].mxu0
    %v2874 = vadd.f32 0.0, %v2873
    %v2875 = vpop.f32.mrb[0].mxu0
    %2876 = vdwg.mxu0
    %2877 = vrot.lane.b32.xlu0 %v186, 48
    %v2878 = vpop.permute.xlu0 %2877
    %v2881 = vsel %vm213, %v2721, 0
    %2883 = vmatprep.subr.mxu0 0.0
    %2884 = vmatpush1.msra.mxu0 %v2878
    %2885 = vmatprep.subr.mxu0 0.0
    %2886 = vmatpush1.msra.mxu0 0.0
    %2887 = vmatprep.subr.mxu0 0.0
    %2888 = vmatpush1.msra.mxu0 0.0
    %2889 = vmatprep.subr.mxu0 0.0
    %2890 = vmatpush1.msra.mxu0 0.0
    %2891 = vmatprep.subr.mxu0 0.0
    %2892 = vmatpush1.msra.mxu0 0.0
    %2893 = vmatprep.subr.mxu0 0.0
    %2894 = vmatpush1.msra.mxu0 0.0
    %2895 = vmatprep.subr.mxu0 0.0
    %2896 = vmatpush1.msra.mxu0 0.0
    %2897 = vmatprep.subr.mxu0 0.0
    %2898 = vmatpush1.msra.mxu0 0.0
    %2899 = vmatprep.subr.mxu0 0.0
    %2900 = vmatpush1.msra.mxu0 0.0
    %2901 = vmatprep.subr.mxu0 0.0
    %2902 = vmatpush1.msra.mxu0 0.0
    %2903 = vmatprep.subr.mxu0 0.0
    %2904 = vmatpush1.msra.mxu0 0.0
    %2905 = vmatprep.subr.mxu0 0.0
    %2906 = vmatpush1.msra.mxu0 0.0
    %2907 = vmatprep.subr.mxu0 0.0
    %2908 = vmatpush1.msra.mxu0 0.0
    %2909 = vmatprep.subr.mxu0 0.0
    %2910 = vmatpush1.msra.mxu0 0.0
    %2911 = vmatprep.subr.mxu0 0.0
    %2912 = vmatpush1.msra.mxu0 0.0
    %2913 = vmatprep.subr.mxu0 0.0
    %2914 = vmatpush1.msra.mxu0 0.0
    %2915 = vmatprep.subr.mxu0 0.0
    %2916 = vmatpush1.msra.mxu0 0.0
    %2917 = vmatprep.subr.mxu0 0.0
    %2918 = vmatpush1.msra.mxu0 0.0
    %2919 = vmatprep.subr.mxu0 0.0
    %2920 = vmatpush1.msra.mxu0 0.0
    %2921 = vmatprep.subr.mxu0 0.0
    %2922 = vmatpush1.msra.mxu0 0.0
    %2923 = vmatprep.subr.mxu0 0.0
    %2924 = vmatpush1.msra.mxu0 0.0
    %2925 = vmatprep.subr.mxu0 0.0
    %2926 = vmatpush1.msra.mxu0 0.0
    %2927 = vmatprep.subr.mxu0 0.0
    %2928 = vmatpush1.msra.mxu0 0.0
    %2929 = vmatprep.subr.mxu0 0.0
    %2930 = vmatpush1.msra.mxu0 0.0
    %2931 = vmatprep.subr.mxu0 0.0
    %2932 = vmatpush1.msra.mxu0 0.0
    %2933 = vmatprep.subr.mxu0 0.0
    %2934 = vmatpush1.msra.mxu0 0.0
    %2935 = vmatprep.subr.mxu0 0.0
    %2936 = vmatpush1.msra.mxu0 0.0
    %2937 = vmatprep.subr.mxu0 0.0
    %2938 = vmatpush1.msra.mxu0 0.0
    %2939 = vmatprep.subr.mxu0 0.0
    %2940 = vmatpush1.msra.mxu0 0.0
    %2941 = vmatprep.subr.mxu0 0.0
    %2942 = vmatpush1.msra.mxu0 0.0
    %2943 = vmatprep.subr.mxu0 0.0
    %2944 = vmatpush1.msra.mxu0 0.0
    %2945 = vmatprep.subr.mxu0 0.0
    %2946 = vmatpush1.msra.mxu0 0.0
    %2947 = vmatprep.mubr.f32.mxu0 0.0
    %2948 = vmatmul.mubr.f32.gmra.mrb[0].mxu0 %v2881
    %v2949 = vpop.f32.mrb[0].mxu0
    %v2950 = vadd.f32 0.0, %v2949
    %v2951 = vpop.f32.mrb[0].mxu0
    %2952 = vdwg.mxu0
    %2953 = vrot.lane.b32.xlu0 %v191, 48
    %v2954 = vpop.permute.xlu0 %2953
    %v2957 = vsel %vm213, %v2722, 0
    %2959 = vmatprep.subr.mxu0 0.0
    %2960 = vmatpush1.msra.mxu0 %v2954
    %2961 = vmatprep.subr.mxu0 0.0
    %2962 = vmatpush1.msra.mxu0 0.0
    %2963 = vmatprep.subr.mxu0 0.0
    %2964 = vmatpush1.msra.mxu0 0.0
    %2965 = vmatprep.subr.mxu0 0.0
    %2966 = vmatpush1.msra.mxu0 0.0
    %2967 = vmatprep.subr.mxu0 0.0
    %2968 = vmatpush1.msra.mxu0 0.0
    %2969 = vmatprep.subr.mxu0 0.0
    %2970 = vmatpush1.msra.mxu0 0.0
    %2971 = vmatprep.subr.mxu0 0.0
    %2972 = vmatpush1.msra.mxu0 0.0
    %2973 = vmatprep.subr.mxu0 0.0
    %2974 = vmatpush1.msra.mxu0 0.0
    %2975 = vmatprep.subr.mxu0 0.0
    %2976 = vmatpush1.msra.mxu0 0.0
    %2977 = vmatprep.subr.mxu0 0.0
    %2978 = vmatpush1.msra.mxu0 0.0
    %2979 = vmatprep.subr.mxu0 0.0
    %2980 = vmatpush1.msra.mxu0 0.0
    %2981 = vmatprep.subr.mxu0 0.0
    %2982 = vmatpush1.msra.mxu0 0.0
    %2983 = vmatprep.subr.mxu0 0.0
    %2984 = vmatpush1.msra.mxu0 0.0
    %2985 = vmatprep.subr.mxu0 0.0
    %2986 = vmatpush1.msra.mxu0 0.0
    %2987 = vmatprep.subr.mxu0 0.0
    %2988 = vmatpush1.msra.mxu0 0.0
    %2989 = vmatprep.subr.mxu0 0.0
    %2990 = vmatpush1.msra.mxu0 0.0
    %2991 = vmatprep.subr.mxu0 0.0
    %2992 = vmatpush1.msra.mxu0 0.0
    %2993 = vmatprep.subr.mxu0 0.0
    %2994 = vmatpush1.msra.mxu0 0.0
    %2995 = vmatprep.subr.mxu0 0.0
    %2996 = vmatpush1.msra.mxu0 0.0
    %2997 = vmatprep.subr.mxu0 0.0
    %2998 = vmatpush1.msra.mxu0 0.0
    %2999 = vmatprep.subr.mxu0 0.0
    %3000 = vmatpush1.msra.mxu0 0.0
    %3001 = vmatprep.subr.mxu0 0.0
    %3002 = vmatpush1.msra.mxu0 0.0
    %3003 = vmatprep.subr.mxu0 0.0
    %3004 = vmatpush1.msra.mxu0 0.0
    %3005 = vmatprep.subr.mxu0 0.0
    %3006 = vmatpush1.msra.mxu0 0.0
    %3007 = vmatprep.subr.mxu0 0.0
    %3008 = vmatpush1.msra.mxu0 0.0
    %3009 = vmatprep.subr.mxu0 0.0
    %3010 = vmatpush1.msra.mxu0 0.0
    %3011 = vmatprep.subr.mxu0 0.0
    %3012 = vmatpush1.msra.mxu0 0.0
    %3013 = vmatprep.subr.mxu0 0.0
    %3014 = vmatpush1.msra.mxu0 0.0
    %3015 = vmatprep.subr.mxu0 0.0
    %3016 = vmatpush1.msra.mxu0 0.0
    %3017 = vmatprep.subr.mxu0 0.0
    %3018 = vmatpush1.msra.mxu0 0.0
    %3019 = vmatprep.subr.mxu0 0.0
    %3020 = vmatpush1.msra.mxu0 0.0
    %3021 = vmatprep.subr.mxu0 0.0
    %3022 = vmatpush1.msra.mxu0 0.0
    %3023 = vmatprep.mubr.f32.mxu0 0.0
    %3024 = vmatmul.mubr.f32.gmra.mrb[0].mxu0 %v2957
    %v3025 = vpop.f32.mrb[0].mxu0
    %v3026 = vadd.f32 0.0, %v3025
    %v3027 = vpop.f32.mrb[0].mxu0
    %3028 = vdwg.mxu0
    %3029 = vrot.lane.b32.xlu0 %v196, 48
    %v3030 = vpop.permute.xlu0 %3029
    %v3033 = vsel %vm213, %v2723, 0
    %3035 = vmatprep.subr.mxu0 0.0
    %3036 = vmatpush1.msra.mxu0 %v3030
    %3037 = vmatprep.subr.mxu0 0.0
    %3038 = vmatpush1.msra.mxu0 0.0
    %3039 = vmatprep.subr.mxu0 0.0
    %3040 = vmatpush1.msra.mxu0 0.0
    %3041 = vmatprep.subr.mxu0 0.0
    %3042 = vmatpush1.msra.mxu0 0.0
    %3043 = vmatprep.subr.mxu0 0.0
    %3044 = vmatpush1.msra.mxu0 0.0
    %3045 = vmatprep.subr.mxu0 0.0
    %3046 = vmatpush1.msra.mxu0 0.0
    %3047 = vmatprep.subr.mxu0 0.0
    %3048 = vmatpush1.msra.mxu0 0.0
    %3049 = vmatprep.subr.mxu0 0.0
    %3050 = vmatpush1.msra.mxu0 0.0
    %3051 = vmatprep.subr.mxu0 0.0
    %3052 = vmatpush1.msra.mxu0 0.0
    %3053 = vmatprep.subr.mxu0 0.0
    %3054 = vmatpush1.msra.mxu0 0.0
    %3055 = vmatprep.subr.mxu0 0.0
    %3056 = vmatpush1.msra.mxu0 0.0
    %3057 = vmatprep.subr.mxu0 0.0
    %3058 = vmatpush1.msra.mxu0 0.0
    %3059 = vmatprep.subr.mxu0 0.0
    %3060 = vmatpush1.msra.mxu0 0.0
    %3061 = vmatprep.subr.mxu0 0.0
    %3062 = vmatpush1.msra.mxu0 0.0
    %3063 = vmatprep.subr.mxu0 0.0
    %3064 = vmatpush1.msra.mxu0 0.0
    %3065 = vmatprep.subr.mxu0 0.0
    %3066 = vmatpush1.msra.mxu0 0.0
    %3067 = vmatprep.subr.mxu0 0.0
    %3068 = vmatpush1.msra.mxu0 0.0
    %3069 = vmatprep.subr.mxu0 0.0
    %3070 = vmatpush1.msra.mxu0 0.0
    %3071 = vmatprep.subr.mxu0 0.0
    %3072 = vmatpush1.msra.mxu0 0.0
    %3073 = vmatprep.subr.mxu0 0.0
    %3074 = vmatpush1.msra.mxu0 0.0
    %3075 = vmatprep.subr.mxu0 0.0
    %3076 = vmatpush1.msra.mxu0 0.0
    %3077 = vmatprep.subr.mxu0 0.0
    %3078 = vmatpush1.msra.mxu0 0.0
    %3079 = vmatprep.subr.mxu0 0.0
    %3080 = vmatpush1.msra.mxu0 0.0
    %3081 = vmatprep.subr.mxu0 0.0
    %3082 = vmatpush1.msra.mxu0 0.0
    %3083 = vmatprep.subr.mxu0 0.0
    %3084 = vmatpush1.msra.mxu0 0.0
    %3085 = vmatprep.subr.mxu0 0.0
    %3086 = vmatpush1.msra.mxu0 0.0
    %3087 = vmatprep.subr.mxu0 0.0
    %3088 = vmatpush1.msra.mxu0 0.0
    %3089 = vmatprep.subr.mxu0 0.0
    %3090 = vmatpush1.msra.mxu0 0.0
    %3091 = vmatprep.subr.mxu0 0.0
    %3092 = vmatpush1.msra.mxu0 0.0
    %3093 = vmatprep.subr.mxu0 0.0
    %3094 = vmatpush1.msra.mxu0 0.0
    %3095 = vmatprep.subr.mxu0 0.0
    %3096 = vmatpush1.msra.mxu0 0.0
    %3097 = vmatprep.subr.mxu0 0.0
    %3098 = vmatpush1.msra.mxu0 0.0
    %3099 = vmatprep.mubr.f32.mxu0 0.0
    %3100 = vmatmul.mubr.f32.gmra.mrb[0].mxu0 %v3033
    %v3101 = vpop.f32.mrb[0].mxu0
    %v3102 = vadd.f32 0.0, %v3101
    %v3103 = vpop.f32.mrb[0].mxu0
    %3104 = vdwg.mxu0
    %3105 = vrot.lane.b32.xlu0 %v201, 48
    %v3106 = vpop.permute.xlu0 %3105
    %v3109 = vsel %vm213, %v2724, 0
    %3111 = vmatprep.subr.mxu0 0.0
    %3112 = vmatpush1.msra.mxu0 %v3106
    %3113 = vmatprep.subr.mxu0 0.0
    %3114 = vmatpush1.msra.mxu0 0.0
    %3115 = vmatprep.subr.mxu0 0.0
    %3116 = vmatpush1.msra.mxu0 0.0
    %3117 = vmatprep.subr.mxu0 0.0
    %3118 = vmatpush1.msra.mxu0 0.0
    %3119 = vmatprep.subr.mxu0 0.0
    %3120 = vmatpush1.msra.mxu0 0.0
    %3121 = vmatprep.subr.mxu0 0.0
    %3122 = vmatpush1.msra.mxu0 0.0
    %3123 = vmatprep.subr.mxu0 0.0
    %3124 = vmatpush1.msra.mxu0 0.0
    %3125 = vmatprep.subr.mxu0 0.0
    %3126 = vmatpush1.msra.mxu0 0.0
    %3127 = vmatprep.subr.mxu0 0.0
    %3128 = vmatpush1.msra.mxu0 0.0
    %3129 = vmatprep.subr.mxu0 0.0
    %3130 = vmatpush1.msra.mxu0 0.0
    %3131 = vmatprep.subr.mxu0 0.0
    %3132 = vmatpush1.msra.mxu0 0.0
    %3133 = vmatprep.subr.mxu0 0.0
    %3134 = vmatpush1.msra.mxu0 0.0
    %3135 = vmatprep.subr.mxu0 0.0
    %3136 = vmatpush1.msra.mxu0 0.0
    %3137 = vmatprep.subr.mxu0 0.0
    %3138 = vmatpush1.msra.mxu0 0.0
    %3139 = vmatprep.subr.mxu0 0.0
    %3140 = vmatpush1.msra.mxu0 0.0
    %3141 = vmatprep.subr.mxu0 0.0
    %3142 = vmatpush1.msra.mxu0 0.0
    %3143 = vmatprep.subr.mxu0 0.0
    %3144 = vmatpush1.msra.mxu0 0.0
    %3145 = vmatprep.subr.mxu0 0.0
    %3146 = vmatpush1.msra.mxu0 0.0
    %3147 = vmatprep.subr.mxu0 0.0
    %3148 = vmatpush1.msra.mxu0 0.0
    %3149 = vmatprep.subr.mxu0 0.0
    %3150 = vmatpush1.msra.mxu0 0.0
    %3151 = vmatprep.subr.mxu0 0.0
    %3152 = vmatpush1.msra.mxu0 0.0
    %3153 = vmatprep.subr.mxu0 0.0
    %3154 = vmatpush1.msra.mxu0 0.0
    %3155 = vmatprep.subr.mxu0 0.0
    %3156 = vmatpush1.msra.mxu0 0.0
    %3157 = vmatprep.subr.mxu0 0.0
    %3158 = vmatpush1.msra.mxu0 0.0
    %3159 = vmatprep.subr.mxu0 0.0
    %3160 = vmatpush1.msra.mxu0 0.0
    %3161 = vmatprep.subr.mxu0 0.0
    %3162 = vmatpush1.msra.mxu0 0.0
    %3163 = vmatprep.subr.mxu0 0.0
    %3164 = vmatpush1.msra.mxu0 0.0
    %3165 = vmatprep.subr.mxu0 0.0
    %3166 = vmatpush1.msra.mxu0 0.0
    %3167 = vmatprep.subr.mxu0 0.0
    %3168 = vmatpush1.msra.mxu0 0.0
    %3169 = vmatprep.subr.mxu0 0.0
    %3170 = vmatpush1.msra.mxu0 0.0
    %3171 = vmatprep.subr.mxu0 0.0
    %3172 = vmatpush1.msra.mxu0 0.0
    %3173 = vmatprep.subr.mxu0 0.0
    %3174 = vmatpush1.msra.mxu0 0.0
    %3175 = vmatprep.mubr.f32.mxu0 0.0
    %3176 = vmatmul.mubr.f32.gmra.mrb[0].mxu0 %v3109
    %v3177 = vpop.f32.mrb[0].mxu0
    %v3178 = vadd.f32 0.0, %v3177
    %v3179 = vpop.f32.mrb[0].mxu0
    %3180 = vdwg.mxu0
    %3181 = vrot.lane.b32.xlu0 %v204, 104
    %v3182 = vpop.permute.xlu0 %3181
    %3183 = vrot.lane.b32.xlu0 %v176, 72
    %v3184 = vpop.permute.xlu0 %3183
    %v3185 = vsel %vm213, %v3182, 0
    %v3187 = vsel %vm213, %v3184, 0
    %3189 = vmatprep.subr.mxu0 0.0
    %3190 = vmatpush1.xpose.msra.mxu0 %v3187
    %3191 = vmatprep.subr.mxu0 0.0
    %3192 = vmatpush1.xpose.msra.mxu0 0.0
    %3193 = vmatprep.subr.mxu0 0.0
    %3194 = vmatpush1.xpose.msra.mxu0 0.0
    %3195 = vmatprep.subr.mxu0 0.0
    %3196 = vmatpush1.xpose.msra.mxu0 0.0
    %3197 = vmatprep.subr.mxu0 0.0
    %3198 = vmatpush1.xpose.msra.mxu0 0.0
    %3199 = vmatprep.subr.mxu0 0.0
    %3200 = vmatpush1.xpose.msra.mxu0 0.0
    %3201 = vmatprep.subr.mxu0 0.0
    %3202 = vmatpush1.xpose.msra.mxu0 0.0
    %3203 = vmatprep.subr.mxu0 0.0
    %3204 = vmatpush1.xpose.msra.mxu0 0.0
    %3205 = vmatprep.subr.mxu0 0.0
    %3206 = vmatpush1.xpose.msra.mxu0 0.0
    %3207 = vmatprep.subr.mxu0 0.0
    %3208 = vmatpush1.xpose.msra.mxu0 0.0
    %3209 = vmatprep.subr.mxu0 0.0
    %3210 = vmatpush1.xpose.msra.mxu0 0.0
    %3211 = vmatprep.subr.mxu0 0.0
    %3212 = vmatpush1.xpose.msra.mxu0 0.0
    %3213 = vmatprep.subr.mxu0 0.0
    %3214 = vmatpush1.xpose.msra.mxu0 0.0
    %3215 = vmatprep.subr.mxu0 0.0
    %3216 = vmatpush1.xpose.msra.mxu0 0.0
    %3217 = vmatprep.subr.mxu0 0.0
    %3218 = vmatpush1.xpose.msra.mxu0 0.0
    %3219 = vmatprep.subr.mxu0 0.0
    %3220 = vmatpush1.xpose.msra.mxu0 0.0
    %3221 = vmatprep.subr.mxu0 0.0
    %3222 = vmatpush1.xpose.msra.mxu0 0.0
    %3223 = vmatprep.subr.mxu0 0.0
    %3224 = vmatpush1.xpose.msra.mxu0 0.0
    %3225 = vmatprep.subr.mxu0 0.0
    %3226 = vmatpush1.xpose.msra.mxu0 0.0
    %3227 = vmatprep.subr.mxu0 0.0
    %3228 = vmatpush1.xpose.msra.mxu0 0.0
    %3229 = vmatprep.subr.mxu0 0.0
    %3230 = vmatpush1.xpose.msra.mxu0 0.0
    %3231 = vmatprep.subr.mxu0 0.0
    %3232 = vmatpush1.xpose.msra.mxu0 0.0
    %3233 = vmatprep.subr.mxu0 0.0
    %3234 = vmatpush1.xpose.msra.mxu0 0.0
    %3235 = vmatprep.subr.mxu0 0.0
    %3236 = vmatpush1.xpose.msra.mxu0 0.0
    %3237 = vmatprep.subr.mxu0 0.0
    %3238 = vmatpush1.xpose.msra.mxu0 0.0
    %3239 = vmatprep.subr.mxu0 0.0
    %3240 = vmatpush1.xpose.msra.mxu0 0.0
    %3241 = vmatprep.subr.mxu0 0.0
    %3242 = vmatpush1.xpose.msra.mxu0 0.0
    %3243 = vmatprep.subr.mxu0 0.0
    %3244 = vmatpush1.xpose.msra.mxu0 0.0
    %3245 = vmatprep.subr.mxu0 0.0
    %3246 = vmatpush1.xpose.msra.mxu0 0.0
    %3247 = vmatprep.subr.mxu0 0.0
    %3248 = vmatpush1.xpose.msra.mxu0 0.0
    %3249 = vmatprep.subr.mxu0 0.0
    %3250 = vmatpush1.xpose.msra.mxu0 0.0
    %3251 = vmatprep.subr.mxu0 0.0
    %3252 = vmatpush1.xpose.msra.mxu0 0.0
    %3253 = vmatprep.mubr.f32.mxu0 0.0
    %3254 = vmatmul.mubr.f32.gmra.mrb[0].mxu0 %v3185
    %v3255 = vpop.f32.mrb[0].mxu0
    %v3256 = vadd.f32 0.0, %v3255
    %v3257 = vpop.f32.mrb[0].mxu0
    %3258 = vdwg.mxu0
    %3259 = vrot.lane.b32.xlu0 %v205, 104
    %v3260 = vpop.permute.xlu0 %3259
    %3261 = vrot.lane.b32.xlu0 %v181, 72
    %v3262 = vpop.permute.xlu0 %3261
    %v3263 = vsel %vm213, %v3260, 0
    %v3265 = vsel %vm213, %v3262, 0
    %3267 = vmatprep.subr.mxu0 0.0
    %3268 = vmatpush1.xpose.msra.mxu0 %v3265
    %3269 = vmatprep.subr.mxu0 0.0
    %3270 = vmatpush1.xpose.msra.mxu0 0.0
    %3271 = vmatprep.subr.mxu0 0.0
    %3272 = vmatpush1.xpose.msra.mxu0 0.0
    %3273 = vmatprep.subr.mxu0 0.0
    %3274 = vmatpush1.xpose.msra.mxu0 0.0
    %3275 = vmatprep.subr.mxu0 0.0
    %3276 = vmatpush1.xpose.msra.mxu0 0.0
    %3277 = vmatprep.subr.mxu0 0.0
    %3278 = vmatpush1.xpose.msra.mxu0 0.0
    %3279 = vmatprep.subr.mxu0 0.0
    %3280 = vmatpush1.xpose.msra.mxu0 0.0
    %3281 = vmatprep.subr.mxu0 0.0
    %3282 = vmatpush1.xpose.msra.mxu0 0.0
    %3283 = vmatprep.subr.mxu0 0.0
    %3284 = vmatpush1.xpose.msra.mxu0 0.0
    %3285 = vmatprep.subr.mxu0 0.0
    %3286 = vmatpush1.xpose.msra.mxu0 0.0
    %3287 = vmatprep.subr.mxu0 0.0
    %3288 = vmatpush1.xpose.msra.mxu0 0.0
    %3289 = vmatprep.subr.mxu0 0.0
    %3290 = vmatpush1.xpose.msra.mxu0 0.0
    %3291 = vmatprep.subr.mxu0 0.0
    %3292 = vmatpush1.xpose.msra.mxu0 0.0
    %3293 = vmatprep.subr.mxu0 0.0
    %3294 = vmatpush1.xpose.msra.mxu0 0.0
    %3295 = vmatprep.subr.mxu0 0.0
    %3296 = vmatpush1.xpose.msra.mxu0 0.0
    %3297 = vmatprep.subr.mxu0 0.0
    %3298 = vmatpush1.xpose.msra.mxu0 0.0
    %3299 = vmatprep.subr.mxu0 0.0
    %3300 = vmatpush1.xpose.msra.mxu0 0.0
    %3301 = vmatprep.subr.mxu0 0.0
    %3302 = vmatpush1.xpose.msra.mxu0 0.0
    %3303 = vmatprep.subr.mxu0 0.0
    %3304 = vmatpush1.xpose.msra.mxu0 0.0
    %3305 = vmatprep.subr.mxu0 0.0
    %3306 = vmatpush1.xpose.msra.mxu0 0.0
    %3307 = vmatprep.subr.mxu0 0.0
    %3308 = vmatpush1.xpose.msra.mxu0 0.0
    %3309 = vmatprep.subr.mxu0 0.0
    %3310 = vmatpush1.xpose.msra.mxu0 0.0
    %3311 = vmatprep.subr.mxu0 0.0
    %3312 = vmatpush1.xpose.msra.mxu0 0.0
    %3313 = vmatprep.subr.mxu0 0.0
    %3314 = vmatpush1.xpose.msra.mxu0 0.0
    %3315 = vmatprep.subr.mxu0 0.0
    %3316 = vmatpush1.xpose.msra.mxu0 0.0
    %3317 = vmatprep.subr.mxu0 0.0
    %3318 = vmatpush1.xpose.msra.mxu0 0.0
    %3319 = vmatprep.subr.mxu0 0.0
    %3320 = vmatpush1.xpose.msra.mxu0 0.0
    %3321 = vmatprep.subr.mxu0 0.0
    %3322 = vmatpush1.xpose.msra.mxu0 0.0
    %3323 = vmatprep.subr.mxu0 0.0
    %3324 = vmatpush1.xpose.msra.mxu0 0.0
    %3325 = vmatprep.subr.mxu0 0.0
    %3326 = vmatpush1.xpose.msra.mxu0 0.0
    %3327 = vmatprep.subr.mxu0 0.0
    %3328 = vmatpush1.xpose.msra.mxu0 0.0
    %3329 = vmatprep.subr.mxu0 0.0
    %3330 = vmatpush1.xpose.msra.mxu0 0.0
    %3331 = vmatprep.mubr.f32.mxu0 0.0
    %3332 = vmatmul.mubr.f32.gmra.mrb[0].mxu0 %v3263
    %v3333 = vpop.f32.mrb[0].mxu0
    %v3334 = vadd.f32 0.0, %v3333
    %v3335 = vpop.f32.mrb[0].mxu0
    %3336 = vdwg.mxu0
    %3337 = vrot.lane.b32.xlu0 %v206, 104
    %v3338 = vpop.permute.xlu0 %3337
    %3339 = vrot.lane.b32.xlu0 %v186, 72
    %v3340 = vpop.permute.xlu0 %3339
    %v3341 = vsel %vm213, %v3338, 0
    %v3343 = vsel %vm213, %v3340, 0
    %3345 = vmatprep.subr.mxu0 0.0
    %3346 = vmatpush1.xpose.msra.mxu0 %v3343
    %3347 = vmatprep.subr.mxu0 0.0
    %3348 = vmatpush1.xpose.msra.mxu0 0.0
    %3349 = vmatprep.subr.mxu0 0.0
    %3350 = vmatpush1.xpose.msra.mxu0 0.0
    %3351 = vmatprep.subr.mxu0 0.0
    %3352 = vmatpush1.xpose.msra.mxu0 0.0
    %3353 = vmatprep.subr.mxu0 0.0
    %3354 = vmatpush1.xpose.msra.mxu0 0.0
    %3355 = vmatprep.subr.mxu0 0.0
    %3356 = vmatpush1.xpose.msra.mxu0 0.0
    %3357 = vmatprep.subr.mxu0 0.0
    %3358 = vmatpush1.xpose.msra.mxu0 0.0
    %3359 = vmatprep.subr.mxu0 0.0
    %3360 = vmatpush1.xpose.msra.mxu0 0.0
    %3361 = vmatprep.subr.mxu0 0.0
    %3362 = vmatpush1.xpose.msra.mxu0 0.0
    %3363 = vmatprep.subr.mxu0 0.0
    %3364 = vmatpush1.xpose.msra.mxu0 0.0
    %3365 = vmatprep.subr.mxu0 0.0
    %3366 = vmatpush1.xpose.msra.mxu0 0.0
    %3367 = vmatprep.subr.mxu0 0.0
    %3368 = vmatpush1.xpose.msra.mxu0 0.0
    %3369 = vmatprep.subr.mxu0 0.0
    %3370 = vmatpush1.xpose.msra.mxu0 0.0
    %3371 = vmatprep.subr.mxu0 0.0
    %3372 = vmatpush1.xpose.msra.mxu0 0.0
    %3373 = vmatprep.subr.mxu0 0.0
    %3374 = vmatpush1.xpose.msra.mxu0 0.0
    %3375 = vmatprep.subr.mxu0 0.0
    %3376 = vmatpush1.xpose.msra.mxu0 0.0
    %3377 = vmatprep.subr.mxu0 0.0
    %3378 = vmatpush1.xpose.msra.mxu0 0.0
    %3379 = vmatprep.subr.mxu0 0.0
    %3380 = vmatpush1.xpose.msra.mxu0 0.0
    %3381 = vmatprep.subr.mxu0 0.0
    %3382 = vmatpush1.xpose.msra.mxu0 0.0
    %3383 = vmatprep.subr.mxu0 0.0
    %3384 = vmatpush1.xpose.msra.mxu0 0.0
    %3385 = vmatprep.subr.mxu0 0.0
    %3386 = vmatpush1.xpose.msra.mxu0 0.0
    %3387 = vmatprep.subr.mxu0 0.0
    %3388 = vmatpush1.xpose.msra.mxu0 0.0
    %3389 = vmatprep.subr.mxu0 0.0
    %3390 = vmatpush1.xpose.msra.mxu0 0.0
    %3391 = vmatprep.subr.mxu0 0.0
    %3392 = vmatpush1.xpose.msra.mxu0 0.0
    %3393 = vmatprep.subr.mxu0 0.0
    %3394 = vmatpush1.xpose.msra.mxu0 0.0
    %3395 = vmatprep.subr.mxu0 0.0
    %3396 = vmatpush1.xpose.msra.mxu0 0.0
    %3397 = vmatprep.subr.mxu0 0.0
    %3398 = vmatpush1.xpose.msra.mxu0 0.0
    %3399 = vmatprep.subr.mxu0 0.0
    %3400 = vmatpush1.xpose.msra.mxu0 0.0
    %3401 = vmatprep.subr.mxu0 0.0
    %3402 = vmatpush1.xpose.msra.mxu0 0.0
    %3403 = vmatprep.subr.mxu0 0.0
    %3404 = vmatpush1.xpose.msra.mxu0 0.0
    %3405 = vmatprep.subr.mxu0 0.0
    %3406 = vmatpush1.xpose.msra.mxu0 0.0
    %3407 = vmatprep.subr.mxu0 0.0
    %3408 = vmatpush1.xpose.msra.mxu0 0.0
    %3409 = vmatprep.mubr.f32.mxu0 0.0
    %3410 = vmatmul.mubr.f32.gmra.mrb[0].mxu0 %v3341
    %v3411 = vpop.f32.mrb[0].mxu0
    %v3412 = vadd.f32 0.0, %v3411
    %v3413 = vpop.f32.mrb[0].mxu0
    %3414 = vdwg.mxu0
    %3415 = vrot.lane.b32.xlu0 %v207, 104
    %v3416 = vpop.permute.xlu0 %3415
    %3417 = vrot.lane.b32.xlu0 %v191, 72
    %v3418 = vpop.permute.xlu0 %3417
    %v3419 = vsel %vm213, %v3416, 0
    %v3421 = vsel %vm213, %v3418, 0
    %3423 = vmatprep.subr.mxu0 0.0
    %3424 = vmatpush1.xpose.msra.mxu0 %v3421
    %3425 = vmatprep.subr.mxu0 0.0
    %3426 = vmatpush1.xpose.msra.mxu0 0.0
    %3427 = vmatprep.subr.mxu0 0.0
    %3428 = vmatpush1.xpose.msra.mxu0 0.0
    %3429 = vmatprep.subr.mxu0 0.0
    %3430 = vmatpush1.xpose.msra.mxu0 0.0
    %3431 = vmatprep.subr.mxu0 0.0
    %3432 = vmatpush1.xpose.msra.mxu0 0.0
    %3433 = vmatprep.subr.mxu0 0.0
    %3434 = vmatpush1.xpose.msra.mxu0 0.0
    %3435 = vmatprep.subr.mxu0 0.0
    %3436 = vmatpush1.xpose.msra.mxu0 0.0
    %3437 = vmatprep.subr.mxu0 0.0
    %3438 = vmatpush1.xpose.msra.mxu0 0.0
    %3439 = vmatprep.subr.mxu0 0.0
    %3440 = vmatpush1.xpose.msra.mxu0 0.0
    %3441 = vmatprep.subr.mxu0 0.0
    %3442 = vmatpush1.xpose.msra.mxu0 0.0
    %3443 = vmatprep.subr.mxu0 0.0
    %3444 = vmatpush1.xpose.msra.mxu0 0.0
    %3445 = vmatprep.subr.mxu0 0.0
    %3446 = vmatpush1.xpose.msra.mxu0 0.0
    %3447 = vmatprep.subr.mxu0 0.0
    %3448 = vmatpush1.xpose.msra.mxu0 0.0
    %3449 = vmatprep.subr.mxu0 0.0
    %3450 = vmatpush1.xpose.msra.mxu0 0.0
    %3451 = vmatprep.subr.mxu0 0.0
    %3452 = vmatpush1.xpose.msra.mxu0 0.0
    %3453 = vmatprep.subr.mxu0 0.0
    %3454 = vmatpush1.xpose.msra.mxu0 0.0
    %3455 = vmatprep.subr.mxu0 0.0
    %3456 = vmatpush1.xpose.msra.mxu0 0.0
    %3457 = vmatprep.subr.mxu0 0.0
    %3458 = vmatpush1.xpose.msra.mxu0 0.0
    %3459 = vmatprep.subr.mxu0 0.0
    %3460 = vmatpush1.xpose.msra.mxu0 0.0
    %3461 = vmatprep.subr.mxu0 0.0
    %3462 = vmatpush1.xpose.msra.mxu0 0.0
    %3463 = vmatprep.subr.mxu0 0.0
    %3464 = vmatpush1.xpose.msra.mxu0 0.0
    %3465 = vmatprep.subr.mxu0 0.0
    %3466 = vmatpush1.xpose.msra.mxu0 0.0
    %3467 = vmatprep.subr.mxu0 0.0
    %3468 = vmatpush1.xpose.msra.mxu0 0.0
    %3469 = vmatprep.subr.mxu0 0.0
    %3470 = vmatpush1.xpose.msra.mxu0 0.0
    %3471 = vmatprep.subr.mxu0 0.0
    %3472 = vmatpush1.xpose.msra.mxu0 0.0
    %3473 = vmatprep.subr.mxu0 0.0
    %3474 = vmatpush1.xpose.msra.mxu0 0.0
    %3475 = vmatprep.subr.mxu0 0.0
    %3476 = vmatpush1.xpose.msra.mxu0 0.0
    %3477 = vmatprep.subr.mxu0 0.0
    %3478 = vmatpush1.xpose.msra.mxu0 0.0
    %3479 = vmatprep.subr.mxu0 0.0
    %3480 = vmatpush1.xpose.msra.mxu0 0.0
    %3481 = vmatprep.subr.mxu0 0.0
    %3482 = vmatpush1.xpose.msra.mxu0 0.0
    %3483 = vmatprep.subr.mxu0 0.0
    %3484 = vmatpush1.xpose.msra.mxu0 0.0
    %3485 = vmatprep.subr.mxu0 0.0
    %3486 = vmatpush1.xpose.msra.mxu0 0.0
    %3487 = vmatprep.mubr.f32.mxu0 0.0
    %3488 = vmatmul.mubr.f32.gmra.mrb[0].mxu0 %v3419
    %v3489 = vpop.f32.mrb[0].mxu0
    %v3490 = vadd.f32 0.0, %v3489
    %v3491 = vpop.f32.mrb[0].mxu0
    %3492 = vdwg.mxu0
    %3493 = vrot.lane.b32.xlu0 %v208, 104
    %v3494 = vpop.permute.xlu0 %3493
    %3495 = vrot.lane.b32.xlu0 %v196, 72
    %v3496 = vpop.permute.xlu0 %3495
    %v3497 = vsel %vm213, %v3494, 0
    %v3499 = vsel %vm213, %v3496, 0
    %3501 = vmatprep.subr.mxu0 0.0
    %3502 = vmatpush1.xpose.msra.mxu0 %v3499
    %3503 = vmatprep.subr.mxu0 0.0
    %3504 = vmatpush1.xpose.msra.mxu0 0.0
    %3505 = vmatprep.subr.mxu0 0.0
    %3506 = vmatpush1.xpose.msra.mxu0 0.0
    %3507 = vmatprep.subr.mxu0 0.0
    %3508 = vmatpush1.xpose.msra.mxu0 0.0
    %3509 = vmatprep.subr.mxu0 0.0
    %3510 = vmatpush1.xpose.msra.mxu0 0.0
    %3511 = vmatprep.subr.mxu0 0.0
    %3512 = vmatpush1.xpose.msra.mxu0 0.0
    %3513 = vmatprep.subr.mxu0 0.0
    %3514 = vmatpush1.xpose.msra.mxu0 0.0
    %3515 = vmatprep.subr.mxu0 0.0
    %3516 = vmatpush1.xpose.msra.mxu0 0.0
    %3517 = vmatprep.subr.mxu0 0.0
    %3518 = vmatpush1.xpose.msra.mxu0 0.0
    %3519 = vmatprep.subr.mxu0 0.0
    %3520 = vmatpush1.xpose.msra.mxu0 0.0
    %3521 = vmatprep.subr.mxu0 0.0
    %3522 = vmatpush1.xpose.msra.mxu0 0.0
    %3523 = vmatprep.subr.mxu0 0.0
    %3524 = vmatpush1.xpose.msra.mxu0 0.0
    %3525 = vmatprep.subr.mxu0 0.0
    %3526 = vmatpush1.xpose.msra.mxu0 0.0
    %3527 = vmatprep.subr.mxu0 0.0
    %3528 = vmatpush1.xpose.msra.mxu0 0.0
    %3529 = vmatprep.subr.mxu0 0.0
    %3530 = vmatpush1.xpose.msra.mxu0 0.0
    %3531 = vmatprep.subr.mxu0 0.0
    %3532 = vmatpush1.xpose.msra.mxu0 0.0
    %3533 = vmatprep.subr.mxu0 0.0
    %3534 = vmatpush1.xpose.msra.mxu0 0.0
    %3535 = vmatprep.subr.mxu0 0.0
    %3536 = vmatpush1.xpose.msra.mxu0 0.0
    %3537 = vmatprep.subr.mxu0 0.0
    %3538 = vmatpush1.xpose.msra.mxu0 0.0
    %3539 = vmatprep.subr.mxu0 0.0
    %3540 = vmatpush1.xpose.msra.mxu0 0.0
    %3541 = vmatprep.subr.mxu0 0.0
    %3542 = vmatpush1.xpose.msra.mxu0 0.0
    %3543 = vmatprep.subr.mxu0 0.0
    %3544 = vmatpush1.xpose.msra.mxu0 0.0
    %3545 = vmatprep.subr.mxu0 0.0
    %3546 = vmatpush1.xpose.msra.mxu0 0.0
    %3547 = vmatprep.subr.mxu0 0.0
    %3548 = vmatpush1.xpose.msra.mxu0 0.0
    %3549 = vmatprep.subr.mxu0 0.0
    %3550 = vmatpush1.xpose.msra.mxu0 0.0
    %3551 = vmatprep.subr.mxu0 0.0
    %3552 = vmatpush1.xpose.msra.mxu0 0.0
    %3553 = vmatprep.subr.mxu0 0.0
    %3554 = vmatpush1.xpose.msra.mxu0 0.0
    %3555 = vmatprep.subr.mxu0 0.0
    %3556 = vmatpush1.xpose.msra.mxu0 0.0
    %3557 = vmatprep.subr.mxu0 0.0
    %3558 = vmatpush1.xpose.msra.mxu0 0.0
    %3559 = vmatprep.subr.mxu0 0.0
    %3560 = vmatpush1.xpose.msra.mxu0 0.0
    %3561 = vmatprep.subr.mxu0 0.0
    %3562 = vmatpush1.xpose.msra.mxu0 0.0
    %3563 = vmatprep.subr.mxu0 0.0
    %3564 = vmatpush1.xpose.msra.mxu0 0.0
    %3565 = vmatprep.mubr.f32.mxu0 0.0
    %3566 = vmatmul.mubr.f32.gmra.mrb[0].mxu0 %v3497
    %v3567 = vpop.f32.mrb[0].mxu0
    %v3568 = vadd.f32 0.0, %v3567
    %v3569 = vpop.f32.mrb[0].mxu0
    %3570 = vdwg.mxu0
    %3571 = vrot.lane.b32.xlu0 %v209, 104
    %v3572 = vpop.permute.xlu0 %3571
    %3573 = vrot.lane.b32.xlu0 %v201, 72
    %v3574 = vpop.permute.xlu0 %3573
    %v3575 = vsel %vm213, %v3572, 0
    %v3577 = vsel %vm213, %v3574, 0
    %3579 = vmatprep.subr.mxu0 0.0
    %3580 = vmatpush1.xpose.msra.mxu0 %v3577
    %3581 = vmatprep.subr.mxu0 0.0
    %3582 = vmatpush1.xpose.msra.mxu0 0.0
    %3583 = vmatprep.subr.mxu0 0.0
    %3584 = vmatpush1.xpose.msra.mxu0 0.0
    %3585 = vmatprep.subr.mxu0 0.0
    %3586 = vmatpush1.xpose.msra.mxu0 0.0
    %3587 = vmatprep.subr.mxu0 0.0
    %3588 = vmatpush1.xpose.msra.mxu0 0.0
    %3589 = vmatprep.subr.mxu0 0.0
    %3590 = vmatpush1.xpose.msra.mxu0 0.0
    %3591 = vmatprep.subr.mxu0 0.0
    %3592 = vmatpush1.xpose.msra.mxu0 0.0
    %3593 = vmatprep.subr.mxu0 0.0
    %3594 = vmatpush1.xpose.msra.mxu0 0.0
    %3595 = vmatprep.subr.mxu0 0.0
    %3596 = vmatpush1.xpose.msra.mxu0 0.0
    %3597 = vmatprep.subr.mxu0 0.0
    %3598 = vmatpush1.xpose.msra.mxu0 0.0
    %3599 = vmatprep.subr.mxu0 0.0
    %3600 = vmatpush1.xpose.msra.mxu0 0.0
    %3601 = vmatprep.subr.mxu0 0.0
    %3602 = vmatpush1.xpose.msra.mxu0 0.0
    %3603 = vmatprep.subr.mxu0 0.0
    %3604 = vmatpush1.xpose.msra.mxu0 0.0
    %3605 = vmatprep.subr.mxu0 0.0
    %3606 = vmatpush1.xpose.msra.mxu0 0.0
    %3607 = vmatprep.subr.mxu0 0.0
    %3608 = vmatpush1.xpose.msra.mxu0 0.0
    %3609 = vmatprep.subr.mxu0 0.0
    %3610 = vmatpush1.xpose.msra.mxu0 0.0
    %3611 = vmatprep.subr.mxu0 0.0
    %3612 = vmatpush1.xpose.msra.mxu0 0.0
    %3613 = vmatprep.subr.mxu0 0.0
    %3614 = vmatpush1.xpose.msra.mxu0 0.0
    %3615 = vmatprep.subr.mxu0 0.0
    %3616 = vmatpush1.xpose.msra.mxu0 0.0
    %3617 = vmatprep.subr.mxu0 0.0
    %3618 = vmatpush1.xpose.msra.mxu0 0.0
    %3619 = vmatprep.subr.mxu0 0.0
    %3620 = vmatpush1.xpose.msra.mxu0 0.0
    %3621 = vmatprep.subr.mxu0 0.0
    %3622 = vmatpush1.xpose.msra.mxu0 0.0
    %3623 = vmatprep.subr.mxu0 0.0
    %3624 = vmatpush1.xpose.msra.mxu0 0.0
    %3625 = vmatprep.subr.mxu0 0.0
    %3626 = vmatpush1.xpose.msra.mxu0 0.0
    %3627 = vmatprep.subr.mxu0 0.0
    %3628 = vmatpush1.xpose.msra.mxu0 0.0
    %3629 = vmatprep.subr.mxu0 0.0
    %3630 = vmatpush1.xpose.msra.mxu0 0.0
    %3631 = vmatprep.subr.mxu0 0.0
    %3632 = vmatpush1.xpose.msra.mxu0 0.0
    %3633 = vmatprep.subr.mxu0 0.0
    %3634 = vmatpush1.xpose.msra.mxu0 0.0
    %3635 = vmatprep.subr.mxu0 0.0
    %3636 = vmatpush1.xpose.msra.mxu0 0.0
    %3637 = vmatprep.subr.mxu0 0.0
    %3638 = vmatpush1.xpose.msra.mxu0 0.0
    %3639 = vmatprep.subr.mxu0 0.0
    %3640 = vmatpush1.xpose.msra.mxu0 0.0
    %3641 = vmatprep.subr.mxu0 0.0
    %3642 = vmatpush1.xpose.msra.mxu0 0.0
    %3643 = vmatprep.mubr.f32.mxu0 0.0
    %3644 = vmatmul.mubr.f32.gmra.mrb[0].mxu0 %v3575
    %v3645 = vpop.f32.mrb[0].mxu0
    %v3646 = vadd.f32 0.0, %v3645
    %v3647 = vpop.f32.mrb[0].mxu0
    %3648 = vdwg.mxu0
    %v3649 = vsel %vm213, %v3256, -inf
    %3650 = vmax.xlane.f32.xlu0 %v3649
    %v3651 = vpop.xlane.xlu0 %3650
    %v3652 = vsel %vm213, %v3334, -inf
    %3653 = vmax.xlane.f32.xlu0 %v3652
    %v3654 = vpop.xlane.xlu0 %3653
    %v3655 = vsel %vm213, %v3412, -inf
    %3656 = vmax.xlane.f32.xlu0 %v3655
    %v3657 = vpop.xlane.xlu0 %3656
    %v3658 = vsel %vm213, %v3490, -inf
    %3659 = vmax.xlane.f32.xlu0 %v3658
    %v3660 = vpop.xlane.xlu0 %3659
    %v3661 = vsel %vm213, %v3568, -inf
    %3662 = vmax.xlane.f32.xlu0 %v3661
    %v3663 = vpop.xlane.xlu0 %3662
    %v3664 = vsel %vm213, %v3646, -inf
    %3665 = vmax.xlane.f32.xlu0 %v3664
    %v3666 = vpop.xlane.xlu0 %3665
    %v3667 = vsub.f32 %v3256, %v3651
    %v3668 = vsub.f32 %v3334, %v3654
    %v3669 = vsub.f32 %v3412, %v3657
    %v3670 = vsub.f32 %v3490, %v3660
    %v3671 = vsub.f32 %v3568, %v3663
    %v3672 = vsub.f32 %v3646, %v3666
    %v3673 = vmul.f32 %v3667, 1.442695
    %v3674 = vpow.pop %v3673
    %v3675 = vmul.f32 %v3668, 1.442695
    %v3676 = vpow.pop %v3675
    %v3677 = vmul.f32 %v3669, 1.442695
    %v3678 = vpow.pop %v3677
    %v3679 = vmul.f32 %v3670, 1.442695
    %v3680 = vpow.pop %v3679
    %v3681 = vmul.f32 %v3671, 1.442695
    %v3682 = vpow.pop %v3681
    %v3683 = vmul.f32 %v3672, 1.442695
    %v3684 = vpow.pop %v3683
    %v3685 = vsel %vm213, %v3674, 0.0
    %3686 = vadd.xlane.f32.xlu0 %v3685
    %v3687 = vpop.xlane.xlu0 %3686
    %v3688 = vsel %vm213, %v3676, 0.0
    %3689 = vadd.xlane.f32.xlu0 %v3688
    %v3690 = vpop.xlane.xlu0 %3689
    %v3691 = vsel %vm213, %v3678, 0.0
    %3692 = vadd.xlane.f32.xlu0 %v3691
    %v3693 = vpop.xlane.xlu0 %3692
    %v3694 = vsel %vm213, %v3680, 0.0
    %3695 = vadd.xlane.f32.xlu0 %v3694
    %v3696 = vpop.xlane.xlu0 %3695
    %v3697 = vsel %vm213, %v3682, 0.0
    %3698 = vadd.xlane.f32.xlu0 %v3697
    %v3699 = vpop.xlane.xlu0 %3698
    %v3700 = vsel %vm213, %v3684, 0.0
    %3701 = vadd.xlane.f32.xlu0 %v3700
    %v3702 = vpop.xlane.xlu0 %3701
    %v3703 = vrcp.pop %v3687
    %v3704 = vrcp.pop %v3690
    %v3705 = vrcp.pop %v3693
    %v3706 = vrcp.pop %v3696
    %v3707 = vrcp.pop %v3699
    %v3708 = vrcp.pop %v3702
    %v3709 = vmul.f32 %v3674, %v3703
    %v3710 = vmul.f32 %v3676, %v3704
    %v3711 = vmul.f32 %v3678, %v3705
    %v3712 = vmul.f32 %v3680, %v3706
    %v3713 = vmul.f32 %v3682, %v3707
    %v3714 = vmul.f32 %v3684, %v3708
    %3715 = vrot.lane.b32.xlu0 %v176, 40
    %v3716 = vpop.permute.xlu0 %3715
    %v3719 = vsel %vm213, %v3709, 0
    %3721 = vmatprep.subr.mxu0 0.0
    %3722 = vmatpush1.msra.mxu0 %v3716
    %3723 = vmatprep.subr.mxu0 0.0
    %3724 = vmatpush1.msra.mxu0 0.0
    %3725 = vmatprep.subr.mxu0 0.0
    %3726 = vmatpush1.msra.mxu0 0.0
    %3727 = vmatprep.subr.mxu0 0.0
    %3728 = vmatpush1.msra.mxu0 0.0
    %3729 = vmatprep.subr.mxu0 0.0
    %3730 = vmatpush1.msra.mxu0 0.0
    %3731 = vmatprep.subr.mxu0 0.0
    %3732 = vmatpush1.msra.mxu0 0.0
    %3733 = vmatprep.subr.mxu0 0.0
    %3734 = vmatpush1.msra.mxu0 0.0
    %3735 = vmatprep.subr.mxu0 0.0
    %3736 = vmatpush1.msra.mxu0 0.0
    %3737 = vmatprep.subr.mxu0 0.0
    %3738 = vmatpush1.msra.mxu0 0.0
    %3739 = vmatprep.subr.mxu0 0.0
    %3740 = vmatpush1.msra.mxu0 0.0
    %3741 = vmatprep.subr.mxu0 0.0
    %3742 = vmatpush1.msra.mxu0 0.0
    %3743 = vmatprep.subr.mxu0 0.0
    %3744 = vmatpush1.msra.mxu0 0.0
    %3745 = vmatprep.subr.mxu0 0.0
    %3746 = vmatpush1.msra.mxu0 0.0
    %3747 = vmatprep.subr.mxu0 0.0
    %3748 = vmatpush1.msra.mxu0 0.0
    %3749 = vmatprep.subr.mxu0 0.0
    %3750 = vmatpush1.msra.mxu0 0.0
    %3751 = vmatprep.subr.mxu0 0.0
    %3752 = vmatpush1.msra.mxu0 0.0
    %3753 = vmatprep.subr.mxu0 0.0
    %3754 = vmatpush1.msra.mxu0 0.0
    %3755 = vmatprep.subr.mxu0 0.0
    %3756 = vmatpush1.msra.mxu0 0.0
    %3757 = vmatprep.subr.mxu0 0.0
    %3758 = vmatpush1.msra.mxu0 0.0
    %3759 = vmatprep.subr.mxu0 0.0
    %3760 = vmatpush1.msra.mxu0 0.0
    %3761 = vmatprep.subr.mxu0 0.0
    %3762 = vmatpush1.msra.mxu0 0.0
    %3763 = vmatprep.subr.mxu0 0.0
    %3764 = vmatpush1.msra.mxu0 0.0
    %3765 = vmatprep.subr.mxu0 0.0
    %3766 = vmatpush1.msra.mxu0 0.0
    %3767 = vmatprep.subr.mxu0 0.0
    %3768 = vmatpush1.msra.mxu0 0.0
    %3769 = vmatprep.subr.mxu0 0.0
    %3770 = vmatpush1.msra.mxu0 0.0
    %3771 = vmatprep.subr.mxu0 0.0
    %3772 = vmatpush1.msra.mxu0 0.0
    %3773 = vmatprep.subr.mxu0 0.0
    %3774 = vmatpush1.msra.mxu0 0.0
    %3775 = vmatprep.subr.mxu0 0.0
    %3776 = vmatpush1.msra.mxu0 0.0
    %3777 = vmatprep.subr.mxu0 0.0
    %3778 = vmatpush1.msra.mxu0 0.0
    %3779 = vmatprep.subr.mxu0 0.0
    %3780 = vmatpush1.msra.mxu0 0.0
    %3781 = vmatprep.subr.mxu0 0.0
    %3782 = vmatpush1.msra.mxu0 0.0
    %3783 = vmatprep.subr.mxu0 0.0
    %3784 = vmatpush1.msra.mxu0 0.0
    %3785 = vmatprep.mubr.f32.mxu0 0.0
    %3786 = vmatmul.mubr.f32.gmra.mrb[0].mxu0 %v3719
    %v3787 = vpop.f32.mrb[0].mxu0
    %v3788 = vadd.f32 0.0, %v3787
    %v3789 = vpop.f32.mrb[0].mxu0
    %3790 = vdwg.mxu0
    %3791 = vrot.lane.b32.xlu0 %v181, 40
    %v3792 = vpop.permute.xlu0 %3791
    %v3795 = vsel %vm213, %v3710, 0
    %3797 = vmatprep.subr.mxu0 0.0
    %3798 = vmatpush1.msra.mxu0 %v3792
    %3799 = vmatprep.subr.mxu0 0.0
    %3800 = vmatpush1.msra.mxu0 0.0
    %3801 = vmatprep.subr.mxu0 0.0
    %3802 = vmatpush1.msra.mxu0 0.0
    %3803 = vmatprep.subr.mxu0 0.0
    %3804 = vmatpush1.msra.mxu0 0.0
    %3805 = vmatprep.subr.mxu0 0.0
    %3806 = vmatpush1.msra.mxu0 0.0
    %3807 = vmatprep.subr.mxu0 0.0
    %3808 = vmatpush1.msra.mxu0 0.0
    %3809 = vmatprep.subr.mxu0 0.0
    %3810 = vmatpush1.msra.mxu0 0.0
    %3811 = vmatprep.subr.mxu0 0.0
    %3812 = vmatpush1.msra.mxu0 0.0
    %3813 = vmatprep.subr.mxu0 0.0
    %3814 = vmatpush1.msra.mxu0 0.0
    %3815 = vmatprep.subr.mxu0 0.0
    %3816 = vmatpush1.msra.mxu0 0.0
    %3817 = vmatprep.subr.mxu0 0.0
    %3818 = vmatpush1.msra.mxu0 0.0
    %3819 = vmatprep.subr.mxu0 0.0
    %3820 = vmatpush1.msra.mxu0 0.0
    %3821 = vmatprep.subr.mxu0 0.0
    %3822 = vmatpush1.msra.mxu0 0.0
    %3823 = vmatprep.subr.mxu0 0.0
    %3824 = vmatpush1.msra.mxu0 0.0
    %3825 = vmatprep.subr.mxu0 0.0
    %3826 = vmatpush1.msra.mxu0 0.0
    %3827 = vmatprep.subr.mxu0 0.0
    %3828 = vmatpush1.msra.mxu0 0.0
    %3829 = vmatprep.subr.mxu0 0.0
    %3830 = vmatpush1.msra.mxu0 0.0
    %3831 = vmatprep.subr.mxu0 0.0
    %3832 = vmatpush1.msra.mxu0 0.0
    %3833 = vmatprep.subr.mxu0 0.0
    %3834 = vmatpush1.msra.mxu0 0.0
    %3835 = vmatprep.subr.mxu0 0.0
    %3836 = vmatpush1.msra.mxu0 0.0
    %3837 = vmatprep.subr.mxu0 0.0
    %3838 = vmatpush1.msra.mxu0 0.0
    %3839 = vmatprep.subr.mxu0 0.0
    %3840 = vmatpush1.msra.mxu0 0.0
    %3841 = vmatprep.subr.mxu0 0.0
    %3842 = vmatpush1.msra.mxu0 0.0
    %3843 = vmatprep.subr.mxu0 0.0
    %3844 = vmatpush1.msra.mxu0 0.0
    %3845 = vmatprep.subr.mxu0 0.0
    %3846 = vmatpush1.msra.mxu0 0.0
    %3847 = vmatprep.subr.mxu0 0.0
    %3848 = vmatpush1.msra.mxu0 0.0
    %3849 = vmatprep.subr.mxu0 0.0
    %3850 = vmatpush1.msra.mxu0 0.0
    %3851 = vmatprep.subr.mxu0 0.0
    %3852 = vmatpush1.msra.mxu0 0.0
    %3853 = vmatprep.subr.mxu0 0.0
    %3854 = vmatpush1.msra.mxu0 0.0
    %3855 = vmatprep.subr.mxu0 0.0
    %3856 = vmatpush1.msra.mxu0 0.0
    %3857 = vmatprep.subr.mxu0 0.0
    %3858 = vmatpush1.msra.mxu0 0.0
    %3859 = vmatprep.subr.mxu0 0.0
    %3860 = vmatpush1.msra.mxu0 0.0
    %3861 = vmatprep.mubr.f32.mxu0 0.0
    %3862 = vmatmul.mubr.f32.gmra.mrb[0].mxu0 %v3795
    %v3863 = vpop.f32.mrb[0].mxu0
    %v3864 = vadd.f32 0.0, %v3863
    %v3865 = vpop.f32.mrb[0].mxu0
    %3866 = vdwg.mxu0
    %3867 = vrot.lane.b32.xlu0 %v186, 40
    %v3868 = vpop.permute.xlu0 %3867
    %v3871 = vsel %vm213, %v3711, 0
    %3873 = vmatprep.subr.mxu0 0.0
    %3874 = vmatpush1.msra.mxu0 %v3868
    %3875 = vmatprep.subr.mxu0 0.0
    %3876 = vmatpush1.msra.mxu0 0.0
    %3877 = vmatprep.subr.mxu0 0.0
    %3878 = vmatpush1.msra.mxu0 0.0
    %3879 = vmatprep.subr.mxu0 0.0
    %3880 = vmatpush1.msra.mxu0 0.0
    %3881 = vmatprep.subr.mxu0 0.0
    %3882 = vmatpush1.msra.mxu0 0.0
    %3883 = vmatprep.subr.mxu0 0.0
    %3884 = vmatpush1.msra.mxu0 0.0
    %3885 = vmatprep.subr.mxu0 0.0
    %3886 = vmatpush1.msra.mxu0 0.0
    %3887 = vmatprep.subr.mxu0 0.0
    %3888 = vmatpush1.msra.mxu0 0.0
    %3889 = vmatprep.subr.mxu0 0.0
    %3890 = vmatpush1.msra.mxu0 0.0
    %3891 = vmatprep.subr.mxu0 0.0
    %3892 = vmatpush1.msra.mxu0 0.0
    %3893 = vmatprep.subr.mxu0 0.0
    %3894 = vmatpush1.msra.mxu0 0.0
    %3895 = vmatprep.subr.mxu0 0.0
    %3896 = vmatpush1.msra.mxu0 0.0
    %3897 = vmatprep.subr.mxu0 0.0
    %3898 = vmatpush1.msra.mxu0 0.0
    %3899 = vmatprep.subr.mxu0 0.0
    %3900 = vmatpush1.msra.mxu0 0.0
    %3901 = vmatprep.subr.mxu0 0.0
    %3902 = vmatpush1.msra.mxu0 0.0
    %3903 = vmatprep.subr.mxu0 0.0
    %3904 = vmatpush1.msra.mxu0 0.0
    %3905 = vmatprep.subr.mxu0 0.0
    %3906 = vmatpush1.msra.mxu0 0.0
    %3907 = vmatprep.subr.mxu0 0.0
    %3908 = vmatpush1.msra.mxu0 0.0
    %3909 = vmatprep.subr.mxu0 0.0
    %3910 = vmatpush1.msra.mxu0 0.0
    %3911 = vmatprep.subr.mxu0 0.0
    %3912 = vmatpush1.msra.mxu0 0.0
    %3913 = vmatprep.subr.mxu0 0.0
    %3914 = vmatpush1.msra.mxu0 0.0
    %3915 = vmatprep.subr.mxu0 0.0
    %3916 = vmatpush1.msra.mxu0 0.0
    %3917 = vmatprep.subr.mxu0 0.0
    %3918 = vmatpush1.msra.mxu0 0.0
    %3919 = vmatprep.subr.mxu0 0.0
    %3920 = vmatpush1.msra.mxu0 0.0
    %3921 = vmatprep.subr.mxu0 0.0
    %3922 = vmatpush1.msra.mxu0 0.0
    %3923 = vmatprep.subr.mxu0 0.0
    %3924 = vmatpush1.msra.mxu0 0.0
    %3925 = vmatprep.subr.mxu0 0.0
    %3926 = vmatpush1.msra.mxu0 0.0
    %3927 = vmatprep.subr.mxu0 0.0
    %3928 = vmatpush1.msra.mxu0 0.0
    %3929 = vmatprep.subr.mxu0 0.0
    %3930 = vmatpush1.msra.mxu0 0.0
    %3931 = vmatprep.subr.mxu0 0.0
    %3932 = vmatpush1.msra.mxu0 0.0
    %3933 = vmatprep.subr.mxu0 0.0
    %3934 = vmatpush1.msra.mxu0 0.0
    %3935 = vmatprep.subr.mxu0 0.0
    %3936 = vmatpush1.msra.mxu0 0.0
    %3937 = vmatprep.mubr.f32.mxu0 0.0
    %3938 = vmatmul.mubr.f32.gmra.mrb[0].mxu0 %v3871
    %v3939 = vpop.f32.mrb[0].mxu0
    %v3940 = vadd.f32 0.0, %v3939
    %v3941 = vpop.f32.mrb[0].mxu0
    %3942 = vdwg.mxu0
    %3943 = vrot.lane.b32.xlu0 %v191, 40
    %v3944 = vpop.permute.xlu0 %3943
    %v3947 = vsel %vm213, %v3712, 0
    %3949 = vmatprep.subr.mxu0 0.0
    %3950 = vmatpush1.msra.mxu0 %v3944
    %3951 = vmatprep.subr.mxu0 0.0
    %3952 = vmatpush1.msra.mxu0 0.0
    %3953 = vmatprep.subr.mxu0 0.0
    %3954 = vmatpush1.msra.mxu0 0.0
    %3955 = vmatprep.subr.mxu0 0.0
    %3956 = vmatpush1.msra.mxu0 0.0
    %3957 = vmatprep.subr.mxu0 0.0
    %3958 = vmatpush1.msra.mxu0 0.0
    %3959 = vmatprep.subr.mxu0 0.0
    %3960 = vmatpush1.msra.mxu0 0.0
    %3961 = vmatprep.subr.mxu0 0.0
    %3962 = vmatpush1.msra.mxu0 0.0
    %3963 = vmatprep.subr.mxu0 0.0
    %3964 = vmatpush1.msra.mxu0 0.0
    %3965 = vmatprep.subr.mxu0 0.0
    %3966 = vmatpush1.msra.mxu0 0.0
    %3967 = vmatprep.subr.mxu0 0.0
    %3968 = vmatpush1.msra.mxu0 0.0
    %3969 = vmatprep.subr.mxu0 0.0
    %3970 = vmatpush1.msra.mxu0 0.0
    %3971 = vmatprep.subr.mxu0 0.0
    %3972 = vmatpush1.msra.mxu0 0.0
    %3973 = vmatprep.subr.mxu0 0.0
    %3974 = vmatpush1.msra.mxu0 0.0
    %3975 = vmatprep.subr.mxu0 0.0
    %3976 = vmatpush1.msra.mxu0 0.0
    %3977 = vmatprep.subr.mxu0 0.0
    %3978 = vmatpush1.msra.mxu0 0.0
    %3979 = vmatprep.subr.mxu0 0.0
    %3980 = vmatpush1.msra.mxu0 0.0
    %3981 = vmatprep.subr.mxu0 0.0
    %3982 = vmatpush1.msra.mxu0 0.0
    %3983 = vmatprep.subr.mxu0 0.0
    %3984 = vmatpush1.msra.mxu0 0.0
    %3985 = vmatprep.subr.mxu0 0.0
    %3986 = vmatpush1.msra.mxu0 0.0
    %3987 = vmatprep.subr.mxu0 0.0
    %3988 = vmatpush1.msra.mxu0 0.0
    %3989 = vmatprep.subr.mxu0 0.0
    %3990 = vmatpush1.msra.mxu0 0.0
    %3991 = vmatprep.subr.mxu0 0.0
    %3992 = vmatpush1.msra.mxu0 0.0
    %3993 = vmatprep.subr.mxu0 0.0
    %3994 = vmatpush1.msra.mxu0 0.0
    %3995 = vmatprep.subr.mxu0 0.0
    %3996 = vmatpush1.msra.mxu0 0.0
    %3997 = vmatprep.subr.mxu0 0.0
    %3998 = vmatpush1.msra.mxu0 0.0
    %3999 = vmatprep.subr.mxu0 0.0
    %4000 = vmatpush1.msra.mxu0 0.0
    %4001 = vmatprep.subr.mxu0 0.0
    %4002 = vmatpush1.msra.mxu0 0.0
    %4003 = vmatprep.subr.mxu0 0.0
    %4004 = vmatpush1.msra.mxu0 0.0
    %4005 = vmatprep.subr.mxu0 0.0
    %4006 = vmatpush1.msra.mxu0 0.0
    %4007 = vmatprep.subr.mxu0 0.0
    %4008 = vmatpush1.msra.mxu0 0.0
    %4009 = vmatprep.subr.mxu0 0.0
    %4010 = vmatpush1.msra.mxu0 0.0
    %4011 = vmatprep.subr.mxu0 0.0
    %4012 = vmatpush1.msra.mxu0 0.0
    %4013 = vmatprep.mubr.f32.mxu0 0.0
    %4014 = vmatmul.mubr.f32.gmra.mrb[0].mxu0 %v3947
    %v4015 = vpop.f32.mrb[0].mxu0
    %v4016 = vadd.f32 0.0, %v4015
    %v4017 = vpop.f32.mrb[0].mxu0
    %4018 = vdwg.mxu0
    %4019 = vrot.lane.b32.xlu0 %v196, 40
    %v4020 = vpop.permute.xlu0 %4019
    %v4023 = vsel %vm213, %v3713, 0
    %4025 = vmatprep.subr.mxu0 0.0
    %4026 = vmatpush1.msra.mxu0 %v4020
    %4027 = vmatprep.subr.mxu0 0.0
    %4028 = vmatpush1.msra.mxu0 0.0
    %4029 = vmatprep.subr.mxu0 0.0
    %4030 = vmatpush1.msra.mxu0 0.0
    %4031 = vmatprep.subr.mxu0 0.0
    %4032 = vmatpush1.msra.mxu0 0.0
    %4033 = vmatprep.subr.mxu0 0.0
    %4034 = vmatpush1.msra.mxu0 0.0
    %4035 = vmatprep.subr.mxu0 0.0
    %4036 = vmatpush1.msra.mxu0 0.0
    %4037 = vmatprep.subr.mxu0 0.0
    %4038 = vmatpush1.msra.mxu0 0.0
    %4039 = vmatprep.subr.mxu0 0.0
    %4040 = vmatpush1.msra.mxu0 0.0
    %4041 = vmatprep.subr.mxu0 0.0
    %4042 = vmatpush1.msra.mxu0 0.0
    %4043 = vmatprep.subr.mxu0 0.0
    %4044 = vmatpush1.msra.mxu0 0.0
    %4045 = vmatprep.subr.mxu0 0.0
    %4046 = vmatpush1.msra.mxu0 0.0
    %4047 = vmatprep.subr.mxu0 0.0
    %4048 = vmatpush1.msra.mxu0 0.0
    %4049 = vmatprep.subr.mxu0 0.0
    %4050 = vmatpush1.msra.mxu0 0.0
    %4051 = vmatprep.subr.mxu0 0.0
    %4052 = vmatpush1.msra.mxu0 0.0
    %4053 = vmatprep.subr.mxu0 0.0
    %4054 = vmatpush1.msra.mxu0 0.0
    %4055 = vmatprep.subr.mxu0 0.0
    %4056 = vmatpush1.msra.mxu0 0.0
    %4057 = vmatprep.subr.mxu0 0.0
    %4058 = vmatpush1.msra.mxu0 0.0
    %4059 = vmatprep.subr.mxu0 0.0
    %4060 = vmatpush1.msra.mxu0 0.0
    %4061 = vmatprep.subr.mxu0 0.0
    %4062 = vmatpush1.msra.mxu0 0.0
    %4063 = vmatprep.subr.mxu0 0.0
    %4064 = vmatpush1.msra.mxu0 0.0
    %4065 = vmatprep.subr.mxu0 0.0
    %4066 = vmatpush1.msra.mxu0 0.0
    %4067 = vmatprep.subr.mxu0 0.0
    %4068 = vmatpush1.msra.mxu0 0.0
    %4069 = vmatprep.subr.mxu0 0.0
    %4070 = vmatpush1.msra.mxu0 0.0
    %4071 = vmatprep.subr.mxu0 0.0
    %4072 = vmatpush1.msra.mxu0 0.0
    %4073 = vmatprep.subr.mxu0 0.0
    %4074 = vmatpush1.msra.mxu0 0.0
    %4075 = vmatprep.subr.mxu0 0.0
    %4076 = vmatpush1.msra.mxu0 0.0
    %4077 = vmatprep.subr.mxu0 0.0
    %4078 = vmatpush1.msra.mxu0 0.0
    %4079 = vmatprep.subr.mxu0 0.0
    %4080 = vmatpush1.msra.mxu0 0.0
    %4081 = vmatprep.subr.mxu0 0.0
    %4082 = vmatpush1.msra.mxu0 0.0
    %4083 = vmatprep.subr.mxu0 0.0
    %4084 = vmatpush1.msra.mxu0 0.0
    %4085 = vmatprep.subr.mxu0 0.0
    %4086 = vmatpush1.msra.mxu0 0.0
    %4087 = vmatprep.subr.mxu0 0.0
    %4088 = vmatpush1.msra.mxu0 0.0
    %4089 = vmatprep.mubr.f32.mxu0 0.0
    %4090 = vmatmul.mubr.f32.gmra.mrb[0].mxu0 %v4023
    %v4091 = vpop.f32.mrb[0].mxu0
    %v4092 = vadd.f32 0.0, %v4091
    %v4093 = vpop.f32.mrb[0].mxu0
    %4094 = vdwg.mxu0
    %4095 = vrot.lane.b32.xlu0 %v201, 40
    %v4096 = vpop.permute.xlu0 %4095
    %v4099 = vsel %vm213, %v3714, 0
    %4101 = vmatprep.subr.mxu0 0.0
    %4102 = vmatpush1.msra.mxu0 %v4096
    %4103 = vmatprep.subr.mxu0 0.0
    %4104 = vmatpush1.msra.mxu0 0.0
    %4105 = vmatprep.subr.mxu0 0.0
    %4106 = vmatpush1.msra.mxu0 0.0
    %4107 = vmatprep.subr.mxu0 0.0
    %4108 = vmatpush1.msra.mxu0 0.0
    %4109 = vmatprep.subr.mxu0 0.0
    %4110 = vmatpush1.msra.mxu0 0.0
    %4111 = vmatprep.subr.mxu0 0.0
    %4112 = vmatpush1.msra.mxu0 0.0
    %4113 = vmatprep.subr.mxu0 0.0
    %4114 = vmatpush1.msra.mxu0 0.0
    %4115 = vmatprep.subr.mxu0 0.0
    %4116 = vmatpush1.msra.mxu0 0.0
    %4117 = vmatprep.subr.mxu0 0.0
    %4118 = vmatpush1.msra.mxu0 0.0
    %4119 = vmatprep.subr.mxu0 0.0
    %4120 = vmatpush1.msra.mxu0 0.0
    %4121 = vmatprep.subr.mxu0 0.0
    %4122 = vmatpush1.msra.mxu0 0.0
    %4123 = vmatprep.subr.mxu0 0.0
    %4124 = vmatpush1.msra.mxu0 0.0
    %4125 = vmatprep.subr.mxu0 0.0
    %4126 = vmatpush1.msra.mxu0 0.0
    %4127 = vmatprep.subr.mxu0 0.0
    %4128 = vmatpush1.msra.mxu0 0.0
    %4129 = vmatprep.subr.mxu0 0.0
    %4130 = vmatpush1.msra.mxu0 0.0
    %4131 = vmatprep.subr.mxu0 0.0
    %4132 = vmatpush1.msra.mxu0 0.0
    %4133 = vmatprep.subr.mxu0 0.0
    %4134 = vmatpush1.msra.mxu0 0.0
    %4135 = vmatprep.subr.mxu0 0.0
    %4136 = vmatpush1.msra.mxu0 0.0
    %4137 = vmatprep.subr.mxu0 0.0
    %4138 = vmatpush1.msra.mxu0 0.0
    %4139 = vmatprep.subr.mxu0 0.0
    %4140 = vmatpush1.msra.mxu0 0.0
    %4141 = vmatprep.subr.mxu0 0.0
    %4142 = vmatpush1.msra.mxu0 0.0
    %4143 = vmatprep.subr.mxu0 0.0
    %4144 = vmatpush1.msra.mxu0 0.0
    %4145 = vmatprep.subr.mxu0 0.0
    %4146 = vmatpush1.msra.mxu0 0.0
    %4147 = vmatprep.subr.mxu0 0.0
    %4148 = vmatpush1.msra.mxu0 0.0
    %4149 = vmatprep.subr.mxu0 0.0
    %4150 = vmatpush1.msra.mxu0 0.0
    %4151 = vmatprep.subr.mxu0 0.0
    %4152 = vmatpush1.msra.mxu0 0.0
    %4153 = vmatprep.subr.mxu0 0.0
    %4154 = vmatpush1.msra.mxu0 0.0
    %4155 = vmatprep.subr.mxu0 0.0
    %4156 = vmatpush1.msra.mxu0 0.0
    %4157 = vmatprep.subr.mxu0 0.0
    %4158 = vmatpush1.msra.mxu0 0.0
    %4159 = vmatprep.subr.mxu0 0.0
    %4160 = vmatpush1.msra.mxu0 0.0
    %4161 = vmatprep.subr.mxu0 0.0
    %4162 = vmatpush1.msra.mxu0 0.0
    %4163 = vmatprep.subr.mxu0 0.0
    %4164 = vmatpush1.msra.mxu0 0.0
    %4165 = vmatprep.mubr.f32.mxu0 0.0
    %4166 = vmatmul.mubr.f32.gmra.mrb[0].mxu0 %v4099
    %v4167 = vpop.f32.mrb[0].mxu0
    %v4168 = vadd.f32 0.0, %v4167
    %v4169 = vpop.f32.mrb[0].mxu0
    %4170 = vdwg.mxu0
    %4177 = vrot.lane.b32.xlu0 %v1808, 8
    %v4178 = vpop.permute.xlu0 %4177
    %4179 = vrot.lane.b32.xlu0 %v1884, 8
    %v4180 = vpop.permute.xlu0 %4179
    %4181 = vrot.lane.b32.xlu0 %v1960, 8
    %v4182 = vpop.permute.xlu0 %4181
    %4183 = vrot.lane.b32.xlu0 %v2036, 8
    %v4184 = vpop.permute.xlu0 %4183
    %4185 = vrot.lane.b32.xlu0 %v2112, 8
    %v4186 = vpop.permute.xlu0 %4185
    %4187 = vrot.lane.b32.xlu0 %v2188, 8
    %v4188 = vpop.permute.xlu0 %4187
    %4201 = vrot.lane.b32.xlu0 %v2798, 16
    %v4202 = vpop.permute.xlu0 %4201
    %4203 = vrot.lane.b32.xlu0 %v2874, 16
    %v4204 = vpop.permute.xlu0 %4203
    %4205 = vrot.lane.b32.xlu0 %v2950, 16
    %v4206 = vpop.permute.xlu0 %4205
    %4207 = vrot.lane.b32.xlu0 %v3026, 16
    %v4208 = vpop.permute.xlu0 %4207
    %4209 = vrot.lane.b32.xlu0 %v3102, 16
    %v4210 = vpop.permute.xlu0 %4209
    %4211 = vrot.lane.b32.xlu0 %v3178, 16
    %v4212 = vpop.permute.xlu0 %4211
    %4225 = vrot.lane.b32.xlu0 %v3788, 24
    %v4226 = vpop.permute.xlu0 %4225
    %4227 = vrot.lane.b32.xlu0 %v3864, 24
    %v4228 = vpop.permute.xlu0 %4227
    %4229 = vrot.lane.b32.xlu0 %v3940, 24
    %v4230 = vpop.permute.xlu0 %4229
    %4231 = vrot.lane.b32.xlu0 %v4016, 24
    %v4232 = vpop.permute.xlu0 %4231
    %4233 = vrot.lane.b32.xlu0 %v4092, 24
    %v4234 = vpop.permute.xlu0 %4233
    %4235 = vrot.lane.b32.xlu0 %v4168, 24
    %v4236 = vpop.permute.xlu0 %4235
    %v4243 = vsel %vm213, %v818, %v4178
    %v4244 = vsel %vm213, %v894, %v4180
    %v4245 = vsel %vm213, %v970, %v4182
    %v4246 = vsel %vm213, %v1046, %v4184
    %v4247 = vsel %vm213, %v1122, %v4186
    %v4248 = vsel %vm213, %v1198, %v4188
    %vm4249 = vcmask 130048
    %v4250 = vsel %vm4249, %v4243, %v4202
    %v4251 = vsel %vm4249, %v4244, %v4204
    %v4252 = vsel %vm4249, %v4245, %v4206
    %v4253 = vsel %vm4249, %v4246, %v4208
    %v4254 = vsel %vm4249, %v4247, %v4210
    %v4255 = vsel %vm4249, %v4248, %v4212
    %vm4256 = vcmask 195584
    %v4257 = vsel %vm4256, %v4250, %v4226
    %v4258 = vsel %vm4256, %v4251, %v4228
    %v4259 = vsel %vm4256, %v4252, %v4230
    %v4260 = vsel %vm4256, %v4253, %v4232
    %v4261 = vsel %vm4256, %v4254, %v4234
    %v4262 = vsel %vm4256, %v4255, %v4236
    %v4263 = vld [vmem:[%s3] sm:$0xff]
    %v4264 = vld [vmem:[%s3 + $0x8] sm:$0xff]
    %v4265 = vld [vmem:[%s3 + $0x10] sm:$0xff]
    %v4266 = vld [vmem:[%s3 + $0x18] sm:$0xff]
    %v4267 = vld [vmem:[%s4] sm:$0x1]
    %v4269 = vlaneseq
    %v4270 = vshrl.u32 %v4269, 7
    %v4271 = vsub.s32 0, %v4270
    %v4272 = vrot.slane %v4267, %v4271
    %v4275 = vsel %vm90, %v4257, 0
    %v4278 = vsel %vm90, %v4258, 0
    %v4281 = vsel %vm90, %v4259, 0
    %v4284 = vsel %vm90, %v4260, 0
    %v4287 = vsel %vm90, %v4261, 0
    %v4290 = vsel %vm90, %v4262, 0
    %4292 = vmatprep.subr.mxu0 0.0
    %4293 = vmatpush1.msra.mxu0 %v4263
    %4294 = vmatprep.subr.mxu0 0.0
    %4295 = vmatpush1.msra.mxu0 %v4264
    %4296 = vmatprep.subr.mxu0 0.0
    %4297 = vmatpush1.msra.mxu0 %v4265
    %4298 = vmatprep.subr.mxu0 0.0
    %4299 = vmatpush1.msra.mxu0 %v4266
    %4300 = vmatprep.subr.mxu0 0.0
    %4301 = vmatpush1.msra.mxu0 0.0
    %4302 = vmatprep.subr.mxu0 0.0
    %4303 = vmatpush1.msra.mxu0 0.0
    %4304 = vmatprep.subr.mxu0 0.0
    %4305 = vmatpush1.msra.mxu0 0.0
    %4306 = vmatprep.subr.mxu0 0.0
    %4307 = vmatpush1.msra.mxu0 0.0
    %4308 = vmatprep.subr.mxu0 0.0
    %4309 = vmatpush1.msra.mxu0 0.0
    %4310 = vmatprep.subr.mxu0 0.0
    %4311 = vmatpush1.msra.mxu0 0.0
    %4312 = vmatprep.subr.mxu0 0.0
    %4313 = vmatpush1.msra.mxu0 0.0
    %4314 = vmatprep.subr.mxu0 0.0
    %4315 = vmatpush1.msra.mxu0 0.0
    %4316 = vmatprep.subr.mxu0 0.0
    %4317 = vmatpush1.msra.mxu0 0.0
    %4318 = vmatprep.subr.mxu0 0.0
    %4319 = vmatpush1.msra.mxu0 0.0
    %4320 = vmatprep.subr.mxu0 0.0
    %4321 = vmatpush1.msra.mxu0 0.0
    %4322 = vmatprep.subr.mxu0 0.0
    %4323 = vmatpush1.msra.mxu0 0.0
    %4324 = vmatprep.subr.mxu0 0.0
    %4325 = vmatpush1.msra.mxu0 0.0
    %4326 = vmatprep.subr.mxu0 0.0
    %4327 = vmatpush1.msra.mxu0 0.0
    %4328 = vmatprep.subr.mxu0 0.0
    %4329 = vmatpush1.msra.mxu0 0.0
    %4330 = vmatprep.subr.mxu0 0.0
    %4331 = vmatpush1.msra.mxu0 0.0
    %4332 = vmatprep.subr.mxu0 0.0
    %4333 = vmatpush1.msra.mxu0 0.0
    %4334 = vmatprep.subr.mxu0 0.0
    %4335 = vmatpush1.msra.mxu0 0.0
    %4336 = vmatprep.subr.mxu0 0.0
    %4337 = vmatpush1.msra.mxu0 0.0
    %4338 = vmatprep.subr.mxu0 0.0
    %4339 = vmatpush1.msra.mxu0 0.0
    %4340 = vmatprep.subr.mxu0 0.0
    %4341 = vmatpush1.msra.mxu0 0.0
    %4342 = vmatprep.subr.mxu0 0.0
    %4343 = vmatpush1.msra.mxu0 0.0
    %4344 = vmatprep.subr.mxu0 0.0
    %4345 = vmatpush1.msra.mxu0 0.0
    %4346 = vmatprep.subr.mxu0 0.0
    %4347 = vmatpush1.msra.mxu0 0.0
    %4348 = vmatprep.subr.mxu0 0.0
    %4349 = vmatpush1.msra.mxu0 0.0
    %4350 = vmatprep.subr.mxu0 0.0
    %4351 = vmatpush1.msra.mxu0 0.0
    %4352 = vmatprep.subr.mxu0 0.0
    %4353 = vmatpush1.msra.mxu0 0.0
    %4354 = vmatprep.subr.mxu0 0.0
    %4355 = vmatpush1.msra.mxu0 0.0
    %4356 = vmatprep.mubr.f32.mxu0 0.0
    %4357 = vmatmul.mubr.f32.gmra.mrb[0].mxu0 %v4275
    %v4358 = vpop.f32.mrb[0].mxu0
    %v4359 = vadd.f32 %v4272, %v4358
    %v4360 = vpop.f32.mrb[0].mxu0
    %4361 = vmatprep.mubr.f32.mxu0 0.0
    %4362 = vmatmul.mubr.f32.gmra.mrb[0].mxu0 %v4278
    %v4363 = vpop.f32.mrb[0].mxu0
    %v4364 = vadd.f32 %v4272, %v4363
    %v4365 = vpop.f32.mrb[0].mxu0
    %4366 = vmatprep.mubr.f32.mxu0 0.0
    %4367 = vmatmul.mubr.f32.gmra.mrb[0].mxu0 %v4281
    %v4368 = vpop.f32.mrb[0].mxu0
    %v4369 = vadd.f32 %v4272, %v4368
    %v4370 = vpop.f32.mrb[0].mxu0
    %4371 = vmatprep.mubr.f32.mxu0 0.0
    %4372 = vmatmul.mubr.f32.gmra.mrb[0].mxu0 %v4284
    %v4373 = vpop.f32.mrb[0].mxu0
    %v4374 = vadd.f32 %v4272, %v4373
    %v4375 = vpop.f32.mrb[0].mxu0
    %4376 = vmatprep.mubr.f32.mxu0 0.0
    %4377 = vmatmul.mubr.f32.gmra.mrb[0].mxu0 %v4287
    %v4378 = vpop.f32.mrb[0].mxu0
    %v4379 = vadd.f32 %v4272, %v4378
    %v4380 = vpop.f32.mrb[0].mxu0
    %4381 = vmatprep.mubr.f32.mxu0 0.0
    %4382 = vmatmul.mubr.f32.gmra.mrb[0].mxu0 %v4290
    %v4383 = vpop.f32.mrb[0].mxu0
    %v4384 = vadd.f32 %v4272, %v4383
    %v4385 = vpop.f32.mrb[0].mxu0
    %4386 = vdwg.mxu0
    %v4387 = vadd.f32 %v73, %v4359
    %v4388 = vadd.f32 %v74, %v4364
    %v4389 = vadd.f32 %v75, %v4369
    %v4390 = vadd.f32 %v76, %v4374
    %v4391 = vadd.f32 %v77, %v4379
    %v4392 = vadd.f32 %v78, %v4384
    %v4393 = vsel %vm90, %v4387, 0.0
    %4394 = vadd.xlane.f32.xlu0 %v4393
    %v4395 = vpop.xlane.xlu0 %4394
    %v4396 = vsel %vm90, %v4388, 0.0
    %4397 = vadd.xlane.f32.xlu0 %v4396
    %v4398 = vpop.xlane.xlu0 %4397
    %v4399 = vsel %vm90, %v4389, 0.0
    %4400 = vadd.xlane.f32.xlu0 %v4399
    %v4401 = vpop.xlane.xlu0 %4400
    %v4402 = vsel %vm90, %v4390, 0.0
    %4403 = vadd.xlane.f32.xlu0 %v4402
    %v4404 = vpop.xlane.xlu0 %4403
    %v4405 = vsel %vm90, %v4391, 0.0
    %4406 = vadd.xlane.f32.xlu0 %v4405
    %v4407 = vpop.xlane.xlu0 %4406
    %v4408 = vsel %vm90, %v4392, 0.0
    %4409 = vadd.xlane.f32.xlu0 %v4408
    %v4410 = vpop.xlane.xlu0 %4409
    %v4411 = vrcp.pop 32.0
    %v4412 = vmul.f32 %v4395, %v4411
    %v4413 = vmul.f32 %v4398, %v4411
    %v4414 = vmul.f32 %v4401, %v4411
    %v4415 = vmul.f32 %v4404, %v4411
    %v4416 = vmul.f32 %v4407, %v4411
    %v4417 = vmul.f32 %v4410, %v4411
    %v4418 = vsub.f32 %v4387, %v4412
    %v4419 = vsub.f32 %v4388, %v4413
    %v4420 = vsub.f32 %v4389, %v4414
    %v4421 = vsub.f32 %v4390, %v4415
    %v4422 = vsub.f32 %v4391, %v4416
    %v4423 = vsub.f32 %v4392, %v4417
    %v4424 = vmul.f32 %v4418, %v4418
    %v4425 = vmul.f32 %v4419, %v4419
    %v4426 = vmul.f32 %v4420, %v4420
    %v4427 = vmul.f32 %v4421, %v4421
    %v4428 = vmul.f32 %v4422, %v4422
    %v4429 = vmul.f32 %v4423, %v4423
    %v4430 = vsel %vm90, %v4424, 0.0
    %4431 = vadd.xlane.f32.xlu0 %v4430
    %v4432 = vpop.xlane.xlu0 %4431
    %v4433 = vsel %vm90, %v4425, 0.0
    %4434 = vadd.xlane.f32.xlu0 %v4433
    %v4435 = vpop.xlane.xlu0 %4434
    %v4436 = vsel %vm90, %v4426, 0.0
    %4437 = vadd.xlane.f32.xlu0 %v4436
    %v4438 = vpop.xlane.xlu0 %4437
    %v4439 = vsel %vm90, %v4427, 0.0
    %4440 = vadd.xlane.f32.xlu0 %v4439
    %v4441 = vpop.xlane.xlu0 %4440
    %v4442 = vsel %vm90, %v4428, 0.0
    %4443 = vadd.xlane.f32.xlu0 %v4442
    %v4444 = vpop.xlane.xlu0 %4443
    %v4445 = vsel %vm90, %v4429, 0.0
    %4446 = vadd.xlane.f32.xlu0 %v4445
    %v4447 = vpop.xlane.xlu0 %4446
    %v4448 = vmul.f32 %v4432, %v4411
    %v4449 = vmul.f32 %v4435, %v4411
    %v4450 = vmul.f32 %v4438, %v4411
    %v4451 = vmul.f32 %v4441, %v4411
    %v4452 = vmul.f32 %v4444, %v4411
    %v4453 = vmul.f32 %v4447, %v4411
    %v4454 = vadd.f32 %v4448, 1e-05
    %v4455 = vadd.f32 %v4449, 1e-05
    %v4456 = vadd.f32 %v4450, 1e-05
    %v4457 = vadd.f32 %v4451, 1e-05
    %v4458 = vadd.f32 %v4452, 1e-05
    %v4459 = vadd.f32 %v4453, 1e-05
    %v4460 = vrsqrt.pop %v4454
    %v4461 = vrsqrt.pop %v4455
    %v4462 = vrsqrt.pop %v4456
    %v4463 = vrsqrt.pop %v4457
    %v4464 = vrsqrt.pop %v4458
    %v4465 = vrsqrt.pop %v4459
    %v4466 = vmul.f32 %v4418, %v4460
    %v4467 = vmul.f32 %v4419, %v4461
    %v4468 = vmul.f32 %v4420, %v4462
    %v4469 = vmul.f32 %v4421, %v4463
    %v4470 = vmul.f32 %v4422, %v4464
    %v4471 = vmul.f32 %v4423, %v4465
    %v4472 = vld [vmem:[%s9] sm:$0x1]
    %v4474 = vlaneseq
    %v4475 = vshrl.u32 %v4474, 7
    %v4476 = vsub.s32 0, %v4475
    %v4477 = vrot.slane %v4472, %v4476
    %v4479 = vmul.f32 %v4466, %v4477
    %v4480 = vmul.f32 %v4467, %v4477
    %v4481 = vmul.f32 %v4468, %v4477
    %v4482 = vmul.f32 %v4469, %v4477
    %v4483 = vmul.f32 %v4470, %v4477
    %v4484 = vmul.f32 %v4471, %v4477
    %v4485 = vld [vmem:[%s10] sm:$0x1]
    %v4487 = vlaneseq
    %v4488 = vshrl.u32 %v4487, 7
    %v4489 = vsub.s32 0, %v4488
    %v4490 = vrot.slane %v4485, %v4489
    %v4492 = vadd.f32 %v4479, %v4490
    %v4493 = vadd.f32 %v4480, %v4490
    %v4494 = vadd.f32 %v4481, %v4490
    %v4495 = vadd.f32 %v4482, %v4490
    %v4496 = vadd.f32 %v4483, %v4490
    %v4497 = vadd.f32 %v4484, %v4490
    %v4498 = vpack.c.bf16 %v4493, %v4492
    %v4499 = vpack.c.bf16 %v4495, %v4494
    %v4500 = vpack.c.bf16 %v4497, %v4496
    %v4501 = vld [vmem:[%s5] sm:$0xff]
    %v4502 = vld [vmem:[%s5 + $0x8] sm:$0xff]
    %v4503 = vld [vmem:[%s5 + $0x10] sm:$0xff]
    %v4504 = vld [vmem:[%s5 + $0x18] sm:$0xff]
    %v4505 = vld [vmem:[%s5 + $0x20] sm:$0xff]
    %v4506 = vld [vmem:[%s5 + $0x28] sm:$0xff]
    %v4507 = vld [vmem:[%s5 + $0x30] sm:$0xff]
    %v4508 = vld [vmem:[%s5 + $0x38] sm:$0xff]
    %v4509 = vld [vmem:[%s5 + $0x40] sm:$0xff]
    %v4510 = vld [vmem:[%s5 + $0x48] sm:$0xff]
    %v4511 = vld [vmem:[%s5 + $0x50] sm:$0xff]
    %v4512 = vld [vmem:[%s5 + $0x58] sm:$0xff]
    %v4513 = vld [vmem:[%s5 + $0x60] sm:$0xff]
    %v4514 = vld [vmem:[%s5 + $0x68] sm:$0xff]
    %v4515 = vld [vmem:[%s5 + $0x70] sm:$0xff]
    %v4516 = vld [vmem:[%s5 + $0x78] sm:$0xff]
    %v4517 = vld [vmem:[%s5 + $0x80] sm:$0xff]
    %v4518 = vld [vmem:[%s5 + $0x88] sm:$0xff]
    %v4519 = vld [vmem:[%s5 + $0x90] sm:$0xff]
    %v4520 = vld [vmem:[%s5 + $0x98] sm:$0xff]
    %v4521 = vld [vmem:[%s5 + $0xa0] sm:$0xff]
    %v4522 = vld [vmem:[%s5 + $0xa8] sm:$0xff]
    %v4523 = vld [vmem:[%s5 + $0xb0] sm:$0xff]
    %v4524 = vld [vmem:[%s5 + $0xb8] sm:$0xff]
    %v4525 = vld [vmem:[%s5 + $0xc0] sm:$0xff]
    %v4526 = vld [vmem:[%s5 + $0xc8] sm:$0xff]
    %v4527 = vld [vmem:[%s5 + $0xd0] sm:$0xff]
    %v4528 = vld [vmem:[%s5 + $0xd8] sm:$0xff]
    %v4529 = vld [vmem:[%s5 + $0xe0] sm:$0xff]
    %v4530 = vld [vmem:[%s5 + $0xe8] sm:$0xff]
    %v4531 = vld [vmem:[%s5 + $0xf0] sm:$0xff]
    %v4532 = vld [vmem:[%s5 + $0xf8] sm:$0xff]
    %v4533 = vld [vmem:[#allocation4] sm:$0xff]
    %v4534 = vld [vmem:[#allocation4 + $0x8] sm:$0xff]
    %v4537 = vlaneseq
    %v4538 = vshrl.u32 %v4537, 7
    %v4539 = vsub.s32 0, %v4538
    %v4540 = vrot.slane %v4533, %v4539
    %v4541 = vlaneseq
    %v4542 = vshrl.u32 %v4541, 7
    %v4543 = vsub.s32 1, %v4542
    %v4544 = vrot.slane %v4533, %v4543
    %v4545 = vlaneseq
    %v4546 = vshrl.u32 %v4545, 7
    %v4547 = vsub.s32 2, %v4546
    %v4548 = vrot.slane %v4533, %v4547
    %v4549 = vlaneseq
    %v4550 = vshrl.u32 %v4549, 7
    %v4551 = vsub.s32 3, %v4550
    %v4552 = vrot.slane %v4533, %v4551
    %v4553 = vlaneseq
    %v4554 = vshrl.u32 %v4553, 7
    %v4555 = vsub.s32 4, %v4554
    %v4556 = vrot.slane %v4533, %v4555
    %v4557 = vlaneseq
    %v4558 = vshrl.u32 %v4557, 7
    %v4559 = vsub.s32 5, %v4558
    %v4560 = vrot.slane %v4533, %v4559
    %v4561 = vlaneseq
    %v4562 = vshrl.u32 %v4561, 7
    %v4563 = vsub.s32 6, %v4562
    %v4564 = vrot.slane %v4533, %v4563
    %v4565 = vlaneseq
    %v4566 = vshrl.u32 %v4565, 7
    %v4567 = vsub.s32 7, %v4566
    %v4568 = vrot.slane %v4533, %v4567
    %v4569 = vlaneseq
    %v4570 = vshrl.u32 %v4569, 7
    %v4571 = vsub.s32 0, %v4570
    %v4572 = vrot.slane %v4534, %v4571
    %v4573 = vlaneseq
    %v4574 = vshrl.u32 %v4573, 7
    %v4575 = vsub.s32 1, %v4574
    %v4576 = vrot.slane %v4534, %v4575
    %v4577 = vlaneseq
    %v4578 = vshrl.u32 %v4577, 7
    %v4579 = vsub.s32 2, %v4578
    %v4580 = vrot.slane %v4534, %v4579
    %v4581 = vlaneseq
    %v4582 = vshrl.u32 %v4581, 7
    %v4583 = vsub.s32 3, %v4582
    %v4584 = vrot.slane %v4534, %v4583
    %v4585 = vlaneseq
    %v4586 = vshrl.u32 %v4585, 7
    %v4587 = vsub.s32 4, %v4586
    %v4588 = vrot.slane %v4534, %v4587
    %v4589 = vlaneseq
    %v4590 = vshrl.u32 %v4589, 7
    %v4591 = vsub.s32 5, %v4590
    %v4592 = vrot.slane %v4534, %v4591
    %v4593 = vlaneseq
    %v4594 = vshrl.u32 %v4593, 7
    %v4595 = vsub.s32 6, %v4594
    %v4596 = vrot.slane %v4534, %v4595
    %v4597 = vlaneseq
    %v4598 = vshrl.u32 %v4597, 7
    %v4599 = vsub.s32 7, %v4598
    %v4600 = vrot.slane %v4534, %v4599
    %v4649 = vunpack.c.l.b16 %v4501
    %v4650 = vunpack.c.h.b16 %v4501
    %v4651 = vunpack.c.l.b16 %v4502
    %v4652 = vunpack.c.h.b16 %v4502
    %v4653 = vunpack.c.l.b16 %v4503
    %v4654 = vunpack.c.h.b16 %v4503
    %v4655 = vunpack.c.l.b16 %v4504
    %v4656 = vunpack.c.h.b16 %v4504
    %v4657 = vunpack.c.l.b16 %v4505
    %v4658 = vunpack.c.h.b16 %v4505
    %v4659 = vunpack.c.l.b16 %v4506
    %v4660 = vunpack.c.h.b16 %v4506
    %v4661 = vunpack.c.l.b16 %v4507
    %v4662 = vunpack.c.h.b16 %v4507
    %v4663 = vunpack.c.l.b16 %v4508
    %v4664 = vunpack.c.h.b16 %v4508
    %v4665 = vunpack.c.l.b16 %v4509
    %v4666 = vunpack.c.h.b16 %v4509
    %v4667 = vunpack.c.l.b16 %v4510
    %v4668 = vunpack.c.h.b16 %v4510
    %v4669 = vunpack.c.l.b16 %v4511
    %v4670 = vunpack.c.h.b16 %v4511
    %v4671 = vunpack.c.l.b16 %v4512
    %v4672 = vunpack.c.h.b16 %v4512
    %v4673 = vunpack.c.l.b16 %v4513
    %v4674 = vunpack.c.h.b16 %v4513
    %v4675 = vunpack.c.l.b16 %v4514
    %v4676 = vunpack.c.h.b16 %v4514
    %v4677 = vunpack.c.l.b16 %v4515
    %v4678 = vunpack.c.h.b16 %v4515
    %v4679 = vunpack.c.l.b16 %v4516
    %v4680 = vunpack.c.h.b16 %v4516
    %v4681 = vunpack.c.l.b16 %v4517
    %v4682 = vunpack.c.h.b16 %v4517
    %v4683 = vunpack.c.l.b16 %v4518
    %v4684 = vunpack.c.h.b16 %v4518
    %v4685 = vunpack.c.l.b16 %v4519
    %v4686 = vunpack.c.h.b16 %v4519
    %v4687 = vunpack.c.l.b16 %v4520
    %v4688 = vunpack.c.h.b16 %v4520
    %v4689 = vunpack.c.l.b16 %v4521
    %v4690 = vunpack.c.h.b16 %v4521
    %v4691 = vunpack.c.l.b16 %v4522
    %v4692 = vunpack.c.h.b16 %v4522
    %v4693 = vunpack.c.l.b16 %v4523
    %v4694 = vunpack.c.h.b16 %v4523
    %v4695 = vunpack.c.l.b16 %v4524
    %v4696 = vunpack.c.h.b16 %v4524
    %v4697 = vunpack.c.l.b16 %v4525
    %v4698 = vunpack.c.h.b16 %v4525
    %v4699 = vunpack.c.l.b16 %v4526
    %v4700 = vunpack.c.h.b16 %v4526
    %v4701 = vunpack.c.l.b16 %v4527
    %v4702 = vunpack.c.h.b16 %v4527
    %v4703 = vunpack.c.l.b16 %v4528
    %v4704 = vunpack.c.h.b16 %v4528
    %v4705 = vunpack.c.l.b16 %v4529
    %v4706 = vunpack.c.h.b16 %v4529
    %v4707 = vunpack.c.l.b16 %v4530
    %v4708 = vunpack.c.h.b16 %v4530
    %v4709 = vunpack.c.l.b16 %v4531
    %v4710 = vunpack.c.h.b16 %v4531
    %v4711 = vunpack.c.l.b16 %v4532
    %v4712 = vunpack.c.h.b16 %v4532
    %v4713 = vpack.c.b16 %v4665, %v4649
    %v4714 = vpack.c.b16 %v4666, %v4650
    %v4715 = vpack.c.b16 %v4667, %v4651
    %v4716 = vpack.c.b16 %v4668, %v4652
    %v4717 = vpack.c.b16 %v4669, %v4653
    %v4718 = vpack.c.b16 %v4670, %v4654
    %v4719 = vpack.c.b16 %v4671, %v4655
    %v4720 = vpack.c.b16 %v4672, %v4656
    %v4721 = vpack.c.b16 %v4673, %v4657
    %v4722 = vpack.c.b16 %v4674, %v4658
    %v4723 = vpack.c.b16 %v4675, %v4659
    %v4724 = vpack.c.b16 %v4676, %v4660
    %v4725 = vpack.c.b16 %v4677, %v4661
    %v4726 = vpack.c.b16 %v4678, %v4662
    %v4727 = vpack.c.b16 %v4679, %v4663
    %v4728 = vpack.c.b16 %v4680, %v4664
    %v4729 = vpack.c.b16 %v4697, %v4681
    %v4730 = vpack.c.b16 %v4698, %v4682
    %v4731 = vpack.c.b16 %v4699, %v4683
    %v4732 = vpack.c.b16 %v4700, %v4684
    %v4733 = vpack.c.b16 %v4701, %v4685
    %v4734 = vpack.c.b16 %v4702, %v4686
    %v4735 = vpack.c.b16 %v4703, %v4687
    %v4736 = vpack.c.b16 %v4704, %v4688
    %v4737 = vpack.c.b16 %v4705, %v4689
    %v4738 = vpack.c.b16 %v4706, %v4690
    %v4739 = vpack.c.b16 %v4707, %v4691
    %v4740 = vpack.c.b16 %v4708, %v4692
    %v4741 = vpack.c.b16 %v4709, %v4693
    %v4742 = vpack.c.b16 %v4710, %v4694
    %v4743 = vpack.c.b16 %v4711, %v4695
    %v4744 = vpack.c.b16 %v4712, %v4696
    %v4778 = vsel %vm90, %v4498, 0
    %v4781 = vsel %vm90, %v4499, 0
    %v4784 = vsel %vm90, %v4500, 0
    %4786 = vmatprep.subr.bf16.mxu0 %v4714
    %4787 = vmatpush1.bf16.msra.mxu0 %v4713
    %4788 = vmatprep.subr.bf16.mxu0 %v4730
    %4789 = vmatpush1.bf16.msra.mxu0 %v4729
    %4790 = vmatprep.subr.bf16.mxu0 0
    %4791 = vmatpush1.bf16.msra.mxu0 0
    %4792 = vmatprep.subr.bf16.mxu0 0
    %4793 = vmatpush1.bf16.msra.mxu0 0
    %4794 = vmatprep.subr.bf16.mxu0 0
    %4795 = vmatpush1.bf16.msra.mxu0 0
    %4796 = vmatprep.subr.bf16.mxu0 0
    %4797 = vmatpush1.bf16.msra.mxu0 0
    %4798 = vmatprep.subr.bf16.mxu0 0
    %4799 = vmatpush1.bf16.msra.mxu0 0
    %4800 = vmatprep.subr.bf16.mxu0 0
    %4801 = vmatpush1.bf16.msra.mxu0 0
    %4802 = vmatprep.subr.bf16.mxu0 0
    %4803 = vmatpush1.bf16.msra.mxu0 0
    %4804 = vmatprep.subr.bf16.mxu0 0
    %4805 = vmatpush1.bf16.msra.mxu0 0
    %4806 = vmatprep.subr.bf16.mxu0 0
    %4807 = vmatpush1.bf16.msra.mxu0 0
    %4808 = vmatprep.subr.bf16.mxu0 0
    %4809 = vmatpush1.bf16.msra.mxu0 0
    %4810 = vmatprep.subr.bf16.mxu0 0
    %4811 = vmatpush1.bf16.msra.mxu0 0
    %4812 = vmatprep.subr.bf16.mxu0 0
    %4813 = vmatpush1.bf16.msra.mxu0 0
    %4814 = vmatprep.subr.bf16.mxu0 0
    %4815 = vmatpush1.bf16.msra.mxu0 0
    %4816 = vmatprep.subr.bf16.mxu0 0
    %4817 = vmatpush1.bf16.msra.mxu0 0
    %4818 = vmatprep.mubr.bf16.mxu0 0
    %4819 = vmatmul.mubr.bf16.gmra.mrb[0].mxu0 %v4778
    %v4820 = vpop.f32.mrb[0].mxu0
    %v4821 = vadd.f32 %v4540, %v4820
    %v4822 = vpop.f32.mrb[0].mxu0
    %v4823 = vadd.f32 %v4544, %v4822
    %v4824 = vpop.f32.mrb[0].mxu0
    %v4825 = vadd.f32 %v4540, %v4824
    %v4826 = vpop.f32.mrb[0].mxu0
    %v4827 = vadd.f32 %v4544, %v4826
    %4828 = vmatprep.mubr.bf16.mxu0 0
    %4829 = vmatmul.mubr.bf16.gmra.mrb[0].mxu0 %v4781
    %v4830 = vpop.f32.mrb[0].mxu0
    %v4831 = vadd.f32 %v4540, %v4830
    %v4832 = vpop.f32.mrb[0].mxu0
    %v4833 = vadd.f32 %v4544, %v4832
    %v4834 = vpop.f32.mrb[0].mxu0
    %v4835 = vadd.f32 %v4540, %v4834
    %v4836 = vpop.f32.mrb[0].mxu0
    %v4837 = vadd.f32 %v4544, %v4836
    %4838 = vmatprep.mubr.bf16.mxu0 0
    %4839 = vmatmul.mubr.bf16.gmra.mrb[0].mxu0 %v4784
    %v4840 = vpop.f32.mrb[0].mxu0
    %v4841 = vadd.f32 %v4540, %v4840
    %v4842 = vpop.f32.mrb[0].mxu0
    %v4843 = vadd.f32 %v4544, %v4842
    %v4844 = vpop.f32.mrb[0].mxu0
    %v4845 = vadd.f32 %v4540, %v4844
    %v4846 = vpop.f32.mrb[0].mxu0
    %v4847 = vadd.f32 %v4544, %v4846
    %4848 = vdwg.mxu0
    %4849 = vmatprep.subr.bf16.mxu0 %v4716
    %4850 = vmatpush1.bf16.msra.mxu0 %v4715
    %4851 = vmatprep.subr.bf16.mxu0 %v4732
    %4852 = vmatpush1.bf16.msra.mxu0 %v4731
    %4853 = vmatprep.subr.bf16.mxu0 0
    %4854 = vmatpush1.bf16.msra.mxu0 0
    %4855 = vmatprep.subr.bf16.mxu0 0
    %4856 = vmatpush1.bf16.msra.mxu0 0
    %4857 = vmatprep.subr.bf16.mxu0 0
    %4858 = vmatpush1.bf16.msra.mxu0 0
    %4859 = vmatprep.subr.bf16.mxu0 0
    %4860 = vmatpush1.bf16.msra.mxu0 0
    %4861 = vmatprep.subr.bf16.mxu0 0
    %4862 = vmatpush1.bf16.msra.mxu0 0
    %4863 = vmatprep.subr.bf16.mxu0 0
    %4864 = vmatpush1.bf16.msra.mxu0 0
    %4865 = vmatprep.subr.bf16.mxu0 0
    %4866 = vmatpush1.bf16.msra.mxu0 0
    %4867 = vmatprep.subr.bf16.mxu0 0
    %4868 = vmatpush1.bf16.msra.mxu0 0
    %4869 = vmatprep.subr.bf16.mxu0 0
    %4870 = vmatpush1.bf16.msra.mxu0 0
    %4871 = vmatprep.subr.bf16.mxu0 0
    %4872 = vmatpush1.bf16.msra.mxu0 0
    %4873 = vmatprep.subr.bf16.mxu0 0
    %4874 = vmatpush1.bf16.msra.mxu0 0
    %4875 = vmatprep.subr.bf16.mxu0 0
    %4876 = vmatpush1.bf16.msra.mxu0 0
    %4877 = vmatprep.subr.bf16.mxu0 0
    %4878 = vmatpush1.bf16.msra.mxu0 0
    %4879 = vmatprep.subr.bf16.mxu0 0
    %4880 = vmatpush1.bf16.msra.mxu0 0
    %4881 = vmatprep.mubr.bf16.mxu0 0
    %4882 = vmatmul.mubr.bf16.gmra.mrb[0].mxu0 %v4778
    %v4883 = vpop.f32.mrb[0].mxu0
    %v4884 = vadd.f32 %v4548, %v4883
    %v4885 = vpop.f32.mrb[0].mxu0
    %v4886 = vadd.f32 %v4552, %v4885
    %v4887 = vpop.f32.mrb[0].mxu0
    %v4888 = vadd.f32 %v4548, %v4887
    %v4889 = vpop.f32.mrb[0].mxu0
    %v4890 = vadd.f32 %v4552, %v4889
    %4891 = vmatprep.mubr.bf16.mxu0 0
    %4892 = vmatmul.mubr.bf16.gmra.mrb[0].mxu0 %v4781
    %v4893 = vpop.f32.mrb[0].mxu0
    %v4894 = vadd.f32 %v4548, %v4893
    %v4895 = vpop.f32.mrb[0].mxu0
    %v4896 = vadd.f32 %v4552, %v4895
    %v4897 = vpop.f32.mrb[0].mxu0
    %v4898 = vadd.f32 %v4548, %v4897
    %v4899 = vpop.f32.mrb[0].mxu0
    %v4900 = vadd.f32 %v4552, %v4899
    %4901 = vmatprep.mubr.bf16.mxu0 0
    %4902 = vmatmul.mubr.bf16.gmra.mrb[0].mxu0 %v4784
    %v4903 = vpop.f32.mrb[0].mxu0
    %v4904 = vadd.f32 %v4548, %v4903
    %v4905 = vpop.f32.mrb[0].mxu0
    %v4906 = vadd.f32 %v4552, %v4905
    %v4907 = vpop.f32.mrb[0].mxu0
    %v4908 = vadd.f32 %v4548, %v4907
    %v4909 = vpop.f32.mrb[0].mxu0
    %v4910 = vadd.f32 %v4552, %v4909
    %4911 = vdwg.mxu0
    %4912 = vmatprep.subr.bf16.mxu0 %v4718
    %4913 = vmatpush1.bf16.msra.mxu0 %v4717
    %4914 = vmatprep.subr.bf16.mxu0 %v4734
    %4915 = vmatpush1.bf16.msra.mxu0 %v4733
    %4916 = vmatprep.subr.bf16.mxu0 0
    %4917 = vmatpush1.bf16.msra.mxu0 0
    %4918 = vmatprep.subr.bf16.mxu0 0
    %4919 = vmatpush1.bf16.msra.mxu0 0
    %4920 = vmatprep.subr.bf16.mxu0 0
    %4921 = vmatpush1.bf16.msra.mxu0 0
    %4922 = vmatprep.subr.bf16.mxu0 0
    %4923 = vmatpush1.bf16.msra.mxu0 0
    %4924 = vmatprep.subr.bf16.mxu0 0
    %4925 = vmatpush1.bf16.msra.mxu0 0
    %4926 = vmatprep.subr.bf16.mxu0 0
    %4927 = vmatpush1.bf16.msra.mxu0 0
    %4928 = vmatprep.subr.bf16.mxu0 0
    %4929 = vmatpush1.bf16.msra.mxu0 0
    %4930 = vmatprep.subr.bf16.mxu0 0
    %4931 = vmatpush1.bf16.msra.mxu0 0
    %4932 = vmatprep.subr.bf16.mxu0 0
    %4933 = vmatpush1.bf16.msra.mxu0 0
    %4934 = vmatprep.subr.bf16.mxu0 0
    %4935 = vmatpush1.bf16.msra.mxu0 0
    %4936 = vmatprep.subr.bf16.mxu0 0
    %4937 = vmatpush1.bf16.msra.mxu0 0
    %4938 = vmatprep.subr.bf16.mxu0 0
    %4939 = vmatpush1.bf16.msra.mxu0 0
    %4940 = vmatprep.subr.bf16.mxu0 0
    %4941 = vmatpush1.bf16.msra.mxu0 0
    %4942 = vmatprep.subr.bf16.mxu0 0
    %4943 = vmatpush1.bf16.msra.mxu0 0
    %4944 = vmatprep.mubr.bf16.mxu0 0
    %4945 = vmatmul.mubr.bf16.gmra.mrb[0].mxu0 %v4778
    %v4946 = vpop.f32.mrb[0].mxu0
    %v4947 = vadd.f32 %v4556, %v4946
    %v4948 = vpop.f32.mrb[0].mxu0
    %v4949 = vadd.f32 %v4560, %v4948
    %v4950 = vpop.f32.mrb[0].mxu0
    %v4951 = vadd.f32 %v4556, %v4950
    %v4952 = vpop.f32.mrb[0].mxu0
    %v4953 = vadd.f32 %v4560, %v4952
    %4954 = vmatprep.mubr.bf16.mxu0 0
    %4955 = vmatmul.mubr.bf16.gmra.mrb[0].mxu0 %v4781
    %v4956 = vpop.f32.mrb[0].mxu0
    %v4957 = vadd.f32 %v4556, %v4956
    %v4958 = vpop.f32.mrb[0].mxu0
    %v4959 = vadd.f32 %v4560, %v4958
    %v4960 = vpop.f32.mrb[0].mxu0
    %v4961 = vadd.f32 %v4556, %v4960
    %v4962 = vpop.f32.mrb[0].mxu0
    %v4963 = vadd.f32 %v4560, %v4962
    %4964 = vmatprep.mubr.bf16.mxu0 0
    %4965 = vmatmul.mubr.bf16.gmra.mrb[0].mxu0 %v4784
    %v4966 = vpop.f32.mrb[0].mxu0
    %v4967 = vadd.f32 %v4556, %v4966
    %v4968 = vpop.f32.mrb[0].mxu0
    %v4969 = vadd.f32 %v4560, %v4968
    %v4970 = vpop.f32.mrb[0].mxu0
    %v4971 = vadd.f32 %v4556, %v4970
    %v4972 = vpop.f32.mrb[0].mxu0
    %v4973 = vadd.f32 %v4560, %v4972
    %4974 = vdwg.mxu0
    %4975 = vmatprep.subr.bf16.mxu0 %v4720
    %4976 = vmatpush1.bf16.msra.mxu0 %v4719
    %4977 = vmatprep.subr.bf16.mxu0 %v4736
    %4978 = vmatpush1.bf16.msra.mxu0 %v4735
    %4979 = vmatprep.subr.bf16.mxu0 0
    %4980 = vmatpush1.bf16.msra.mxu0 0
    %4981 = vmatprep.subr.bf16.mxu0 0
    %4982 = vmatpush1.bf16.msra.mxu0 0
    %4983 = vmatprep.subr.bf16.mxu0 0
    %4984 = vmatpush1.bf16.msra.mxu0 0
    %4985 = vmatprep.subr.bf16.mxu0 0
    %4986 = vmatpush1.bf16.msra.mxu0 0
    %4987 = vmatprep.subr.bf16.mxu0 0
    %4988 = vmatpush1.bf16.msra.mxu0 0
    %4989 = vmatprep.subr.bf16.mxu0 0
    %4990 = vmatpush1.bf16.msra.mxu0 0
    %4991 = vmatprep.subr.bf16.mxu0 0
    %4992 = vmatpush1.bf16.msra.mxu0 0
    %4993 = vmatprep.subr.bf16.mxu0 0
    %4994 = vmatpush1.bf16.msra.mxu0 0
    %4995 = vmatprep.subr.bf16.mxu0 0
    %4996 = vmatpush1.bf16.msra.mxu0 0
    %4997 = vmatprep.subr.bf16.mxu0 0
    %4998 = vmatpush1.bf16.msra.mxu0 0
    %4999 = vmatprep.subr.bf16.mxu0 0
    %5000 = vmatpush1.bf16.msra.mxu0 0
    %5001 = vmatprep.subr.bf16.mxu0 0
    %5002 = vmatpush1.bf16.msra.mxu0 0
    %5003 = vmatprep.subr.bf16.mxu0 0
    %5004 = vmatpush1.bf16.msra.mxu0 0
    %5005 = vmatprep.subr.bf16.mxu0 0
    %5006 = vmatpush1.bf16.msra.mxu0 0
    %5007 = vmatprep.mubr.bf16.mxu0 0
    %5008 = vmatmul.mubr.bf16.gmra.mrb[0].mxu0 %v4778
    %v5009 = vpop.f32.mrb[0].mxu0
    %v5010 = vadd.f32 %v4564, %v5009
    %v5011 = vpop.f32.mrb[0].mxu0
    %v5012 = vadd.f32 %v4568, %v5011
    %v5013 = vpop.f32.mrb[0].mxu0
    %v5014 = vadd.f32 %v4564, %v5013
    %v5015 = vpop.f32.mrb[0].mxu0
    %v5016 = vadd.f32 %v4568, %v5015
    %5017 = vmatprep.mubr.bf16.mxu0 0
    %5018 = vmatmul.mubr.bf16.gmra.mrb[0].mxu0 %v4781
    %v5019 = vpop.f32.mrb[0].mxu0
    %v5020 = vadd.f32 %v4564, %v5019
    %v5021 = vpop.f32.mrb[0].mxu0
    %v5022 = vadd.f32 %v4568, %v5021
    %v5023 = vpop.f32.mrb[0].mxu0
    %v5024 = vadd.f32 %v4564, %v5023
    %v5025 = vpop.f32.mrb[0].mxu0
    %v5026 = vadd.f32 %v4568, %v5025
    %5027 = vmatprep.mubr.bf16.mxu0 0
    %5028 = vmatmul.mubr.bf16.gmra.mrb[0].mxu0 %v4784
    %v5029 = vpop.f32.mrb[0].mxu0
    %v5030 = vadd.f32 %v4564, %v5029
    %v5031 = vpop.f32.mrb[0].mxu0
    %v5032 = vadd.f32 %v4568, %v5031
    %v5033 = vpop.f32.mrb[0].mxu0
    %v5034 = vadd.f32 %v4564, %v5033
    %v5035 = vpop.f32.mrb[0].mxu0
    %v5036 = vadd.f32 %v4568, %v5035
    %5037 = vdwg.mxu0
    %5038 = vmatprep.subr.bf16.mxu0 %v4722
    %5039 = vmatpush1.bf16.msra.mxu0 %v4721
    %5040 = vmatprep.subr.bf16.mxu0 %v4738
    %5041 = vmatpush1.bf16.msra.mxu0 %v4737
    %5042 = vmatprep.subr.bf16.mxu0 0
    %5043 = vmatpush1.bf16.msra.mxu0 0
    %5044 = vmatprep.subr.bf16.mxu0 0
    %5045 = vmatpush1.bf16.msra.mxu0 0
    %5046 = vmatprep.subr.bf16.mxu0 0
    %5047 = vmatpush1.bf16.msra.mxu0 0
    %5048 = vmatprep.subr.bf16.mxu0 0
    %5049 = vmatpush1.bf16.msra.mxu0 0
    %5050 = vmatprep.subr.bf16.mxu0 0
    %5051 = vmatpush1.bf16.msra.mxu0 0
    %5052 = vmatprep.subr.bf16.mxu0 0
    %5053 = vmatpush1.bf16.msra.mxu0 0
    %5054 = vmatprep.subr.bf16.mxu0 0
    %5055 = vmatpush1.bf16.msra.mxu0 0
    %5056 = vmatprep.subr.bf16.mxu0 0
    %5057 = vmatpush1.bf16.msra.mxu0 0
    %5058 = vmatprep.subr.bf16.mxu0 0
    %5059 = vmatpush1.bf16.msra.mxu0 0
    %5060 = vmatprep.subr.bf16.mxu0 0
    %5061 = vmatpush1.bf16.msra.mxu0 0
    %5062 = vmatprep.subr.bf16.mxu0 0
    %5063 = vmatpush1.bf16.msra.mxu0 0
    %5064 = vmatprep.subr.bf16.mxu0 0
    %5065 = vmatpush1.bf16.msra.mxu0 0
    %5066 = vmatprep.subr.bf16.mxu0 0
    %5067 = vmatpush1.bf16.msra.mxu0 0
    %5068 = vmatprep.subr.bf16.mxu0 0
    %5069 = vmatpush1.bf16.msra.mxu0 0
    %5070 = vmatprep.mubr.bf16.mxu0 0
    %5071 = vmatmul.mubr.bf16.gmra.mrb[0].mxu0 %v4778
    %v5072 = vpop.f32.mrb[0].mxu0
    %v5073 = vadd.f32 %v4572, %v5072
    %v5074 = vpop.f32.mrb[0].mxu0
    %v5075 = vadd.f32 %v4576, %v5074
    %v5076 = vpop.f32.mrb[0].mxu0
    %v5077 = vadd.f32 %v4572, %v5076
    %v5078 = vpop.f32.mrb[0].mxu0
    %v5079 = vadd.f32 %v4576, %v5078
    %5080 = vmatprep.mubr.bf16.mxu0 0
    %5081 = vmatmul.mubr.bf16.gmra.mrb[0].mxu0 %v4781
    %v5082 = vpop.f32.mrb[0].mxu0
    %v5083 = vadd.f32 %v4572, %v5082
    %v5084 = vpop.f32.mrb[0].mxu0
    %v5085 = vadd.f32 %v4576, %v5084
    %v5086 = vpop.f32.mrb[0].mxu0
    %v5087 = vadd.f32 %v4572, %v5086
    %v5088 = vpop.f32.mrb[0].mxu0
    %v5089 = vadd.f32 %v4576, %v5088
    %5090 = vmatprep.mubr.bf16.mxu0 0
    %5091 = vmatmul.mubr.bf16.gmra.mrb[0].mxu0 %v4784
    %v5092 = vpop.f32.mrb[0].mxu0
    %v5093 = vadd.f32 %v4572, %v5092
    %v5094 = vpop.f32.mrb[0].mxu0
    %v5095 = vadd.f32 %v4576, %v5094
    %v5096 = vpop.f32.mrb[0].mxu0
    %v5097 = vadd.f32 %v4572, %v5096
    %v5098 = vpop.f32.mrb[0].mxu0
    %v5099 = vadd.f32 %v4576, %v5098
    %5100 = vdwg.mxu0
    %5101 = vmatprep.subr.bf16.mxu0 %v4724
    %5102 = vmatpush1.bf16.msra.mxu0 %v4723
    %5103 = vmatprep.subr.bf16.mxu0 %v4740
    %5104 = vmatpush1.bf16.msra.mxu0 %v4739
    %5105 = vmatprep.subr.bf16.mxu0 0
    %5106 = vmatpush1.bf16.msra.mxu0 0
    %5107 = vmatprep.subr.bf16.mxu0 0
    %5108 = vmatpush1.bf16.msra.mxu0 0
    %5109 = vmatprep.subr.bf16.mxu0 0
    %5110 = vmatpush1.bf16.msra.mxu0 0
    %5111 = vmatprep.subr.bf16.mxu0 0
    %5112 = vmatpush1.bf16.msra.mxu0 0
    %5113 = vmatprep.subr.bf16.mxu0 0
    %5114 = vmatpush1.bf16.msra.mxu0 0
    %5115 = vmatprep.subr.bf16.mxu0 0
    %5116 = vmatpush1.bf16.msra.mxu0 0
    %5117 = vmatprep.subr.bf16.mxu0 0
    %5118 = vmatpush1.bf16.msra.mxu0 0
    %5119 = vmatprep.subr.bf16.mxu0 0
    %5120 = vmatpush1.bf16.msra.mxu0 0
    %5121 = vmatprep.subr.bf16.mxu0 0
    %5122 = vmatpush1.bf16.msra.mxu0 0
    %5123 = vmatprep.subr.bf16.mxu0 0
    %5124 = vmatpush1.bf16.msra.mxu0 0
    %5125 = vmatprep.subr.bf16.mxu0 0
    %5126 = vmatpush1.bf16.msra.mxu0 0
    %5127 = vmatprep.subr.bf16.mxu0 0
    %5128 = vmatpush1.bf16.msra.mxu0 0
    %5129 = vmatprep.subr.bf16.mxu0 0
    %5130 = vmatpush1.bf16.msra.mxu0 0
    %5131 = vmatprep.subr.bf16.mxu0 0
    %5132 = vmatpush1.bf16.msra.mxu0 0
    %5133 = vmatprep.mubr.bf16.mxu0 0
    %5134 = vmatmul.mubr.bf16.gmra.mrb[0].mxu0 %v4778
    %v5135 = vpop.f32.mrb[0].mxu0
    %v5136 = vadd.f32 %v4580, %v5135
    %v5137 = vpop.f32.mrb[0].mxu0
    %v5138 = vadd.f32 %v4584, %v5137
    %v5139 = vpop.f32.mrb[0].mxu0
    %v5140 = vadd.f32 %v4580, %v5139
    %v5141 = vpop.f32.mrb[0].mxu0
    %v5142 = vadd.f32 %v4584, %v5141
    %5143 = vmatprep.mubr.bf16.mxu0 0
    %5144 = vmatmul.mubr.bf16.gmra.mrb[0].mxu0 %v4781
    %v5145 = vpop.f32.mrb[0].mxu0
    %v5146 = vadd.f32 %v4580, %v5145
    %v5147 = vpop.f32.mrb[0].mxu0
    %v5148 = vadd.f32 %v4584, %v5147
    %v5149 = vpop.f32.mrb[0].mxu0
    %v5150 = vadd.f32 %v4580, %v5149
    %v5151 = vpop.f32.mrb[0].mxu0
    %v5152 = vadd.f32 %v4584, %v5151
    %5153 = vmatprep.mubr.bf16.mxu0 0
    %5154 = vmatmul.mubr.bf16.gmra.mrb[0].mxu0 %v4784
    %v5155 = vpop.f32.mrb[0].mxu0
    %v5156 = vadd.f32 %v4580, %v5155
    %v5157 = vpop.f32.mrb[0].mxu0
    %v5158 = vadd.f32 %v4584, %v5157
    %v5159 = vpop.f32.mrb[0].mxu0
    %v5160 = vadd.f32 %v4580, %v5159
    %v5161 = vpop.f32.mrb[0].mxu0
    %v5162 = vadd.f32 %v4584, %v5161
    %5163 = vdwg.mxu0
    %5164 = vmatprep.subr.bf16.mxu0 %v4726
    %5165 = vmatpush1.bf16.msra.mxu0 %v4725
    %5166 = vmatprep.subr.bf16.mxu0 %v4742
    %5167 = vmatpush1.bf16.msra.mxu0 %v4741
    %5168 = vmatprep.subr.bf16.mxu0 0
    %5169 = vmatpush1.bf16.msra.mxu0 0
    %5170 = vmatprep.subr.bf16.mxu0 0
    %5171 = vmatpush1.bf16.msra.mxu0 0
    %5172 = vmatprep.subr.bf16.mxu0 0
    %5173 = vmatpush1.bf16.msra.mxu0 0
    %5174 = vmatprep.subr.bf16.mxu0 0
    %5175 = vmatpush1.bf16.msra.mxu0 0
    %5176 = vmatprep.subr.bf16.mxu0 0
    %5177 = vmatpush1.bf16.msra.mxu0 0
    %5178 = vmatprep.subr.bf16.mxu0 0
    %5179 = vmatpush1.bf16.msra.mxu0 0
    %5180 = vmatprep.subr.bf16.mxu0 0
    %5181 = vmatpush1.bf16.msra.mxu0 0
    %5182 = vmatprep.subr.bf16.mxu0 0
    %5183 = vmatpush1.bf16.msra.mxu0 0
    %5184 = vmatprep.subr.bf16.mxu0 0
    %5185 = vmatpush1.bf16.msra.mxu0 0
    %5186 = vmatprep.subr.bf16.mxu0 0
    %5187 = vmatpush1.bf16.msra.mxu0 0
    %5188 = vmatprep.subr.bf16.mxu0 0
    %5189 = vmatpush1.bf16.msra.mxu0 0
    %5190 = vmatprep.subr.bf16.mxu0 0
    %5191 = vmatpush1.bf16.msra.mxu0 0
    %5192 = vmatprep.subr.bf16.mxu0 0
    %5193 = vmatpush1.bf16.msra.mxu0 0
    %5194 = vmatprep.subr.bf16.mxu0 0
    %5195 = vmatpush1.bf16.msra.mxu0 0
    %5196 = vmatprep.mubr.bf16.mxu0 0
    %5197 = vmatmul.mubr.bf16.gmra.mrb[0].mxu0 %v4778
    %v5198 = vpop.f32.mrb[0].mxu0
    %v5199 = vadd.f32 %v4588, %v5198
    %v5200 = vpop.f32.mrb[0].mxu0
    %v5201 = vadd.f32 %v4592, %v5200
    %v5202 = vpop.f32.mrb[0].mxu0
    %v5203 = vadd.f32 %v4588, %v5202
    %v5204 = vpop.f32.mrb[0].mxu0
    %v5205 = vadd.f32 %v4592, %v5204
    %5206 = vmatprep.mubr.bf16.mxu0 0
    %5207 = vmatmul.mubr.bf16.gmra.mrb[0].mxu0 %v4781
    %v5208 = vpop.f32.mrb[0].mxu0
    %v5209 = vadd.f32 %v4588, %v5208
    %v5210 = vpop.f32.mrb[0].mxu0
    %v5211 = vadd.f32 %v4592, %v5210
    %v5212 = vpop.f32.mrb[0].mxu0
    %v5213 = vadd.f32 %v4588, %v5212
    %v5214 = vpop.f32.mrb[0].mxu0
    %v5215 = vadd.f32 %v4592, %v5214
    %5216 = vmatprep.mubr.bf16.mxu0 0
    %5217 = vmatmul.mubr.bf16.gmra.mrb[0].mxu0 %v4784
    %v5218 = vpop.f32.mrb[0].mxu0
    %v5219 = vadd.f32 %v4588, %v5218
    %v5220 = vpop.f32.mrb[0].mxu0
    %v5221 = vadd.f32 %v4592, %v5220
    %v5222 = vpop.f32.mrb[0].mxu0
    %v5223 = vadd.f32 %v4588, %v5222
    %v5224 = vpop.f32.mrb[0].mxu0
    %v5225 = vadd.f32 %v4592, %v5224
    %5226 = vdwg.mxu0
    %5227 = vmatprep.subr.bf16.mxu0 %v4728
    %5228 = vmatpush1.bf16.msra.mxu0 %v4727
    %5229 = vmatprep.subr.bf16.mxu0 %v4744
    %5230 = vmatpush1.bf16.msra.mxu0 %v4743
    %5231 = vmatprep.subr.bf16.mxu0 0
    %5232 = vmatpush1.bf16.msra.mxu0 0
    %5233 = vmatprep.subr.bf16.mxu0 0
    %5234 = vmatpush1.bf16.msra.mxu0 0
    %5235 = vmatprep.subr.bf16.mxu0 0
    %5236 = vmatpush1.bf16.msra.mxu0 0
    %5237 = vmatprep.subr.bf16.mxu0 0
    %5238 = vmatpush1.bf16.msra.mxu0 0
    %5239 = vmatprep.subr.bf16.mxu0 0
    %5240 = vmatpush1.bf16.msra.mxu0 0
    %5241 = vmatprep.subr.bf16.mxu0 0
    %5242 = vmatpush1.bf16.msra.mxu0 0
    %5243 = vmatprep.subr.bf16.mxu0 0
    %5244 = vmatpush1.bf16.msra.mxu0 0
    %5245 = vmatprep.subr.bf16.mxu0 0
    %5246 = vmatpush1.bf16.msra.mxu0 0
    %5247 = vmatprep.subr.bf16.mxu0 0
    %5248 = vmatpush1.bf16.msra.mxu0 0
    %5249 = vmatprep.subr.bf16.mxu0 0
    %5250 = vmatpush1.bf16.msra.mxu0 0
    %5251 = vmatprep.subr.bf16.mxu0 0
    %5252 = vmatpush1.bf16.msra.mxu0 0
    %5253 = vmatprep.subr.bf16.mxu0 0
    %5254 = vmatpush1.bf16.msra.mxu0 0
    %5255 = vmatprep.subr.bf16.mxu0 0
    %5256 = vmatpush1.bf16.msra.mxu0 0
    %5257 = vmatprep.subr.bf16.mxu0 0
    %5258 = vmatpush1.bf16.msra.mxu0 0
    %5259 = vmatprep.mubr.bf16.mxu0 0
    %5260 = vmatmul.mubr.bf16.gmra.mrb[0].mxu0 %v4778
    %v5261 = vpop.f32.mrb[0].mxu0
    %v5262 = vadd.f32 %v4596, %v5261
    %v5263 = vpop.f32.mrb[0].mxu0
    %v5264 = vadd.f32 %v4600, %v5263
    %v5265 = vpop.f32.mrb[0].mxu0
    %v5266 = vadd.f32 %v4596, %v5265
    %v5267 = vpop.f32.mrb[0].mxu0
    %v5268 = vadd.f32 %v4600, %v5267
    %5269 = vmatprep.mubr.bf16.mxu0 0
    %5270 = vmatmul.mubr.bf16.gmra.mrb[0].mxu0 %v4781
    %v5271 = vpop.f32.mrb[0].mxu0
    %v5272 = vadd.f32 %v4596, %v5271
    %v5273 = vpop.f32.mrb[0].mxu0
    %v5274 = vadd.f32 %v4600, %v5273
    %v5275 = vpop.f32.mrb[0].mxu0
    %v5276 = vadd.f32 %v4596, %v5275
    %v5277 = vpop.f32.mrb[0].mxu0
    %v5278 = vadd.f32 %v4600, %v5277
    %5279 = vmatprep.mubr.bf16.mxu0 0
    %5280 = vmatmul.mubr.bf16.gmra.mrb[0].mxu0 %v4784
    %v5281 = vpop.f32.mrb[0].mxu0
    %v5282 = vadd.f32 %v4596, %v5281
    %v5283 = vpop.f32.mrb[0].mxu0
    %v5284 = vadd.f32 %v4600, %v5283
    %v5285 = vpop.f32.mrb[0].mxu0
    %v5286 = vadd.f32 %v4596, %v5285
    %v5287 = vpop.f32.mrb[0].mxu0
    %v5288 = vadd.f32 %v4600, %v5287
    %5289 = vdwg.mxu0
    %v5290 = vmax.f32 %v4821, 0.0
    %v5291 = vmax.f32 %v4823, 0.0
    %v5292 = vmax.f32 %v4884, 0.0
    %v5293 = vmax.f32 %v4886, 0.0
    %v5294 = vmax.f32 %v4947, 0.0
    %v5295 = vmax.f32 %v4949, 0.0
    %v5296 = vmax.f32 %v5010, 0.0
    %v5297 = vmax.f32 %v5012, 0.0
    %v5298 = vmax.f32 %v5073, 0.0
    %v5299 = vmax.f32 %v5075, 0.0
    %v5300 = vmax.f32 %v5136, 0.0
    %v5301 = vmax.f32 %v5138, 0.0
    %v5302 = vmax.f32 %v5199, 0.0
    %v5303 = vmax.f32 %v5201, 0.0
    %v5304 = vmax.f32 %v5262, 0.0
    %v5305 = vmax.f32 %v5264, 0.0
    %v5306 = vmax.f32 %v4825, 0.0
    %v5307 = vmax.f32 %v4827, 0.0
    %v5308 = vmax.f32 %v4888, 0.0
    %v5309 = vmax.f32 %v4890, 0.0
    %v5310 = vmax.f32 %v4951, 0.0
    %v5311 = vmax.f32 %v4953, 0.0
    %v5312 = vmax.f32 %v5014, 0.0
    %v5313 = vmax.f32 %v5016, 0.0
    %v5314 = vmax.f32 %v5077, 0.0
    %v5315 = vmax.f32 %v5079, 0.0
    %v5316 = vmax.f32 %v5140, 0.0
    %v5317 = vmax.f32 %v5142, 0.0
    %v5318 = vmax.f32 %v5203, 0.0
    %v5319 = vmax.f32 %v5205, 0.0
    %v5320 = vmax.f32 %v5266, 0.0
    %v5321 = vmax.f32 %v5268, 0.0
    %v5322 = vmax.f32 %v4831, 0.0
    %v5323 = vmax.f32 %v4833, 0.0
    %v5324 = vmax.f32 %v4894, 0.0
    %v5325 = vmax.f32 %v4896, 0.0
    %v5326 = vmax.f32 %v4957, 0.0
    %v5327 = vmax.f32 %v4959, 0.0
    %v5328 = vmax.f32 %v5020, 0.0
    %v5329 = vmax.f32 %v5022, 0.0
    %v5330 = vmax.f32 %v5083, 0.0
    %v5331 = vmax.f32 %v5085, 0.0
    %v5332 = vmax.f32 %v5146, 0.0
    %v5333 = vmax.f32 %v5148, 0.0
    %v5334 = vmax.f32 %v5209, 0.0
    %v5335 = vmax.f32 %v5211, 0.0
    %v5336 = vmax.f32 %v5272, 0.0
    %v5337 = vmax.f32 %v5274, 0.0
    %v5338 = vmax.f32 %v4835, 0.0
    %v5339 = vmax.f32 %v4837, 0.0
    %v5340 = vmax.f32 %v4898, 0.0
    %v5341 = vmax.f32 %v4900, 0.0
    %v5342 = vmax.f32 %v4961, 0.0
    %v5343 = vmax.f32 %v4963, 0.0
    %v5344 = vmax.f32 %v5024, 0.0
    %v5345 = vmax.f32 %v5026, 0.0
    %v5346 = vmax.f32 %v5087, 0.0
    %v5347 = vmax.f32 %v5089, 0.0
    %v5348 = vmax.f32 %v5150, 0.0
    %v5349 = vmax.f32 %v5152, 0.0
    %v5350 = vmax.f32 %v5213, 0.0
    %v5351 = vmax.f32 %v5215, 0.0
    %v5352 = vmax.f32 %v5276, 0.0
    %v5353 = vmax.f32 %v5278, 0.0
    %v5354 = vmax.f32 %v4841, 0.0
    %v5355 = vmax.f32 %v4843, 0.0
    %v5356 = vmax.f32 %v4904, 0.0
    %v5357 = vmax.f32 %v4906, 0.0
    %v5358 = vmax.f32 %v4967, 0.0
    %v5359 = vmax.f32 %v4969, 0.0
    %v5360 = vmax.f32 %v5030, 0.0
    %v5361 = vmax.f32 %v5032, 0.0
    %v5362 = vmax.f32 %v5093, 0.0
    %v5363 = vmax.f32 %v5095, 0.0
    %v5364 = vmax.f32 %v5156, 0.0
    %v5365 = vmax.f32 %v5158, 0.0
    %v5366 = vmax.f32 %v5219, 0.0
    %v5367 = vmax.f32 %v5221, 0.0
    %v5368 = vmax.f32 %v5282, 0.0
    %v5369 = vmax.f32 %v5284, 0.0
    %v5370 = vmax.f32 %v4845, 0.0
    %v5371 = vmax.f32 %v4847, 0.0
    %v5372 = vmax.f32 %v4908, 0.0
    %v5373 = vmax.f32 %v4910, 0.0
    %v5374 = vmax.f32 %v4971, 0.0
    %v5375 = vmax.f32 %v4973, 0.0
    %v5376 = vmax.f32 %v5034, 0.0
    %v5377 = vmax.f32 %v5036, 0.0
    %v5378 = vmax.f32 %v5097, 0.0
    %v5379 = vmax.f32 %v5099, 0.0
    %v5380 = vmax.f32 %v5160, 0.0
    %v5381 = vmax.f32 %v5162, 0.0
    %v5382 = vmax.f32 %v5223, 0.0
    %v5383 = vmax.f32 %v5225, 0.0
    %v5384 = vmax.f32 %v5286, 0.0
    %v5385 = vmax.f32 %v5288, 0.0
    %v5386 = vpack.c.bf16 %v5306, %v5290
    %v5387 = vpack.c.bf16 %v5307, %v5291
    %v5388 = vpack.c.bf16 %v5308, %v5292
    %v5389 = vpack.c.bf16 %v5309, %v5293
    %v5390 = vpack.c.bf16 %v5310, %v5294
    %v5391 = vpack.c.bf16 %v5311, %v5295
    %v5392 = vpack.c.bf16 %v5312, %v5296
    %v5393 = vpack.c.bf16 %v5313, %v5297
    %v5394 = vpack.c.bf16 %v5314, %v5298
    %v5395 = vpack.c.bf16 %v5315, %v5299
    %v5396 = vpack.c.bf16 %v5316, %v5300
    %v5397 = vpack.c.bf16 %v5317, %v5301
    %v5398 = vpack.c.bf16 %v5318, %v5302
    %v5399 = vpack.c.bf16 %v5319, %v5303
    %v5400 = vpack.c.bf16 %v5320, %v5304
    %v5401 = vpack.c.bf16 %v5321, %v5305
    %v5402 = vpack.c.bf16 %v5338, %v5322
    %v5403 = vpack.c.bf16 %v5339, %v5323
    %v5404 = vpack.c.bf16 %v5340, %v5324
    %v5405 = vpack.c.bf16 %v5341, %v5325
    %v5406 = vpack.c.bf16 %v5342, %v5326
    %v5407 = vpack.c.bf16 %v5343, %v5327
    %v5408 = vpack.c.bf16 %v5344, %v5328
    %v5409 = vpack.c.bf16 %v5345, %v5329
    %v5410 = vpack.c.bf16 %v5346, %v5330
    %v5411 = vpack.c.bf16 %v5347, %v5331
    %v5412 = vpack.c.bf16 %v5348, %v5332
    %v5413 = vpack.c.bf16 %v5349, %v5333
    %v5414 = vpack.c.bf16 %v5350, %v5334
    %v5415 = vpack.c.bf16 %v5351, %v5335
    %v5416 = vpack.c.bf16 %v5352, %v5336
    %v5417 = vpack.c.bf16 %v5353, %v5337
    %v5418 = vpack.c.bf16 %v5370, %v5354
    %v5419 = vpack.c.bf16 %v5371, %v5355
    %v5420 = vpack.c.bf16 %v5372, %v5356
    %v5421 = vpack.c.bf16 %v5373, %v5357
    %v5422 = vpack.c.bf16 %v5374, %v5358
    %v5423 = vpack.c.bf16 %v5375, %v5359
    %v5424 = vpack.c.bf16 %v5376, %v5360
    %v5425 = vpack.c.bf16 %v5377, %v5361
    %v5426 = vpack.c.bf16 %v5378, %v5362
    %v5427 = vpack.c.bf16 %v5379, %v5363
    %v5428 = vpack.c.bf16 %v5380, %v5364
    %v5429 = vpack.c.bf16 %v5381, %v5365
    %v5430 = vpack.c.bf16 %v5382, %v5366
    %v5431 = vpack.c.bf16 %v5383, %v5367
    %v5432 = vpack.c.bf16 %v5384, %v5368
    %v5433 = vpack.c.bf16 %v5385, %v5369
    %v5434 = vld [vmem:[%s7] sm:$0xf]
    %v5435 = vld [vmem:[%s7 + $0x4] sm:$0xf]
    %v5436 = vld [vmem:[%s7 + $0x8] sm:$0xf]
    %v5437 = vld [vmem:[%s7 + $0xc] sm:$0xf]
    %v5438 = vld [vmem:[%s7 + $0x10] sm:$0xf]
    %v5439 = vld [vmem:[%s7 + $0x14] sm:$0xf]
    %v5440 = vld [vmem:[%s7 + $0x18] sm:$0xf]
    %v5441 = vld [vmem:[%s7 + $0x1c] sm:$0xf]
    %v5442 = vld [vmem:[%s7 + $0x20] sm:$0xf]
    %v5443 = vld [vmem:[%s7 + $0x24] sm:$0xf]
    %v5444 = vld [vmem:[%s7 + $0x28] sm:$0xf]
    %v5445 = vld [vmem:[%s7 + $0x2c] sm:$0xf]
    %v5446 = vld [vmem:[%s7 + $0x30] sm:$0xf]
    %v5447 = vld [vmem:[%s7 + $0x34] sm:$0xf]
    %v5448 = vld [vmem:[%s7 + $0x38] sm:$0xf]
    %v5449 = vld [vmem:[%s7 + $0x3c] sm:$0xf]
    %v5450 = vld [vmem:[%s7 + $0x40] sm:$0xf]
    %v5451 = vld [vmem:[%s7 + $0x44] sm:$0xf]
    %v5452 = vld [vmem:[%s7 + $0x48] sm:$0xf]
    %v5453 = vld [vmem:[%s7 + $0x4c] sm:$0xf]
    %v5454 = vld [vmem:[%s7 + $0x50] sm:$0xf]
    %v5455 = vld [vmem:[%s7 + $0x54] sm:$0xf]
    %v5456 = vld [vmem:[%s7 + $0x58] sm:$0xf]
    %v5457 = vld [vmem:[%s7 + $0x5c] sm:$0xf]
    %v5458 = vld [vmem:[%s7 + $0x60] sm:$0xf]
    %v5459 = vld [vmem:[%s7 + $0x64] sm:$0xf]
    %v5460 = vld [vmem:[%s7 + $0x68] sm:$0xf]
    %v5461 = vld [vmem:[%s7 + $0x6c] sm:$0xf]
    %v5462 = vld [vmem:[%s7 + $0x70] sm:$0xf]
    %v5463 = vld [vmem:[%s7 + $0x74] sm:$0xf]
    %v5464 = vld [vmem:[%s7 + $0x78] sm:$0xf]
    %v5465 = vld [vmem:[%s7 + $0x7c] sm:$0xf]
    %v5466 = vld [vmem:[%s7 + $0x80] sm:$0xf]
    %v5467 = vld [vmem:[%s7 + $0x84] sm:$0xf]
    %v5468 = vld [vmem:[%s7 + $0x88] sm:$0xf]
    %v5469 = vld [vmem:[%s7 + $0x8c] sm:$0xf]
    %v5470 = vld [vmem:[%s7 + $0x90] sm:$0xf]
    %v5471 = vld [vmem:[%s7 + $0x94] sm:$0xf]
    %v5472 = vld [vmem:[%s7 + $0x98] sm:$0xf]
    %v5473 = vld [vmem:[%s7 + $0x9c] sm:$0xf]
    %v5474 = vld [vmem:[%s7 + $0xa0] sm:$0xf]
    %v5475 = vld [vmem:[%s7 + $0xa4] sm:$0xf]
    %v5476 = vld [vmem:[%s7 + $0xa8] sm:$0xf]
    %v5477 = vld [vmem:[%s7 + $0xac] sm:$0xf]
    %v5478 = vld [vmem:[%s7 + $0xb0] sm:$0xf]
    %v5479 = vld [vmem:[%s7 + $0xb4] sm:$0xf]
    %v5480 = vld [vmem:[%s7 + $0xb8] sm:$0xf]
    %v5481 = vld [vmem:[%s7 + $0xbc] sm:$0xf]
    %v5482 = vld [vmem:[%s7 + $0xc0] sm:$0xf]
    %v5483 = vld [vmem:[%s7 + $0xc4] sm:$0xf]
    %v5484 = vld [vmem:[%s7 + $0xc8] sm:$0xf]
    %v5485 = vld [vmem:[%s7 + $0xcc] sm:$0xf]
    %v5486 = vld [vmem:[%s7 + $0xd0] sm:$0xf]
    %v5487 = vld [vmem:[%s7 + $0xd4] sm:$0xf]
    %v5488 = vld [vmem:[%s7 + $0xd8] sm:$0xf]
    %v5489 = vld [vmem:[%s7 + $0xdc] sm:$0xf]
    %v5490 = vld [vmem:[%s7 + $0xe0] sm:$0xf]
    %v5491 = vld [vmem:[%s7 + $0xe4] sm:$0xf]
    %v5492 = vld [vmem:[%s7 + $0xe8] sm:$0xf]
    %v5493 = vld [vmem:[%s7 + $0xec] sm:$0xf]
    %v5494 = vld [vmem:[%s7 + $0xf0] sm:$0xf]
    %v5495 = vld [vmem:[%s7 + $0xf4] sm:$0xf]
    %v5496 = vld [vmem:[%s7 + $0xf8] sm:$0xf]
    %v5497 = vld [vmem:[%s7 + $0xfc] sm:$0xf]
    %v5498 = vld [vmem:[%s7 + $0x100] sm:$0xf]
    %v5499 = vld [vmem:[%s7 + $0x104] sm:$0xf]
    %v5500 = vld [vmem:[%s7 + $0x108] sm:$0xf]
    %v5501 = vld [vmem:[%s7 + $0x10c] sm:$0xf]
    %v5502 = vld [vmem:[%s7 + $0x110] sm:$0xf]
    %v5503 = vld [vmem:[%s7 + $0x114] sm:$0xf]
    %v5504 = vld [vmem:[%s7 + $0x118] sm:$0xf]
    %v5505 = vld [vmem:[%s7 + $0x11c] sm:$0xf]
    %v5506 = vld [vmem:[%s7 + $0x120] sm:$0xf]
    %v5507 = vld [vmem:[%s7 + $0x124] sm:$0xf]
    %v5508 = vld [vmem:[%s7 + $0x128] sm:$0xf]
    %v5509 = vld [vmem:[%s7 + $0x12c] sm:$0xf]
    %v5510 = vld [vmem:[%s7 + $0x130] sm:$0xf]
    %v5511 = vld [vmem:[%s7 + $0x134] sm:$0xf]
    %v5512 = vld [vmem:[%s7 + $0x138] sm:$0xf]
    %v5513 = vld [vmem:[%s7 + $0x13c] sm:$0xf]
    %v5514 = vld [vmem:[%s7 + $0x140] sm:$0xf]
    %v5515 = vld [vmem:[%s7 + $0x144] sm:$0xf]
    %v5516 = vld [vmem:[%s7 + $0x148] sm:$0xf]
    %v5517 = vld [vmem:[%s7 + $0x14c] sm:$0xf]
    %v5518 = vld [vmem:[%s7 + $0x150] sm:$0xf]
    %v5519 = vld [vmem:[%s7 + $0x154] sm:$0xf]
    %v5520 = vld [vmem:[%s7 + $0x158] sm:$0xf]
    %v5521 = vld [vmem:[%s7 + $0x15c] sm:$0xf]
    %v5522 = vld [vmem:[%s7 + $0x160] sm:$0xf]
    %v5523 = vld [vmem:[%s7 + $0x164] sm:$0xf]
    %v5524 = vld [vmem:[%s7 + $0x168] sm:$0xf]
    %v5525 = vld [vmem:[%s7 + $0x16c] sm:$0xf]
    %v5526 = vld [vmem:[%s7 + $0x170] sm:$0xf]
    %v5527 = vld [vmem:[%s7 + $0x174] sm:$0xf]
    %v5528 = vld [vmem:[%s7 + $0x178] sm:$0xf]
    %v5529 = vld [vmem:[%s7 + $0x17c] sm:$0xf]
    %v5530 = vld [vmem:[%s7 + $0x180] sm:$0xf]
    %v5531 = vld [vmem:[%s7 + $0x184] sm:$0xf]
    %v5532 = vld [vmem:[%s7 + $0x188] sm:$0xf]
    %v5533 = vld [vmem:[%s7 + $0x18c] sm:$0xf]
    %v5534 = vld [vmem:[%s7 + $0x190] sm:$0xf]
    %v5535 = vld [vmem:[%s7 + $0x194] sm:$0xf]
    %v5536 = vld [vmem:[%s7 + $0x198] sm:$0xf]
    %v5537 = vld [vmem:[%s7 + $0x19c] sm:$0xf]
    %v5538 = vld [vmem:[%s7 + $0x1a0] sm:$0xf]
    %v5539 = vld [vmem:[%s7 + $0x1a4] sm:$0xf]
    %v5540 = vld [vmem:[%s7 + $0x1a8] sm:$0xf]
    %v5541 = vld [vmem:[%s7 + $0x1ac] sm:$0xf]
    %v5542 = vld [vmem:[%s7 + $0x1b0] sm:$0xf]
    %v5543 = vld [vmem:[%s7 + $0x1b4] sm:$0xf]
    %v5544 = vld [vmem:[%s7 + $0x1b8] sm:$0xf]
    %v5545 = vld [vmem:[%s7 + $0x1bc] sm:$0xf]
    %v5546 = vld [vmem:[%s7 + $0x1c0] sm:$0xf]
    %v5547 = vld [vmem:[%s7 + $0x1c4] sm:$0xf]
    %v5548 = vld [vmem:[%s7 + $0x1c8] sm:$0xf]
    %v5549 = vld [vmem:[%s7 + $0x1cc] sm:$0xf]
    %v5550 = vld [vmem:[%s7 + $0x1d0] sm:$0xf]
    %v5551 = vld [vmem:[%s7 + $0x1d4] sm:$0xf]
    %v5552 = vld [vmem:[%s7 + $0x1d8] sm:$0xf]
    %v5553 = vld [vmem:[%s7 + $0x1dc] sm:$0xf]
    %v5554 = vld [vmem:[%s7 + $0x1e0] sm:$0xf]
    %v5555 = vld [vmem:[%s7 + $0x1e4] sm:$0xf]
    %v5556 = vld [vmem:[%s7 + $0x1e8] sm:$0xf]
    %v5557 = vld [vmem:[%s7 + $0x1ec] sm:$0xf]
    %v5558 = vld [vmem:[%s7 + $0x1f0] sm:$0xf]
    %v5559 = vld [vmem:[%s7 + $0x1f4] sm:$0xf]
    %v5560 = vld [vmem:[%s7 + $0x1f8] sm:$0xf]
    %v5561 = vld [vmem:[%s7 + $0x1fc] sm:$0xf]
    %v5562 = vld [vmem:[%s7 + $0x200] sm:$0xf]
    %v5563 = vld [vmem:[%s7 + $0x204] sm:$0xf]
    %v5564 = vld [vmem:[%s7 + $0x208] sm:$0xf]
    %v5565 = vld [vmem:[%s7 + $0x20c] sm:$0xf]
    %v5566 = vld [vmem:[%s7 + $0x210] sm:$0xf]
    %v5567 = vld [vmem:[%s7 + $0x214] sm:$0xf]
    %v5568 = vld [vmem:[%s7 + $0x218] sm:$0xf]
    %v5569 = vld [vmem:[%s7 + $0x21c] sm:$0xf]
    %v5570 = vld [vmem:[%s7 + $0x220] sm:$0xf]
    %v5571 = vld [vmem:[%s7 + $0x224] sm:$0xf]
    %v5572 = vld [vmem:[%s7 + $0x228] sm:$0xf]
    %v5573 = vld [vmem:[%s7 + $0x22c] sm:$0xf]
    %v5574 = vld [vmem:[%s7 + $0x230] sm:$0xf]
    %v5575 = vld [vmem:[%s7 + $0x234] sm:$0xf]
    %v5576 = vld [vmem:[%s7 + $0x238] sm:$0xf]
    %v5577 = vld [vmem:[%s7 + $0x23c] sm:$0xf]
    %v5578 = vld [vmem:[%s7 + $0x240] sm:$0xf]
    %v5579 = vld [vmem:[%s7 + $0x244] sm:$0xf]
    %v5580 = vld [vmem:[%s7 + $0x248] sm:$0xf]
    %v5581 = vld [vmem:[%s7 + $0x24c] sm:$0xf]
    %v5582 = vld [vmem:[%s7 + $0x250] sm:$0xf]
    %v5583 = vld [vmem:[%s7 + $0x254] sm:$0xf]
    %v5584 = vld [vmem:[%s7 + $0x258] sm:$0xf]
    %v5585 = vld [vmem:[%s7 + $0x25c] sm:$0xf]
    %v5586 = vld [vmem:[%s7 + $0x260] sm:$0xf]
    %v5587 = vld [vmem:[%s7 + $0x264] sm:$0xf]
    %v5588 = vld [vmem:[%s7 + $0x268] sm:$0xf]
    %v5589 = vld [vmem:[%s7 + $0x26c] sm:$0xf]
    %v5590 = vld [vmem:[%s7 + $0x270] sm:$0xf]
    %v5591 = vld [vmem:[%s7 + $0x274] sm:$0xf]
    %v5592 = vld [vmem:[%s7 + $0x278] sm:$0xf]
    %v5593 = vld [vmem:[%s7 + $0x27c] sm:$0xf]
    %v5594 = vld [vmem:[%s7 + $0x280] sm:$0xf]
    %v5595 = vld [vmem:[%s7 + $0x284] sm:$0xf]
    %v5596 = vld [vmem:[%s7 + $0x288] sm:$0xf]
    %v5597 = vld [vmem:[%s7 + $0x28c] sm:$0xf]
    %v5598 = vld [vmem:[%s7 + $0x290] sm:$0xf]
    %v5599 = vld [vmem:[%s7 + $0x294] sm:$0xf]
    %v5600 = vld [vmem:[%s7 + $0x298] sm:$0xf]
    %v5601 = vld [vmem:[%s7 + $0x29c] sm:$0xf]
    %v5602 = vld [vmem:[%s7 + $0x2a0] sm:$0xf]
    %v5603 = vld [vmem:[%s7 + $0x2a4] sm:$0xf]
    %v5604 = vld [vmem:[%s7 + $0x2a8] sm:$0xf]
    %v5605 = vld [vmem:[%s7 + $0x2ac] sm:$0xf]
    %v5606 = vld [vmem:[%s7 + $0x2b0] sm:$0xf]
    %v5607 = vld [vmem:[%s7 + $0x2b4] sm:$0xf]
    %v5608 = vld [vmem:[%s7 + $0x2b8] sm:$0xf]
    %v5609 = vld [vmem:[%s7 + $0x2bc] sm:$0xf]
    %v5610 = vld [vmem:[%s7 + $0x2c0] sm:$0xf]
    %v5611 = vld [vmem:[%s7 + $0x2c4] sm:$0xf]
    %v5612 = vld [vmem:[%s7 + $0x2c8] sm:$0xf]
    %v5613 = vld [vmem:[%s7 + $0x2cc] sm:$0xf]
    %v5614 = vld [vmem:[%s7 + $0x2d0] sm:$0xf]
    %v5615 = vld [vmem:[%s7 + $0x2d4] sm:$0xf]
    %v5616 = vld [vmem:[%s7 + $0x2d8] sm:$0xf]
    %v5617 = vld [vmem:[%s7 + $0x2dc] sm:$0xf]
    %v5618 = vld [vmem:[%s7 + $0x2e0] sm:$0xf]
    %v5619 = vld [vmem:[%s7 + $0x2e4] sm:$0xf]
    %v5620 = vld [vmem:[%s7 + $0x2e8] sm:$0xf]
    %v5621 = vld [vmem:[%s7 + $0x2ec] sm:$0xf]
    %v5622 = vld [vmem:[%s7 + $0x2f0] sm:$0xf]
    %v5623 = vld [vmem:[%s7 + $0x2f4] sm:$0xf]
    %v5624 = vld [vmem:[%s7 + $0x2f8] sm:$0xf]
    %v5625 = vld [vmem:[%s7 + $0x2fc] sm:$0xf]
    %v5626 = vld [vmem:[%s7 + $0x300] sm:$0xf]
    %v5627 = vld [vmem:[%s7 + $0x304] sm:$0xf]
    %v5628 = vld [vmem:[%s7 + $0x308] sm:$0xf]
    %v5629 = vld [vmem:[%s7 + $0x30c] sm:$0xf]
    %v5630 = vld [vmem:[%s7 + $0x310] sm:$0xf]
    %v5631 = vld [vmem:[%s7 + $0x314] sm:$0xf]
    %v5632 = vld [vmem:[%s7 + $0x318] sm:$0xf]
    %v5633 = vld [vmem:[%s7 + $0x31c] sm:$0xf]
    %v5634 = vld [vmem:[%s7 + $0x320] sm:$0xf]
    %v5635 = vld [vmem:[%s7 + $0x324] sm:$0xf]
    %v5636 = vld [vmem:[%s7 + $0x328] sm:$0xf]
    %v5637 = vld [vmem:[%s7 + $0x32c] sm:$0xf]
    %v5638 = vld [vmem:[%s7 + $0x330] sm:$0xf]
    %v5639 = vld [vmem:[%s7 + $0x334] sm:$0xf]
    %v5640 = vld [vmem:[%s7 + $0x338] sm:$0xf]
    %v5641 = vld [vmem:[%s7 + $0x33c] sm:$0xf]
    %v5642 = vld [vmem:[%s7 + $0x340] sm:$0xf]
    %v5643 = vld [vmem:[%s7 + $0x344] sm:$0xf]
    %v5644 = vld [vmem:[%s7 + $0x348] sm:$0xf]
    %v5645 = vld [vmem:[%s7 + $0x34c] sm:$0xf]
    %v5646 = vld [vmem:[%s7 + $0x350] sm:$0xf]
    %v5647 = vld [vmem:[%s7 + $0x354] sm:$0xf]
    %v5648 = vld [vmem:[%s7 + $0x358] sm:$0xf]
    %v5649 = vld [vmem:[%s7 + $0x35c] sm:$0xf]
    %v5650 = vld [vmem:[%s7 + $0x360] sm:$0xf]
    %v5651 = vld [vmem:[%s7 + $0x364] sm:$0xf]
    %v5652 = vld [vmem:[%s7 + $0x368] sm:$0xf]
    %v5653 = vld [vmem:[%s7 + $0x36c] sm:$0xf]
    %v5654 = vld [vmem:[%s7 + $0x370] sm:$0xf]
    %v5655 = vld [vmem:[%s7 + $0x374] sm:$0xf]
    %v5656 = vld [vmem:[%s7 + $0x378] sm:$0xf]
    %v5657 = vld [vmem:[%s7 + $0x37c] sm:$0xf]
    %v5658 = vld [vmem:[%s7 + $0x380] sm:$0xf]
    %v5659 = vld [vmem:[%s7 + $0x384] sm:$0xf]
    %v5660 = vld [vmem:[%s7 + $0x388] sm:$0xf]
    %v5661 = vld [vmem:[%s7 + $0x38c] sm:$0xf]
    %v5662 = vld [vmem:[%s7 + $0x390] sm:$0xf]
    %v5663 = vld [vmem:[%s7 + $0x394] sm:$0xf]
    %v5664 = vld [vmem:[%s7 + $0x398] sm:$0xf]
    %v5665 = vld [vmem:[%s7 + $0x39c] sm:$0xf]
    %v5666 = vld [vmem:[%s7 + $0x3a0] sm:$0xf]
    %v5667 = vld [vmem:[%s7 + $0x3a4] sm:$0xf]
    %v5668 = vld [vmem:[%s7 + $0x3a8] sm:$0xf]
    %v5669 = vld [vmem:[%s7 + $0x3ac] sm:$0xf]
    %v5670 = vld [vmem:[%s7 + $0x3b0] sm:$0xf]
    %v5671 = vld [vmem:[%s7 + $0x3b4] sm:$0xf]
    %v5672 = vld [vmem:[%s7 + $0x3b8] sm:$0xf]
    %v5673 = vld [vmem:[%s7 + $0x3bc] sm:$0xf]
    %v5674 = vld [vmem:[%s7 + $0x3c0] sm:$0xf]
    %v5675 = vld [vmem:[%s7 + $0x3c4] sm:$0xf]
    %v5676 = vld [vmem:[%s7 + $0x3c8] sm:$0xf]
    %v5677 = vld [vmem:[%s7 + $0x3cc] sm:$0xf]
    %v5678 = vld [vmem:[%s7 + $0x3d0] sm:$0xf]
    %v5679 = vld [vmem:[%s7 + $0x3d4] sm:$0xf]
    %v5680 = vld [vmem:[%s7 + $0x3d8] sm:$0xf]
    %v5681 = vld [vmem:[%s7 + $0x3dc] sm:$0xf]
    %v5682 = vld [vmem:[%s7 + $0x3e0] sm:$0xf]
    %v5683 = vld [vmem:[%s7 + $0x3e4] sm:$0xf]
    %v5684 = vld [vmem:[%s7 + $0x3e8] sm:$0xf]
    %v5685 = vld [vmem:[%s7 + $0x3ec] sm:$0xf]
    %v5686 = vld [vmem:[%s7 + $0x3f0] sm:$0xf]
    %v5687 = vld [vmem:[%s7 + $0x3f4] sm:$0xf]
    %v5688 = vld [vmem:[%s7 + $0x3f8] sm:$0xf]
    %v5689 = vld [vmem:[%s7 + $0x3fc] sm:$0xf]
    %v5690 = vld [vmem:[%s8] sm:$0x1]
    %v5692 = vlaneseq
    %v5693 = vshrl.u32 %v5692, 7
    %v5694 = vsub.s32 0, %v5693
    %v5695 = vrot.slane %v5690, %v5694
    %v5953 = vunpack.c.l.b16 %v5434
    %v5954 = vunpack.c.l.b16 %v5435
    %v5955 = vunpack.c.l.b16 %v5436
    %v5956 = vunpack.c.l.b16 %v5437
    %v5957 = vunpack.c.l.b16 %v5438
    %v5958 = vunpack.c.l.b16 %v5439
    %v5959 = vunpack.c.l.b16 %v5440
    %v5960 = vunpack.c.l.b16 %v5441
    %v5961 = vunpack.c.l.b16 %v5442
    %v5962 = vunpack.c.l.b16 %v5443
    %v5963 = vunpack.c.l.b16 %v5444
    %v5964 = vunpack.c.l.b16 %v5445
    %v5965 = vunpack.c.l.b16 %v5446
    %v5966 = vunpack.c.l.b16 %v5447
    %v5967 = vunpack.c.l.b16 %v5448
    %v5968 = vunpack.c.l.b16 %v5449
    %v5969 = vunpack.c.l.b16 %v5450
    %v5970 = vunpack.c.l.b16 %v5451
    %v5971 = vunpack.c.l.b16 %v5452
    %v5972 = vunpack.c.l.b16 %v5453
    %v5973 = vunpack.c.l.b16 %v5454
    %v5974 = vunpack.c.l.b16 %v5455
    %v5975 = vunpack.c.l.b16 %v5456
    %v5976 = vunpack.c.l.b16 %v5457
    %v5977 = vunpack.c.l.b16 %v5458
    %v5978 = vunpack.c.l.b16 %v5459
    %v5979 = vunpack.c.l.b16 %v5460
    %v5980 = vunpack.c.l.b16 %v5461
    %v5981 = vunpack.c.l.b16 %v5462
    %v5982 = vunpack.c.l.b16 %v5463
    %v5983 = vunpack.c.l.b16 %v5464
    %v5984 = vunpack.c.l.b16 %v5465
    %v5985 = vunpack.c.l.b16 %v5466
    %v5986 = vunpack.c.l.b16 %v5467
    %v5987 = vunpack.c.l.b16 %v5468
    %v5988 = vunpack.c.l.b16 %v5469
    %v5989 = vunpack.c.l.b16 %v5470
    %v5990 = vunpack.c.l.b16 %v5471
    %v5991 = vunpack.c.l.b16 %v5472
    %v5992 = vunpack.c.l.b16 %v5473
    %v5993 = vunpack.c.l.b16 %v5474
    %v5994 = vunpack.c.l.b16 %v5475
    %v5995 = vunpack.c.l.b16 %v5476
    %v5996 = vunpack.c.l.b16 %v5477
    %v5997 = vunpack.c.l.b16 %v5478
    %v5998 = vunpack.c.l.b16 %v5479
    %v5999 = vunpack.c.l.b16 %v5480
    %v6000 = vunpack.c.l.b16 %v5481
    %v6001 = vunpack.c.l.b16 %v5482
    %v6002 = vunpack.c.l.b16 %v5483
    %v6003 = vunpack.c.l.b16 %v5484
    %v6004 = vunpack.c.l.b16 %v5485
    %v6005 = vunpack.c.l.b16 %v5486
    %v6006 = vunpack.c.l.b16 %v5487
    %v6007 = vunpack.c.l.b16 %v5488
    %v6008 = vunpack.c.l.b16 %v5489
    %v6009 = vunpack.c.l.b16 %v5490
    %v6010 = vunpack.c.l.b16 %v5491
    %v6011 = vunpack.c.l.b16 %v5492
    %v6012 = vunpack.c.l.b16 %v5493
    %v6013 = vunpack.c.l.b16 %v5494
    %v6014 = vunpack.c.l.b16 %v5495
    %v6015 = vunpack.c.l.b16 %v5496
    %v6016 = vunpack.c.l.b16 %v5497
    %v6017 = vunpack.c.l.b16 %v5498
    %v6018 = vunpack.c.l.b16 %v5499
    %v6019 = vunpack.c.l.b16 %v5500
    %v6020 = vunpack.c.l.b16 %v5501
    %v6021 = vunpack.c.l.b16 %v5502
    %v6022 = vunpack.c.l.b16 %v5503
    %v6023 = vunpack.c.l.b16 %v5504
    %v6024 = vunpack.c.l.b16 %v5505
    %v6025 = vunpack.c.l.b16 %v5506
    %v6026 = vunpack.c.l.b16 %v5507
    %v6027 = vunpack.c.l.b16 %v5508
    %v6028 = vunpack.c.l.b16 %v5509
    %v6029 = vunpack.c.l.b16 %v5510
    %v6030 = vunpack.c.l.b16 %v5511
    %v6031 = vunpack.c.l.b16 %v5512
    %v6032 = vunpack.c.l.b16 %v5513
    %v6033 = vunpack.c.l.b16 %v5514
    %v6034 = vunpack.c.l.b16 %v5515
    %v6035 = vunpack.c.l.b16 %v5516
    %v6036 = vunpack.c.l.b16 %v5517
    %v6037 = vunpack.c.l.b16 %v5518
    %v6038 = vunpack.c.l.b16 %v5519
    %v6039 = vunpack.c.l.b16 %v5520
    %v6040 = vunpack.c.l.b16 %v5521
    %v6041 = vunpack.c.l.b16 %v5522
    %v6042 = vunpack.c.l.b16 %v5523
    %v6043 = vunpack.c.l.b16 %v5524
    %v6044 = vunpack.c.l.b16 %v5525
    %v6045 = vunpack.c.l.b16 %v5526
    %v6046 = vunpack.c.l.b16 %v5527
    %v6047 = vunpack.c.l.b16 %v5528
    %v6048 = vunpack.c.l.b16 %v5529
    %v6049 = vunpack.c.l.b16 %v5530
    %v6050 = vunpack.c.l.b16 %v5531
    %v6051 = vunpack.c.l.b16 %v5532
    %v6052 = vunpack.c.l.b16 %v5533
    %v6053 = vunpack.c.l.b16 %v5534
    %v6054 = vunpack.c.l.b16 %v5535
    %v6055 = vunpack.c.l.b16 %v5536
    %v6056 = vunpack.c.l.b16 %v5537
    %v6057 = vunpack.c.l.b16 %v5538
    %v6058 = vunpack.c.l.b16 %v5539
    %v6059 = vunpack.c.l.b16 %v5540
    %v6060 = vunpack.c.l.b16 %v5541
    %v6061 = vunpack.c.l.b16 %v5542
    %v6062 = vunpack.c.l.b16 %v5543
    %v6063 = vunpack.c.l.b16 %v5544
    %v6064 = vunpack.c.l.b16 %v5545
    %v6065 = vunpack.c.l.b16 %v5546
    %v6066 = vunpack.c.l.b16 %v5547
    %v6067 = vunpack.c.l.b16 %v5548
    %v6068 = vunpack.c.l.b16 %v5549
    %v6069 = vunpack.c.l.b16 %v5550
    %v6070 = vunpack.c.l.b16 %v5551
    %v6071 = vunpack.c.l.b16 %v5552
    %v6072 = vunpack.c.l.b16 %v5553
    %v6073 = vunpack.c.l.b16 %v5554
    %v6074 = vunpack.c.l.b16 %v5555
    %v6075 = vunpack.c.l.b16 %v5556
    %v6076 = vunpack.c.l.b16 %v5557
    %v6077 = vunpack.c.l.b16 %v5558
    %v6078 = vunpack.c.l.b16 %v5559
    %v6079 = vunpack.c.l.b16 %v5560
    %v6080 = vunpack.c.l.b16 %v5561
    %v6081 = vunpack.c.l.b16 %v5562
    %v6082 = vunpack.c.l.b16 %v5563
    %v6083 = vunpack.c.l.b16 %v5564
    %v6084 = vunpack.c.l.b16 %v5565
    %v6085 = vunpack.c.l.b16 %v5566
    %v6086 = vunpack.c.l.b16 %v5567
    %v6087 = vunpack.c.l.b16 %v5568
    %v6088 = vunpack.c.l.b16 %v5569
    %v6089 = vunpack.c.l.b16 %v5570
    %v6090 = vunpack.c.l.b16 %v5571
    %v6091 = vunpack.c.l.b16 %v5572
    %v6092 = vunpack.c.l.b16 %v5573
    %v6093 = vunpack.c.l.b16 %v5574
    %v6094 = vunpack.c.l.b16 %v5575
    %v6095 = vunpack.c.l.b16 %v5576
    %v6096 = vunpack.c.l.b16 %v5577
    %v6097 = vunpack.c.l.b16 %v5578
    %v6098 = vunpack.c.l.b16 %v5579
    %v6099 = vunpack.c.l.b16 %v5580
    %v6100 = vunpack.c.l.b16 %v5581
    %v6101 = vunpack.c.l.b16 %v5582
    %v6102 = vunpack.c.l.b16 %v5583
    %v6103 = vunpack.c.l.b16 %v5584
    %v6104 = vunpack.c.l.b16 %v5585
    %v6105 = vunpack.c.l.b16 %v5586
    %v6106 = vunpack.c.l.b16 %v5587
    %v6107 = vunpack.c.l.b16 %v5588
    %v6108 = vunpack.c.l.b16 %v5589
    %v6109 = vunpack.c.l.b16 %v5590
    %v6110 = vunpack.c.l.b16 %v5591
    %v6111 = vunpack.c.l.b16 %v5592
    %v6112 = vunpack.c.l.b16 %v5593
    %v6113 = vunpack.c.l.b16 %v5594
    %v6114 = vunpack.c.l.b16 %v5595
    %v6115 = vunpack.c.l.b16 %v5596
    %v6116 = vunpack.c.l.b16 %v5597
    %v6117 = vunpack.c.l.b16 %v5598
    %v6118 = vunpack.c.l.b16 %v5599
    %v6119 = vunpack.c.l.b16 %v5600
    %v6120 = vunpack.c.l.b16 %v5601
    %v6121 = vunpack.c.l.b16 %v5602
    %v6122 = vunpack.c.l.b16 %v5603
    %v6123 = vunpack.c.l.b16 %v5604
    %v6124 = vunpack.c.l.b16 %v5605
    %v6125 = vunpack.c.l.b16 %v5606
    %v6126 = vunpack.c.l.b16 %v5607
    %v6127 = vunpack.c.l.b16 %v5608
    %v6128 = vunpack.c.l.b16 %v5609
    %v6129 = vunpack.c.l.b16 %v5610
    %v6130 = vunpack.c.l.b16 %v5611
    %v6131 = vunpack.c.l.b16 %v5612
    %v6132 = vunpack.c.l.b16 %v5613
    %v6133 = vunpack.c.l.b16 %v5614
    %v6134 = vunpack.c.l.b16 %v5615
    %v6135 = vunpack.c.l.b16 %v5616
    %v6136 = vunpack.c.l.b16 %v5617
    %v6137 = vunpack.c.l.b16 %v5618
    %v6138 = vunpack.c.l.b16 %v5619
    %v6139 = vunpack.c.l.b16 %v5620
    %v6140 = vunpack.c.l.b16 %v5621
    %v6141 = vunpack.c.l.b16 %v5622
    %v6142 = vunpack.c.l.b16 %v5623
    %v6143 = vunpack.c.l.b16 %v5624
    %v6144 = vunpack.c.l.b16 %v5625
    %v6145 = vunpack.c.l.b16 %v5626
    %v6146 = vunpack.c.l.b16 %v5627
    %v6147 = vunpack.c.l.b16 %v5628
    %v6148 = vunpack.c.l.b16 %v5629
    %v6149 = vunpack.c.l.b16 %v5630
    %v6150 = vunpack.c.l.b16 %v5631
    %v6151 = vunpack.c.l.b16 %v5632
    %v6152 = vunpack.c.l.b16 %v5633
    %v6153 = vunpack.c.l.b16 %v5634
    %v6154 = vunpack.c.l.b16 %v5635
    %v6155 = vunpack.c.l.b16 %v5636
    %v6156 = vunpack.c.l.b16 %v5637
    %v6157 = vunpack.c.l.b16 %v5638
    %v6158 = vunpack.c.l.b16 %v5639
    %v6159 = vunpack.c.l.b16 %v5640
    %v6160 = vunpack.c.l.b16 %v5641
    %v6161 = vunpack.c.l.b16 %v5642
    %v6162 = vunpack.c.l.b16 %v5643
    %v6163 = vunpack.c.l.b16 %v5644
    %v6164 = vunpack.c.l.b16 %v5645
    %v6165 = vunpack.c.l.b16 %v5646
    %v6166 = vunpack.c.l.b16 %v5647
    %v6167 = vunpack.c.l.b16 %v5648
    %v6168 = vunpack.c.l.b16 %v5649
    %v6169 = vunpack.c.l.b16 %v5650
    %v6170 = vunpack.c.l.b16 %v5651
    %v6171 = vunpack.c.l.b16 %v5652
    %v6172 = vunpack.c.l.b16 %v5653
    %v6173 = vunpack.c.l.b16 %v5654
    %v6174 = vunpack.c.l.b16 %v5655
    %v6175 = vunpack.c.l.b16 %v5656
    %v6176 = vunpack.c.l.b16 %v5657
    %v6177 = vunpack.c.l.b16 %v5658
    %v6178 = vunpack.c.l.b16 %v5659
    %v6179 = vunpack.c.l.b16 %v5660
    %v6180 = vunpack.c.l.b16 %v5661
    %v6181 = vunpack.c.l.b16 %v5662
    %v6182 = vunpack.c.l.b16 %v5663
    %v6183 = vunpack.c.l.b16 %v5664
    %v6184 = vunpack.c.l.b16 %v5665
    %v6185 = vunpack.c.l.b16 %v5666
    %v6186 = vunpack.c.l.b16 %v5667
    %v6187 = vunpack.c.l.b16 %v5668
    %v6188 = vunpack.c.l.b16 %v5669
    %v6189 = vunpack.c.l.b16 %v5670
    %v6190 = vunpack.c.l.b16 %v5671
    %v6191 = vunpack.c.l.b16 %v5672
    %v6192 = vunpack.c.l.b16 %v5673
    %v6193 = vunpack.c.l.b16 %v5674
    %v6194 = vunpack.c.l.b16 %v5675
    %v6195 = vunpack.c.l.b16 %v5676
    %v6196 = vunpack.c.l.b16 %v5677
    %v6197 = vunpack.c.l.b16 %v5678
    %v6198 = vunpack.c.l.b16 %v5679
    %v6199 = vunpack.c.l.b16 %v5680
    %v6200 = vunpack.c.l.b16 %v5681
    %v6201 = vunpack.c.l.b16 %v5682
    %v6202 = vunpack.c.l.b16 %v5683
    %v6203 = vunpack.c.l.b16 %v5684
    %v6204 = vunpack.c.l.b16 %v5685
    %v6205 = vunpack.c.l.b16 %v5686
    %v6206 = vunpack.c.l.b16 %v5687
    %v6207 = vunpack.c.l.b16 %v5688
    %v6208 = vunpack.c.l.b16 %v5689
    %v6209 = vpack.c.b16 %v5954, %v5953
    %v6210 = vpack.c.b16 %v5956, %v5955
    %v6211 = vpack.c.b16 %v5958, %v5957
    %v6212 = vpack.c.b16 %v5960, %v5959
    %v6213 = vpack.c.b16 %v5962, %v5961
    %v6214 = vpack.c.b16 %v5964, %v5963
    %v6215 = vpack.c.b16 %v5966, %v5965
    %v6216 = vpack.c.b16 %v5968, %v5967
    %v6217 = vpack.c.b16 %v5970, %v5969
    %v6218 = vpack.c.b16 %v5972, %v5971
    %v6219 = vpack.c.b16 %v5974, %v5973
    %v6220 = vpack.c.b16 %v5976, %v5975
    %v6221 = vpack.c.b16 %v5978, %v5977
    %v6222 = vpack.c.b16 %v5980, %v5979
    %v6223 = vpack.c.b16 %v5982, %v5981
    %v6224 = vpack.c.b16 %v5984, %v5983
    %v6225 = vpack.c.b16 %v5986, %v5985
    %v6226 = vpack.c.b16 %v5988, %v5987
    %v6227 = vpack.c.b16 %v5990, %v5989
    %v6228 = vpack.c.b16 %v5992, %v5991
    %v6229 = vpack.c.b16 %v5994, %v5993
    %v6230 = vpack.c.b16 %v5996, %v5995
    %v6231 = vpack.c.b16 %v5998, %v5997
    %v6232 = vpack.c.b16 %v6000, %v5999
    %v6233 = vpack.c.b16 %v6002, %v6001
    %v6234 = vpack.c.b16 %v6004, %v6003
    %v6235 = vpack.c.b16 %v6006, %v6005
    %v6236 = vpack.c.b16 %v6008, %v6007
    %v6237 = vpack.c.b16 %v6010, %v6009
    %v6238 = vpack.c.b16 %v6012, %v6011
    %v6239 = vpack.c.b16 %v6014, %v6013
    %v6240 = vpack.c.b16 %v6016, %v6015
    %v6241 = vpack.c.b16 %v6018, %v6017
    %v6242 = vpack.c.b16 %v6020, %v6019
    %v6243 = vpack.c.b16 %v6022, %v6021
    %v6244 = vpack.c.b16 %v6024, %v6023
    %v6245 = vpack.c.b16 %v6026, %v6025
    %v6246 = vpack.c.b16 %v6028, %v6027
    %v6247 = vpack.c.b16 %v6030, %v6029
    %v6248 = vpack.c.b16 %v6032, %v6031
    %v6249 = vpack.c.b16 %v6034, %v6033
    %v6250 = vpack.c.b16 %v6036, %v6035
    %v6251 = vpack.c.b16 %v6038, %v6037
    %v6252 = vpack.c.b16 %v6040, %v6039
    %v6253 = vpack.c.b16 %v6042, %v6041
    %v6254 = vpack.c.b16 %v6044, %v6043
    %v6255 = vpack.c.b16 %v6046, %v6045
    %v6256 = vpack.c.b16 %v6048, %v6047
    %v6257 = vpack.c.b16 %v6050, %v6049
    %v6258 = vpack.c.b16 %v6052, %v6051
    %v6259 = vpack.c.b16 %v6054, %v6053
    %v6260 = vpack.c.b16 %v6056, %v6055
    %v6261 = vpack.c.b16 %v6058, %v6057
    %v6262 = vpack.c.b16 %v6060, %v6059
    %v6263 = vpack.c.b16 %v6062, %v6061
    %v6264 = vpack.c.b16 %v6064, %v6063
    %v6265 = vpack.c.b16 %v6066, %v6065
    %v6266 = vpack.c.b16 %v6068, %v6067
    %v6267 = vpack.c.b16 %v6070, %v6069
    %v6268 = vpack.c.b16 %v6072, %v6071
    %v6269 = vpack.c.b16 %v6074, %v6073
    %v6270 = vpack.c.b16 %v6076, %v6075
    %v6271 = vpack.c.b16 %v6078, %v6077
    %v6272 = vpack.c.b16 %v6080, %v6079
    %v6273 = vpack.c.b16 %v6082, %v6081
    %v6274 = vpack.c.b16 %v6084, %v6083
    %v6275 = vpack.c.b16 %v6086, %v6085
    %v6276 = vpack.c.b16 %v6088, %v6087
    %v6277 = vpack.c.b16 %v6090, %v6089
    %v6278 = vpack.c.b16 %v6092, %v6091
    %v6279 = vpack.c.b16 %v6094, %v6093
    %v6280 = vpack.c.b16 %v6096, %v6095
    %v6281 = vpack.c.b16 %v6098, %v6097
    %v6282 = vpack.c.b16 %v6100, %v6099
    %v6283 = vpack.c.b16 %v6102, %v6101
    %v6284 = vpack.c.b16 %v6104, %v6103
    %v6285 = vpack.c.b16 %v6106, %v6105
    %v6286 = vpack.c.b16 %v6108, %v6107
    %v6287 = vpack.c.b16 %v6110, %v6109
    %v6288 = vpack.c.b16 %v6112, %v6111
    %v6289 = vpack.c.b16 %v6114, %v6113
    %v6290 = vpack.c.b16 %v6116, %v6115
    %v6291 = vpack.c.b16 %v6118, %v6117
    %v6292 = vpack.c.b16 %v6120, %v6119
    %v6293 = vpack.c.b16 %v6122, %v6121
    %v6294 = vpack.c.b16 %v6124, %v6123
    %v6295 = vpack.c.b16 %v6126, %v6125
    %v6296 = vpack.c.b16 %v6128, %v6127
    %v6297 = vpack.c.b16 %v6130, %v6129
    %v6298 = vpack.c.b16 %v6132, %v6131
    %v6299 = vpack.c.b16 %v6134, %v6133
    %v6300 = vpack.c.b16 %v6136, %v6135
    %v6301 = vpack.c.b16 %v6138, %v6137
    %v6302 = vpack.c.b16 %v6140, %v6139
    %v6303 = vpack.c.b16 %v6142, %v6141
    %v6304 = vpack.c.b16 %v6144, %v6143
    %v6305 = vpack.c.b16 %v6146, %v6145
    %v6306 = vpack.c.b16 %v6148, %v6147
    %v6307 = vpack.c.b16 %v6150, %v6149
    %v6308 = vpack.c.b16 %v6152, %v6151
    %v6309 = vpack.c.b16 %v6154, %v6153
    %v6310 = vpack.c.b16 %v6156, %v6155
    %v6311 = vpack.c.b16 %v6158, %v6157
    %v6312 = vpack.c.b16 %v6160, %v6159
    %v6313 = vpack.c.b16 %v6162, %v6161
    %v6314 = vpack.c.b16 %v6164, %v6163
    %v6315 = vpack.c.b16 %v6166, %v6165
    %v6316 = vpack.c.b16 %v6168, %v6167
    %v6317 = vpack.c.b16 %v6170, %v6169
    %v6318 = vpack.c.b16 %v6172, %v6171
    %v6319 = vpack.c.b16 %v6174, %v6173
    %v6320 = vpack.c.b16 %v6176, %v6175
    %v6321 = vpack.c.b16 %v6178, %v6177
    %v6322 = vpack.c.b16 %v6180, %v6179
    %v6323 = vpack.c.b16 %v6182, %v6181
    %v6324 = vpack.c.b16 %v6184, %v6183
    %v6325 = vpack.c.b16 %v6186, %v6185
    %v6326 = vpack.c.b16 %v6188, %v6187
    %v6327 = vpack.c.b16 %v6190, %v6189
    %v6328 = vpack.c.b16 %v6192, %v6191
    %v6329 = vpack.c.b16 %v6194, %v6193
    %v6330 = vpack.c.b16 %v6196, %v6195
    %v6331 = vpack.c.b16 %v6198, %v6197
    %v6332 = vpack.c.b16 %v6200, %v6199
    %v6333 = vpack.c.b16 %v6202, %v6201
    %v6334 = vpack.c.b16 %v6204, %v6203
    %v6335 = vpack.c.b16 %v6206, %v6205
    %v6336 = vpack.c.b16 %v6208, %v6207
    %6465 = vmatprep.subr.bf16.mxu0 0
    %6466 = vmatpush1.bf16.msra.mxu0 %v6209
    %6467 = vmatprep.subr.bf16.mxu0 0
    %6468 = vmatpush1.bf16.msra.mxu0 %v6210
    %6469 = vmatprep.subr.bf16.mxu0 0
    %6470 = vmatpush1.bf16.msra.mxu0 %v6211
    %6471 = vmatprep.subr.bf16.mxu0 0
    %6472 = vmatpush1.bf16.msra.mxu0 %v6212
    %6473 = vmatprep.subr.bf16.mxu0 0
    %6474 = vmatpush1.bf16.msra.mxu0 %v6213
    %6475 = vmatprep.subr.bf16.mxu0 0
    %6476 = vmatpush1.bf16.msra.mxu0 %v6214
    %6477 = vmatprep.subr.bf16.mxu0 0
    %6478 = vmatpush1.bf16.msra.mxu0 %v6215
    %6479 = vmatprep.subr.bf16.mxu0 0
    %6480 = vmatpush1.bf16.msra.mxu0 %v6216
    %6481 = vmatprep.subr.bf16.mxu0 0
    %6482 = vmatpush1.bf16.msra.mxu0 %v6217
    %6483 = vmatprep.subr.bf16.mxu0 0
    %6484 = vmatpush1.bf16.msra.mxu0 %v6218
    %6485 = vmatprep.subr.bf16.mxu0 0
    %6486 = vmatpush1.bf16.msra.mxu0 %v6219
    %6487 = vmatprep.subr.bf16.mxu0 0
    %6488 = vmatpush1.bf16.msra.mxu0 %v6220
    %6489 = vmatprep.subr.bf16.mxu0 0
    %6490 = vmatpush1.bf16.msra.mxu0 %v6221
    %6491 = vmatprep.subr.bf16.mxu0 0
    %6492 = vmatpush1.bf16.msra.mxu0 %v6222
    %6493 = vmatprep.subr.bf16.mxu0 0
    %6494 = vmatpush1.bf16.msra.mxu0 %v6223
    %6495 = vmatprep.subr.bf16.mxu0 0
    %6496 = vmatpush1.bf16.msra.mxu0 %v6224
    %6497 = vmatprep.mubr.bf16.mxu0 %v5387
    %6498 = vmatmul.mubr.bf16.gmra.mrb[0].mxu0 %v5386
    %v6499 = vpop.f32.mrb[0].mxu0
    %v6500 = vadd.f32 %v5695, %v6499
    %v6501 = vpop.f32.mrb[0].mxu0
    %v6502 = vpop.f32.mrb[0].mxu0
    %v6503 = vadd.f32 %v5695, %v6502
    %v6504 = vpop.f32.mrb[0].mxu0
    %6505 = vmatprep.mubr.bf16.mxu0 %v5403
    %6506 = vmatmul.mubr.bf16.gmra.mrb[0].mxu0 %v5402
    %v6507 = vpop.f32.mrb[0].mxu0
    %v6508 = vadd.f32 %v5695, %v6507
    %v6509 = vpop.f32.mrb[0].mxu0
    %v6510 = vpop.f32.mrb[0].mxu0
    %v6511 = vadd.f32 %v5695, %v6510
    %v6512 = vpop.f32.mrb[0].mxu0
    %6513 = vmatprep.mubr.bf16.mxu0 %v5419
    %6514 = vmatmul.mubr.bf16.gmra.mrb[0].mxu0 %v5418
    %v6515 = vpop.f32.mrb[0].mxu0
    %v6516 = vadd.f32 %v5695, %v6515
    %v6517 = vpop.f32.mrb[0].mxu0
    %v6518 = vpop.f32.mrb[0].mxu0
    %v6519 = vadd.f32 %v5695, %v6518
    %v6520 = vpop.f32.mrb[0].mxu0
    %6521 = vdwg.mxu0
    %6522 = vmatprep.subr.bf16.mxu0 0
    %6523 = vmatpush1.bf16.msra.mxu0 %v6225
    %6524 = vmatprep.subr.bf16.mxu0 0
    %6525 = vmatpush1.bf16.msra.mxu0 %v6226
    %6526 = vmatprep.subr.bf16.mxu0 0
    %6527 = vmatpush1.bf16.msra.mxu0 %v6227
    %6528 = vmatprep.subr.bf16.mxu0 0
    %6529 = vmatpush1.bf16.msra.mxu0 %v6228
    %6530 = vmatprep.subr.bf16.mxu0 0
    %6531 = vmatpush1.bf16.msra.mxu0 %v6229
    %6532 = vmatprep.subr.bf16.mxu0 0
    %6533 = vmatpush1.bf16.msra.mxu0 %v6230
    %6534 = vmatprep.subr.bf16.mxu0 0
    %6535 = vmatpush1.bf16.msra.mxu0 %v6231
    %6536 = vmatprep.subr.bf16.mxu0 0
    %6537 = vmatpush1.bf16.msra.mxu0 %v6232
    %6538 = vmatprep.subr.bf16.mxu0 0
    %6539 = vmatpush1.bf16.msra.mxu0 %v6233
    %6540 = vmatprep.subr.bf16.mxu0 0
    %6541 = vmatpush1.bf16.msra.mxu0 %v6234
    %6542 = vmatprep.subr.bf16.mxu0 0
    %6543 = vmatpush1.bf16.msra.mxu0 %v6235
    %6544 = vmatprep.subr.bf16.mxu0 0
    %6545 = vmatpush1.bf16.msra.mxu0 %v6236
    %6546 = vmatprep.subr.bf16.mxu0 0
    %6547 = vmatpush1.bf16.msra.mxu0 %v6237
    %6548 = vmatprep.subr.bf16.mxu0 0
    %6549 = vmatpush1.bf16.msra.mxu0 %v6238
    %6550 = vmatprep.subr.bf16.mxu0 0
    %6551 = vmatpush1.bf16.msra.mxu0 %v6239
    %6552 = vmatprep.subr.bf16.mxu0 0
    %6553 = vmatpush1.bf16.msra.mxu0 %v6240
    %6554 = vmatprep.mubr.bf16.mxu0 %v5389
    %6555 = vmatmul.mubr.bf16.gmra.mrb[0].mxu0 %v5388
    %v6556 = vpop.f32.mrb[0].mxu0
    %v6557 = vadd.f32 %v6500, %v6556
    %v6558 = vpop.f32.mrb[0].mxu0
    %v6559 = vpop.f32.mrb[0].mxu0
    %v6560 = vadd.f32 %v6503, %v6559
    %v6561 = vpop.f32.mrb[0].mxu0
    %6562 = vmatprep.mubr.bf16.mxu0 %v5405
    %6563 = vmatmul.mubr.bf16.gmra.mrb[0].mxu0 %v5404
    %v6564 = vpop.f32.mrb[0].mxu0
    %v6565 = vadd.f32 %v6508, %v6564
    %v6566 = vpop.f32.mrb[0].mxu0
    %v6567 = vpop.f32.mrb[0].mxu0
    %v6568 = vadd.f32 %v6511, %v6567
    %v6569 = vpop.f32.mrb[0].mxu0
    %6570 = vmatprep.mubr.bf16.mxu0 %v5421
    %6571 = vmatmul.mubr.bf16.gmra.mrb[0].mxu0 %v5420
    %v6572 = vpop.f32.mrb[0].mxu0
    %v6573 = vadd.f32 %v6516, %v6572
    %v6574 = vpop.f32.mrb[0].mxu0
    %v6575 = vpop.f32.mrb[0].mxu0
    %v6576 = vadd.f32 %v6519, %v6575
    %v6577 = vpop.f32.mrb[0].mxu0
    %6578 = vdwg.mxu0
    %6579 = vmatprep.subr.bf16.mxu0 0
    %6580 = vmatpush1.bf16.msra.mxu0 %v6241
    %6581 = vmatprep.subr.bf16.mxu0 0
    %6582 = vmatpush1.bf16.msra.mxu0 %v6242
    %6583 = vmatprep.subr.bf16.mxu0 0
    %6584 = vmatpush1.bf16.msra.mxu0 %v6243
    %6585 = vmatprep.subr.bf16.mxu0 0
    %6586 = vmatpush1.bf16.msra.mxu0 %v6244
    %6587 = vmatprep.subr.bf16.mxu0 0
    %6588 = vmatpush1.bf16.msra.mxu0 %v6245
    %6589 = vmatprep.subr.bf16.mxu0 0
    %6590 = vmatpush1.bf16.msra.mxu0 %v6246
    %6591 = vmatprep.subr.bf16.mxu0 0
    %6592 = vmatpush1.bf16.msra.mxu0 %v6247
    %6593 = vmatprep.subr.bf16.mxu0 0
    %6594 = vmatpush1.bf16.msra.mxu0 %v6248
    %6595 = vmatprep.subr.bf16.mxu0 0
    %6596 = vmatpush1.bf16.msra.mxu0 %v6249
    %6597 = vmatprep.subr.bf16.mxu0 0
    %6598 = vmatpush1.bf16.msra.mxu0 %v6250
    %6599 = vmatprep.subr.bf16.mxu0 0
    %6600 = vmatpush1.bf16.msra.mxu0 %v6251
    %6601 = vmatprep.subr.bf16.mxu0 0
    %6602 = vmatpush1.bf16.msra.mxu0 %v6252
    %6603 = vmatprep.subr.bf16.mxu0 0
    %6604 = vmatpush1.bf16.msra.mxu0 %v6253
    %6605 = vmatprep.subr.bf16.mxu0 0
    %6606 = vmatpush1.bf16.msra.mxu0 %v6254
    %6607 = vmatprep.subr.bf16.mxu0 0
    %6608 = vmatpush1.bf16.msra.mxu0 %v6255
    %6609 = vmatprep.subr.bf16.mxu0 0
    %6610 = vmatpush1.bf16.msra.mxu0 %v6256
    %6611 = vmatprep.mubr.bf16.mxu0 %v5391
    %6612 = vmatmul.mubr.bf16.gmra.mrb[0].mxu0 %v5390
    %v6613 = vpop.f32.mrb[0].mxu0
    %v6614 = vadd.f32 %v6557, %v6613
    %v6615 = vpop.f32.mrb[0].mxu0
    %v6616 = vpop.f32.mrb[0].mxu0
    %v6617 = vadd.f32 %v6560, %v6616
    %v6618 = vpop.f32.mrb[0].mxu0
    %6619 = vmatprep.mubr.bf16.mxu0 %v5407
    %6620 = vmatmul.mubr.bf16.gmra.mrb[0].mxu0 %v5406
    %v6621 = vpop.f32.mrb[0].mxu0
    %v6622 = vadd.f32 %v6565, %v6621
    %v6623 = vpop.f32.mrb[0].mxu0
    %v6624 = vpop.f32.mrb[0].mxu0
    %v6625 = vadd.f32 %v6568, %v6624
    %v6626 = vpop.f32.mrb[0].mxu0
    %6627 = vmatprep.mubr.bf16.mxu0 %v5423
    %6628 = vmatmul.mubr.bf16.gmra.mrb[0].mxu0 %v5422
    %v6629 = vpop.f32.mrb[0].mxu0
    %v6630 = vadd.f32 %v6573, %v6629
    %v6631 = vpop.f32.mrb[0].mxu0
    %v6632 = vpop.f32.mrb[0].mxu0
    %v6633 = vadd.f32 %v6576, %v6632
    %v6634 = vpop.f32.mrb[0].mxu0
    %6635 = vdwg.mxu0
    %6636 = vmatprep.subr.bf16.mxu0 0
    %6637 = vmatpush1.bf16.msra.mxu0 %v6257
    %6638 = vmatprep.subr.bf16.mxu0 0
    %6639 = vmatpush1.bf16.msra.mxu0 %v6258
    %6640 = vmatprep.subr.bf16.mxu0 0
    %6641 = vmatpush1.bf16.msra.mxu0 %v6259
    %6642 = vmatprep.subr.bf16.mxu0 0
    %6643 = vmatpush1.bf16.msra.mxu0 %v6260
    %6644 = vmatprep.subr.bf16.mxu0 0
    %6645 = vmatpush1.bf16.msra.mxu0 %v6261
    %6646 = vmatprep.subr.bf16.mxu0 0
    %6647 = vmatpush1.bf16.msra.mxu0 %v6262
    %6648 = vmatprep.subr.bf16.mxu0 0
    %6649 = vmatpush1.bf16.msra.mxu0 %v6263
    %6650 = vmatprep.subr.bf16.mxu0 0
    %6651 = vmatpush1.bf16.msra.mxu0 %v6264
    %6652 = vmatprep.subr.bf16.mxu0 0
    %6653 = vmatpush1.bf16.msra.mxu0 %v6265
    %6654 = vmatprep.subr.bf16.mxu0 0
    %6655 = vmatpush1.bf16.msra.mxu0 %v6266
    %6656 = vmatprep.subr.bf16.mxu0 0
    %6657 = vmatpush1.bf16.msra.mxu0 %v6267
    %6658 = vmatprep.subr.bf16.mxu0 0
    %6659 = vmatpush1.bf16.msra.mxu0 %v6268
    %6660 = vmatprep.subr.bf16.mxu0 0
    %6661 = vmatpush1.bf16.msra.mxu0 %v6269
    %6662 = vmatprep.subr.bf16.mxu0 0
    %6663 = vmatpush1.bf16.msra.mxu0 %v6270
    %6664 = vmatprep.subr.bf16.mxu0 0
    %6665 = vmatpush1.bf16.msra.mxu0 %v6271
    %6666 = vmatprep.subr.bf16.mxu0 0
    %6667 = vmatpush1.bf16.msra.mxu0 %v6272
    %6668 = vmatprep.mubr.bf16.mxu0 %v5393
    %6669 = vmatmul.mubr.bf16.gmra.mrb[0].mxu0 %v5392
    %v6670 = vpop.f32.mrb[0].mxu0
    %v6671 = vadd.f32 %v6614, %v6670
    %v6672 = vpop.f32.mrb[0].mxu0
    %v6673 = vpop.f32.mrb[0].mxu0
    %v6674 = vadd.f32 %v6617, %v6673
    %v6675 = vpop.f32.mrb[0].mxu0
    %6676 = vmatprep.mubr.bf16.mxu0 %v5409
    %6677 = vmatmul.mubr.bf16.gmra.mrb[0].mxu0 %v5408
    %v6678 = vpop.f32.mrb[0].mxu0
    %v6679 = vadd.f32 %v6622, %v6678
    %v6680 = vpop.f32.mrb[0].mxu0
    %v6681 = vpop.f32.mrb[0].mxu0
    %v6682 = vadd.f32 %v6625, %v6681
    %v6683 = vpop.f32.mrb[0].mxu0
    %6684 = vmatprep.mubr.bf16.mxu0 %v5425
    %6685 = vmatmul.mubr.bf16.gmra.mrb[0].mxu0 %v5424
    %v6686 = vpop.f32.mrb[0].mxu0
    %v6687 = vadd.f32 %v6630, %v6686
    %v6688 = vpop.f32.mrb[0].mxu0
    %v6689 = vpop.f32.mrb[0].mxu0
    %v6690 = vadd.f32 %v6633, %v6689
    %v6691 = vpop.f32.mrb[0].mxu0
    %6692 = vdwg.mxu0
    %6693 = vmatprep.subr.bf16.mxu0 0
    %6694 = vmatpush1.bf16.msra.mxu0 %v6273
    %6695 = vmatprep.subr.bf16.mxu0 0
    %6696 = vmatpush1.bf16.msra.mxu0 %v6274
    %6697 = vmatprep.subr.bf16.mxu0 0
    %6698 = vmatpush1.bf16.msra.mxu0 %v6275
    %6699 = vmatprep.subr.bf16.mxu0 0
    %6700 = vmatpush1.bf16.msra.mxu0 %v6276
    %6701 = vmatprep.subr.bf16.mxu0 0
    %6702 = vmatpush1.bf16.msra.mxu0 %v6277
    %6703 = vmatprep.subr.bf16.mxu0 0
    %6704 = vmatpush1.bf16.msra.mxu0 %v6278
    %6705 = vmatprep.subr.bf16.mxu0 0
    %6706 = vmatpush1.bf16.msra.mxu0 %v6279
    %6707 = vmatprep.subr.bf16.mxu0 0
    %6708 = vmatpush1.bf16.msra.mxu0 %v6280
    %6709 = vmatprep.subr.bf16.mxu0 0
    %6710 = vmatpush1.bf16.msra.mxu0 %v6281
    %6711 = vmatprep.subr.bf16.mxu0 0
    %6712 = vmatpush1.bf16.msra.mxu0 %v6282
    %6713 = vmatprep.subr.bf16.mxu0 0
    %6714 = vmatpush1.bf16.msra.mxu0 %v6283
    %6715 = vmatprep.subr.bf16.mxu0 0
    %6716 = vmatpush1.bf16.msra.mxu0 %v6284
    %6717 = vmatprep.subr.bf16.mxu0 0
    %6718 = vmatpush1.bf16.msra.mxu0 %v6285
    %6719 = vmatprep.subr.bf16.mxu0 0
    %6720 = vmatpush1.bf16.msra.mxu0 %v6286
    %6721 = vmatprep.subr.bf16.mxu0 0
    %6722 = vmatpush1.bf16.msra.mxu0 %v6287
    %6723 = vmatprep.subr.bf16.mxu0 0
    %6724 = vmatpush1.bf16.msra.mxu0 %v6288
    %6725 = vmatprep.mubr.bf16.mxu0 %v5395
    %6726 = vmatmul.mubr.bf16.gmra.mrb[0].mxu0 %v5394
    %v6727 = vpop.f32.mrb[0].mxu0
    %v6728 = vadd.f32 %v6671, %v6727
    %v6729 = vpop.f32.mrb[0].mxu0
    %v6730 = vpop.f32.mrb[0].mxu0
    %v6731 = vadd.f32 %v6674, %v6730
    %v6732 = vpop.f32.mrb[0].mxu0
    %6733 = vmatprep.mubr.bf16.mxu0 %v5411
    %6734 = vmatmul.mubr.bf16.gmra.mrb[0].mxu0 %v5410
    %v6735 = vpop.f32.mrb[0].mxu0
    %v6736 = vadd.f32 %v6679, %v6735
    %v6737 = vpop.f32.mrb[0].mxu0
    %v6738 = vpop.f32.mrb[0].mxu0
    %v6739 = vadd.f32 %v6682, %v6738
    %v6740 = vpop.f32.mrb[0].mxu0
    %6741 = vmatprep.mubr.bf16.mxu0 %v5427
    %6742 = vmatmul.mubr.bf16.gmra.mrb[0].mxu0 %v5426
    %v6743 = vpop.f32.mrb[0].mxu0
    %v6744 = vadd.f32 %v6687, %v6743
    %v6745 = vpop.f32.mrb[0].mxu0
    %v6746 = vpop.f32.mrb[0].mxu0
    %v6747 = vadd.f32 %v6690, %v6746
    %v6748 = vpop.f32.mrb[0].mxu0
    %6749 = vdwg.mxu0
    %6750 = vmatprep.subr.bf16.mxu0 0
    %6751 = vmatpush1.bf16.msra.mxu0 %v6289
    %6752 = vmatprep.subr.bf16.mxu0 0
    %6753 = vmatpush1.bf16.msra.mxu0 %v6290
    %6754 = vmatprep.subr.bf16.mxu0 0
    %6755 = vmatpush1.bf16.msra.mxu0 %v6291
    %6756 = vmatprep.subr.bf16.mxu0 0
    %6757 = vmatpush1.bf16.msra.mxu0 %v6292
    %6758 = vmatprep.subr.bf16.mxu0 0
    %6759 = vmatpush1.bf16.msra.mxu0 %v6293
    %6760 = vmatprep.subr.bf16.mxu0 0
    %6761 = vmatpush1.bf16.msra.mxu0 %v6294
    %6762 = vmatprep.subr.bf16.mxu0 0
    %6763 = vmatpush1.bf16.msra.mxu0 %v6295
    %6764 = vmatprep.subr.bf16.mxu0 0
    %6765 = vmatpush1.bf16.msra.mxu0 %v6296
    %6766 = vmatprep.subr.bf16.mxu0 0
    %6767 = vmatpush1.bf16.msra.mxu0 %v6297
    %6768 = vmatprep.subr.bf16.mxu0 0
    %6769 = vmatpush1.bf16.msra.mxu0 %v6298
    %6770 = vmatprep.subr.bf16.mxu0 0
    %6771 = vmatpush1.bf16.msra.mxu0 %v6299
    %6772 = vmatprep.subr.bf16.mxu0 0
    %6773 = vmatpush1.bf16.msra.mxu0 %v6300
    %6774 = vmatprep.subr.bf16.mxu0 0
    %6775 = vmatpush1.bf16.msra.mxu0 %v6301
    %6776 = vmatprep.subr.bf16.mxu0 0
    %6777 = vmatpush1.bf16.msra.mxu0 %v6302
    %6778 = vmatprep.subr.bf16.mxu0 0
    %6779 = vmatpush1.bf16.msra.mxu0 %v6303
    %6780 = vmatprep.subr.bf16.mxu0 0
    %6781 = vmatpush1.bf16.msra.mxu0 %v6304
    %6782 = vmatprep.mubr.bf16.mxu0 %v5397
    %6783 = vmatmul.mubr.bf16.gmra.mrb[0].mxu0 %v5396
    %v6784 = vpop.f32.mrb[0].mxu0
    %v6785 = vadd.f32 %v6728, %v6784
    %v6786 = vpop.f32.mrb[0].mxu0
    %v6787 = vpop.f32.mrb[0].mxu0
    %v6788 = vadd.f32 %v6731, %v6787
    %v6789 = vpop.f32.mrb[0].mxu0
    %6790 = vmatprep.mubr.bf16.mxu0 %v5413
    %6791 = vmatmul.mubr.bf16.gmra.mrb[0].mxu0 %v5412
    %v6792 = vpop.f32.mrb[0].mxu0
    %v6793 = vadd.f32 %v6736, %v6792
    %v6794 = vpop.f32.mrb[0].mxu0
    %v6795 = vpop.f32.mrb[0].mxu0
    %v6796 = vadd.f32 %v6739, %v6795
    %v6797 = vpop.f32.mrb[0].mxu0
    %6798 = vmatprep.mubr.bf16.mxu0 %v5429
    %6799 = vmatmul.mubr.bf16.gmra.mrb[0].mxu0 %v5428
    %v6800 = vpop.f32.mrb[0].mxu0
    %v6801 = vadd.f32 %v6744, %v6800
    %v6802 = vpop.f32.mrb[0].mxu0
    %v6803 = vpop.f32.mrb[0].mxu0
    %v6804 = vadd.f32 %v6747, %v6803
    %v6805 = vpop.f32.mrb[0].mxu0
    %6806 = vdwg.mxu0
    %6807 = vmatprep.subr.bf16.mxu0 0
    %6808 = vmatpush1.bf16.msra.mxu0 %v6305
    %6809 = vmatprep.subr.bf16.mxu0 0
    %6810 = vmatpush1.bf16.msra.mxu0 %v6306
    %6811 = vmatprep.subr.bf16.mxu0 0
    %6812 = vmatpush1.bf16.msra.mxu0 %v6307
    %6813 = vmatprep.subr.bf16.mxu0 0
    %6814 = vmatpush1.bf16.msra.mxu0 %v6308
    %6815 = vmatprep.subr.bf16.mxu0 0
    %6816 = vmatpush1.bf16.msra.mxu0 %v6309
    %6817 = vmatprep.subr.bf16.mxu0 0
    %6818 = vmatpush1.bf16.msra.mxu0 %v6310
    %6819 = vmatprep.subr.bf16.mxu0 0
    %6820 = vmatpush1.bf16.msra.mxu0 %v6311
    %6821 = vmatprep.subr.bf16.mxu0 0
    %6822 = vmatpush1.bf16.msra.mxu0 %v6312
    %6823 = vmatprep.subr.bf16.mxu0 0
    %6824 = vmatpush1.bf16.msra.mxu0 %v6313
    %6825 = vmatprep.subr.bf16.mxu0 0
    %6826 = vmatpush1.bf16.msra.mxu0 %v6314
    %6827 = vmatprep.subr.bf16.mxu0 0
    %6828 = vmatpush1.bf16.msra.mxu0 %v6315
    %6829 = vmatprep.subr.bf16.mxu0 0
    %6830 = vmatpush1.bf16.msra.mxu0 %v6316
    %6831 = vmatprep.subr.bf16.mxu0 0
    %6832 = vmatpush1.bf16.msra.mxu0 %v6317
    %6833 = vmatprep.subr.bf16.mxu0 0
    %6834 = vmatpush1.bf16.msra.mxu0 %v6318
    %6835 = vmatprep.subr.bf16.mxu0 0
    %6836 = vmatpush1.bf16.msra.mxu0 %v6319
    %6837 = vmatprep.subr.bf16.mxu0 0
    %6838 = vmatpush1.bf16.msra.mxu0 %v6320
    %6839 = vmatprep.mubr.bf16.mxu0 %v5399
    %6840 = vmatmul.mubr.bf16.gmra.mrb[0].mxu0 %v5398
    %v6841 = vpop.f32.mrb[0].mxu0
    %v6842 = vadd.f32 %v6785, %v6841
    %v6843 = vpop.f32.mrb[0].mxu0
    %v6844 = vpop.f32.mrb[0].mxu0
    %v6845 = vadd.f32 %v6788, %v6844
    %v6846 = vpop.f32.mrb[0].mxu0
    %6847 = vmatprep.mubr.bf16.mxu0 %v5415
    %6848 = vmatmul.mubr.bf16.gmra.mrb[0].mxu0 %v5414
    %v6849 = vpop.f32.mrb[0].mxu0
    %v6850 = vadd.f32 %v6793, %v6849
    %v6851 = vpop.f32.mrb[0].mxu0
    %v6852 = vpop.f32.mrb[0].mxu0
    %v6853 = vadd.f32 %v6796, %v6852
    %v6854 = vpop.f32.mrb[0].mxu0
    %6855 = vmatprep.mubr.bf16.mxu0 %v5431
    %6856 = vmatmul.mubr.bf16.gmra.mrb[0].mxu0 %v5430
    %v6857 = vpop.f32.mrb[0].mxu0
    %v6858 = vadd.f32 %v6801, %v6857
    %v6859 = vpop.f32.mrb[0].mxu0
    %v6860 = vpop.f32.mrb[0].mxu0
    %v6861 = vadd.f32 %v6804, %v6860
    %v6862 = vpop.f32.mrb[0].mxu0
    %6863 = vdwg.mxu0
    %6864 = vmatprep.subr.bf16.mxu0 0
    %6865 = vmatpush1.bf16.msra.mxu0 %v6321
    %6866 = vmatprep.subr.bf16.mxu0 0
    %6867 = vmatpush1.bf16.msra.mxu0 %v6322
    %6868 = vmatprep.subr.bf16.mxu0 0
    %6869 = vmatpush1.bf16.msra.mxu0 %v6323
    %6870 = vmatprep.subr.bf16.mxu0 0
    %6871 = vmatpush1.bf16.msra.mxu0 %v6324
    %6872 = vmatprep.subr.bf16.mxu0 0
    %6873 = vmatpush1.bf16.msra.mxu0 %v6325
    %6874 = vmatprep.subr.bf16.mxu0 0
    %6875 = vmatpush1.bf16.msra.mxu0 %v6326
    %6876 = vmatprep.subr.bf16.mxu0 0
    %6877 = vmatpush1.bf16.msra.mxu0 %v6327
    %6878 = vmatprep.subr.bf16.mxu0 0
    %6879 = vmatpush1.bf16.msra.mxu0 %v6328
    %6880 = vmatprep.subr.bf16.mxu0 0
    %6881 = vmatpush1.bf16.msra.mxu0 %v6329
    %6882 = vmatprep.subr.bf16.mxu0 0
    %6883 = vmatpush1.bf16.msra.mxu0 %v6330
    %6884 = vmatprep.subr.bf16.mxu0 0
    %6885 = vmatpush1.bf16.msra.mxu0 %v6331
    %6886 = vmatprep.subr.bf16.mxu0 0
    %6887 = vmatpush1.bf16.msra.mxu0 %v6332
    %6888 = vmatprep.subr.bf16.mxu0 0
    %6889 = vmatpush1.bf16.msra.mxu0 %v6333
    %6890 = vmatprep.subr.bf16.mxu0 0
    %6891 = vmatpush1.bf16.msra.mxu0 %v6334
    %6892 = vmatprep.subr.bf16.mxu0 0
    %6893 = vmatpush1.bf16.msra.mxu0 %v6335
    %6894 = vmatprep.subr.bf16.mxu0 0
    %6895 = vmatpush1.bf16.msra.mxu0 %v6336
    %6896 = vmatprep.mubr.bf16.mxu0 %v5401
    %6897 = vmatmul.mubr.bf16.gmra.mrb[0].mxu0 %v5400
    %v6898 = vpop.f32.mrb[0].mxu0
    %v6899 = vadd.f32 %v6842, %v6898
    %v6900 = vpop.f32.mrb[0].mxu0
    %v6901 = vpop.f32.mrb[0].mxu0
    %v6902 = vadd.f32 %v6845, %v6901
    %v6903 = vpop.f32.mrb[0].mxu0
    %6904 = vmatprep.mubr.bf16.mxu0 %v5417
    %6905 = vmatmul.mubr.bf16.gmra.mrb[0].mxu0 %v5416
    %v6906 = vpop.f32.mrb[0].mxu0
    %v6907 = vadd.f32 %v6850, %v6906
    %v6908 = vpop.f32.mrb[0].mxu0
    %v6909 = vpop.f32.mrb[0].mxu0
    %v6910 = vadd.f32 %v6853, %v6909
    %v6911 = vpop.f32.mrb[0].mxu0
    %6912 = vmatprep.mubr.bf16.mxu0 %v5433
    %6913 = vmatmul.mubr.bf16.gmra.mrb[0].mxu0 %v5432
    %v6914 = vpop.f32.mrb[0].mxu0
    %v6915 = vadd.f32 %v6858, %v6914
    %v6916 = vpop.f32.mrb[0].mxu0
    %v6917 = vpop.f32.mrb[0].mxu0
    %v6918 = vadd.f32 %v6861, %v6917
    %v6919 = vpop.f32.mrb[0].mxu0
    %6920 = vdwg.mxu0
    %v6921 = vadd.f32 %v4492, %v6899
    %v6922 = vadd.f32 %v4493, %v6902
    %v6923 = vadd.f32 %v4494, %v6907
    %v6924 = vadd.f32 %v4495, %v6910
    %v6925 = vadd.f32 %v4496, %v6915
    %v6926 = vadd.f32 %v4497, %v6918
    %v6927 = vsel %vm90, %v6921, 0.0
    %6928 = vadd.xlane.f32.xlu0 %v6927
    %v6929 = vpop.xlane.xlu0 %6928
    %v6930 = vsel %vm90, %v6922, 0.0
    %6931 = vadd.xlane.f32.xlu0 %v6930
    %v6932 = vpop.xlane.xlu0 %6931
    %v6933 = vsel %vm90, %v6923, 0.0
    %6934 = vadd.xlane.f32.xlu0 %v6933
    %v6935 = vpop.xlane.xlu0 %6934
    %v6936 = vsel %vm90, %v6924, 0.0
    %6937 = vadd.xlane.f32.xlu0 %v6936
    %v6938 = vpop.xlane.xlu0 %6937
    %v6939 = vsel %vm90, %v6925, 0.0
    %6940 = vadd.xlane.f32.xlu0 %v6939
    %v6941 = vpop.xlane.xlu0 %6940
    %v6942 = vsel %vm90, %v6926, 0.0
    %6943 = vadd.xlane.f32.xlu0 %v6942
    %v6944 = vpop.xlane.xlu0 %6943
    %v6945 = vmul.f32 %v6929, %v4411
    %v6946 = vmul.f32 %v6932, %v4411
    %v6947 = vmul.f32 %v6935, %v4411
    %v6948 = vmul.f32 %v6938, %v4411
    %v6949 = vmul.f32 %v6941, %v4411
    %v6950 = vmul.f32 %v6944, %v4411
    %v6951 = vsub.f32 %v6921, %v6945
    %v6952 = vsub.f32 %v6922, %v6946
    %v6953 = vsub.f32 %v6923, %v6947
    %v6954 = vsub.f32 %v6924, %v6948
    %v6955 = vsub.f32 %v6925, %v6949
    %v6956 = vsub.f32 %v6926, %v6950
    %v6957 = vmul.f32 %v6951, %v6951
    %v6958 = vmul.f32 %v6952, %v6952
    %v6959 = vmul.f32 %v6953, %v6953
    %v6960 = vmul.f32 %v6954, %v6954
    %v6961 = vmul.f32 %v6955, %v6955
    %v6962 = vmul.f32 %v6956, %v6956
    %v6963 = vsel %vm90, %v6957, 0.0
    %6964 = vadd.xlane.f32.xlu0 %v6963
    %v6965 = vpop.xlane.xlu0 %6964
    %v6966 = vsel %vm90, %v6958, 0.0
    %6967 = vadd.xlane.f32.xlu0 %v6966
    %v6968 = vpop.xlane.xlu0 %6967
    %v6969 = vsel %vm90, %v6959, 0.0
    %6970 = vadd.xlane.f32.xlu0 %v6969
    %v6971 = vpop.xlane.xlu0 %6970
    %v6972 = vsel %vm90, %v6960, 0.0
    %6973 = vadd.xlane.f32.xlu0 %v6972
    %v6974 = vpop.xlane.xlu0 %6973
    %v6975 = vsel %vm90, %v6961, 0.0
    %6976 = vadd.xlane.f32.xlu0 %v6975
    %v6977 = vpop.xlane.xlu0 %6976
    %v6978 = vsel %vm90, %v6962, 0.0
    %6979 = vadd.xlane.f32.xlu0 %v6978
    %v6980 = vpop.xlane.xlu0 %6979
    %v6981 = vmul.f32 %v6965, %v4411
    %v6982 = vmul.f32 %v6968, %v4411
    %v6983 = vmul.f32 %v6971, %v4411
    %v6984 = vmul.f32 %v6974, %v4411
    %v6985 = vmul.f32 %v6977, %v4411
    %v6986 = vmul.f32 %v6980, %v4411
    %v6987 = vadd.f32 %v6981, 1e-05
    %v6988 = vadd.f32 %v6982, 1e-05
    %v6989 = vadd.f32 %v6983, 1e-05
    %v6990 = vadd.f32 %v6984, 1e-05
    %v6991 = vadd.f32 %v6985, 1e-05
    %v6992 = vadd.f32 %v6986, 1e-05
    %v6993 = vrsqrt.pop %v6987
    %v6994 = vrsqrt.pop %v6988
    %v6995 = vrsqrt.pop %v6989
    %v6996 = vrsqrt.pop %v6990
    %v6997 = vrsqrt.pop %v6991
    %v6998 = vrsqrt.pop %v6992
    %v6999 = vmul.f32 %v6951, %v6993
    %v7000 = vmul.f32 %v6952, %v6994
    %v7001 = vmul.f32 %v6953, %v6995
    %v7002 = vmul.f32 %v6954, %v6996
    %v7003 = vmul.f32 %v6955, %v6997
    %v7004 = vmul.f32 %v6956, %v6998
    %v7005 = vld [vmem:[%s11] sm:$0x1]
    %v7007 = vlaneseq
    %v7008 = vshrl.u32 %v7007, 7
    %v7009 = vsub.s32 0, %v7008
    %v7010 = vrot.slane %v7005, %v7009
    %v7012 = vmul.f32 %v6999, %v7010
    %v7013 = vmul.f32 %v7000, %v7010
    %v7014 = vmul.f32 %v7001, %v7010
    %v7015 = vmul.f32 %v7002, %v7010
    %v7016 = vmul.f32 %v7003, %v7010
    %v7017 = vmul.f32 %v7004, %v7010
    %v7018 = vld [vmem:[%s12] sm:$0x1]
    %v7020 = vlaneseq
    %v7021 = vshrl.u32 %v7020, 7
    %v7022 = vsub.s32 0, %v7021
    %v7023 = vrot.slane %v7018, %v7022
    %v7025 = vadd.f32 %v7012, %v7023
    %v7026 = vadd.f32 %v7013, %v7023
    %v7027 = vadd.f32 %v7014, %v7023
    %v7028 = vadd.f32 %v7015, %v7023
    %v7029 = vadd.f32 %v7016, %v7023
    %v7030 = vadd.f32 %v7017, %v7023
    %7032 = vrot.lane.b32.xlu0 %v7026, 32
    %v7033 = vpop.permute.xlu0 %7032
    %7036 = vrot.lane.b32.xlu0 %v7027, 64
    %v7037 = vpop.permute.xlu0 %7036
    %v7039 = vsel %vm90, %v7025, %v7033
    %vm7040 = vcmask 523264
    %v7041 = vsel %vm7040, %v7039, %v7037
    %vm7042 = vcmask 785408
    %7043 = vst.msk [vmem:[%s13] sm:$0xff] %vm7042, %v7041
    %7045 = vrot.lane.b32.xlu0 %v7029, 32
    %v7046 = vpop.permute.xlu0 %7045
    %7049 = vrot.lane.b32.xlu0 %v7030, 64
    %v7050 = vpop.permute.xlu0 %7049
    %v7052 = vsel %vm90, %v7028, %v7046
    %v7053 = vsel %vm7040, %v7052, %v7050
    %7054 = vst.msk [vmem:[%s14] sm:$0xff] %vm7042, %v7053
    // Predicated region
    $region62: #{_lambda_.4} parent=1 // pred_check
      _
    $region63: #{_lambda_.4} parent=1 // pred_check_branch
      %7056 = sbr.rel (0) target = $region65
    $region64: #{_lambda_.4} parent=1 // pred_region
      _
    $region65: #{_lambda_.4} parent=1 // pred_fallthru
      _
    // Predicated region
    $region66: #{_lambda_.4} parent=1 // pred_check
      _
    $region67: #{_lambda_.4} parent=1 // pred_check_branch
      %7058 = sbr.rel (0) target = $region69
    $region68: #{_lambda_.4} parent=1 // pred_region
      _
    $region69: #{_lambda_.4} parent=1 // pred_fallthru
      _
    // Predicated region
    $region70: #{_lambda_.4} parent=1 // pred_check
      _
    $region71: #{_lambda_.4} parent=1 // pred_check_branch
      %7060 = sbr.rel (0) target = $region73
    $region72: #{_lambda_.4} parent=1 // pred_region
      _
    $region73: #{_lambda_.4} parent=1 // pred_fallthru
      _
    // Predicated region
    $region74: #{_lambda_.4} parent=1 // pred_check
      _
    $region75: #{_lambda_.4} parent=1 // pred_check_branch
      %7062 = sbr.rel (0) target = $region77
    $region76: #{_lambda_.4} parent=1 // pred_region
      _
    $region77: #{_lambda_.4} parent=1 // pred_fallthru
      _
    %7063 = vsyncpa [#allocation3], 1
    %7064 = vsyncpa [#allocation5], 1

</llo_original>
